<compile_context>
chip_gen: v5e
topology: v5e:2x2
jax: 0.10.0
libtpu: 0.0.40
codegen_flags: <defaults>
</compile_context>

<pallas_src>
import functools

import jax
import jax.numpy as jnp
from jax.experimental import pallas as pl
from jax.experimental.pallas import tpu as pltpu


# ---------------------------------------------------------------------------
# Stage 1: self-attention + residual + LayerNorm1 (one batch element per step)
# ---------------------------------------------------------------------------
def attn_block_kernel(q_ref, k_ref, v_ref, wq_ref, wk_ref, wv_ref, wo_ref,
                      bo_ref, g1_ref, be1_ref, x_ref, *, heads, head_dim,
                      ln_eps):
    q = q_ref[0]                                   # (L, E) original query (residual)
    k = k_ref[0]
    v = v_ref[0]
    L, E = q.shape
    scale = 1.0 / (E ** 0.5)

    # Per-head projections via block-diagonal (E, E) weights -> one MXU matmul
    # per tensor, f32 accumulation.
    qp = jnp.dot(q, wq_ref[...], preferred_element_type=jnp.float32)
    kp = jnp.dot(k, wk_ref[...], preferred_element_type=jnp.float32)
    vp = jnp.dot(v, wv_ref[...], preferred_element_type=jnp.float32)

    # TODO(synk): optional attention `mask` (masked_fill of energy) is not
    # implemented; this kernel matches the mask=None call path.
    ctx_parts = []
    for h in range(heads):                         # static, unrolled head loop
        sl = slice(h * head_dim, (h + 1) * head_dim)
        qh = qp[:, sl]                             # (L, D)
        kh = kp[:, sl]
        vh = vp[:, sl]
        # energy_h = qh @ kh^T  (contract D; avoids an explicit transpose)
        e = jax.lax.dot_general(qh, kh, (((1,), (1,)), ((), ())),
                                preferred_element_type=jnp.float32) * scale
        # numerically-stable softmax over keys
        e = e - jnp.max(e, axis=-1, keepdims=True)
        p = jnp.exp(e)
        p = p / jnp.sum(p, axis=-1, keepdims=True)
        ctx_parts.append(jnp.dot(p, vh, preferred_element_type=jnp.float32))
    ctx = jnp.concatenate(ctx_parts, axis=-1)      # (L, E)

    attn_out = jnp.dot(ctx.astype(wo_ref.dtype), wo_ref[...],
                       preferred_element_type=jnp.float32) + bo_ref[...]

    # TODO(synk): nn.Dropout after fc_out is identity at inference; training-
    # mode masking (pltpu.prng_seed + pltpu.prng_random_bits) not implemented.

    y = attn_out + q.astype(jnp.float32)           # residual with the raw query
    mu = jnp.mean(y, axis=-1, keepdims=True)
    var = jnp.mean((y - mu) * (y - mu), axis=-1, keepdims=True)
    yn = (y - mu) * jax.lax.rsqrt(var + ln_eps)
    x_ref[0] = (yn * g1_ref[...] + be1_ref[...]).astype(x_ref.dtype)


# ---------------------------------------------------------------------------
# Stage 2: FFN (fc1 -> ReLU -> fc2) + residual + LayerNorm2, tiled over tokens
# ---------------------------------------------------------------------------
def ffn_block_kernel(x_ref, w1_ref, b1_ref, w2_ref, b2_ref, g2_ref, be2_ref,
                     o_ref, *, ln_eps):
    x = x_ref[...]                                 # (TM, E)
    h = jnp.dot(x, w1_ref[...], preferred_element_type=jnp.float32)
    h = jnp.maximum(h + b1_ref[...], 0.0)          # bias + ReLU in f32
    f = jnp.dot(h.astype(w2_ref.dtype), w2_ref[...],
                preferred_element_type=jnp.float32) + b2_ref[...]
    # TODO(synk): FFN dropout and the final block dropout are identity at
    # inference; training-mode masking is not implemented.
    y = f + x.astype(jnp.float32)                  # residual
    mu = jnp.mean(y, axis=-1, keepdims=True)
    var = jnp.mean((y - mu) * (y - mu), axis=-1, keepdims=True)
    yn = (y - mu) * jax.lax.rsqrt(var + ln_eps)
    o_ref[...] = (yn * g2_ref[...] + be2_ref[...]).astype(o_ref.dtype)


# ---------------------------------------------------------------------------
# VMEM-aware tile picking for the FFN stage
# ---------------------------------------------------------------------------
def _vmem_capacity_bytes():
    try:
        return int(pltpu.get_tpu_info().vmem_capacity_bytes)
    except Exception:
        return 64 << 20   # conservative default (v7x per-core VMEM)


def _ffn_vmem_bytes(tile_m, E, H, dt_bytes):
    weights = (E * H + H * E) * dt_bytes + (H + 3 * E) * 4   # resident w1/w2 + vecs
    acts = 2 * (2 * tile_m * E * dt_bytes)                   # x/out tiles, 2x-buffered
    inter = tile_m * H * 4 + 2 * tile_m * E * 4              # f32 h + residual/LN temps
    return weights + acts + inter


def _pick_tile_m(M, E, H, dt_bytes, vmem_budget, max_tile_m):
    for tm in (2048, 1024, 512, 256, 128, 64, 32, 16, 8):
        if tm <= max_tile_m and tm <= M and \
                _ffn_vmem_bytes(tm, E, H, dt_bytes) <= vmem_budget:
            return tm
    return M if M < 8 else 8


# ---------------------------------------------------------------------------
# Wrapper: full BertBlock forward (mask=None path, dropout = identity)
# ---------------------------------------------------------------------------
def bert_block(value, key, query, *, wq, wk, wv, wo, bo, g1, be1,
               w1, b1, w2, b2, g2, be2, heads, tile_m=None, ln_eps=1e-5):
    """value/key/query: (N, L, E).  All Linear weights stored as (in, out),
    i.e. the transpose of PyTorch's nn.Linear.weight."""
    N, L, E = query.shape
    D = E // heads
    assert D * heads == E, "embed_size must be divisible by heads"
    dt = query.dtype
    dt_bytes = jnp.dtype(dt).itemsize

    # Shared per-head projection -> block-diagonal (E, E) so the kernel does a
    # single full-width matmul per tensor.
    eye = jnp.eye(heads, dtype=dt)
    wq_bd = jnp.kron(eye, wq.astype(dt))
    wk_bd = jnp.kron(eye, wk.astype(dt))
    wv_bd = jnp.kron(eye, wv.astype(dt))

    bo2 = bo.astype(jnp.float32).reshape(1, E)
    g1_2 = g1.astype(jnp.float32).reshape(1, E)
    be1_2 = be1.astype(jnp.float32).reshape(1, E)
    g2_2 = g2.astype(jnp.float32).reshape(1, E)
    be2_2 = be2.astype(jnp.float32).reshape(1, E)
    H_ff = w1.shape[1]
    b1_2 = b1.astype(jnp.float32).reshape(1, H_ff)
    b2_2 = b2.astype(jnp.float32).reshape(1, E)

    # ----------------- stage 1: attention + LN1, grid over batch ------------
    attn_cost = pl.CostEstimate(
        flops=int(N * (8 * L * E * E + 4 * heads * L * L * D)),
        transcendentals=int(N * heads * L * L),
        bytes_accessed=int((4 * N * L * E + 4 * E * E) * dt_bytes),
    )
    x = pl.pallas_call(
        functools.partial(attn_block_kernel, heads=heads, head_dim=D,
                          ln_eps=ln_eps),
        out_shape=jax.ShapeDtypeStruct((N, L, E), dt),
        grid_spec=pltpu.PrefetchScalarGridSpec(
            num_scalar_prefetch=0,
            grid=(N,),
            in_specs=[
                pl.BlockSpec((1, L, E), lambda b: (b, 0, 0)),   # query
                pl.BlockSpec((1, L, E), lambda b: (b, 0, 0)),   # key
                pl.BlockSpec((1, L, E), lambda b: (b, 0, 0)),   # value
                pl.BlockSpec((E, E), lambda b: (0, 0)),          # wq block-diag
                pl.BlockSpec((E, E), lambda b: (0, 0)),          # wk block-diag
                pl.BlockSpec((E, E), lambda b: (0, 0)),          # wv block-diag
                pl.BlockSpec((E, E), lambda b: (0, 0)),          # wo
                pl.BlockSpec((1, E), lambda b: (0, 0)),          # bo
                pl.BlockSpec((1, E), lambda b: (0, 0)),          # gamma1
                pl.BlockSpec((1, E), lambda b: (0, 0)),          # beta1
            ],
            out_specs=pl.BlockSpec((1, L, E), lambda b: (b, 0, 0)),
        ),
        compiler_params=pltpu.CompilerParams(
            dimension_semantics=("parallel",)),
        cost_estimate=attn_cost,
    )(query, key, value, wq_bd, wk_bd, wv_bd, wo.astype(dt), bo2, g1_2, be1_2)

    # ----------------- stage 2: FFN + LN2, grid over token tiles ------------
    M = N * L
    x2d = x.reshape(M, E)

    vmem_cap = _vmem_capacity_bytes()
    vmem_budget = (3 * vmem_cap) // 4
    max_tile_m = 2048 if vmem_cap >= (100 << 20) else 512
    if tile_m is None:
        tile_m = _pick_tile_m(M, E, H_ff, dt_bytes, vmem_budget, max_tile_m)
    grid_m = pl.cdiv(M, tile_m)
    vmem_limit = int(min(max(_ffn_vmem_bytes(tile_m, E, H_ff, dt_bytes) + (8 << 20),
                             32 << 20), vmem_budget))

    ffn_cost = pl.CostEstimate(
        flops=int(4 * M * E * H_ff),
        transcendentals=0,
        bytes_accessed=int((2 * M * E + 2 * E * H_ff) * dt_bytes + (H_ff + 3 * E) * 4),
    )
    out2d = pl.pallas_call(
        functools.partial(ffn_block_kernel, ln_eps=ln_eps),
        out_shape=jax.ShapeDtypeStruct((M, E), dt),
        grid_spec=pltpu.PrefetchScalarGridSpec(
            num_scalar_prefetch=0,
            grid=(grid_m,),
            in_specs=[
                pl.BlockSpec((tile_m, E), lambda i: (i, 0)),     # x row tiles
                pl.BlockSpec((E, H_ff), lambda i: (0, 0)),       # w1 resident
                pl.BlockSpec((1, H_ff), lambda i: (0, 0)),       # b1
                pl.BlockSpec((H_ff, E), lambda i: (0, 0)),       # w2 resident
                pl.BlockSpec((1, E), lambda i: (0, 0)),          # b2
                pl.BlockSpec((1, E), lambda i: (0, 0)),          # gamma2
                pl.BlockSpec((1, E), lambda i: (0, 0)),          # beta2
            ],
            out_specs=pl.BlockSpec((tile_m, E), lambda i: (i, 0)),
        ),
        compiler_params=pltpu.CompilerParams(
            dimension_semantics=("parallel",),
            vmem_limit_bytes=vmem_limit,
        ),
        cost_estimate=ffn_cost,
    )(x2d, w1.astype(dt), b1_2, w2.astype(dt), b2_2, g2_2, be2_2)

    return out2d.reshape(N, L, E)


# ---------------------------------------------------------------------------
# Pure-JAX reference (mask=None, dropout=identity)
# ---------------------------------------------------------------------------
def bert_block_reference(value, key, query, *, wq, wk, wv, wo, bo, g1, be1,
                         w1, b1, w2, b2, g2, be2, heads, ln_eps=1e-5):
    HP = jax.lax.Precision.HIGHEST
    N, L, E = query.shape
    D = E // heads

    def proj(t, w):
        return jnp.einsum('nlhd,df->nlhf', t.reshape(N, L, heads, D), w,
                          precision=HP)

    def ln(t, g, b):
        mu = jnp.mean(t, -1, keepdims=True)
        var = jnp.mean((t - mu) ** 2, -1, keepdims=True)
        return (t - mu) * jax.lax.rsqrt(var + ln_eps) * g + b

    qp = proj(query, wq)
    kp = proj(key, wk)
    vp = proj(value, wv)
    energy = jnp.einsum('nqhd,nkhd->nhqk', qp, kp, precision=HP) / (E ** 0.5)
    attn = jax.nn.softmax(energy, axis=-1)
    ctx = jnp.einsum('nhqk,nkhd->nqhd', attn, vp,
                     precision=HP).reshape(N, L, E)
    attn_out = jnp.einsum('nle,ef->nlf', ctx, wo, precision=HP) + bo
    x = ln(attn_out + query, g1, be1)
    h = jnp.maximum(jnp.einsum('nle,eh->nlh', x, w1, precision=HP) + b1, 0.0)
    f = jnp.einsum('nlh,he->nle', h, w2, precision=HP) + b2
    return ln(f + x, g2, be2)


if __name__ == "__main__":
    # Small, lane-aligned shapes: N=2, L=128, E=128 (heads=8 -> head_dim=16),
    # FFN hidden=256.  All f32.
    N, L, E, HEADS, HID = 2, 128, 128, 8, 256
    D = E // HEADS

    key0 = jax.random.PRNGKey(0)
    ks = jax.random.split(key0, 17)

    def uniform(k, shape, fan_in):
        lim = 1.0 / (fan_in ** 0.5)
        return jax.random.uniform(k, shape, jnp.float32, -lim, lim)

    value = jax.random.normal(ks[0], (N, L, E), jnp.float32)
    key_t = jax.random.normal(ks[1], (N, L, E), jnp.float32)
    query = jax.random.normal(ks[2], (N, L, E), jnp.float32)

    # Linear weights stored as (in, out) == torch weight transposed.
    params = dict(
        wq=uniform(ks[3], (D, D), D),
        wk=uniform(ks[4], (D, D), D),
        wv=uniform(ks[5], (D, D), D),
        wo=uniform(ks[6], (E, E), E),
        bo=uniform(ks[7], (E,), E),
        g1=1.0 + 0.05 * jax.random.normal(ks[8], (E,), jnp.float32),
        be1=0.05 * jax.random.normal(ks[9], (E,), jnp.float32),
        w1=uniform(ks[10], (E, HID), E),
        b1=uniform(ks[11], (HID,), E),
        w2=uniform(ks[12], (HID, E), HID),
        b2=uniform(ks[13], (E,), HID),
        g2=1.0 + 0.05 * jax.random.normal(ks[14], (E,), jnp.float32),
        be2=0.05 * jax.random.normal(ks[15], (E,), jnp.float32),
        heads=HEADS,
    )

    out = bert_block(value, key_t, query, **params)
    jax.block_until_ready(out)

    ref = bert_block_reference(value, key_t, query, **params)

    assert out.shape == (N, L, E) and out.dtype == query.dtype
    assert jnp.allclose(out.astype(jnp.float32), ref.astype(jnp.float32),
                        atol=3e-2, rtol=3e-2)

    print("KERNEL_OK")
</pallas_src>

<mosaic_0001>
module attributes {stable_mosaic.version = 11 : i64} {
  func.func @attn_block_kernel(%arg0: i32, %arg1: memref<1x128x128xf32, #tpu.memory_space<vmem>>, %arg2: memref<1x128x128xf32, #tpu.memory_space<vmem>>, %arg3: memref<1x128x128xf32, #tpu.memory_space<vmem>>, %arg4: memref<128x128xf32, #tpu.memory_space<vmem>>, %arg5: memref<128x128xf32, #tpu.memory_space<vmem>>, %arg6: memref<128x128xf32, #tpu.memory_space<vmem>>, %arg7: memref<128x128xf32, #tpu.memory_space<vmem>>, %arg8: memref<1x128xf32, #tpu.memory_space<vmem>>, %arg9: memref<1x128xf32, #tpu.memory_space<vmem>>, %arg10: memref<1x128xf32, #tpu.memory_space<vmem>>, %arg11: memref<1x128x128xf32, #tpu.memory_space<vmem>>) attributes {dimension_semantics = [#tpu.dimension_semantics<parallel>], iteration_bounds = array<i64: 2>, scalar_prefetch = 0 : i64, scratch_operands = 0 : i64, tpu.core_type = #tpu.core_type<tc>, window_params = [{transform_indices = @transform_0, window_bounds = array<i64: 1, 128, 128>}, {transform_indices = @transform_1, window_bounds = array<i64: 1, 128, 128>}, {transform_indices = @transform_2, window_bounds = array<i64: 1, 128, 128>}, {pipeline_mode = #tpu.pipeline_mode<synchronous>, transform_indices = @transform_3, window_bounds = array<i64: 128, 128>}, {pipeline_mode = #tpu.pipeline_mode<synchronous>, transform_indices = @transform_4, window_bounds = array<i64: 128, 128>}, {pipeline_mode = #tpu.pipeline_mode<synchronous>, transform_indices = @transform_5, window_bounds = array<i64: 128, 128>}, {pipeline_mode = #tpu.pipeline_mode<synchronous>, transform_indices = @transform_6, window_bounds = array<i64: 128, 128>}, {pipeline_mode = #tpu.pipeline_mode<synchronous>, transform_indices = @transform_7, window_bounds = array<i64: 1, 128>}, {pipeline_mode = #tpu.pipeline_mode<synchronous>, transform_indices = @transform_8, window_bounds = array<i64: 1, 128>}, {pipeline_mode = #tpu.pipeline_mode<synchronous>, transform_indices = @transform_9, window_bounds = array<i64: 1, 128>}, {transform_indices = @transform_10, window_bounds = array<i64: 1, 128, 128>}]} {
    %c0 = arith.constant 0 : index
    %c0_0 = arith.constant 0 : index
    %c0_1 = arith.constant 0 : index
    %0 = vector.load %arg1[%c0, %c0_0, %c0_1] : memref<1x128x128xf32, #tpu.memory_space<vmem>>, vector<1x128x128xf32>
    %1 = vector.shape_cast %0 : vector<1x128x128xf32> to vector<128x128xf32>
    %c0_2 = arith.constant 0 : index
    %c0_3 = arith.constant 0 : index
    %c0_4 = arith.constant 0 : index
    %2 = vector.load %arg2[%c0_2, %c0_3, %c0_4] : memref<1x128x128xf32, #tpu.memory_space<vmem>>, vector<1x128x128xf32>
    %3 = vector.shape_cast %2 : vector<1x128x128xf32> to vector<128x128xf32>
    %c0_5 = arith.constant 0 : index
    %c0_6 = arith.constant 0 : index
    %c0_7 = arith.constant 0 : index
    %4 = vector.load %arg3[%c0_5, %c0_6, %c0_7] : memref<1x128x128xf32, #tpu.memory_space<vmem>>, vector<1x128x128xf32>
    %5 = vector.shape_cast %4 : vector<1x128x128xf32> to vector<128x128xf32>
    %c0_8 = arith.constant 0 : index
    %c0_9 = arith.constant 0 : index
    %6 = vector.load %arg4[%c0_8, %c0_9] : memref<128x128xf32, #tpu.memory_space<vmem>>, vector<128x128xf32>
    %cst = arith.constant dense<0.000000e+00> : vector<128x128xf32>
    %7 = tpu.matmul %1, %6, %cst {dimension_numbers = #tpu.dot_dimension_numbers<[1], [0], [0], [1], [0, 0, 1, 1], [], []>} : vector<128x128xf32>, vector<128x128xf32>, vector<128x128xf32> -> vector<128x128xf32>
    %c0_10 = arith.constant 0 : index
    %c0_11 = arith.constant 0 : index
    %8 = vector.load %arg5[%c0_10, %c0_11] : memref<128x128xf32, #tpu.memory_space<vmem>>, vector<128x128xf32>
    %cst_12 = arith.constant dense<0.000000e+00> : vector<128x128xf32>
    %9 = tpu.matmul %3, %8, %cst_12 {dimension_numbers = #tpu.dot_dimension_numbers<[1], [0], [0], [1], [0, 0, 1, 1], [], []>} : vector<128x128xf32>, vector<128x128xf32>, vector<128x128xf32> -> vector<128x128xf32>
    %c0_13 = arith.constant 0 : index
    %c0_14 = arith.constant 0 : index
    %10 = vector.load %arg6[%c0_13, %c0_14] : memref<128x128xf32, #tpu.memory_space<vmem>>, vector<128x128xf32>
    %cst_15 = arith.constant dense<0.000000e+00> : vector<128x128xf32>
    %11 = tpu.matmul %5, %10, %cst_15 {dimension_numbers = #tpu.dot_dimension_numbers<[1], [0], [0], [1], [0, 0, 1, 1], [], []>} : vector<128x128xf32>, vector<128x128xf32>, vector<128x128xf32> -> vector<128x128xf32>
    %12 = vector.extract_strided_slice %7 {offsets = [0, 0], sizes = [128, 16], strides = [1, 1]} : vector<128x128xf32> to vector<128x16xf32>
    %13 = vector.extract_strided_slice %9 {offsets = [0, 0], sizes = [128, 16], strides = [1, 1]} : vector<128x128xf32> to vector<128x16xf32>
    %14 = vector.extract_strided_slice %11 {offsets = [0, 0], sizes = [128, 16], strides = [1, 1]} : vector<128x128xf32> to vector<128x16xf32>
    %cst_16 = arith.constant dense<0.000000e+00> : vector<128x128xf32>
    %15 = tpu.matmul %12, %13, %cst_16 {dimension_numbers = #tpu.dot_dimension_numbers<[1], [1], [0], [0], [0, 0, 1, 0], [], []>} : vector<128x16xf32>, vector<128x16xf32>, vector<128x128xf32> -> vector<128x128xf32>
    %cst_17 = arith.constant 0.0883883461 : f32
    %16 = vector.broadcast %cst_17 : f32 to vector<128x128xf32>
    %17 = arith.mulf %15, %16 : vector<128x128xf32>
    %cst_18 = arith.constant dense<0xFF800000> : vector<128xf32>
    %18 = vector.multi_reduction <maximumf>, %17, %cst_18 [1] : vector<128x128xf32> to vector<128xf32>
    %19 = vector.shape_cast %18 : vector<128xf32> to vector<128x1xf32>
    %20 = vector.broadcast %19 : vector<128x1xf32> to vector<128x128xf32>
    %21 = arith.subf %17, %20 : vector<128x128xf32>
    %22 = math.exp %21 : vector<128x128xf32>
    %cst_19 = arith.constant dense<0.000000e+00> : vector<128xf32>
    %23 = vector.multi_reduction <add>, %22, %cst_19 [1] : vector<128x128xf32> to vector<128xf32>
    %24 = vector.shape_cast %23 : vector<128xf32> to vector<128x1xf32>
    %25 = vector.broadcast %24 : vector<128x1xf32> to vector<128x128xf32>
    %26 = arith.divf %22, %25 : vector<128x128xf32>
    %cst_20 = arith.constant dense<0.000000e+00> : vector<128x16xf32>
    %27 = tpu.matmul %26, %14, %cst_20 {dimension_numbers = #tpu.dot_dimension_numbers<[1], [0], [0], [1], [0, 0, 1, 1], [], []>} : vector<128x128xf32>, vector<128x16xf32>, vector<128x16xf32> -> vector<128x16xf32>
    %28 = vector.extract_strided_slice %7 {offsets = [0, 16], sizes = [128, 16], strides = [1, 1]} : vector<128x128xf32> to vector<128x16xf32>
    %29 = vector.extract_strided_slice %9 {offsets = [0, 16], sizes = [128, 16], strides = [1, 1]} : vector<128x128xf32> to vector<128x16xf32>
    %30 = vector.extract_strided_slice %11 {offsets = [0, 16], sizes = [128, 16], strides = [1, 1]} : vector<128x128xf32> to vector<128x16xf32>
    %cst_21 = arith.constant dense<0.000000e+00> : vector<128x128xf32>
    %31 = tpu.matmul %28, %29, %cst_21 {dimension_numbers = #tpu.dot_dimension_numbers<[1], [1], [0], [0], [0, 0, 1, 0], [], []>} : vector<128x16xf32>, vector<128x16xf32>, vector<128x128xf32> -> vector<128x128xf32>
    %cst_22 = arith.constant 0.0883883461 : f32
    %32 = vector.broadcast %cst_22 : f32 to vector<128x128xf32>
    %33 = arith.mulf %31, %32 : vector<128x128xf32>
    %cst_23 = arith.constant dense<0xFF800000> : vector<128xf32>
    %34 = vector.multi_reduction <maximumf>, %33, %cst_23 [1] : vector<128x128xf32> to vector<128xf32>
    %35 = vector.shape_cast %34 : vector<128xf32> to vector<128x1xf32>
    %36 = vector.broadcast %35 : vector<128x1xf32> to vector<128x128xf32>
    %37 = arith.subf %33, %36 : vector<128x128xf32>
    %38 = math.exp %37 : vector<128x128xf32>
    %cst_24 = arith.constant dense<0.000000e+00> : vector<128xf32>
    %39 = vector.multi_reduction <add>, %38, %cst_24 [1] : vector<128x128xf32> to vector<128xf32>
    %40 = vector.shape_cast %39 : vector<128xf32> to vector<128x1xf32>
    %41 = vector.broadcast %40 : vector<128x1xf32> to vector<128x128xf32>
    %42 = arith.divf %38, %41 : vector<128x128xf32>
    %cst_25 = arith.constant dense<0.000000e+00> : vector<128x16xf32>
    %43 = tpu.matmul %42, %30, %cst_25 {dimension_numbers = #tpu.dot_dimension_numbers<[1], [0], [0], [1], [0, 0, 1, 1], [], []>} : vector<128x128xf32>, vector<128x16xf32>, vector<128x16xf32> -> vector<128x16xf32>
    %44 = vector.extract_strided_slice %7 {offsets = [0, 32], sizes = [128, 16], strides = [1, 1]} : vector<128x128xf32> to vector<128x16xf32>
    %45 = vector.extract_strided_slice %9 {offsets = [0, 32], sizes = [128, 16], strides = [1, 1]} : vector<128x128xf32> to vector<128x16xf32>
    %46 = vector.extract_strided_slice %11 {offsets = [0, 32], sizes = [128, 16], strides = [1, 1]} : vector<128x128xf32> to vector<128x16xf32>
    %cst_26 = arith.constant dense<0.000000e+00> : vector<128x128xf32>
    %47 = tpu.matmul %44, %45, %cst_26 {dimension_numbers = #tpu.dot_dimension_numbers<[1], [1], [0], [0], [0, 0, 1, 0], [], []>} : vector<128x16xf32>, vector<128x16xf32>, vector<128x128xf32> -> vector<128x128xf32>
    %cst_27 = arith.constant 0.0883883461 : f32
    %48 = vector.broadcast %cst_27 : f32 to vector<128x128xf32>
    %49 = arith.mulf %47, %48 : vector<128x128xf32>
    %cst_28 = arith.constant dense<0xFF800000> : vector<128xf32>
    %50 = vector.multi_reduction <maximumf>, %49, %cst_28 [1] : vector<128x128xf32> to vector<128xf32>
    %51 = vector.shape_cast %50 : vector<128xf32> to vector<128x1xf32>
    %52 = vector.broadcast %51 : vector<128x1xf32> to vector<128x128xf32>
    %53 = arith.subf %49, %52 : vector<128x128xf32>
    %54 = math.exp %53 : vector<128x128xf32>
    %cst_29 = arith.constant dense<0.000000e+00> : vector<128xf32>
    %55 = vector.multi_reduction <add>, %54, %cst_29 [1] : vector<128x128xf32> to vector<128xf32>
    %56 = vector.shape_cast %55 : vector<128xf32> to vector<128x1xf32>
    %57 = vector.broadcast %56 : vector<128x1xf32> to vector<128x128xf32>
    %58 = arith.divf %54, %57 : vector<128x128xf32>
    %cst_30 = arith.constant dense<0.000000e+00> : vector<128x16xf32>
    %59 = tpu.matmul %58, %46, %cst_30 {dimension_numbers = #tpu.dot_dimension_numbers<[1], [0], [0], [1], [0, 0, 1, 1], [], []>} : vector<128x128xf32>, vector<128x16xf32>, vector<128x16xf32> -> vector<128x16xf32>
    %60 = vector.extract_strided_slice %7 {offsets = [0, 48], sizes = [128, 16], strides = [1, 1]} : vector<128x128xf32> to vector<128x16xf32>
    %61 = vector.extract_strided_slice %9 {offsets = [0, 48], sizes = [128, 16], strides = [1, 1]} : vector<128x128xf32> to vector<128x16xf32>
    %62 = vector.extract_strided_slice %11 {offsets = [0, 48], sizes = [128, 16], strides = [1, 1]} : vector<128x128xf32> to vector<128x16xf32>
    %cst_31 = arith.constant dense<0.000000e+00> : vector<128x128xf32>
    %63 = tpu.matmul %60, %61, %cst_31 {dimension_numbers = #tpu.dot_dimension_numbers<[1], [1], [0], [0], [0, 0, 1, 0], [], []>} : vector<128x16xf32>, vector<128x16xf32>, vector<128x128xf32> -> vector<128x128xf32>
    %cst_32 = arith.constant 0.0883883461 : f32
    %64 = vector.broadcast %cst_32 : f32 to vector<128x128xf32>
    %65 = arith.mulf %63, %64 : vector<128x128xf32>
    %cst_33 = arith.constant dense<0xFF800000> : vector<128xf32>
    %66 = vector.multi_reduction <maximumf>, %65, %cst_33 [1] : vector<128x128xf32> to vector<128xf32>
    %67 = vector.shape_cast %66 : vector<128xf32> to vector<128x1xf32>
    %68 = vector.broadcast %67 : vector<128x1xf32> to vector<128x128xf32>
    %69 = arith.subf %65, %68 : vector<128x128xf32>
    %70 = math.exp %69 : vector<128x128xf32>
    %cst_34 = arith.constant dense<0.000000e+00> : vector<128xf32>
    %71 = vector.multi_reduction <add>, %70, %cst_34 [1] : vector<128x128xf32> to vector<128xf32>
    %72 = vector.shape_cast %71 : vector<128xf32> to vector<128x1xf32>
    %73 = vector.broadcast %72 : vector<128x1xf32> to vector<128x128xf32>
    %74 = arith.divf %70, %73 : vector<128x128xf32>
    %cst_35 = arith.constant dense<0.000000e+00> : vector<128x16xf32>
    %75 = tpu.matmul %74, %62, %cst_35 {dimension_numbers = #tpu.dot_dimension_numbers<[1], [0], [0], [1], [0, 0, 1, 1], [], []>} : vector<128x128xf32>, vector<128x16xf32>, vector<128x16xf32> -> vector<128x16xf32>
    %76 = vector.extract_strided_slice %7 {offsets = [0, 64], sizes = [128, 16], strides = [1, 1]} : vector<128x128xf32> to vector<128x16xf32>
    %77 = vector.extract_strided_slice %9 {offsets = [0, 64], sizes = [128, 16], strides = [1, 1]} : vector<128x128xf32> to vector<128x16xf32>
    %78 = vector.extract_strided_slice %11 {offsets = [0, 64], sizes = [128, 16], strides = [1, 1]} : vector<128x128xf32> to vector<128x16xf32>
    %cst_36 = arith.constant dense<0.000000e+00> : vector<128x128xf32>
    %79 = tpu.matmul %76, %77, %cst_36 {dimension_numbers = #tpu.dot_dimension_numbers<[1], [1], [0], [0], [0, 0, 1, 0], [], []>} : vector<128x16xf32>, vector<128x16xf32>, vector<128x128xf32> -> vector<128x128xf32>
    %cst_37 = arith.constant 0.0883883461 : f32
    %80 = vector.broadcast %cst_37 : f32 to vector<128x128xf32>
    %81 = arith.mulf %79, %80 : vector<128x128xf32>
    %cst_38 = arith.constant dense<0xFF800000> : vector<128xf32>
    %82 = vector.multi_reduction <maximumf>, %81, %cst_38 [1] : vector<128x128xf32> to vector<128xf32>
    %83 = vector.shape_cast %82 : vector<128xf32> to vector<128x1xf32>
    %84 = vector.broadcast %83 : vector<128x1xf32> to vector<128x128xf32>
    %85 = arith.subf %81, %84 : vector<128x128xf32>
    %86 = math.exp %85 : vector<128x128xf32>
    %cst_39 = arith.constant dense<0.000000e+00> : vector<128xf32>
    %87 = vector.multi_reduction <add>, %86, %cst_39 [1] : vector<128x128xf32> to vector<128xf32>
    %88 = vector.shape_cast %87 : vector<128xf32> to vector<128x1xf32>
    %89 = vector.broadcast %88 : vector<128x1xf32> to vector<128x128xf32>
    %90 = arith.divf %86, %89 : vector<128x128xf32>
    %cst_40 = arith.constant dense<0.000000e+00> : vector<128x16xf32>
    %91 = tpu.matmul %90, %78, %cst_40 {dimension_numbers = #tpu.dot_dimension_numbers<[1], [0], [0], [1], [0, 0, 1, 1], [], []>} : vector<128x128xf32>, vector<128x16xf32>, vector<128x16xf32> -> vector<128x16xf32>
    %92 = vector.extract_strided_slice %7 {offsets = [0, 80], sizes = [128, 16], strides = [1, 1]} : vector<128x128xf32> to vector<128x16xf32>
    %93 = vector.extract_strided_slice %9 {offsets = [0, 80], sizes = [128, 16], strides = [1, 1]} : vector<128x128xf32> to vector<128x16xf32>
    %94 = vector.extract_strided_slice %11 {offsets = [0, 80], sizes = [128, 16], strides = [1, 1]} : vector<128x128xf32> to vector<128x16xf32>
    %cst_41 = arith.constant dense<0.000000e+00> : vector<128x128xf32>
    %95 = tpu.matmul %92, %93, %cst_41 {dimension_numbers = #tpu.dot_dimension_numbers<[1], [1], [0], [0], [0, 0, 1, 0], [], []>} : vector<128x16xf32>, vector<128x16xf32>, vector<128x128xf32> -> vector<128x128xf32>
    %cst_42 = arith.constant 0.0883883461 : f32
    %96 = vector.broadcast %cst_42 : f32 to vector<128x128xf32>
    %97 = arith.mulf %95, %96 : vector<128x128xf32>
    %cst_43 = arith.constant dense<0xFF800000> : vector<128xf32>
    %98 = vector.multi_reduction <maximumf>, %97, %cst_43 [1] : vector<128x128xf32> to vector<128xf32>
    %99 = vector.shape_cast %98 : vector<128xf32> to vector<128x1xf32>
    %100 = vector.broadcast %99 : vector<128x1xf32> to vector<128x128xf32>
    %101 = arith.subf %97, %100 : vector<128x128xf32>
    %102 = math.exp %101 : vector<128x128xf32>
    %cst_44 = arith.constant dense<0.000000e+00> : vector<128xf32>
    %103 = vector.multi_reduction <add>, %102, %cst_44 [1] : vector<128x128xf32> to vector<128xf32>
    %104 = vector.shape_cast %103 : vector<128xf32> to vector<128x1xf32>
    %105 = vector.broadcast %104 : vector<128x1xf32> to vector<128x128xf32>
    %106 = arith.divf %102, %105 : vector<128x128xf32>
    %cst_45 = arith.constant dense<0.000000e+00> : vector<128x16xf32>
    %107 = tpu.matmul %106, %94, %cst_45 {dimension_numbers = #tpu.dot_dimension_numbers<[1], [0], [0], [1], [0, 0, 1, 1], [], []>} : vector<128x128xf32>, vector<128x16xf32>, vector<128x16xf32> -> vector<128x16xf32>
    %108 = vector.extract_strided_slice %7 {offsets = [0, 96], sizes = [128, 16], strides = [1, 1]} : vector<128x128xf32> to vector<128x16xf32>
    %109 = vector.extract_strided_slice %9 {offsets = [0, 96], sizes = [128, 16], strides = [1, 1]} : vector<128x128xf32> to vector<128x16xf32>
    %110 = vector.extract_strided_slice %11 {offsets = [0, 96], sizes = [128, 16], strides = [1, 1]} : vector<128x128xf32> to vector<128x16xf32>
    %cst_46 = arith.constant dense<0.000000e+00> : vector<128x128xf32>
    %111 = tpu.matmul %108, %109, %cst_46 {dimension_numbers = #tpu.dot_dimension_numbers<[1], [1], [0], [0], [0, 0, 1, 0], [], []>} : vector<128x16xf32>, vector<128x16xf32>, vector<128x128xf32> -> vector<128x128xf32>
    %cst_47 = arith.constant 0.0883883461 : f32
    %112 = vector.broadcast %cst_47 : f32 to vector<128x128xf32>
    %113 = arith.mulf %111, %112 : vector<128x128xf32>
    %cst_48 = arith.constant dense<0xFF800000> : vector<128xf32>
    %114 = vector.multi_reduction <maximumf>, %113, %cst_48 [1] : vector<128x128xf32> to vector<128xf32>
    %115 = vector.shape_cast %114 : vector<128xf32> to vector<128x1xf32>
    %116 = vector.broadcast %115 : vector<128x1xf32> to vector<128x128xf32>
    %117 = arith.subf %113, %116 : vector<128x128xf32>
    %118 = math.exp %117 : vector<128x128xf32>
    %cst_49 = arith.constant dense<0.000000e+00> : vector<128xf32>
    %119 = vector.multi_reduction <add>, %118, %cst_49 [1] : vector<128x128xf32> to vector<128xf32>
    %120 = vector.shape_cast %119 : vector<128xf32> to vector<128x1xf32>
    %121 = vector.broadcast %120 : vector<128x1xf32> to vector<128x128xf32>
    %122 = arith.divf %118, %121 : vector<128x128xf32>
    %cst_50 = arith.constant dense<0.000000e+00> : vector<128x16xf32>
    %123 = tpu.matmul %122, %110, %cst_50 {dimension_numbers = #tpu.dot_dimension_numbers<[1], [0], [0], [1], [0, 0, 1, 1], [], []>} : vector<128x128xf32>, vector<128x16xf32>, vector<128x16xf32> -> vector<128x16xf32>
    %124 = vector.extract_strided_slice %7 {offsets = [0, 112], sizes = [128, 16], strides = [1, 1]} : vector<128x128xf32> to vector<128x16xf32>
    %125 = vector.extract_strided_slice %9 {offsets = [0, 112], sizes = [128, 16], strides = [1, 1]} : vector<128x128xf32> to vector<128x16xf32>
    %126 = vector.extract_strided_slice %11 {offsets = [0, 112], sizes = [128, 16], strides = [1, 1]} : vector<128x128xf32> to vector<128x16xf32>
    %cst_51 = arith.constant dense<0.000000e+00> : vector<128x128xf32>
    %127 = tpu.matmul %124, %125, %cst_51 {dimension_numbers = #tpu.dot_dimension_numbers<[1], [1], [0], [0], [0, 0, 1, 0], [], []>} : vector<128x16xf32>, vector<128x16xf32>, vector<128x128xf32> -> vector<128x128xf32>
    %cst_52 = arith.constant 0.0883883461 : f32
    %128 = vector.broadcast %cst_52 : f32 to vector<128x128xf32>
    %129 = arith.mulf %127, %128 : vector<128x128xf32>
    %cst_53 = arith.constant dense<0xFF800000> : vector<128xf32>
    %130 = vector.multi_reduction <maximumf>, %129, %cst_53 [1] : vector<128x128xf32> to vector<128xf32>
    %131 = vector.shape_cast %130 : vector<128xf32> to vector<128x1xf32>
    %132 = vector.broadcast %131 : vector<128x1xf32> to vector<128x128xf32>
    %133 = arith.subf %129, %132 : vector<128x128xf32>
    %134 = math.exp %133 : vector<128x128xf32>
    %cst_54 = arith.constant dense<0.000000e+00> : vector<128xf32>
    %135 = vector.multi_reduction <add>, %134, %cst_54 [1] : vector<128x128xf32> to vector<128xf32>
    %136 = vector.shape_cast %135 : vector<128xf32> to vector<128x1xf32>
    %137 = vector.broadcast %136 : vector<128x1xf32> to vector<128x128xf32>
    %138 = arith.divf %134, %137 : vector<128x128xf32>
    %cst_55 = arith.constant dense<0.000000e+00> : vector<128x16xf32>
    %139 = tpu.matmul %138, %126, %cst_55 {dimension_numbers = #tpu.dot_dimension_numbers<[1], [0], [0], [1], [0, 0, 1, 1], [], []>} : vector<128x128xf32>, vector<128x16xf32>, vector<128x16xf32> -> vector<128x16xf32>
    %140 = tpu.concatenate %27, %43, %59, %75, %91, %107, %123, %139 in 1 : vector<128x16xf32>, vector<128x16xf32>, vector<128x16xf32>, vector<128x16xf32>, vector<128x16xf32>, vector<128x16xf32>, vector<128x16xf32>, vector<128x16xf32> -> vector<128x128xf32>
    %c0_56 = arith.constant 0 : index
    %c0_57 = arith.constant 0 : index
    %141 = vector.load %arg7[%c0_56, %c0_57] : memref<128x128xf32, #tpu.memory_space<vmem>>, vector<128x128xf32>
    %cst_58 = arith.constant dense<0.000000e+00> : vector<128x128xf32>
    %142 = tpu.matmul %140, %141, %cst_58 {dimension_numbers = #tpu.dot_dimension_numbers<[1], [0], [0], [1], [0, 0, 1, 1], [], []>} : vector<128x128xf32>, vector<128x128xf32>, vector<128x128xf32> -> vector<128x128xf32>
    %c0_59 = arith.constant 0 : index
    %c0_60 = arith.constant 0 : index
    %143 = vector.load %arg8[%c0_59, %c0_60] : memref<1x128xf32, #tpu.memory_space<vmem>>, vector<1x128xf32>
    %144 = vector.broadcast %143 : vector<1x128xf32> to vector<128x128xf32>
    %145 = arith.addf %142, %144 : vector<128x128xf32>
    %146 = arith.addf %145, %1 : vector<128x128xf32>
    %cst_61 = arith.constant dense<0.000000e+00> : vector<128xf32>
    %147 = vector.multi_reduction <add>, %146, %cst_61 [1] : vector<128x128xf32> to vector<128xf32>
    %148 = vector.shape_cast %147 : vector<128xf32> to vector<128x1xf32>
    %cst_62 = arith.constant 1.280000e+02 : f32
    %149 = vector.broadcast %cst_62 : f32 to vector<128x1xf32>
    %150 = arith.divf %148, %149 : vector<128x1xf32>
    %151 = vector.broadcast %150 : vector<128x1xf32> to vector<128x128xf32>
    %152 = arith.subf %146, %151 : vector<128x128xf32>
    %153 = vector.broadcast %150 : vector<128x1xf32> to vector<128x128xf32>
    %154 = arith.subf %146, %153 : vector<128x128xf32>
    %155 = arith.mulf %152, %154 : vector<128x128xf32>
    %cst_63 = arith.constant dense<0.000000e+00> : vector<128xf32>
    %156 = vector.multi_reduction <add>, %155, %cst_63 [1] : vector<128x128xf32> to vector<128xf32>
    %157 = vector.shape_cast %156 : vector<128xf32> to vector<128x1xf32>
    %cst_64 = arith.constant 1.280000e+02 : f32
    %158 = vector.broadcast %cst_64 : f32 to vector<128x1xf32>
    %159 = arith.divf %157, %158 : vector<128x1xf32>
    %160 = vector.broadcast %150 : vector<128x1xf32> to vector<128x128xf32>
    %161 = arith.subf %146, %160 : vector<128x128xf32>
    %cst_65 = arith.constant 9.99999974E-6 : f32
    %162 = vector.broadcast %cst_65 : f32 to vector<128x1xf32>
    %163 = arith.addf %159, %162 : vector<128x1xf32>
    %164 = math.rsqrt %163 : vector<128x1xf32>
    %165 = vector.broadcast %164 : vector<128x1xf32> to vector<128x128xf32>
    %166 = arith.mulf %161, %165 : vector<128x128xf32>
    %c0_66 = arith.constant 0 : index
    %c0_67 = arith.constant 0 : index
    %167 = vector.load %arg9[%c0_66, %c0_67] : memref<1x128xf32, #tpu.memory_space<vmem>>, vector<1x128xf32>
    %168 = vector.broadcast %167 : vector<1x128xf32> to vector<128x128xf32>
    %169 = arith.mulf %166, %168 : vector<128x128xf32>
    %c0_68 = arith.constant 0 : index
    %c0_69 = arith.constant 0 : index
    %170 = vector.load %arg10[%c0_68, %c0_69] : memref<1x128xf32, #tpu.memory_space<vmem>>, vector<1x128xf32>
    %171 = vector.broadcast %170 : vector<1x128xf32> to vector<128x128xf32>
    %172 = arith.addf %169, %171 : vector<128x128xf32>
    %c0_70 = arith.constant 0 : index
    %c0_71 = arith.constant 0 : index
    %c0_72 = arith.constant 0 : index
    %173 = vector.load %arg11[%c0_70, %c0_71, %c0_72] : memref<1x128x128xf32, #tpu.memory_space<vmem>>, vector<1x128x128xf32>
    %174 = vector.shape_cast %173 : vector<1x128x128xf32> to vector<128x128xf32>
    %175 = vector.shape_cast %172 : vector<128x128xf32> to vector<1x128x128xf32>
    tpu.vector_store %arg11[%c0_70, %c0_71, %c0_72], %175 {strides = array<i32>} : memref<1x128x128xf32, #tpu.memory_space<vmem>>, vector<1x128x128xf32>,
    return
  }
  func.func @transform_0(%arg0: i32) -> (i32, i32, i32) {
    %c0_i32 = arith.constant 0 : i32
    %c0_i32_0 = arith.constant 0 : i32
    %c0_i32_1 = arith.constant 0 : i32
    return %arg0, %c0_i32, %c0_i32_0 : i32, i32, i32
  }
  func.func @transform_1(%arg0: i32) -> (i32, i32, i32) {
    %c0_i32 = arith.constant 0 : i32
    %c0_i32_0 = arith.constant 0 : i32
    %c0_i32_1 = arith.constant 0 : i32
    return %arg0, %c0_i32, %c0_i32_0 : i32, i32, i32
  }
  func.func @transform_2(%arg0: i32) -> (i32, i32, i32) {
    %c0_i32 = arith.constant 0 : i32
    %c0_i32_0 = arith.constant 0 : i32
    %c0_i32_1 = arith.constant 0 : i32
    return %arg0, %c0_i32, %c0_i32_0 : i32, i32, i32
  }
  func.func @transform_3(%arg0: i32) -> (i32, i32) {
    %c0_i32 = arith.constant 0 : i32
    %c0_i32_0 = arith.constant 0 : i32
    %c0_i32_1 = arith.constant 0 : i32
    return %c0_i32, %c0_i32_0 : i32, i32
  }
  func.func @transform_4(%arg0: i32) -> (i32, i32) {
    %c0_i32 = arith.constant 0 : i32
    %c0_i32_0 = arith.constant 0 : i32
    %c0_i32_1 = arith.constant 0 : i32
    return %c0_i32, %c0_i32_0 : i32, i32
  }
  func.func @transform_5(%arg0: i32) -> (i32, i32) {
    %c0_i32 = arith.constant 0 : i32
    %c0_i32_0 = arith.constant 0 : i32
    %c0_i32_1 = arith.constant 0 : i32
    return %c0_i32, %c0_i32_0 : i32, i32
  }
  func.func @transform_6(%arg0: i32) -> (i32, i32) {
    %c0_i32 = arith.constant 0 : i32
    %c0_i32_0 = arith.constant 0 : i32
    %c0_i32_1 = arith.constant 0 : i32
    return %c0_i32, %c0_i32_0 : i32, i32
  }
  func.func @transform_7(%arg0: i32) -> (i32, i32) {
    %c0_i32 = arith.constant 0 : i32
    %c0_i32_0 = arith.constant 0 : i32
    %c0_i32_1 = arith.constant 0 : i32
    return %c0_i32, %c0_i32_0 : i32, i32
  }
  func.func @transform_8(%arg0: i32) -> (i32, i32) {
    %c0_i32 = arith.constant 0 : i32
    %c0_i32_0 = arith.constant 0 : i32
    %c0_i32_1 = arith.constant 0 : i32
    return %c0_i32, %c0_i32_0 : i32, i32
  }
  func.func @transform_9(%arg0: i32) -> (i32, i32) {
    %c0_i32 = arith.constant 0 : i32
    %c0_i32_0 = arith.constant 0 : i32
    %c0_i32_1 = arith.constant 0 : i32
    return %c0_i32, %c0_i32_0 : i32, i32
  }
  func.func @transform_10(%arg0: i32) -> (i32, i32, i32) {
    %c0_i32 = arith.constant 0 : i32
    %c0_i32_0 = arith.constant 0 : i32
    %c0_i32_1 = arith.constant 0 : i32
    return %arg0, %c0_i32, %c0_i32_0 : i32, i32, i32
  }
}

</mosaic_0001>

<llo_original>
// kernel: tpu_custom_call.1
$region0: #{tpu_custom_call.1}
  #allocation0 [shape = 'u32[]', space=smem, size = 0x4, offset = 0x4, fixed_abs, tag = 'smem constant byte address 0x4 - core index']
  #allocation1 [shape = 'u32[72,128]{1,0:T(1,128)}', space=vmem, size = 0x9000, scoped, tag = 'internal scratch']
  %s0 = inlined_call_operand.hbm [shape: f32[2,128,128], index: 0, kind: input, shape index: {}]
  %s1 = inlined_call_operand.hbm [shape: f32[2,128,128], index: 1, kind: input, shape index: {}]
  %s2 = inlined_call_operand.hbm [shape: f32[2,128,128], index: 2, kind: input, shape index: {}]
  %s3 = inlined_call_operand.hbm [shape: f32[128,128], index: 3, kind: input, shape index: {}]
  %s4 = inlined_call_operand.hbm [shape: f32[128,128], index: 4, kind: input, shape index: {}]
  %s5 = inlined_call_operand.hbm [shape: f32[128,128], index: 5, kind: input, shape index: {}]
  %s6 = inlined_call_operand.hbm [shape: f32[128,128], index: 6, kind: input, shape index: {}]
  %s7 = inlined_call_operand.vmem [shape: f32[1,128], index: 7, kind: input, shape index: {}]
  %s8 = inlined_call_operand.vmem [shape: f32[1,128], index: 8, kind: input, shape index: {}]
  %s9 = inlined_call_operand.vmem [shape: f32[1,128], index: 9, kind: input, shape index: {}]
  %s10 = inlined_call_operand.hbm [shape: f32[2,128,128], index: 10, kind: output, shape index: {}]
  %s11 = sld [smem:[#allocation0]]
  $region101: #{tpu_custom_call.1} parent=0
    _
  %s13 = ssub.s32 1, %s11
  %s14 = scalar_select 0, %s13, %s11
  $region1: #{tpu_custom_call.1} parent=0
    #allocation2 [shape = 'u8[131072]{0}', space=vmem, size = 0x20000, scoped, tag = 'input window, operand 0']
    #allocation3 [shape = 's32[2]{0}', space=sflag, size = 0x8, scoped, tag = 'scoped memory for tpu_custom_call.1']
    #allocation4 [shape = 's32[2]{0}', space=sflag, size = 0x8, scoped, tag = 'scoped memory for tpu_custom_call.1']
    #allocation5 [shape = 'u8[131072]{0}', space=vmem, size = 0x20000, scoped, tag = 'input window, operand 1']
    #allocation6 [shape = 's32[2]{0}', space=sflag, size = 0x8, scoped, tag = 'scoped memory for tpu_custom_call.1']
    #allocation7 [shape = 'u8[131072]{0}', space=vmem, size = 0x20000, scoped, tag = 'input window, operand 2']
    #allocation8 [shape = 'u8[65536]{0}', space=vmem, size = 0x10000, scoped, tag = 'input window, operand 3, single buffered']
    #allocation9 [shape = 's32[1]{0}', space=sflag, size = 0x4, scoped, tag = 'scoped memory for tpu_custom_call.1']
    #allocation10 [shape = 'u8[65536]{0}', space=vmem, size = 0x10000, scoped, tag = 'input window, operand 4, single buffered']
    #allocation11 [shape = 'u8[65536]{0}', space=vmem, size = 0x10000, scoped, tag = 'input window, operand 5, single buffered']
    #allocation12 [shape = 's32[1]{0}', space=sflag, size = 0x4, scoped, tag = 'scoped memory for tpu_custom_call.1']
    #allocation13 [shape = 'u8[65536]{0}', space=vmem, size = 0x10000, scoped, tag = 'input window, operand 6, single buffered']
    #allocation14 [shape = 'u8[131072]{0}', space=vmem, size = 0x20000, scoped, tag = 'output window, operand 0']
    %15 = vsyncpa [#allocation3], 0
    %s16 = scalar_lea.sflag [#allocation3], 1
    %17 = vsyncpa %s16, 0
    %18 = vsyncpa [#allocation6], 0
    %s19 = scalar_lea.sflag [#allocation6], 1
    %20 = vsyncpa %s19, 0
    %21 = vsyncpa [#allocation9], 0
    %22 = vsyncpa [#allocation12], 0
    %23 = vsyncpa [#allocation4], 0
    %s24 = scalar_lea.sflag [#allocation4], 1
    %25 = vsyncpa %s24, 0
    loop: start=0, step=1, limit=4
    $region2: #{tpu_custom_call.1} parent=1 // loop_pre_header
      _
    $region3: #{tpu_custom_call.1} parent=1 // loop_header
      %s27 = sphi 0, %s31
      %p28 = scmp.ge.s32.totalorder %s27, 4
      %s37 = sphi 0, %s39
      %s40 = sphi 0, %s37
      %s41 = sphi 0, %s40
      %s57 = sphi 0, %s41
      %s63 = sphi 0, %s65
      %s66 = sphi 0, %s63
      %s67 = sphi 0, %s66
      %s83 = sphi 0, %s67
      %s89 = sphi 0, %s91
      %s92 = sphi 0, %s89
      %s93 = sphi 0, %s92
      %s109 = sphi 0, %s93
      %s113 = sphi 0, %s113
      %s115 = sphi 0, %s113
      %s116 = sphi 0, %s115
      %s130 = sphi 0, %s116
      %s134 = sphi 0, %s134
      %s136 = sphi 0, %s134
      %s137 = sphi 0, %s136
      %s151 = sphi 0, %s137
      %s155 = sphi 0, %s155
      %s157 = sphi 0, %s155
      %s158 = sphi 0, %s157
      %s172 = sphi 0, %s158
      %s176 = sphi 0, %s176
      %s178 = sphi 0, %s176
      %s179 = sphi 0, %s178
      %s193 = sphi 0, %s179
      %s197 = sphi 0, %s197
      %s199 = sphi 0, %s197
      %s200 = sphi 0, %s199
      %s214 = sphi 0, %s200
      %s218 = sphi 0, %s218
      %s220 = sphi 0, %s218
      %s221 = sphi 0, %s220
      %s235 = sphi 0, %s221
      %s239 = sphi 0, %s239
      %s241 = sphi 0, %s239
      %s242 = sphi 0, %s241
      %s256 = sphi 0, %s242
      %s262 = sphi 0, %s264
      %s265 = sphi 0, %s262
      %s266 = sphi 0, %s265
      %s282 = sphi 0, %s266
    $region4: #{tpu_custom_call.1} parent=1 // loop_header_branch
      %30 = sbr.rel (%p28) target = $region8
    $region5: #{tpu_custom_call.1} parent=1 // loop_body
      %s32 = ssub.s32 %s27, 1
      %s33 = ssub.s32 %s27, 2
      %s34 = sadd.s32 %s27, 1
      %s35 = ssub.s32 %s27, %s34
      %p36 = scmp.eq.s32.totalorder %s35, 0
      %s38 = sadd.s32 %s37, 1
      %s39 = scalar_select %p36, %s37, %s38
      %p42 = pneg %p36
      %p43 = scmp.eq.s32.totalorder %s27, 1
      %p44 = por %p42, %p43
      %p45 = scmp.ne.s32.totalorder %s37, %s40
      %p46 = scmp.eq.s32.totalorder %s27, 0
      %p47 = por %p45, %p46
      %p48 = scmp.ne.s32.totalorder %s37, %s40
      %p49 = scmp.eq.s32.totalorder %s32, 1
      %p50 = por %p48, %p49
      %p51 = scmp.ne.s32.totalorder %s40, %s41
      %p52 = scmp.eq.s32.totalorder %s32, 0
      %p53 = por %p51, %p52
      %p54 = scmp.ne.s32.totalorder %s40, %s41
      %p55 = scmp.eq.s32.totalorder %s33, 1
      %p56 = por %p54, %p55
      %p58 = scmp.ne.s32.totalorder %s41, %s57
      %p59 = scmp.eq.s32.totalorder %s33, 0
      %p60 = por %p58, %p59
      %s61 = ssub.s32 %s27, %s34
      %p62 = scmp.eq.s32.totalorder %s61, 0
      %s64 = sadd.s32 %s63, 1
      %s65 = scalar_select %p62, %s63, %s64
      %p68 = pneg %p62
      %p69 = scmp.eq.s32.totalorder %s27, 1
      %p70 = por %p68, %p69
      %p71 = scmp.ne.s32.totalorder %s63, %s66
      %p72 = scmp.eq.s32.totalorder %s27, 0
      %p73 = por %p71, %p72
      %p74 = scmp.ne.s32.totalorder %s63, %s66
      %p75 = scmp.eq.s32.totalorder %s32, 1
      %p76 = por %p74, %p75
      %p77 = scmp.ne.s32.totalorder %s66, %s67
      %p78 = scmp.eq.s32.totalorder %s32, 0
      %p79 = por %p77, %p78
      %p80 = scmp.ne.s32.totalorder %s66, %s67
      %p81 = scmp.eq.s32.totalorder %s33, 1
      %p82 = por %p80, %p81
      %p84 = scmp.ne.s32.totalorder %s67, %s83
      %p85 = scmp.eq.s32.totalorder %s33, 0
      %p86 = por %p84, %p85
      %s87 = ssub.s32 %s27, %s34
      %p88 = scmp.eq.s32.totalorder %s87, 0
      %s90 = sadd.s32 %s89, 1
      %s91 = scalar_select %p88, %s89, %s90
      %p94 = pneg %p88
      %p95 = scmp.eq.s32.totalorder %s27, 1
      %p96 = por %p94, %p95
      %p97 = scmp.ne.s32.totalorder %s89, %s92
      %p98 = scmp.eq.s32.totalorder %s27, 0
      %p99 = por %p97, %p98
      %p100 = scmp.ne.s32.totalorder %s89, %s92
      %p101 = scmp.eq.s32.totalorder %s32, 1
      %p102 = por %p100, %p101
      %p103 = scmp.ne.s32.totalorder %s92, %s93
      %p104 = scmp.eq.s32.totalorder %s32, 0
      %p105 = por %p103, %p104
      %p106 = scmp.ne.s32.totalorder %s92, %s93
      %p107 = scmp.eq.s32.totalorder %s33, 1
      %p108 = por %p106, %p107
      %p110 = scmp.ne.s32.totalorder %s93, %s109
      %p111 = scmp.eq.s32.totalorder %s33, 0
      %p112 = por %p110, %p111
      %s114 = sadd.s32 %s113, 1
      %p117 = scmp.eq.s32.totalorder %s27, 1
      %p118 = scmp.ne.s32.totalorder %s113, %s115
      %p119 = scmp.eq.s32.totalorder %s27, 0
      %p120 = por %p118, %p119
      %p121 = scmp.ne.s32.totalorder %s113, %s115
      %p122 = scmp.eq.s32.totalorder %s32, 1
      %p123 = por %p121, %p122
      %p124 = scmp.ne.s32.totalorder %s115, %s116
      %p125 = scmp.eq.s32.totalorder %s32, 0
      %p126 = por %p124, %p125
      %p127 = scmp.ne.s32.totalorder %s115, %s116
      %p128 = scmp.eq.s32.totalorder %s33, 1
      %p129 = por %p127, %p128
      %p131 = scmp.ne.s32.totalorder %s116, %s130
      %p132 = scmp.eq.s32.totalorder %s33, 0
      %p133 = por %p131, %p132
      %s135 = sadd.s32 %s134, 1
      %p138 = scmp.eq.s32.totalorder %s27, 1
      %p139 = scmp.ne.s32.totalorder %s134, %s136
      %p140 = scmp.eq.s32.totalorder %s27, 0
      %p141 = por %p139, %p140
      %p142 = scmp.ne.s32.totalorder %s134, %s136
      %p143 = scmp.eq.s32.totalorder %s32, 1
      %p144 = por %p142, %p143
      %p145 = scmp.ne.s32.totalorder %s136, %s137
      %p146 = scmp.eq.s32.totalorder %s32, 0
      %p147 = por %p145, %p146
      %p148 = scmp.ne.s32.totalorder %s136, %s137
      %p149 = scmp.eq.s32.totalorder %s33, 1
      %p150 = por %p148, %p149
      %p152 = scmp.ne.s32.totalorder %s137, %s151
      %p153 = scmp.eq.s32.totalorder %s33, 0
      %p154 = por %p152, %p153
      %s156 = sadd.s32 %s155, 1
      %p159 = scmp.eq.s32.totalorder %s27, 1
      %p160 = scmp.ne.s32.totalorder %s155, %s157
      %p161 = scmp.eq.s32.totalorder %s27, 0
      %p162 = por %p160, %p161
      %p163 = scmp.ne.s32.totalorder %s155, %s157
      %p164 = scmp.eq.s32.totalorder %s32, 1
      %p165 = por %p163, %p164
      %p166 = scmp.ne.s32.totalorder %s157, %s158
      %p167 = scmp.eq.s32.totalorder %s32, 0
      %p168 = por %p166, %p167
      %p169 = scmp.ne.s32.totalorder %s157, %s158
      %p170 = scmp.eq.s32.totalorder %s33, 1
      %p171 = por %p169, %p170
      %p173 = scmp.ne.s32.totalorder %s158, %s172
      %p174 = scmp.eq.s32.totalorder %s33, 0
      %p175 = por %p173, %p174
      %s177 = sadd.s32 %s176, 1
      %p180 = scmp.eq.s32.totalorder %s27, 1
      %p181 = scmp.ne.s32.totalorder %s176, %s178
      %p182 = scmp.eq.s32.totalorder %s27, 0
      %p183 = por %p181, %p182
      %p184 = scmp.ne.s32.totalorder %s176, %s178
      %p185 = scmp.eq.s32.totalorder %s32, 1
      %p186 = por %p184, %p185
      %p187 = scmp.ne.s32.totalorder %s178, %s179
      %p188 = scmp.eq.s32.totalorder %s32, 0
      %p189 = por %p187, %p188
      %p190 = scmp.ne.s32.totalorder %s178, %s179
      %p191 = scmp.eq.s32.totalorder %s33, 1
      %p192 = por %p190, %p191
      %p194 = scmp.ne.s32.totalorder %s179, %s193
      %p195 = scmp.eq.s32.totalorder %s33, 0
      %p196 = por %p194, %p195
      %s198 = sadd.s32 %s197, 1
      %p201 = scmp.eq.s32.totalorder %s27, 1
      %p202 = scmp.ne.s32.totalorder %s197, %s199
      %p203 = scmp.eq.s32.totalorder %s27, 0
      %p204 = por %p202, %p203
      %p205 = scmp.ne.s32.totalorder %s197, %s199
      %p206 = scmp.eq.s32.totalorder %s32, 1
      %p207 = por %p205, %p206
      %p208 = scmp.ne.s32.totalorder %s199, %s200
      %p209 = scmp.eq.s32.totalorder %s32, 0
      %p210 = por %p208, %p209
      %p211 = scmp.ne.s32.totalorder %s199, %s200
      %p212 = scmp.eq.s32.totalorder %s33, 1
      %p213 = por %p211, %p212
      %p215 = scmp.ne.s32.totalorder %s200, %s214
      %p216 = scmp.eq.s32.totalorder %s33, 0
      %p217 = por %p215, %p216
      %s219 = sadd.s32 %s218, 1
      %p222 = scmp.eq.s32.totalorder %s27, 1
      %p223 = scmp.ne.s32.totalorder %s218, %s220
      %p224 = scmp.eq.s32.totalorder %s27, 0
      %p225 = por %p223, %p224
      %p226 = scmp.ne.s32.totalorder %s218, %s220
      %p227 = scmp.eq.s32.totalorder %s32, 1
      %p228 = por %p226, %p227
      %p229 = scmp.ne.s32.totalorder %s220, %s221
      %p230 = scmp.eq.s32.totalorder %s32, 0
      %p231 = por %p229, %p230
      %p232 = scmp.ne.s32.totalorder %s220, %s221
      %p233 = scmp.eq.s32.totalorder %s33, 1
      %p234 = por %p232, %p233
      %p236 = scmp.ne.s32.totalorder %s221, %s235
      %p237 = scmp.eq.s32.totalorder %s33, 0
      %p238 = por %p236, %p237
      %s240 = sadd.s32 %s239, 1
      %p243 = scmp.eq.s32.totalorder %s27, 1
      %p244 = scmp.ne.s32.totalorder %s239, %s241
      %p245 = scmp.eq.s32.totalorder %s27, 0
      %p246 = por %p244, %p245
      %p247 = scmp.ne.s32.totalorder %s239, %s241
      %p248 = scmp.eq.s32.totalorder %s32, 1
      %p249 = por %p247, %p248
      %p250 = scmp.ne.s32.totalorder %s241, %s242
      %p251 = scmp.eq.s32.totalorder %s32, 0
      %p252 = por %p250, %p251
      %p253 = scmp.ne.s32.totalorder %s241, %s242
      %p254 = scmp.eq.s32.totalorder %s33, 1
      %p255 = por %p253, %p254
      %p257 = scmp.ne.s32.totalorder %s242, %s256
      %p258 = scmp.eq.s32.totalorder %s33, 0
      %p259 = por %p257, %p258
      %s260 = ssub.s32 %s27, %s34
      %p261 = scmp.eq.s32.totalorder %s260, 0
      %s263 = sadd.s32 %s262, 1
      %s264 = scalar_select %p261, %s262, %s263
      %p267 = pneg %p261
      %p268 = scmp.eq.s32.totalorder %s27, 1
      %p269 = por %p267, %p268
      %p270 = scmp.ne.s32.totalorder %s262, %s265
      %p271 = scmp.eq.s32.totalorder %s27, 0
      %p272 = por %p270, %p271
      %p273 = scmp.ne.s32.totalorder %s262, %s265
      %p274 = scmp.eq.s32.totalorder %s32, 1
      %p275 = por %p273, %p274
      %p276 = scmp.ne.s32.totalorder %s265, %s266
      %p277 = scmp.eq.s32.totalorder %s32, 0
      %p278 = por %p276, %p277
      %p279 = scmp.ne.s32.totalorder %s265, %s266
      %p280 = scmp.eq.s32.totalorder %s33, 1
      %p281 = por %p279, %p280
      %p283 = scmp.ne.s32.totalorder %s266, %s282
      %p284 = scmp.eq.s32.totalorder %s33, 0
      %p285 = por %p283, %p284
      %p286 = scmp.le.s32.totalorder 1, %s27
      %p287 = scmp.lt.s32.totalorder %s27, 3
      %p288 = pnand %p286, %p287
      %p289 = pneg %p288
      // Predicated region
      $region9: #{tpu_custom_call.1} parent=5 // pred_check
        _
      $region10: #{tpu_custom_call.1} parent=5 // pred_check_branch
        %291 = sbr.rel (%p288) target = $region12
      $region11: #{tpu_custom_call.1} parent=5 // pred_region
        %s292 = ssub.s32 %s27, 1
        // Predicated region
        $region13: #{tpu_custom_call.1} parent=11 // pred_check
          %p293 = pneg %p126
        $region14: #{tpu_custom_call.1} parent=11 // pred_check_branch
          %295 = sbr.rel (%p293) target = $region16
        $region15: #{tpu_custom_call.1} parent=11 // pred_region
          %297 = vsyncadd [#allocation9], 0
          %s298 = sshll.u32 %s3, 4
          %s299 = int_to_ptr.hbm [resolvable:$true] %s298
          %s300 = sshll.u32 [#allocation8], 4
          %s301 = int_to_ptr.vmem [resolvable:$true] %s300
          %306 = dma.hbm_to_vmem [thread:$0]  %s299, 2048, %s301, [#allocation9], 128, 128, 8
        $region16: #{tpu_custom_call.1} parent=11 // pred_fallthru
          _
        // Predicated region
        $region17: #{tpu_custom_call.1} parent=11 // pred_check
          %p307 = pneg %p147
        $region18: #{tpu_custom_call.1} parent=11 // pred_check_branch
          %309 = sbr.rel (%p307) target = $region20
        $region19: #{tpu_custom_call.1} parent=11 // pred_region
          %311 = vsyncadd [#allocation9], 0
          %s312 = sshll.u32 %s4, 4
          %s313 = int_to_ptr.hbm [resolvable:$true] %s312
          %s314 = sshll.u32 [#allocation10], 4
          %s315 = int_to_ptr.vmem [resolvable:$true] %s314
          %320 = dma.hbm_to_vmem [thread:$0]  %s313, 2048, %s315, [#allocation9], 128, 128, 8
        $region20: #{tpu_custom_call.1} parent=11 // pred_fallthru
          _
        // Predicated region
        $region21: #{tpu_custom_call.1} parent=11 // pred_check
          %p321 = pneg %p168
        $region22: #{tpu_custom_call.1} parent=11 // pred_check_branch
          %323 = sbr.rel (%p321) target = $region24
        $region23: #{tpu_custom_call.1} parent=11 // pred_region
          %325 = vsyncadd [#allocation12], 0
          %s326 = sshll.u32 %s5, 4
          %s327 = int_to_ptr.hbm [resolvable:$true] %s326
          %s328 = sshll.u32 [#allocation11], 4
          %s329 = int_to_ptr.vmem [resolvable:$true] %s328
          %334 = dma.hbm_to_vmem [thread:$0]  %s327, 2048, %s329, [#allocation12], 128, 128, 8
        $region24: #{tpu_custom_call.1} parent=11 // pred_fallthru
          _
        // Predicated region
        $region25: #{tpu_custom_call.1} parent=11 // pred_check
          %p335 = pneg %p189
        $region26: #{tpu_custom_call.1} parent=11 // pred_check_branch
          %337 = sbr.rel (%p335) target = $region28
        $region27: #{tpu_custom_call.1} parent=11 // pred_region
          %339 = vsyncadd [#allocation12], 0
          %s340 = sshll.u32 %s6, 4
          %s341 = int_to_ptr.hbm [resolvable:$true] %s340
          %s342 = sshll.u32 [#allocation13], 4
          %s343 = int_to_ptr.vmem [resolvable:$true] %s342
          %348 = dma.hbm_to_vmem [thread:$0]  %s341, 2048, %s343, [#allocation12], 128, 128, 8
        $region28: #{tpu_custom_call.1} parent=11 // pred_fallthru
          _
        // Predicated region
        $region29: #{tpu_custom_call.1} parent=11 // pred_check
          %p349 = pneg %p210
        $region30: #{tpu_custom_call.1} parent=11 // pred_check_branch
          %351 = sbr.rel (%p349) target = $region32
        $region31: #{tpu_custom_call.1} parent=11 // pred_region
          _
        $region32: #{tpu_custom_call.1} parent=11 // pred_fallthru
          _
        // Predicated region
        $region33: #{tpu_custom_call.1} parent=11 // pred_check
          %p352 = pneg %p231
        $region34: #{tpu_custom_call.1} parent=11 // pred_check_branch
          %354 = sbr.rel (%p352) target = $region36
        $region35: #{tpu_custom_call.1} parent=11 // pred_region
          _
        $region36: #{tpu_custom_call.1} parent=11 // pred_fallthru
          _
        // Predicated region
        $region37: #{tpu_custom_call.1} parent=11 // pred_check
          %p355 = pneg %p252
        $region38: #{tpu_custom_call.1} parent=11 // pred_check_branch
          %357 = sbr.rel (%p355) target = $region40
        $region39: #{tpu_custom_call.1} parent=11 // pred_region
          _
        $region40: #{tpu_custom_call.1} parent=11 // pred_fallthru
          _
      $region12: #{tpu_custom_call.1} parent=5 // pred_fallthru
        _
      %p358 = scmp.lt.s32.totalorder %s27, 2
      // Predicated region
      $region41: #{tpu_custom_call.1} parent=5 // pred_check
        %p359 = pneg %p358
      $region42: #{tpu_custom_call.1} parent=5 // pred_check_branch
        %361 = sbr.rel (%p359) target = $region44
      $region43: #{tpu_custom_call.1} parent=5 // pred_region
        // Predicated region
        $region45: #{tpu_custom_call.1} parent=43 // pred_check
          %p362 = pneg %p47
        $region46: #{tpu_custom_call.1} parent=43 // pred_check_branch
          %364 = sbr.rel (%p362) target = $region48
        $region47: #{tpu_custom_call.1} parent=43 // pred_region
          %s365 = sand.u32 %s37, 1
          %s366 = scalar_lea.sflag [#allocation3], %s365
          %s367 = sand.u32 %s37, 1
          %s368 = smul.addr %s367, 128
          %s369 = scalar_lea.vmem [#allocation2], %s368
          %371 = vsyncadd %s366, 0
          %s372 = smul.addr %s27, 16
          %s373 = smul.addr %s372, 8
          %s374 = scalar_lea.hbm %s0, %s373
          %s375 = sshll.u32 %s374, 4
          %s376 = int_to_ptr.hbm [resolvable:$true] %s375
          %s377 = sshll.u32 %s369, 4
          %s378 = int_to_ptr.vmem [resolvable:$true] %s377
          %383 = dma.hbm_to_vmem [thread:$0]  %s376, 2048, %s378, %s366, 128, 128, 8
        $region48: #{tpu_custom_call.1} parent=43 // pred_fallthru
          _
        // Predicated region
        $region49: #{tpu_custom_call.1} parent=43 // pred_check
          %p384 = pneg %p73
        $region50: #{tpu_custom_call.1} parent=43 // pred_check_branch
          %386 = sbr.rel (%p384) target = $region52
        $region51: #{tpu_custom_call.1} parent=43 // pred_region
          %s387 = sand.u32 %s27, 1
          %s388 = scalar_lea.sflag [#allocation6], %s387
          %s389 = sand.u32 %s63, 1
          %s390 = smul.addr %s389, 128
          %s391 = scalar_lea.vmem [#allocation5], %s390
          %393 = vsyncadd %s388, 0
          %s394 = smul.addr %s27, 16
          %s395 = smul.addr %s394, 8
          %s396 = scalar_lea.hbm %s1, %s395
          %s397 = sshll.u32 %s396, 4
          %s398 = int_to_ptr.hbm [resolvable:$true] %s397
          %s399 = sshll.u32 %s391, 4
          %s400 = int_to_ptr.vmem [resolvable:$true] %s399
          %405 = dma.hbm_to_vmem [thread:$0]  %s398, 2048, %s400, %s388, 128, 128, 8
        $region52: #{tpu_custom_call.1} parent=43 // pred_fallthru
          _
        // Predicated region
        $region53: #{tpu_custom_call.1} parent=43 // pred_check
          %p406 = pneg %p99
        $region54: #{tpu_custom_call.1} parent=43 // pred_check_branch
          %408 = sbr.rel (%p406) target = $region56
        $region55: #{tpu_custom_call.1} parent=43 // pred_region
          %s409 = sand.u32 %s27, 1
          %s410 = scalar_lea.sflag [#allocation6], %s409
          %s411 = sand.u32 %s89, 1
          %s412 = smul.addr %s411, 128
          %s413 = scalar_lea.vmem [#allocation7], %s412
          %415 = vsyncadd %s410, 0
          %s416 = smul.addr %s27, 16
          %s417 = smul.addr %s416, 8
          %s418 = scalar_lea.hbm %s2, %s417
          %s419 = sshll.u32 %s418, 4
          %s420 = int_to_ptr.hbm [resolvable:$true] %s419
          %s421 = sshll.u32 %s413, 4
          %s422 = int_to_ptr.vmem [resolvable:$true] %s421
          %427 = dma.hbm_to_vmem [thread:$0]  %s420, 2048, %s422, %s410, 128, 128, 8
        $region56: #{tpu_custom_call.1} parent=43 // pred_fallthru
          _
      $region44: #{tpu_custom_call.1} parent=5 // pred_fallthru
        _
      %p428 = scmp.le.s32.totalorder 1, %s27
      %p429 = scmp.lt.s32.totalorder %s27, 3
      %p430 = pnand %p428, %p429
      %p431 = pneg %p430
      // Predicated region
      $region57: #{tpu_custom_call.1} parent=5 // pred_check
        _
      $region58: #{tpu_custom_call.1} parent=5 // pred_check_branch
        %433 = sbr.rel (%p430) target = $region60
      $region59: #{tpu_custom_call.1} parent=5 // pred_region
        %s434 = ssub.s32 %s27, 1
        %s435 = sand.u32 %s40, 1
        %s436 = scalar_lea.sflag [#allocation3], %s435
        %s437 = sand.u32 %s40, 1
        %s438 = smul.addr %s437, 128
        %s439 = scalar_lea.vmem [#allocation2], %s438
        // Predicated region
        $region61: #{tpu_custom_call.1} parent=59 // pred_check
          %p440 = pneg %p53
        $region62: #{tpu_custom_call.1} parent=59 // pred_check_branch
          %442 = sbr.rel (%p440) target = $region64
        $region63: #{tpu_custom_call.1} parent=59 // pred_region
          %444 = dma.done %s436, 2048
        $region64: #{tpu_custom_call.1} parent=59 // pred_fallthru
          _
        %s445 = sand.u32 %s32, 1
        %s446 = scalar_lea.sflag [#allocation6], %s445
        %s447 = sand.u32 %s66, 1
        %s448 = smul.addr %s447, 128
        %s449 = scalar_lea.vmem [#allocation5], %s448
        // Predicated region
        $region65: #{tpu_custom_call.1} parent=59 // pred_check
          %p450 = pneg %p79
        $region66: #{tpu_custom_call.1} parent=59 // pred_check_branch
          %452 = sbr.rel (%p450) target = $region68
        $region67: #{tpu_custom_call.1} parent=59 // pred_region
          %454 = dma.done %s446, 2048
        $region68: #{tpu_custom_call.1} parent=59 // pred_fallthru
          _
        %s455 = sand.u32 %s32, 1
        %s456 = scalar_lea.sflag [#allocation6], %s455
        %s457 = sand.u32 %s92, 1
        %s458 = smul.addr %s457, 128
        %s459 = scalar_lea.vmem [#allocation7], %s458
        // Predicated region
        $region69: #{tpu_custom_call.1} parent=59 // pred_check
          %p460 = pneg %p105
        $region70: #{tpu_custom_call.1} parent=59 // pred_check_branch
          %462 = sbr.rel (%p460) target = $region72
        $region71: #{tpu_custom_call.1} parent=59 // pred_region
          %464 = dma.done %s456, 2048
        $region72: #{tpu_custom_call.1} parent=59 // pred_fallthru
          _
        // Predicated region
        $region73: #{tpu_custom_call.1} parent=59 // pred_check
          %p465 = pneg %p126
        $region74: #{tpu_custom_call.1} parent=59 // pred_check_branch
          %467 = sbr.rel (%p465) target = $region76
        $region75: #{tpu_custom_call.1} parent=59 // pred_region
          %469 = dma.done [#allocation9], 2048
        $region76: #{tpu_custom_call.1} parent=59 // pred_fallthru
          _
        // Predicated region
        $region77: #{tpu_custom_call.1} parent=59 // pred_check
          %p470 = pneg %p147
        $region78: #{tpu_custom_call.1} parent=59 // pred_check_branch
          %472 = sbr.rel (%p470) target = $region80
        $region79: #{tpu_custom_call.1} parent=59 // pred_region
          %474 = dma.done [#allocation9], 2048
        $region80: #{tpu_custom_call.1} parent=59 // pred_fallthru
          _
        // Predicated region
        $region81: #{tpu_custom_call.1} parent=59 // pred_check
          %p475 = pneg %p168
        $region82: #{tpu_custom_call.1} parent=59 // pred_check_branch
          %477 = sbr.rel (%p475) target = $region84
        $region83: #{tpu_custom_call.1} parent=59 // pred_region
          %479 = dma.done [#allocation12], 2048
        $region84: #{tpu_custom_call.1} parent=59 // pred_fallthru
          _
        // Predicated region
        $region85: #{tpu_custom_call.1} parent=59 // pred_check
          %p480 = pneg %p189
        $region86: #{tpu_custom_call.1} parent=59 // pred_check_branch
          %482 = sbr.rel (%p480) target = $region88
        $region87: #{tpu_custom_call.1} parent=59 // pred_region
          %484 = dma.done [#allocation12], 2048
        $region88: #{tpu_custom_call.1} parent=59 // pred_fallthru
          _
        %s485 = sand.u32 %s40, 1
        %s486 = scalar_lea.sflag [#allocation3], %s485
        %s487 = sand.u32 %s40, 1
        %s488 = smul.addr %s487, 128
        %s489 = scalar_lea.vmem [#allocation2], %s488
        %p490 = pneg %p53
        %p491 = pneg %p50
        %s492 = sand.u32 %s32, 1
        %s493 = scalar_lea.sflag [#allocation6], %s492
        %s494 = sand.u32 %s66, 1
        %s495 = smul.addr %s494, 128
        %s496 = scalar_lea.vmem [#allocation5], %s495
        %p497 = pneg %p79
        %p498 = pneg %p76
        %s499 = sand.u32 %s32, 1
        %s500 = scalar_lea.sflag [#allocation6], %s499
        %s501 = sand.u32 %s92, 1
        %s502 = smul.addr %s501, 128
        %s503 = scalar_lea.vmem [#allocation7], %s502
        %p504 = pneg %p105
        %p505 = pneg %p102
        %p506 = pneg %p126
        %p507 = pneg %p123
        %p508 = pneg %p147
        %p509 = pneg %p144
        %p510 = pneg %p168
        %p511 = pneg %p165
        %p512 = pneg %p189
        %p513 = pneg %p186
        %p514 = pneg %p210
        %p515 = pneg %p207
        %p516 = pneg %p231
        %p517 = pneg %p228
        %p518 = pneg %p252
        %p519 = pneg %p249
        %p520 = pneg %p278
        %p521 = pneg %p275
        %s522 = sand.u32 %s265, 1
        %s523 = scalar_lea.sflag [#allocation4], %s522
        %s524 = sand.u32 %s265, 1
        %s525 = smul.addr %s524, 128
        %s526 = scalar_lea.vmem [#allocation14], %s525
        %v527 = vld [vmem:[%s439] sm:$0xff]
        %v528 = vld [vmem:[%s439 + $0x8] sm:$0xff]
        %v529 = vld [vmem:[%s439 + $0x10] sm:$0xff]
        %v530 = vld [vmem:[%s439 + $0x18] sm:$0xff]
        %v531 = vld [vmem:[%s439 + $0x20] sm:$0xff]
        %v532 = vld [vmem:[%s439 + $0x28] sm:$0xff]
        %v533 = vld [vmem:[%s439 + $0x30] sm:$0xff]
        %v534 = vld [vmem:[%s439 + $0x38] sm:$0xff]
        %v535 = vld [vmem:[%s439 + $0x40] sm:$0xff]
        %v536 = vld [vmem:[%s439 + $0x48] sm:$0xff]
        %v537 = vld [vmem:[%s439 + $0x50] sm:$0xff]
        %v538 = vld [vmem:[%s439 + $0x58] sm:$0xff]
        %v539 = vld [vmem:[%s439 + $0x60] sm:$0xff]
        %v540 = vld [vmem:[%s439 + $0x68] sm:$0xff]
        %v541 = vld [vmem:[%s439 + $0x70] sm:$0xff]
        %v542 = vld [vmem:[%s439 + $0x78] sm:$0xff]
        %v543 = vld [vmem:[%s449] sm:$0xff]
        %v544 = vld [vmem:[%s449 + $0x8] sm:$0xff]
        %v545 = vld [vmem:[%s449 + $0x10] sm:$0xff]
        %v546 = vld [vmem:[%s449 + $0x18] sm:$0xff]
        %v547 = vld [vmem:[%s449 + $0x20] sm:$0xff]
        %v548 = vld [vmem:[%s449 + $0x28] sm:$0xff]
        %v549 = vld [vmem:[%s449 + $0x30] sm:$0xff]
        %v550 = vld [vmem:[%s449 + $0x38] sm:$0xff]
        %v551 = vld [vmem:[%s449 + $0x40] sm:$0xff]
        %v552 = vld [vmem:[%s449 + $0x48] sm:$0xff]
        %v553 = vld [vmem:[%s449 + $0x50] sm:$0xff]
        %v554 = vld [vmem:[%s449 + $0x58] sm:$0xff]
        %v555 = vld [vmem:[%s449 + $0x60] sm:$0xff]
        %v556 = vld [vmem:[%s449 + $0x68] sm:$0xff]
        %v557 = vld [vmem:[%s449 + $0x70] sm:$0xff]
        %v558 = vld [vmem:[%s449 + $0x78] sm:$0xff]
        %v559 = vld [vmem:[%s459] sm:$0xff]
        %v560 = vld [vmem:[%s459 + $0x8] sm:$0xff]
        %v561 = vld [vmem:[%s459 + $0x10] sm:$0xff]
        %v562 = vld [vmem:[%s459 + $0x18] sm:$0xff]
        %v563 = vld [vmem:[%s459 + $0x20] sm:$0xff]
        %v564 = vld [vmem:[%s459 + $0x28] sm:$0xff]
        %v565 = vld [vmem:[%s459 + $0x30] sm:$0xff]
        %v566 = vld [vmem:[%s459 + $0x38] sm:$0xff]
        %v567 = vld [vmem:[%s459 + $0x40] sm:$0xff]
        %v568 = vld [vmem:[%s459 + $0x48] sm:$0xff]
        %v569 = vld [vmem:[%s459 + $0x50] sm:$0xff]
        %v570 = vld [vmem:[%s459 + $0x58] sm:$0xff]
        %v571 = vld [vmem:[%s459 + $0x60] sm:$0xff]
        %v572 = vld [vmem:[%s459 + $0x68] sm:$0xff]
        %v573 = vld [vmem:[%s459 + $0x70] sm:$0xff]
        %v574 = vld [vmem:[%s459 + $0x78] sm:$0xff]
        %v575 = vld [vmem:[#allocation8] sm:$0xff]
        %v576 = vld [vmem:[#allocation8 + $0x8] sm:$0xff]
        %v577 = vld [vmem:[#allocation8 + $0x10] sm:$0xff]
        %v578 = vld [vmem:[#allocation8 + $0x18] sm:$0xff]
        %v579 = vld [vmem:[#allocation8 + $0x20] sm:$0xff]
        %v580 = vld [vmem:[#allocation8 + $0x28] sm:$0xff]
        %v581 = vld [vmem:[#allocation8 + $0x30] sm:$0xff]
        %v582 = vld [vmem:[#allocation8 + $0x38] sm:$0xff]
        %v583 = vld [vmem:[#allocation8 + $0x40] sm:$0xff]
        %v584 = vld [vmem:[#allocation8 + $0x48] sm:$0xff]
        %v585 = vld [vmem:[#allocation8 + $0x50] sm:$0xff]
        %v586 = vld [vmem:[#allocation8 + $0x58] sm:$0xff]
        %v587 = vld [vmem:[#allocation8 + $0x60] sm:$0xff]
        %v588 = vld [vmem:[#allocation8 + $0x68] sm:$0xff]
        %v589 = vld [vmem:[#allocation8 + $0x70] sm:$0xff]
        %v590 = vld [vmem:[#allocation8 + $0x78] sm:$0xff]
        %591 = vmatpush.msra.mxu0 %v590
        %592 = vmatpush.msra.mxu0 %v589
        %593 = vmatpush.msra.mxu0 %v588
        %594 = vmatpush.msra.mxu0 %v587
        %595 = vmatpush.msra.mxu0 %v586
        %596 = vmatpush.msra.mxu0 %v585
        %597 = vmatpush.msra.mxu0 %v584
        %598 = vmatpush.msra.mxu0 %v583
        %599 = vmatpush.msra.mxu0 %v582
        %600 = vmatpush.msra.mxu0 %v581
        %601 = vmatpush.msra.mxu0 %v580
        %602 = vmatpush.msra.mxu0 %v579
        %603 = vmatpush.msra.mxu0 %v578
        %604 = vmatpush.msra.mxu0 %v577
        %605 = vmatpush.msra.mxu0 %v576
        %606 = vmatpush.msra.mxu0 %v575
        %607 = vmatmul.f32.gmra.mxu0 %v527
        %v608 = vpop.f32.mrf.mxu0
        %v609 = vadd.f32 0.0, %v608
        %610 = vmatmul.f32.gmra.mxu0 %v528
        %v611 = vpop.f32.mrf.mxu0
        %v612 = vadd.f32 0.0, %v611
        %613 = vmatmul.f32.gmra.mxu0 %v529
        %v614 = vpop.f32.mrf.mxu0
        %v615 = vadd.f32 0.0, %v614
        %616 = vmatmul.f32.gmra.mxu0 %v530
        %v617 = vpop.f32.mrf.mxu0
        %v618 = vadd.f32 0.0, %v617
        %619 = vmatmul.f32.gmra.mxu0 %v531
        %v620 = vpop.f32.mrf.mxu0
        %v621 = vadd.f32 0.0, %v620
        %622 = vmatmul.f32.gmra.mxu0 %v532
        %v623 = vpop.f32.mrf.mxu0
        %v624 = vadd.f32 0.0, %v623
        %625 = vmatmul.f32.gmra.mxu0 %v533
        %v626 = vpop.f32.mrf.mxu0
        %v627 = vadd.f32 0.0, %v626
        %628 = vmatmul.f32.gmra.mxu0 %v534
        %v629 = vpop.f32.mrf.mxu0
        %v630 = vadd.f32 0.0, %v629
        %631 = vmatmul.f32.gmra.mxu0 %v535
        %v632 = vpop.f32.mrf.mxu0
        %v633 = vadd.f32 0.0, %v632
        %634 = vmatmul.f32.gmra.mxu0 %v536
        %v635 = vpop.f32.mrf.mxu0
        %v636 = vadd.f32 0.0, %v635
        %637 = vmatmul.f32.gmra.mxu0 %v537
        %v638 = vpop.f32.mrf.mxu0
        %v639 = vadd.f32 0.0, %v638
        %640 = vmatmul.f32.gmra.mxu0 %v538
        %v641 = vpop.f32.mrf.mxu0
        %v642 = vadd.f32 0.0, %v641
        %643 = vmatmul.f32.gmra.mxu0 %v539
        %v644 = vpop.f32.mrf.mxu0
        %v645 = vadd.f32 0.0, %v644
        %646 = vmatmul.f32.gmra.mxu0 %v540
        %v647 = vpop.f32.mrf.mxu0
        %v648 = vadd.f32 0.0, %v647
        %649 = vmatmul.f32.gmra.mxu0 %v541
        %v650 = vpop.f32.mrf.mxu0
        %v651 = vadd.f32 0.0, %v650
        %652 = vmatmul.f32.gmra.mxu0 %v542
        %v653 = vpop.f32.mrf.mxu0
        %v654 = vadd.f32 0.0, %v653
        %655 = vdwg.mxu0
        %v656 = vld [vmem:[#allocation10] sm:$0xff]
        %v657 = vld [vmem:[#allocation10 + $0x8] sm:$0xff]
        %v658 = vld [vmem:[#allocation10 + $0x10] sm:$0xff]
        %v659 = vld [vmem:[#allocation10 + $0x18] sm:$0xff]
        %v660 = vld [vmem:[#allocation10 + $0x20] sm:$0xff]
        %v661 = vld [vmem:[#allocation10 + $0x28] sm:$0xff]
        %v662 = vld [vmem:[#allocation10 + $0x30] sm:$0xff]
        %v663 = vld [vmem:[#allocation10 + $0x38] sm:$0xff]
        %v664 = vld [vmem:[#allocation10 + $0x40] sm:$0xff]
        %v665 = vld [vmem:[#allocation10 + $0x48] sm:$0xff]
        %v666 = vld [vmem:[#allocation10 + $0x50] sm:$0xff]
        %v667 = vld [vmem:[#allocation10 + $0x58] sm:$0xff]
        %v668 = vld [vmem:[#allocation10 + $0x60] sm:$0xff]
        %v669 = vld [vmem:[#allocation10 + $0x68] sm:$0xff]
        %v670 = vld [vmem:[#allocation10 + $0x70] sm:$0xff]
        %v671 = vld [vmem:[#allocation10 + $0x78] sm:$0xff]
        %672 = vmatpush.msra.mxu0 %v671
        %673 = vmatpush.msra.mxu0 %v670
        %674 = vmatpush.msra.mxu0 %v669
        %675 = vmatpush.msra.mxu0 %v668
        %676 = vmatpush.msra.mxu0 %v667
        %677 = vmatpush.msra.mxu0 %v666
        %678 = vmatpush.msra.mxu0 %v665
        %679 = vmatpush.msra.mxu0 %v664
        %680 = vmatpush.msra.mxu0 %v663
        %681 = vmatpush.msra.mxu0 %v662
        %682 = vmatpush.msra.mxu0 %v661
        %683 = vmatpush.msra.mxu0 %v660
        %684 = vmatpush.msra.mxu0 %v659
        %685 = vmatpush.msra.mxu0 %v658
        %686 = vmatpush.msra.mxu0 %v657
        %687 = vmatpush.msra.mxu0 %v656
        %688 = vmatmul.f32.gmra.mxu0 %v543
        %v689 = vpop.f32.mrf.mxu0
        %v690 = vadd.f32 0.0, %v689
        %691 = vmatmul.f32.gmra.mxu0 %v544
        %v692 = vpop.f32.mrf.mxu0
        %v693 = vadd.f32 0.0, %v692
        %694 = vmatmul.f32.gmra.mxu0 %v545
        %v695 = vpop.f32.mrf.mxu0
        %v696 = vadd.f32 0.0, %v695
        %697 = vmatmul.f32.gmra.mxu0 %v546
        %v698 = vpop.f32.mrf.mxu0
        %v699 = vadd.f32 0.0, %v698
        %700 = vmatmul.f32.gmra.mxu0 %v547
        %v701 = vpop.f32.mrf.mxu0
        %v702 = vadd.f32 0.0, %v701
        %703 = vmatmul.f32.gmra.mxu0 %v548
        %v704 = vpop.f32.mrf.mxu0
        %v705 = vadd.f32 0.0, %v704
        %706 = vmatmul.f32.gmra.mxu0 %v549
        %v707 = vpop.f32.mrf.mxu0
        %v708 = vadd.f32 0.0, %v707
        %709 = vmatmul.f32.gmra.mxu0 %v550
        %v710 = vpop.f32.mrf.mxu0
        %v711 = vadd.f32 0.0, %v710
        %712 = vmatmul.f32.gmra.mxu0 %v551
        %v713 = vpop.f32.mrf.mxu0
        %v714 = vadd.f32 0.0, %v713
        %715 = vmatmul.f32.gmra.mxu0 %v552
        %v716 = vpop.f32.mrf.mxu0
        %v717 = vadd.f32 0.0, %v716
        %718 = vmatmul.f32.gmra.mxu0 %v553
        %v719 = vpop.f32.mrf.mxu0
        %v720 = vadd.f32 0.0, %v719
        %721 = vmatmul.f32.gmra.mxu0 %v554
        %v722 = vpop.f32.mrf.mxu0
        %v723 = vadd.f32 0.0, %v722
        %724 = vmatmul.f32.gmra.mxu0 %v555
        %v725 = vpop.f32.mrf.mxu0
        %v726 = vadd.f32 0.0, %v725
        %727 = vmatmul.f32.gmra.mxu0 %v556
        %v728 = vpop.f32.mrf.mxu0
        %v729 = vadd.f32 0.0, %v728
        %730 = vmatmul.f32.gmra.mxu0 %v557
        %v731 = vpop.f32.mrf.mxu0
        %v732 = vadd.f32 0.0, %v731
        %733 = vmatmul.f32.gmra.mxu0 %v558
        %v734 = vpop.f32.mrf.mxu0
        %v735 = vadd.f32 0.0, %v734
        %736 = vdwg.mxu0
        %v737 = vld [vmem:[#allocation11] sm:$0xff]
        %v738 = vld [vmem:[#allocation11 + $0x8] sm:$0xff]
        %v739 = vld [vmem:[#allocation11 + $0x10] sm:$0xff]
        %v740 = vld [vmem:[#allocation11 + $0x18] sm:$0xff]
        %v741 = vld [vmem:[#allocation11 + $0x20] sm:$0xff]
        %v742 = vld [vmem:[#allocation11 + $0x28] sm:$0xff]
        %v743 = vld [vmem:[#allocation11 + $0x30] sm:$0xff]
        %v744 = vld [vmem:[#allocation11 + $0x38] sm:$0xff]
        %v745 = vld [vmem:[#allocation11 + $0x40] sm:$0xff]
        %v746 = vld [vmem:[#allocation11 + $0x48] sm:$0xff]
        %v747 = vld [vmem:[#allocation11 + $0x50] sm:$0xff]
        %v748 = vld [vmem:[#allocation11 + $0x58] sm:$0xff]
        %v749 = vld [vmem:[#allocation11 + $0x60] sm:$0xff]
        %v750 = vld [vmem:[#allocation11 + $0x68] sm:$0xff]
        %v751 = vld [vmem:[#allocation11 + $0x70] sm:$0xff]
        %v752 = vld [vmem:[#allocation11 + $0x78] sm:$0xff]
        %753 = vmatpush.msra.mxu0 %v752
        %754 = vmatpush.msra.mxu0 %v751
        %755 = vmatpush.msra.mxu0 %v750
        %756 = vmatpush.msra.mxu0 %v749
        %757 = vmatpush.msra.mxu0 %v748
        %758 = vmatpush.msra.mxu0 %v747
        %759 = vmatpush.msra.mxu0 %v746
        %760 = vmatpush.msra.mxu0 %v745
        %761 = vmatpush.msra.mxu0 %v744
        %762 = vmatpush.msra.mxu0 %v743
        %763 = vmatpush.msra.mxu0 %v742
        %764 = vmatpush.msra.mxu0 %v741
        %765 = vmatpush.msra.mxu0 %v740
        %766 = vmatpush.msra.mxu0 %v739
        %767 = vmatpush.msra.mxu0 %v738
        %768 = vmatpush.msra.mxu0 %v737
        %769 = vmatmul.f32.gmra.mxu0 %v559
        %v770 = vpop.f32.mrf.mxu0
        %v771 = vadd.f32 0.0, %v770
        %772 = vmatmul.f32.gmra.mxu0 %v560
        %v773 = vpop.f32.mrf.mxu0
        %v774 = vadd.f32 0.0, %v773
        %775 = vmatmul.f32.gmra.mxu0 %v561
        %v776 = vpop.f32.mrf.mxu0
        %v777 = vadd.f32 0.0, %v776
        %778 = vmatmul.f32.gmra.mxu0 %v562
        %v779 = vpop.f32.mrf.mxu0
        %v780 = vadd.f32 0.0, %v779
        %781 = vmatmul.f32.gmra.mxu0 %v563
        %v782 = vpop.f32.mrf.mxu0
        %v783 = vadd.f32 0.0, %v782
        %784 = vmatmul.f32.gmra.mxu0 %v564
        %v785 = vpop.f32.mrf.mxu0
        %v786 = vadd.f32 0.0, %v785
        %787 = vmatmul.f32.gmra.mxu0 %v565
        %v788 = vpop.f32.mrf.mxu0
        %v789 = vadd.f32 0.0, %v788
        %790 = vmatmul.f32.gmra.mxu0 %v566
        %v791 = vpop.f32.mrf.mxu0
        %v792 = vadd.f32 0.0, %v791
        %793 = vmatmul.f32.gmra.mxu0 %v567
        %v794 = vpop.f32.mrf.mxu0
        %v795 = vadd.f32 0.0, %v794
        %796 = vmatmul.f32.gmra.mxu0 %v568
        %v797 = vpop.f32.mrf.mxu0
        %v798 = vadd.f32 0.0, %v797
        %799 = vmatmul.f32.gmra.mxu0 %v569
        %v800 = vpop.f32.mrf.mxu0
        %v801 = vadd.f32 0.0, %v800
        %802 = vmatmul.f32.gmra.mxu0 %v570
        %v803 = vpop.f32.mrf.mxu0
        %v804 = vadd.f32 0.0, %v803
        %805 = vmatmul.f32.gmra.mxu0 %v571
        %v806 = vpop.f32.mrf.mxu0
        %v807 = vadd.f32 0.0, %v806
        %808 = vmatmul.f32.gmra.mxu0 %v572
        %v809 = vpop.f32.mrf.mxu0
        %v810 = vadd.f32 0.0, %v809
        %811 = vmatmul.f32.gmra.mxu0 %v573
        %v812 = vpop.f32.mrf.mxu0
        %v813 = vadd.f32 0.0, %v812
        %814 = vmatmul.f32.gmra.mxu0 %v574
        %v815 = vpop.f32.mrf.mxu0
        %v816 = vadd.f32 0.0, %v815
        %817 = vdwg.mxu0
        %vm818 = vcmask 130048
        %v820 = vsel %vm818, %v609, 0
        %v823 = vsel %vm818, %v612, 0
        %v826 = vsel %vm818, %v615, 0
        %v829 = vsel %vm818, %v618, 0
        %v832 = vsel %vm818, %v621, 0
        %v835 = vsel %vm818, %v624, 0
        %v838 = vsel %vm818, %v627, 0
        %v841 = vsel %vm818, %v630, 0
        %v844 = vsel %vm818, %v633, 0
        %v847 = vsel %vm818, %v636, 0
        %v850 = vsel %vm818, %v639, 0
        %v853 = vsel %vm818, %v642, 0
        %v856 = vsel %vm818, %v645, 0
        %v859 = vsel %vm818, %v648, 0
        %v862 = vsel %vm818, %v651, 0
        %v865 = vsel %vm818, %v654, 0
        %v868 = vsel %vm818, %v690, 0
        %v871 = vsel %vm818, %v693, 0
        %v874 = vsel %vm818, %v696, 0
        %v877 = vsel %vm818, %v699, 0
        %v880 = vsel %vm818, %v702, 0
        %v883 = vsel %vm818, %v705, 0
        %v886 = vsel %vm818, %v708, 0
        %v889 = vsel %vm818, %v711, 0
        %v892 = vsel %vm818, %v714, 0
        %v895 = vsel %vm818, %v717, 0
        %v898 = vsel %vm818, %v720, 0
        %v901 = vsel %vm818, %v723, 0
        %v904 = vsel %vm818, %v726, 0
        %v907 = vsel %vm818, %v729, 0
        %v910 = vsel %vm818, %v732, 0
        %v913 = vsel %vm818, %v735, 0
        %915 = vmatpush.xpose.msra.mxu0 %v913
        %916 = vmatpush.xpose.msra.mxu0 %v910
        %917 = vmatpush.xpose.msra.mxu0 %v907
        %918 = vmatpush.xpose.msra.mxu0 %v904
        %919 = vmatpush.xpose.msra.mxu0 %v901
        %920 = vmatpush.xpose.msra.mxu0 %v898
        %921 = vmatpush.xpose.msra.mxu0 %v895
        %922 = vmatpush.xpose.msra.mxu0 %v892
        %923 = vmatpush.xpose.msra.mxu0 %v889
        %924 = vmatpush.xpose.msra.mxu0 %v886
        %925 = vmatpush.xpose.msra.mxu0 %v883
        %926 = vmatpush.xpose.msra.mxu0 %v880
        %927 = vmatpush.xpose.msra.mxu0 %v877
        %928 = vmatpush.xpose.msra.mxu0 %v874
        %929 = vmatpush.xpose.msra.mxu0 %v871
        %930 = vmatpush.xpose.msra.mxu0 %v868
        %931 = vmatmul.f32.gmra.mxu0 %v820
        %v932 = vpop.f32.mrf.mxu0
        %v933 = vadd.f32 0.0, %v932
        %934 = vmatmul.f32.gmra.mxu0 %v823
        %v935 = vpop.f32.mrf.mxu0
        %v936 = vadd.f32 0.0, %v935
        %937 = vmatmul.f32.gmra.mxu0 %v826
        %v938 = vpop.f32.mrf.mxu0
        %v939 = vadd.f32 0.0, %v938
        %940 = vmatmul.f32.gmra.mxu0 %v829
        %v941 = vpop.f32.mrf.mxu0
        %v942 = vadd.f32 0.0, %v941
        %943 = vmatmul.f32.gmra.mxu0 %v832
        %v944 = vpop.f32.mrf.mxu0
        %v945 = vadd.f32 0.0, %v944
        %946 = vmatmul.f32.gmra.mxu0 %v835
        %v947 = vpop.f32.mrf.mxu0
        %v948 = vadd.f32 0.0, %v947
        %949 = vmatmul.f32.gmra.mxu0 %v838
        %v950 = vpop.f32.mrf.mxu0
        %v951 = vadd.f32 0.0, %v950
        %952 = vmatmul.f32.gmra.mxu0 %v841
        %v953 = vpop.f32.mrf.mxu0
        %v954 = vadd.f32 0.0, %v953
        %955 = vmatmul.f32.gmra.mxu0 %v844
        %v956 = vpop.f32.mrf.mxu0
        %v957 = vadd.f32 0.0, %v956
        %958 = vmatmul.f32.gmra.mxu0 %v847
        %v959 = vpop.f32.mrf.mxu0
        %v960 = vadd.f32 0.0, %v959
        %961 = vmatmul.f32.gmra.mxu0 %v850
        %v962 = vpop.f32.mrf.mxu0
        %v963 = vadd.f32 0.0, %v962
        %964 = vmatmul.f32.gmra.mxu0 %v853
        %v965 = vpop.f32.mrf.mxu0
        %v966 = vadd.f32 0.0, %v965
        %967 = vmatmul.f32.gmra.mxu0 %v856
        %v968 = vpop.f32.mrf.mxu0
        %v969 = vadd.f32 0.0, %v968
        %970 = vmatmul.f32.gmra.mxu0 %v859
        %v971 = vpop.f32.mrf.mxu0
        %v972 = vadd.f32 0.0, %v971
        %973 = vmatmul.f32.gmra.mxu0 %v862
        %v974 = vpop.f32.mrf.mxu0
        %v975 = vadd.f32 0.0, %v974
        %976 = vmatmul.f32.gmra.mxu0 %v865
        %v977 = vpop.f32.mrf.mxu0
        %v978 = vadd.f32 0.0, %v977
        %979 = vdwg.mxu0
        %v980 = vmul.f32 %v933, 0.088388346
        %v981 = vmul.f32 %v936, 0.088388346
        %v982 = vmul.f32 %v939, 0.088388346
        %v983 = vmul.f32 %v942, 0.088388346
        %v984 = vmul.f32 %v945, 0.088388346
        %v985 = vmul.f32 %v948, 0.088388346
        %v986 = vmul.f32 %v951, 0.088388346
        %v987 = vmul.f32 %v954, 0.088388346
        %v988 = vmul.f32 %v957, 0.088388346
        %v989 = vmul.f32 %v960, 0.088388346
        %v990 = vmul.f32 %v963, 0.088388346
        %v991 = vmul.f32 %v966, 0.088388346
        %v992 = vmul.f32 %v969, 0.088388346
        %v993 = vmul.f32 %v972, 0.088388346
        %v994 = vmul.f32 %v975, 0.088388346
        %v995 = vmul.f32 %v978, 0.088388346
        %996 = vmax.xlane.f32.xlu0 %v980
        %v997 = vpop.xlane.xlu0 %996
        %998 = vmax.xlane.f32.xlu0 %v981
        %v999 = vpop.xlane.xlu0 %998
        %1000 = vmax.xlane.f32.xlu0 %v982
        %v1001 = vpop.xlane.xlu0 %1000
        %1002 = vmax.xlane.f32.xlu0 %v983
        %v1003 = vpop.xlane.xlu0 %1002
        %1004 = vmax.xlane.f32.xlu0 %v984
        %v1005 = vpop.xlane.xlu0 %1004
        %1006 = vmax.xlane.f32.xlu0 %v985
        %v1007 = vpop.xlane.xlu0 %1006
        %1008 = vmax.xlane.f32.xlu0 %v986
        %v1009 = vpop.xlane.xlu0 %1008
        %1010 = vmax.xlane.f32.xlu0 %v987
        %v1011 = vpop.xlane.xlu0 %1010
        %1012 = vmax.xlane.f32.xlu0 %v988
        %v1013 = vpop.xlane.xlu0 %1012
        %1014 = vmax.xlane.f32.xlu0 %v989
        %v1015 = vpop.xlane.xlu0 %1014
        %1016 = vmax.xlane.f32.xlu0 %v990
        %v1017 = vpop.xlane.xlu0 %1016
        %1018 = vmax.xlane.f32.xlu0 %v991
        %v1019 = vpop.xlane.xlu0 %1018
        %1020 = vmax.xlane.f32.xlu0 %v992
        %v1021 = vpop.xlane.xlu0 %1020
        %1022 = vmax.xlane.f32.xlu0 %v993
        %v1023 = vpop.xlane.xlu0 %1022
        %1024 = vmax.xlane.f32.xlu0 %v994
        %v1025 = vpop.xlane.xlu0 %1024
        %1026 = vmax.xlane.f32.xlu0 %v995
        %v1027 = vpop.xlane.xlu0 %1026
        %v1028 = vsub.f32 %v980, %v997
        %v1029 = vsub.f32 %v981, %v999
        %v1030 = vsub.f32 %v982, %v1001
        %v1031 = vsub.f32 %v983, %v1003
        %v1032 = vsub.f32 %v984, %v1005
        %v1033 = vsub.f32 %v985, %v1007
        %v1034 = vsub.f32 %v986, %v1009
        %v1035 = vsub.f32 %v987, %v1011
        %v1036 = vsub.f32 %v988, %v1013
        %v1037 = vsub.f32 %v989, %v1015
        %v1038 = vsub.f32 %v990, %v1017
        %v1039 = vsub.f32 %v991, %v1019
        %v1040 = vsub.f32 %v992, %v1021
        %v1041 = vsub.f32 %v993, %v1023
        %v1042 = vsub.f32 %v994, %v1025
        %v1043 = vsub.f32 %v995, %v1027
        %v1044 = vmul.f32 %v1028, 1.442695
        %v1045 = vpow.pop %v1044
        %v1046 = vmul.f32 %v1029, 1.442695
        %v1047 = vpow.pop %v1046
        %v1048 = vmul.f32 %v1030, 1.442695
        %v1049 = vpow.pop %v1048
        %v1050 = vmul.f32 %v1031, 1.442695
        %v1051 = vpow.pop %v1050
        %v1052 = vmul.f32 %v1032, 1.442695
        %v1053 = vpow.pop %v1052
        %v1054 = vmul.f32 %v1033, 1.442695
        %v1055 = vpow.pop %v1054
        %v1056 = vmul.f32 %v1034, 1.442695
        %v1057 = vpow.pop %v1056
        %v1058 = vmul.f32 %v1035, 1.442695
        %v1059 = vpow.pop %v1058
        %v1060 = vmul.f32 %v1036, 1.442695
        %v1061 = vpow.pop %v1060
        %v1062 = vmul.f32 %v1037, 1.442695
        %v1063 = vpow.pop %v1062
        %v1064 = vmul.f32 %v1038, 1.442695
        %v1065 = vpow.pop %v1064
        %v1066 = vmul.f32 %v1039, 1.442695
        %v1067 = vpow.pop %v1066
        %v1068 = vmul.f32 %v1040, 1.442695
        %v1069 = vpow.pop %v1068
        %v1070 = vmul.f32 %v1041, 1.442695
        %v1071 = vpow.pop %v1070
        %v1072 = vmul.f32 %v1042, 1.442695
        %v1073 = vpow.pop %v1072
        %v1074 = vmul.f32 %v1043, 1.442695
        %v1075 = vpow.pop %v1074
        %1076 = vadd.xlane.f32.xlu0 %v1045
        %v1077 = vpop.xlane.xlu0 %1076
        %1078 = vadd.xlane.f32.xlu0 %v1047
        %v1079 = vpop.xlane.xlu0 %1078
        %1080 = vadd.xlane.f32.xlu0 %v1049
        %v1081 = vpop.xlane.xlu0 %1080
        %1082 = vadd.xlane.f32.xlu0 %v1051
        %v1083 = vpop.xlane.xlu0 %1082
        %1084 = vadd.xlane.f32.xlu0 %v1053
        %v1085 = vpop.xlane.xlu0 %1084
        %1086 = vadd.xlane.f32.xlu0 %v1055
        %v1087 = vpop.xlane.xlu0 %1086
        %1088 = vadd.xlane.f32.xlu0 %v1057
        %v1089 = vpop.xlane.xlu0 %1088
        %1090 = vadd.xlane.f32.xlu0 %v1059
        %v1091 = vpop.xlane.xlu0 %1090
        %1092 = vadd.xlane.f32.xlu0 %v1061
        %v1093 = vpop.xlane.xlu0 %1092
        %1094 = vadd.xlane.f32.xlu0 %v1063
        %v1095 = vpop.xlane.xlu0 %1094
        %1096 = vadd.xlane.f32.xlu0 %v1065
        %v1097 = vpop.xlane.xlu0 %1096
        %1098 = vadd.xlane.f32.xlu0 %v1067
        %v1099 = vpop.xlane.xlu0 %1098
        %1100 = vadd.xlane.f32.xlu0 %v1069
        %v1101 = vpop.xlane.xlu0 %1100
        %1102 = vadd.xlane.f32.xlu0 %v1071
        %v1103 = vpop.xlane.xlu0 %1102
        %1104 = vadd.xlane.f32.xlu0 %v1073
        %v1105 = vpop.xlane.xlu0 %1104
        %1106 = vadd.xlane.f32.xlu0 %v1075
        %v1107 = vpop.xlane.xlu0 %1106
        %v1108 = vrcp.pop %v1077
        %v1109 = vmul.f32 %v1077, %v1108
        %v1110 = vsub.f32 1.0, %v1109
        %v1111 = vmul.f32 %v1108, %v1110
        %v1112 = vadd.f32 %v1108, %v1111
        %vm1113 = vweird.f32 %v1077
        %vm1114 = vweird.f32 %v1108
        %vm1115 = vmor %vm1113, %vm1114
        %v1116 = vsel %vm1115, %v1108, %v1112
        %v1117 = vand.u32 2147483647, %v1077
        %vm1118 = vcmp.eq.f32.partialorder %v1117, 8.507059e+37
        %v1119 = vand.u32 %v1077, 2147483648
        %v1120 = vor.u32 1.1754944e-38, %v1119
        %v1121 = vsel %vm1118, %v1120, %v1116
        %v1122 = vmul.f32 %v1045, %v1121
        %v1123 = vrcp.pop %v1079
        %v1124 = vmul.f32 %v1079, %v1123
        %v1125 = vsub.f32 1.0, %v1124
        %v1126 = vmul.f32 %v1123, %v1125
        %v1127 = vadd.f32 %v1123, %v1126
        %vm1128 = vweird.f32 %v1079
        %vm1129 = vweird.f32 %v1123
        %vm1130 = vmor %vm1128, %vm1129
        %v1131 = vsel %vm1130, %v1123, %v1127
        %v1132 = vand.u32 2147483647, %v1079
        %vm1133 = vcmp.eq.f32.partialorder %v1132, 8.507059e+37
        %v1134 = vand.u32 %v1079, 2147483648
        %v1135 = vor.u32 1.1754944e-38, %v1134
        %v1136 = vsel %vm1133, %v1135, %v1131
        %v1137 = vmul.f32 %v1047, %v1136
        %v1138 = vrcp.pop %v1081
        %v1139 = vmul.f32 %v1081, %v1138
        %v1140 = vsub.f32 1.0, %v1139
        %v1141 = vmul.f32 %v1138, %v1140
        %v1142 = vadd.f32 %v1138, %v1141
        %vm1143 = vweird.f32 %v1081
        %vm1144 = vweird.f32 %v1138
        %vm1145 = vmor %vm1143, %vm1144
        %v1146 = vsel %vm1145, %v1138, %v1142
        %v1147 = vand.u32 2147483647, %v1081
        %vm1148 = vcmp.eq.f32.partialorder %v1147, 8.507059e+37
        %v1149 = vand.u32 %v1081, 2147483648
        %v1150 = vor.u32 1.1754944e-38, %v1149
        %v1151 = vsel %vm1148, %v1150, %v1146
        %v1152 = vmul.f32 %v1049, %v1151
        %v1153 = vrcp.pop %v1083
        %v1154 = vmul.f32 %v1083, %v1153
        %v1155 = vsub.f32 1.0, %v1154
        %v1156 = vmul.f32 %v1153, %v1155
        %v1157 = vadd.f32 %v1153, %v1156
        %vm1158 = vweird.f32 %v1083
        %vm1159 = vweird.f32 %v1153
        %vm1160 = vmor %vm1158, %vm1159
        %v1161 = vsel %vm1160, %v1153, %v1157
        %v1162 = vand.u32 2147483647, %v1083
        %vm1163 = vcmp.eq.f32.partialorder %v1162, 8.507059e+37
        %v1164 = vand.u32 %v1083, 2147483648
        %v1165 = vor.u32 1.1754944e-38, %v1164
        %v1166 = vsel %vm1163, %v1165, %v1161
        %v1167 = vmul.f32 %v1051, %v1166
        %v1168 = vrcp.pop %v1085
        %v1169 = vmul.f32 %v1085, %v1168
        %v1170 = vsub.f32 1.0, %v1169
        %v1171 = vmul.f32 %v1168, %v1170
        %v1172 = vadd.f32 %v1168, %v1171
        %vm1173 = vweird.f32 %v1085
        %vm1174 = vweird.f32 %v1168
        %vm1175 = vmor %vm1173, %vm1174
        %v1176 = vsel %vm1175, %v1168, %v1172
        %v1177 = vand.u32 2147483647, %v1085
        %vm1178 = vcmp.eq.f32.partialorder %v1177, 8.507059e+37
        %v1179 = vand.u32 %v1085, 2147483648
        %v1180 = vor.u32 1.1754944e-38, %v1179
        %v1181 = vsel %vm1178, %v1180, %v1176
        %v1182 = vmul.f32 %v1053, %v1181
        %v1183 = vrcp.pop %v1087
        %v1184 = vmul.f32 %v1087, %v1183
        %v1185 = vsub.f32 1.0, %v1184
        %v1186 = vmul.f32 %v1183, %v1185
        %v1187 = vadd.f32 %v1183, %v1186
        %vm1188 = vweird.f32 %v1087
        %vm1189 = vweird.f32 %v1183
        %vm1190 = vmor %vm1188, %vm1189
        %v1191 = vsel %vm1190, %v1183, %v1187
        %v1192 = vand.u32 2147483647, %v1087
        %vm1193 = vcmp.eq.f32.partialorder %v1192, 8.507059e+37
        %v1194 = vand.u32 %v1087, 2147483648
        %v1195 = vor.u32 1.1754944e-38, %v1194
        %v1196 = vsel %vm1193, %v1195, %v1191
        %v1197 = vmul.f32 %v1055, %v1196
        %v1198 = vrcp.pop %v1089
        %v1199 = vmul.f32 %v1089, %v1198
        %v1200 = vsub.f32 1.0, %v1199
        %v1201 = vmul.f32 %v1198, %v1200
        %v1202 = vadd.f32 %v1198, %v1201
        %vm1203 = vweird.f32 %v1089
        %vm1204 = vweird.f32 %v1198
        %vm1205 = vmor %vm1203, %vm1204
        %v1206 = vsel %vm1205, %v1198, %v1202
        %v1207 = vand.u32 2147483647, %v1089
        %vm1208 = vcmp.eq.f32.partialorder %v1207, 8.507059e+37
        %v1209 = vand.u32 %v1089, 2147483648
        %v1210 = vor.u32 1.1754944e-38, %v1209
        %v1211 = vsel %vm1208, %v1210, %v1206
        %v1212 = vmul.f32 %v1057, %v1211
        %v1213 = vrcp.pop %v1091
        %v1214 = vmul.f32 %v1091, %v1213
        %v1215 = vsub.f32 1.0, %v1214
        %v1216 = vmul.f32 %v1213, %v1215
        %v1217 = vadd.f32 %v1213, %v1216
        %vm1218 = vweird.f32 %v1091
        %vm1219 = vweird.f32 %v1213
        %vm1220 = vmor %vm1218, %vm1219
        %v1221 = vsel %vm1220, %v1213, %v1217
        %v1222 = vand.u32 2147483647, %v1091
        %vm1223 = vcmp.eq.f32.partialorder %v1222, 8.507059e+37
        %v1224 = vand.u32 %v1091, 2147483648
        %v1225 = vor.u32 1.1754944e-38, %v1224
        %v1226 = vsel %vm1223, %v1225, %v1221
        %v1227 = vmul.f32 %v1059, %v1226
        %v1228 = vrcp.pop %v1093
        %v1229 = vmul.f32 %v1093, %v1228
        %v1230 = vsub.f32 1.0, %v1229
        %v1231 = vmul.f32 %v1228, %v1230
        %v1232 = vadd.f32 %v1228, %v1231
        %vm1233 = vweird.f32 %v1093
        %vm1234 = vweird.f32 %v1228
        %vm1235 = vmor %vm1233, %vm1234
        %v1236 = vsel %vm1235, %v1228, %v1232
        %v1237 = vand.u32 2147483647, %v1093
        %vm1238 = vcmp.eq.f32.partialorder %v1237, 8.507059e+37
        %v1239 = vand.u32 %v1093, 2147483648
        %v1240 = vor.u32 1.1754944e-38, %v1239
        %v1241 = vsel %vm1238, %v1240, %v1236
        %v1242 = vmul.f32 %v1061, %v1241
        %v1243 = vrcp.pop %v1095
        %v1244 = vmul.f32 %v1095, %v1243
        %v1245 = vsub.f32 1.0, %v1244
        %v1246 = vmul.f32 %v1243, %v1245
        %v1247 = vadd.f32 %v1243, %v1246
        %vm1248 = vweird.f32 %v1095
        %vm1249 = vweird.f32 %v1243
        %vm1250 = vmor %vm1248, %vm1249
        %v1251 = vsel %vm1250, %v1243, %v1247
        %v1252 = vand.u32 2147483647, %v1095
        %vm1253 = vcmp.eq.f32.partialorder %v1252, 8.507059e+37
        %v1254 = vand.u32 %v1095, 2147483648
        %v1255 = vor.u32 1.1754944e-38, %v1254
        %v1256 = vsel %vm1253, %v1255, %v1251
        %v1257 = vmul.f32 %v1063, %v1256
        %v1258 = vrcp.pop %v1097
        %v1259 = vmul.f32 %v1097, %v1258
        %v1260 = vsub.f32 1.0, %v1259
        %v1261 = vmul.f32 %v1258, %v1260
        %v1262 = vadd.f32 %v1258, %v1261
        %vm1263 = vweird.f32 %v1097
        %vm1264 = vweird.f32 %v1258
        %vm1265 = vmor %vm1263, %vm1264
        %v1266 = vsel %vm1265, %v1258, %v1262
        %v1267 = vand.u32 2147483647, %v1097
        %vm1268 = vcmp.eq.f32.partialorder %v1267, 8.507059e+37
        %v1269 = vand.u32 %v1097, 2147483648
        %v1270 = vor.u32 1.1754944e-38, %v1269
        %v1271 = vsel %vm1268, %v1270, %v1266
        %v1272 = vmul.f32 %v1065, %v1271
        %v1273 = vrcp.pop %v1099
        %v1274 = vmul.f32 %v1099, %v1273
        %v1275 = vsub.f32 1.0, %v1274
        %v1276 = vmul.f32 %v1273, %v1275
        %v1277 = vadd.f32 %v1273, %v1276
        %vm1278 = vweird.f32 %v1099
        %vm1279 = vweird.f32 %v1273
        %vm1280 = vmor %vm1278, %vm1279
        %v1281 = vsel %vm1280, %v1273, %v1277
        %v1282 = vand.u32 2147483647, %v1099
        %vm1283 = vcmp.eq.f32.partialorder %v1282, 8.507059e+37
        %v1284 = vand.u32 %v1099, 2147483648
        %v1285 = vor.u32 1.1754944e-38, %v1284
        %v1286 = vsel %vm1283, %v1285, %v1281
        %v1287 = vmul.f32 %v1067, %v1286
        %v1288 = vrcp.pop %v1101
        %v1289 = vmul.f32 %v1101, %v1288
        %v1290 = vsub.f32 1.0, %v1289
        %v1291 = vmul.f32 %v1288, %v1290
        %v1292 = vadd.f32 %v1288, %v1291
        %vm1293 = vweird.f32 %v1101
        %vm1294 = vweird.f32 %v1288
        %vm1295 = vmor %vm1293, %vm1294
        %v1296 = vsel %vm1295, %v1288, %v1292
        %v1297 = vand.u32 2147483647, %v1101
        %vm1298 = vcmp.eq.f32.partialorder %v1297, 8.507059e+37
        %v1299 = vand.u32 %v1101, 2147483648
        %v1300 = vor.u32 1.1754944e-38, %v1299
        %v1301 = vsel %vm1298, %v1300, %v1296
        %v1302 = vmul.f32 %v1069, %v1301
        %v1303 = vrcp.pop %v1103
        %v1304 = vmul.f32 %v1103, %v1303
        %v1305 = vsub.f32 1.0, %v1304
        %v1306 = vmul.f32 %v1303, %v1305
        %v1307 = vadd.f32 %v1303, %v1306
        %vm1308 = vweird.f32 %v1103
        %vm1309 = vweird.f32 %v1303
        %vm1310 = vmor %vm1308, %vm1309
        %v1311 = vsel %vm1310, %v1303, %v1307
        %v1312 = vand.u32 2147483647, %v1103
        %vm1313 = vcmp.eq.f32.partialorder %v1312, 8.507059e+37
        %v1314 = vand.u32 %v1103, 2147483648
        %v1315 = vor.u32 1.1754944e-38, %v1314
        %v1316 = vsel %vm1313, %v1315, %v1311
        %v1317 = vmul.f32 %v1071, %v1316
        %v1318 = vrcp.pop %v1105
        %v1319 = vmul.f32 %v1105, %v1318
        %v1320 = vsub.f32 1.0, %v1319
        %v1321 = vmul.f32 %v1318, %v1320
        %v1322 = vadd.f32 %v1318, %v1321
        %vm1323 = vweird.f32 %v1105
        %vm1324 = vweird.f32 %v1318
        %vm1325 = vmor %vm1323, %vm1324
        %v1326 = vsel %vm1325, %v1318, %v1322
        %v1327 = vand.u32 2147483647, %v1105
        %vm1328 = vcmp.eq.f32.partialorder %v1327, 8.507059e+37
        %v1329 = vand.u32 %v1105, 2147483648
        %v1330 = vor.u32 1.1754944e-38, %v1329
        %v1331 = vsel %vm1328, %v1330, %v1326
        %v1332 = vmul.f32 %v1073, %v1331
        %v1333 = vrcp.pop %v1107
        %v1334 = vmul.f32 %v1107, %v1333
        %v1335 = vsub.f32 1.0, %v1334
        %v1336 = vmul.f32 %v1333, %v1335
        %v1337 = vadd.f32 %v1333, %v1336
        %vm1338 = vweird.f32 %v1107
        %vm1339 = vweird.f32 %v1333
        %vm1340 = vmor %vm1338, %vm1339
        %v1341 = vsel %vm1340, %v1333, %v1337
        %v1342 = vand.u32 2147483647, %v1107
        %vm1343 = vcmp.eq.f32.partialorder %v1342, 8.507059e+37
        %v1344 = vand.u32 %v1107, 2147483648
        %v1345 = vor.u32 1.1754944e-38, %v1344
        %v1346 = vsel %vm1343, %v1345, %v1341
        %v1347 = vmul.f32 %v1075, %v1346
        %1348 = vmatpush.msra.mxu0 %v816
        %1349 = vmatpush.msra.mxu0 %v813
        %1350 = vmatpush.msra.mxu0 %v810
        %1351 = vmatpush.msra.mxu0 %v807
        %1352 = vmatpush.msra.mxu0 %v804
        %1353 = vmatpush.msra.mxu0 %v801
        %1354 = vmatpush.msra.mxu0 %v798
        %1355 = vmatpush.msra.mxu0 %v795
        %1356 = vmatpush.msra.mxu0 %v792
        %1357 = vmatpush.msra.mxu0 %v789
        %1358 = vmatpush.msra.mxu0 %v786
        %1359 = vmatpush.msra.mxu0 %v783
        %1360 = vmatpush.msra.mxu0 %v780
        %1361 = vmatpush.msra.mxu0 %v777
        %1362 = vmatpush.msra.mxu0 %v774
        %1363 = vmatpush.msra.mxu0 %v771
        %1364 = vmatmul.f32.gmra.mxu0 %v1122
        %v1365 = vpop.f32.mrf.mxu0
        %v1366 = vadd.f32 0.0, %v1365
        %1367 = vmatmul.f32.gmra.mxu0 %v1137
        %v1368 = vpop.f32.mrf.mxu0
        %v1369 = vadd.f32 0.0, %v1368
        %1370 = vmatmul.f32.gmra.mxu0 %v1152
        %v1371 = vpop.f32.mrf.mxu0
        %v1372 = vadd.f32 0.0, %v1371
        %1373 = vmatmul.f32.gmra.mxu0 %v1167
        %v1374 = vpop.f32.mrf.mxu0
        %v1375 = vadd.f32 0.0, %v1374
        %1376 = vmatmul.f32.gmra.mxu0 %v1182
        %v1377 = vpop.f32.mrf.mxu0
        %v1378 = vadd.f32 0.0, %v1377
        %1379 = vmatmul.f32.gmra.mxu0 %v1197
        %v1380 = vpop.f32.mrf.mxu0
        %v1381 = vadd.f32 0.0, %v1380
        %1382 = vmatmul.f32.gmra.mxu0 %v1212
        %v1383 = vpop.f32.mrf.mxu0
        %v1384 = vadd.f32 0.0, %v1383
        %1385 = vmatmul.f32.gmra.mxu0 %v1227
        %v1386 = vpop.f32.mrf.mxu0
        %v1387 = vadd.f32 0.0, %v1386
        %1388 = vmatmul.f32.gmra.mxu0 %v1242
        %v1389 = vpop.f32.mrf.mxu0
        %v1390 = vadd.f32 0.0, %v1389
        %1391 = vmatmul.f32.gmra.mxu0 %v1257
        %v1392 = vpop.f32.mrf.mxu0
        %v1393 = vadd.f32 0.0, %v1392
        %1394 = vmatmul.f32.gmra.mxu0 %v1272
        %v1395 = vpop.f32.mrf.mxu0
        %v1396 = vadd.f32 0.0, %v1395
        %1397 = vmatmul.f32.gmra.mxu0 %v1287
        %v1398 = vpop.f32.mrf.mxu0
        %v1399 = vadd.f32 0.0, %v1398
        %1400 = vmatmul.f32.gmra.mxu0 %v1302
        %v1401 = vpop.f32.mrf.mxu0
        %v1402 = vadd.f32 0.0, %v1401
        %1403 = vmatmul.f32.gmra.mxu0 %v1317
        %v1404 = vpop.f32.mrf.mxu0
        %v1405 = vadd.f32 0.0, %v1404
        %1406 = vmatmul.f32.gmra.mxu0 %v1332
        %v1407 = vpop.f32.mrf.mxu0
        %v1408 = vadd.f32 0.0, %v1407
        %1409 = vmatmul.f32.gmra.mxu0 %v1347
        %v1410 = vpop.f32.mrf.mxu0
        %v1411 = vadd.f32 0.0, %v1410
        %1412 = vdwg.mxu0
        %1413 = vrot.lane.b32.xlu0 %v609, 112
        %v1414 = vpop.permute.xlu0 %1413
        %1415 = vrot.lane.b32.xlu0 %v612, 112
        %v1416 = vpop.permute.xlu0 %1415
        %1417 = vrot.lane.b32.xlu0 %v615, 112
        %v1418 = vpop.permute.xlu0 %1417
        %1419 = vrot.lane.b32.xlu0 %v618, 112
        %v1420 = vpop.permute.xlu0 %1419
        %1421 = vrot.lane.b32.xlu0 %v621, 112
        %v1422 = vpop.permute.xlu0 %1421
        %1423 = vrot.lane.b32.xlu0 %v624, 112
        %v1424 = vpop.permute.xlu0 %1423
        %1425 = vrot.lane.b32.xlu0 %v627, 112
        %v1426 = vpop.permute.xlu0 %1425
        %1427 = vrot.lane.b32.xlu0 %v630, 112
        %v1428 = vpop.permute.xlu0 %1427
        %1429 = vrot.lane.b32.xlu0 %v633, 112
        %v1430 = vpop.permute.xlu0 %1429
        %1431 = vrot.lane.b32.xlu0 %v636, 112
        %v1432 = vpop.permute.xlu0 %1431
        %1433 = vrot.lane.b32.xlu0 %v639, 112
        %v1434 = vpop.permute.xlu0 %1433
        %1435 = vrot.lane.b32.xlu0 %v642, 112
        %v1436 = vpop.permute.xlu0 %1435
        %1437 = vrot.lane.b32.xlu0 %v645, 112
        %v1438 = vpop.permute.xlu0 %1437
        %1439 = vrot.lane.b32.xlu0 %v648, 112
        %v1440 = vpop.permute.xlu0 %1439
        %1441 = vrot.lane.b32.xlu0 %v651, 112
        %v1442 = vpop.permute.xlu0 %1441
        %1443 = vrot.lane.b32.xlu0 %v654, 112
        %v1444 = vpop.permute.xlu0 %1443
        %1445 = vrot.lane.b32.xlu0 %v690, 112
        %v1446 = vpop.permute.xlu0 %1445
        %1447 = vrot.lane.b32.xlu0 %v693, 112
        %v1448 = vpop.permute.xlu0 %1447
        %1449 = vrot.lane.b32.xlu0 %v696, 112
        %v1450 = vpop.permute.xlu0 %1449
        %1451 = vrot.lane.b32.xlu0 %v699, 112
        %v1452 = vpop.permute.xlu0 %1451
        %1453 = vrot.lane.b32.xlu0 %v702, 112
        %v1454 = vpop.permute.xlu0 %1453
        %1455 = vrot.lane.b32.xlu0 %v705, 112
        %v1456 = vpop.permute.xlu0 %1455
        %1457 = vrot.lane.b32.xlu0 %v708, 112
        %v1458 = vpop.permute.xlu0 %1457
        %1459 = vrot.lane.b32.xlu0 %v711, 112
        %v1460 = vpop.permute.xlu0 %1459
        %1461 = vrot.lane.b32.xlu0 %v714, 112
        %v1462 = vpop.permute.xlu0 %1461
        %1463 = vrot.lane.b32.xlu0 %v717, 112
        %v1464 = vpop.permute.xlu0 %1463
        %1465 = vrot.lane.b32.xlu0 %v720, 112
        %v1466 = vpop.permute.xlu0 %1465
        %1467 = vrot.lane.b32.xlu0 %v723, 112
        %v1468 = vpop.permute.xlu0 %1467
        %1469 = vrot.lane.b32.xlu0 %v726, 112
        %v1470 = vpop.permute.xlu0 %1469
        %1471 = vrot.lane.b32.xlu0 %v729, 112
        %v1472 = vpop.permute.xlu0 %1471
        %1473 = vrot.lane.b32.xlu0 %v732, 112
        %v1474 = vpop.permute.xlu0 %1473
        %1475 = vrot.lane.b32.xlu0 %v735, 112
        %v1476 = vpop.permute.xlu0 %1475
        %v1477 = vsel %vm818, %v1414, 0
        %v1479 = vsel %vm818, %v1416, 0
        %v1481 = vsel %vm818, %v1418, 0
        %v1483 = vsel %vm818, %v1420, 0
        %v1485 = vsel %vm818, %v1422, 0
        %v1487 = vsel %vm818, %v1424, 0
        %v1489 = vsel %vm818, %v1426, 0
        %v1491 = vsel %vm818, %v1428, 0
        %v1493 = vsel %vm818, %v1430, 0
        %v1495 = vsel %vm818, %v1432, 0
        %v1497 = vsel %vm818, %v1434, 0
        %v1499 = vsel %vm818, %v1436, 0
        %v1501 = vsel %vm818, %v1438, 0
        %v1503 = vsel %vm818, %v1440, 0
        %v1505 = vsel %vm818, %v1442, 0
        %v1507 = vsel %vm818, %v1444, 0
        %v1509 = vsel %vm818, %v1446, 0
        %v1511 = vsel %vm818, %v1448, 0
        %v1513 = vsel %vm818, %v1450, 0
        %v1515 = vsel %vm818, %v1452, 0
        %v1517 = vsel %vm818, %v1454, 0
        %v1519 = vsel %vm818, %v1456, 0
        %v1521 = vsel %vm818, %v1458, 0
        %v1523 = vsel %vm818, %v1460, 0
        %v1525 = vsel %vm818, %v1462, 0
        %v1527 = vsel %vm818, %v1464, 0
        %v1529 = vsel %vm818, %v1466, 0
        %v1531 = vsel %vm818, %v1468, 0
        %v1533 = vsel %vm818, %v1470, 0
        %v1535 = vsel %vm818, %v1472, 0
        %v1537 = vsel %vm818, %v1474, 0
        %v1539 = vsel %vm818, %v1476, 0
        %1541 = vmatpush.xpose.msra.mxu0 %v1539
        %1542 = vmatpush.xpose.msra.mxu0 %v1537
        %1543 = vmatpush.xpose.msra.mxu0 %v1535
        %1544 = vmatpush.xpose.msra.mxu0 %v1533
        %1545 = vmatpush.xpose.msra.mxu0 %v1531
        %1546 = vmatpush.xpose.msra.mxu0 %v1529
        %1547 = vmatpush.xpose.msra.mxu0 %v1527
        %1548 = vmatpush.xpose.msra.mxu0 %v1525
        %1549 = vmatpush.xpose.msra.mxu0 %v1523
        %1550 = vmatpush.xpose.msra.mxu0 %v1521
        %1551 = vmatpush.xpose.msra.mxu0 %v1519
        %1552 = vmatpush.xpose.msra.mxu0 %v1517
        %1553 = vmatpush.xpose.msra.mxu0 %v1515
        %1554 = vmatpush.xpose.msra.mxu0 %v1513
        %1555 = vmatpush.xpose.msra.mxu0 %v1511
        %1556 = vmatpush.xpose.msra.mxu0 %v1509
        %1557 = vmatmul.f32.gmra.mxu0 %v1477
        %v1558 = vpop.f32.mrf.mxu0
        %v1559 = vadd.f32 0.0, %v1558
        %1560 = vmatmul.f32.gmra.mxu0 %v1479
        %v1561 = vpop.f32.mrf.mxu0
        %v1562 = vadd.f32 0.0, %v1561
        %1563 = vmatmul.f32.gmra.mxu0 %v1481
        %v1564 = vpop.f32.mrf.mxu0
        %v1565 = vadd.f32 0.0, %v1564
        %1566 = vmatmul.f32.gmra.mxu0 %v1483
        %v1567 = vpop.f32.mrf.mxu0
        %v1568 = vadd.f32 0.0, %v1567
        %1569 = vmatmul.f32.gmra.mxu0 %v1485
        %v1570 = vpop.f32.mrf.mxu0
        %v1571 = vadd.f32 0.0, %v1570
        %1572 = vmatmul.f32.gmra.mxu0 %v1487
        %v1573 = vpop.f32.mrf.mxu0
        %v1574 = vadd.f32 0.0, %v1573
        %1575 = vmatmul.f32.gmra.mxu0 %v1489
        %v1576 = vpop.f32.mrf.mxu0
        %v1577 = vadd.f32 0.0, %v1576
        %1578 = vmatmul.f32.gmra.mxu0 %v1491
        %v1579 = vpop.f32.mrf.mxu0
        %v1580 = vadd.f32 0.0, %v1579
        %1581 = vmatmul.f32.gmra.mxu0 %v1493
        %v1582 = vpop.f32.mrf.mxu0
        %v1583 = vadd.f32 0.0, %v1582
        %1584 = vmatmul.f32.gmra.mxu0 %v1495
        %v1585 = vpop.f32.mrf.mxu0
        %v1586 = vadd.f32 0.0, %v1585
        %1587 = vmatmul.f32.gmra.mxu0 %v1497
        %v1588 = vpop.f32.mrf.mxu0
        %v1589 = vadd.f32 0.0, %v1588
        %1590 = vmatmul.f32.gmra.mxu0 %v1499
        %v1591 = vpop.f32.mrf.mxu0
        %v1592 = vadd.f32 0.0, %v1591
        %1593 = vmatmul.f32.gmra.mxu0 %v1501
        %v1594 = vpop.f32.mrf.mxu0
        %v1595 = vadd.f32 0.0, %v1594
        %1596 = vmatmul.f32.gmra.mxu0 %v1503
        %v1597 = vpop.f32.mrf.mxu0
        %v1598 = vadd.f32 0.0, %v1597
        %1599 = vmatmul.f32.gmra.mxu0 %v1505
        %v1600 = vpop.f32.mrf.mxu0
        %v1601 = vadd.f32 0.0, %v1600
        %1602 = vmatmul.f32.gmra.mxu0 %v1507
        %v1603 = vpop.f32.mrf.mxu0
        %v1604 = vadd.f32 0.0, %v1603
        %1605 = vdwg.mxu0
        %v1606 = vmul.f32 %v1559, 0.088388346
        %v1607 = vmul.f32 %v1562, 0.088388346
        %v1608 = vmul.f32 %v1565, 0.088388346
        %v1609 = vmul.f32 %v1568, 0.088388346
        %v1610 = vmul.f32 %v1571, 0.088388346
        %v1611 = vmul.f32 %v1574, 0.088388346
        %v1612 = vmul.f32 %v1577, 0.088388346
        %v1613 = vmul.f32 %v1580, 0.088388346
        %v1614 = vmul.f32 %v1583, 0.088388346
        %v1615 = vmul.f32 %v1586, 0.088388346
        %v1616 = vmul.f32 %v1589, 0.088388346
        %v1617 = vmul.f32 %v1592, 0.088388346
        %v1618 = vmul.f32 %v1595, 0.088388346
        %v1619 = vmul.f32 %v1598, 0.088388346
        %v1620 = vmul.f32 %v1601, 0.088388346
        %v1621 = vmul.f32 %v1604, 0.088388346
        %1622 = vmax.xlane.f32.xlu0 %v1606
        %v1623 = vpop.xlane.xlu0 %1622
        %1624 = vmax.xlane.f32.xlu0 %v1607
        %v1625 = vpop.xlane.xlu0 %1624
        %1626 = vmax.xlane.f32.xlu0 %v1608
        %v1627 = vpop.xlane.xlu0 %1626
        %1628 = vmax.xlane.f32.xlu0 %v1609
        %v1629 = vpop.xlane.xlu0 %1628
        %1630 = vmax.xlane.f32.xlu0 %v1610
        %v1631 = vpop.xlane.xlu0 %1630
        %1632 = vmax.xlane.f32.xlu0 %v1611
        %v1633 = vpop.xlane.xlu0 %1632
        %1634 = vmax.xlane.f32.xlu0 %v1612
        %v1635 = vpop.xlane.xlu0 %1634
        %1636 = vmax.xlane.f32.xlu0 %v1613
        %v1637 = vpop.xlane.xlu0 %1636
        %1638 = vmax.xlane.f32.xlu0 %v1614
        %v1639 = vpop.xlane.xlu0 %1638
        %1640 = vmax.xlane.f32.xlu0 %v1615
        %v1641 = vpop.xlane.xlu0 %1640
        %1642 = vmax.xlane.f32.xlu0 %v1616
        %v1643 = vpop.xlane.xlu0 %1642
        %1644 = vmax.xlane.f32.xlu0 %v1617
        %v1645 = vpop.xlane.xlu0 %1644
        %1646 = vmax.xlane.f32.xlu0 %v1618
        %v1647 = vpop.xlane.xlu0 %1646
        %1648 = vmax.xlane.f32.xlu0 %v1619
        %v1649 = vpop.xlane.xlu0 %1648
        %1650 = vmax.xlane.f32.xlu0 %v1620
        %v1651 = vpop.xlane.xlu0 %1650
        %1652 = vmax.xlane.f32.xlu0 %v1621
        %v1653 = vpop.xlane.xlu0 %1652
        %v1654 = vsub.f32 %v1606, %v1623
        %v1655 = vsub.f32 %v1607, %v1625
        %v1656 = vsub.f32 %v1608, %v1627
        %v1657 = vsub.f32 %v1609, %v1629
        %v1658 = vsub.f32 %v1610, %v1631
        %v1659 = vsub.f32 %v1611, %v1633
        %v1660 = vsub.f32 %v1612, %v1635
        %v1661 = vsub.f32 %v1613, %v1637
        %v1662 = vsub.f32 %v1614, %v1639
        %v1663 = vsub.f32 %v1615, %v1641
        %v1664 = vsub.f32 %v1616, %v1643
        %v1665 = vsub.f32 %v1617, %v1645
        %v1666 = vsub.f32 %v1618, %v1647
        %v1667 = vsub.f32 %v1619, %v1649
        %v1668 = vsub.f32 %v1620, %v1651
        %v1669 = vsub.f32 %v1621, %v1653
        %v1670 = vmul.f32 %v1654, 1.442695
        %v1671 = vpow.pop %v1670
        %v1672 = vmul.f32 %v1655, 1.442695
        %v1673 = vpow.pop %v1672
        %v1674 = vmul.f32 %v1656, 1.442695
        %v1675 = vpow.pop %v1674
        %v1676 = vmul.f32 %v1657, 1.442695
        %v1677 = vpow.pop %v1676
        %v1678 = vmul.f32 %v1658, 1.442695
        %v1679 = vpow.pop %v1678
        %v1680 = vmul.f32 %v1659, 1.442695
        %v1681 = vpow.pop %v1680
        %v1682 = vmul.f32 %v1660, 1.442695
        %v1683 = vpow.pop %v1682
        %v1684 = vmul.f32 %v1661, 1.442695
        %v1685 = vpow.pop %v1684
        %v1686 = vmul.f32 %v1662, 1.442695
        %v1687 = vpow.pop %v1686
        %v1688 = vmul.f32 %v1663, 1.442695
        %v1689 = vpow.pop %v1688
        %v1690 = vmul.f32 %v1664, 1.442695
        %v1691 = vpow.pop %v1690
        %v1692 = vmul.f32 %v1665, 1.442695
        %v1693 = vpow.pop %v1692
        %v1694 = vmul.f32 %v1666, 1.442695
        %v1695 = vpow.pop %v1694
        %v1696 = vmul.f32 %v1667, 1.442695
        %v1697 = vpow.pop %v1696
        %v1698 = vmul.f32 %v1668, 1.442695
        %v1699 = vpow.pop %v1698
        %v1700 = vmul.f32 %v1669, 1.442695
        %v1701 = vpow.pop %v1700
        %1702 = vadd.xlane.f32.xlu0 %v1671
        %v1703 = vpop.xlane.xlu0 %1702
        %1704 = vadd.xlane.f32.xlu0 %v1673
        %v1705 = vpop.xlane.xlu0 %1704
        %1706 = vadd.xlane.f32.xlu0 %v1675
        %v1707 = vpop.xlane.xlu0 %1706
        %1708 = vadd.xlane.f32.xlu0 %v1677
        %v1709 = vpop.xlane.xlu0 %1708
        %1710 = vadd.xlane.f32.xlu0 %v1679
        %v1711 = vpop.xlane.xlu0 %1710
        %1712 = vadd.xlane.f32.xlu0 %v1681
        %v1713 = vpop.xlane.xlu0 %1712
        %1714 = vadd.xlane.f32.xlu0 %v1683
        %v1715 = vpop.xlane.xlu0 %1714
        %1716 = vadd.xlane.f32.xlu0 %v1685
        %v1717 = vpop.xlane.xlu0 %1716
        %1718 = vadd.xlane.f32.xlu0 %v1687
        %v1719 = vpop.xlane.xlu0 %1718
        %1720 = vadd.xlane.f32.xlu0 %v1689
        %v1721 = vpop.xlane.xlu0 %1720
        %1722 = vadd.xlane.f32.xlu0 %v1691
        %v1723 = vpop.xlane.xlu0 %1722
        %1724 = vadd.xlane.f32.xlu0 %v1693
        %v1725 = vpop.xlane.xlu0 %1724
        %1726 = vadd.xlane.f32.xlu0 %v1695
        %v1727 = vpop.xlane.xlu0 %1726
        %1728 = vadd.xlane.f32.xlu0 %v1697
        %v1729 = vpop.xlane.xlu0 %1728
        %1730 = vadd.xlane.f32.xlu0 %v1699
        %v1731 = vpop.xlane.xlu0 %1730
        %1732 = vadd.xlane.f32.xlu0 %v1701
        %v1733 = vpop.xlane.xlu0 %1732
        %v1734 = vrcp.pop %v1703
        %v1735 = vmul.f32 %v1703, %v1734
        %v1736 = vsub.f32 1.0, %v1735
        %v1737 = vmul.f32 %v1734, %v1736
        %v1738 = vadd.f32 %v1734, %v1737
        %vm1739 = vweird.f32 %v1703
        %vm1740 = vweird.f32 %v1734
        %vm1741 = vmor %vm1739, %vm1740
        %v1742 = vsel %vm1741, %v1734, %v1738
        %v1743 = vand.u32 2147483647, %v1703
        %vm1744 = vcmp.eq.f32.partialorder %v1743, 8.507059e+37
        %v1745 = vand.u32 %v1703, 2147483648
        %v1746 = vor.u32 1.1754944e-38, %v1745
        %v1747 = vsel %vm1744, %v1746, %v1742
        %v1748 = vmul.f32 %v1671, %v1747
        %v1749 = vrcp.pop %v1705
        %v1750 = vmul.f32 %v1705, %v1749
        %v1751 = vsub.f32 1.0, %v1750
        %v1752 = vmul.f32 %v1749, %v1751
        %v1753 = vadd.f32 %v1749, %v1752
        %vm1754 = vweird.f32 %v1705
        %vm1755 = vweird.f32 %v1749
        %vm1756 = vmor %vm1754, %vm1755
        %v1757 = vsel %vm1756, %v1749, %v1753
        %v1758 = vand.u32 2147483647, %v1705
        %vm1759 = vcmp.eq.f32.partialorder %v1758, 8.507059e+37
        %v1760 = vand.u32 %v1705, 2147483648
        %v1761 = vor.u32 1.1754944e-38, %v1760
        %v1762 = vsel %vm1759, %v1761, %v1757
        %v1763 = vmul.f32 %v1673, %v1762
        %v1764 = vrcp.pop %v1707
        %v1765 = vmul.f32 %v1707, %v1764
        %v1766 = vsub.f32 1.0, %v1765
        %v1767 = vmul.f32 %v1764, %v1766
        %v1768 = vadd.f32 %v1764, %v1767
        %vm1769 = vweird.f32 %v1707
        %vm1770 = vweird.f32 %v1764
        %vm1771 = vmor %vm1769, %vm1770
        %v1772 = vsel %vm1771, %v1764, %v1768
        %v1773 = vand.u32 2147483647, %v1707
        %vm1774 = vcmp.eq.f32.partialorder %v1773, 8.507059e+37
        %v1775 = vand.u32 %v1707, 2147483648
        %v1776 = vor.u32 1.1754944e-38, %v1775
        %v1777 = vsel %vm1774, %v1776, %v1772
        %v1778 = vmul.f32 %v1675, %v1777
        %v1779 = vrcp.pop %v1709
        %v1780 = vmul.f32 %v1709, %v1779
        %v1781 = vsub.f32 1.0, %v1780
        %v1782 = vmul.f32 %v1779, %v1781
        %v1783 = vadd.f32 %v1779, %v1782
        %vm1784 = vweird.f32 %v1709
        %vm1785 = vweird.f32 %v1779
        %vm1786 = vmor %vm1784, %vm1785
        %v1787 = vsel %vm1786, %v1779, %v1783
        %v1788 = vand.u32 2147483647, %v1709
        %vm1789 = vcmp.eq.f32.partialorder %v1788, 8.507059e+37
        %v1790 = vand.u32 %v1709, 2147483648
        %v1791 = vor.u32 1.1754944e-38, %v1790
        %v1792 = vsel %vm1789, %v1791, %v1787
        %v1793 = vmul.f32 %v1677, %v1792
        %v1794 = vrcp.pop %v1711
        %v1795 = vmul.f32 %v1711, %v1794
        %v1796 = vsub.f32 1.0, %v1795
        %v1797 = vmul.f32 %v1794, %v1796
        %v1798 = vadd.f32 %v1794, %v1797
        %vm1799 = vweird.f32 %v1711
        %vm1800 = vweird.f32 %v1794
        %vm1801 = vmor %vm1799, %vm1800
        %v1802 = vsel %vm1801, %v1794, %v1798
        %v1803 = vand.u32 2147483647, %v1711
        %vm1804 = vcmp.eq.f32.partialorder %v1803, 8.507059e+37
        %v1805 = vand.u32 %v1711, 2147483648
        %v1806 = vor.u32 1.1754944e-38, %v1805
        %v1807 = vsel %vm1804, %v1806, %v1802
        %v1808 = vmul.f32 %v1679, %v1807
        %v1809 = vrcp.pop %v1713
        %v1810 = vmul.f32 %v1713, %v1809
        %v1811 = vsub.f32 1.0, %v1810
        %v1812 = vmul.f32 %v1809, %v1811
        %v1813 = vadd.f32 %v1809, %v1812
        %vm1814 = vweird.f32 %v1713
        %vm1815 = vweird.f32 %v1809
        %vm1816 = vmor %vm1814, %vm1815
        %v1817 = vsel %vm1816, %v1809, %v1813
        %v1818 = vand.u32 2147483647, %v1713
        %vm1819 = vcmp.eq.f32.partialorder %v1818, 8.507059e+37
        %v1820 = vand.u32 %v1713, 2147483648
        %v1821 = vor.u32 1.1754944e-38, %v1820
        %v1822 = vsel %vm1819, %v1821, %v1817
        %v1823 = vmul.f32 %v1681, %v1822
        %v1824 = vrcp.pop %v1715
        %v1825 = vmul.f32 %v1715, %v1824
        %v1826 = vsub.f32 1.0, %v1825
        %v1827 = vmul.f32 %v1824, %v1826
        %v1828 = vadd.f32 %v1824, %v1827
        %vm1829 = vweird.f32 %v1715
        %vm1830 = vweird.f32 %v1824
        %vm1831 = vmor %vm1829, %vm1830
        %v1832 = vsel %vm1831, %v1824, %v1828
        %v1833 = vand.u32 2147483647, %v1715
        %vm1834 = vcmp.eq.f32.partialorder %v1833, 8.507059e+37
        %v1835 = vand.u32 %v1715, 2147483648
        %v1836 = vor.u32 1.1754944e-38, %v1835
        %v1837 = vsel %vm1834, %v1836, %v1832
        %v1838 = vmul.f32 %v1683, %v1837
        %v1839 = vrcp.pop %v1717
        %v1840 = vmul.f32 %v1717, %v1839
        %v1841 = vsub.f32 1.0, %v1840
        %v1842 = vmul.f32 %v1839, %v1841
        %v1843 = vadd.f32 %v1839, %v1842
        %vm1844 = vweird.f32 %v1717
        %vm1845 = vweird.f32 %v1839
        %vm1846 = vmor %vm1844, %vm1845
        %v1847 = vsel %vm1846, %v1839, %v1843
        %v1848 = vand.u32 2147483647, %v1717
        %vm1849 = vcmp.eq.f32.partialorder %v1848, 8.507059e+37
        %v1850 = vand.u32 %v1717, 2147483648
        %v1851 = vor.u32 1.1754944e-38, %v1850
        %v1852 = vsel %vm1849, %v1851, %v1847
        %v1853 = vmul.f32 %v1685, %v1852
        %v1854 = vrcp.pop %v1719
        %v1855 = vmul.f32 %v1719, %v1854
        %v1856 = vsub.f32 1.0, %v1855
        %v1857 = vmul.f32 %v1854, %v1856
        %v1858 = vadd.f32 %v1854, %v1857
        %vm1859 = vweird.f32 %v1719
        %vm1860 = vweird.f32 %v1854
        %vm1861 = vmor %vm1859, %vm1860
        %v1862 = vsel %vm1861, %v1854, %v1858
        %v1863 = vand.u32 2147483647, %v1719
        %vm1864 = vcmp.eq.f32.partialorder %v1863, 8.507059e+37
        %v1865 = vand.u32 %v1719, 2147483648
        %v1866 = vor.u32 1.1754944e-38, %v1865
        %v1867 = vsel %vm1864, %v1866, %v1862
        %v1868 = vmul.f32 %v1687, %v1867
        %v1869 = vrcp.pop %v1721
        %v1870 = vmul.f32 %v1721, %v1869
        %v1871 = vsub.f32 1.0, %v1870
        %v1872 = vmul.f32 %v1869, %v1871
        %v1873 = vadd.f32 %v1869, %v1872
        %vm1874 = vweird.f32 %v1721
        %vm1875 = vweird.f32 %v1869
        %vm1876 = vmor %vm1874, %vm1875
        %v1877 = vsel %vm1876, %v1869, %v1873
        %v1878 = vand.u32 2147483647, %v1721
        %vm1879 = vcmp.eq.f32.partialorder %v1878, 8.507059e+37
        %v1880 = vand.u32 %v1721, 2147483648
        %v1881 = vor.u32 1.1754944e-38, %v1880
        %v1882 = vsel %vm1879, %v1881, %v1877
        %v1883 = vmul.f32 %v1689, %v1882
        %v1884 = vrcp.pop %v1723
        %v1885 = vmul.f32 %v1723, %v1884
        %v1886 = vsub.f32 1.0, %v1885
        %v1887 = vmul.f32 %v1884, %v1886
        %v1888 = vadd.f32 %v1884, %v1887
        %vm1889 = vweird.f32 %v1723
        %vm1890 = vweird.f32 %v1884
        %vm1891 = vmor %vm1889, %vm1890
        %v1892 = vsel %vm1891, %v1884, %v1888
        %v1893 = vand.u32 2147483647, %v1723
        %vm1894 = vcmp.eq.f32.partialorder %v1893, 8.507059e+37
        %v1895 = vand.u32 %v1723, 2147483648
        %v1896 = vor.u32 1.1754944e-38, %v1895
        %v1897 = vsel %vm1894, %v1896, %v1892
        %v1898 = vmul.f32 %v1691, %v1897
        %v1899 = vrcp.pop %v1725
        %v1900 = vmul.f32 %v1725, %v1899
        %v1901 = vsub.f32 1.0, %v1900
        %v1902 = vmul.f32 %v1899, %v1901
        %v1903 = vadd.f32 %v1899, %v1902
        %vm1904 = vweird.f32 %v1725
        %vm1905 = vweird.f32 %v1899
        %vm1906 = vmor %vm1904, %vm1905
        %v1907 = vsel %vm1906, %v1899, %v1903
        %v1908 = vand.u32 2147483647, %v1725
        %vm1909 = vcmp.eq.f32.partialorder %v1908, 8.507059e+37
        %v1910 = vand.u32 %v1725, 2147483648
        %v1911 = vor.u32 1.1754944e-38, %v1910
        %v1912 = vsel %vm1909, %v1911, %v1907
        %v1913 = vmul.f32 %v1693, %v1912
        %v1914 = vrcp.pop %v1727
        %v1915 = vmul.f32 %v1727, %v1914
        %v1916 = vsub.f32 1.0, %v1915
        %v1917 = vmul.f32 %v1914, %v1916
        %v1918 = vadd.f32 %v1914, %v1917
        %vm1919 = vweird.f32 %v1727
        %vm1920 = vweird.f32 %v1914
        %vm1921 = vmor %vm1919, %vm1920
        %v1922 = vsel %vm1921, %v1914, %v1918
        %v1923 = vand.u32 2147483647, %v1727
        %vm1924 = vcmp.eq.f32.partialorder %v1923, 8.507059e+37
        %v1925 = vand.u32 %v1727, 2147483648
        %v1926 = vor.u32 1.1754944e-38, %v1925
        %v1927 = vsel %vm1924, %v1926, %v1922
        %v1928 = vmul.f32 %v1695, %v1927
        %v1929 = vrcp.pop %v1729
        %v1930 = vmul.f32 %v1729, %v1929
        %v1931 = vsub.f32 1.0, %v1930
        %v1932 = vmul.f32 %v1929, %v1931
        %v1933 = vadd.f32 %v1929, %v1932
        %vm1934 = vweird.f32 %v1729
        %vm1935 = vweird.f32 %v1929
        %vm1936 = vmor %vm1934, %vm1935
        %v1937 = vsel %vm1936, %v1929, %v1933
        %v1938 = vand.u32 2147483647, %v1729
        %vm1939 = vcmp.eq.f32.partialorder %v1938, 8.507059e+37
        %v1940 = vand.u32 %v1729, 2147483648
        %v1941 = vor.u32 1.1754944e-38, %v1940
        %v1942 = vsel %vm1939, %v1941, %v1937
        %v1943 = vmul.f32 %v1697, %v1942
        %v1944 = vrcp.pop %v1731
        %v1945 = vmul.f32 %v1731, %v1944
        %v1946 = vsub.f32 1.0, %v1945
        %v1947 = vmul.f32 %v1944, %v1946
        %v1948 = vadd.f32 %v1944, %v1947
        %vm1949 = vweird.f32 %v1731
        %vm1950 = vweird.f32 %v1944
        %vm1951 = vmor %vm1949, %vm1950
        %v1952 = vsel %vm1951, %v1944, %v1948
        %v1953 = vand.u32 2147483647, %v1731
        %vm1954 = vcmp.eq.f32.partialorder %v1953, 8.507059e+37
        %v1955 = vand.u32 %v1731, 2147483648
        %v1956 = vor.u32 1.1754944e-38, %v1955
        %v1957 = vsel %vm1954, %v1956, %v1952
        %v1958 = vmul.f32 %v1699, %v1957
        %v1959 = vrcp.pop %v1733
        %v1960 = vmul.f32 %v1733, %v1959
        %v1961 = vsub.f32 1.0, %v1960
        %v1962 = vmul.f32 %v1959, %v1961
        %v1963 = vadd.f32 %v1959, %v1962
        %vm1964 = vweird.f32 %v1733
        %vm1965 = vweird.f32 %v1959
        %vm1966 = vmor %vm1964, %vm1965
        %v1967 = vsel %vm1966, %v1959, %v1963
        %v1968 = vand.u32 2147483647, %v1733
        %vm1969 = vcmp.eq.f32.partialorder %v1968, 8.507059e+37
        %v1970 = vand.u32 %v1733, 2147483648
        %v1971 = vor.u32 1.1754944e-38, %v1970
        %v1972 = vsel %vm1969, %v1971, %v1967
        %v1973 = vmul.f32 %v1701, %v1972
        %1990 = vrot.lane.b32.xlu0 %v771, 112
        %v1991 = vpop.permute.xlu0 %1990
        %1992 = vrot.lane.b32.xlu0 %v774, 112
        %v1993 = vpop.permute.xlu0 %1992
        %1994 = vrot.lane.b32.xlu0 %v777, 112
        %v1995 = vpop.permute.xlu0 %1994
        %1996 = vrot.lane.b32.xlu0 %v780, 112
        %v1997 = vpop.permute.xlu0 %1996
        %1998 = vrot.lane.b32.xlu0 %v783, 112
        %v1999 = vpop.permute.xlu0 %1998
        %2000 = vrot.lane.b32.xlu0 %v786, 112
        %v2001 = vpop.permute.xlu0 %2000
        %2002 = vrot.lane.b32.xlu0 %v789, 112
        %v2003 = vpop.permute.xlu0 %2002
        %2004 = vrot.lane.b32.xlu0 %v792, 112
        %v2005 = vpop.permute.xlu0 %2004
        %2006 = vrot.lane.b32.xlu0 %v795, 112
        %v2007 = vpop.permute.xlu0 %2006
        %2008 = vrot.lane.b32.xlu0 %v798, 112
        %v2009 = vpop.permute.xlu0 %2008
        %2010 = vrot.lane.b32.xlu0 %v801, 112
        %v2011 = vpop.permute.xlu0 %2010
        %2012 = vrot.lane.b32.xlu0 %v804, 112
        %v2013 = vpop.permute.xlu0 %2012
        %2014 = vrot.lane.b32.xlu0 %v807, 112
        %v2015 = vpop.permute.xlu0 %2014
        %2016 = vrot.lane.b32.xlu0 %v810, 112
        %v2017 = vpop.permute.xlu0 %2016
        %2018 = vrot.lane.b32.xlu0 %v813, 112
        %v2019 = vpop.permute.xlu0 %2018
        %2020 = vrot.lane.b32.xlu0 %v816, 112
        %v2021 = vpop.permute.xlu0 %2020
        %2038 = vmatpush.msra.mxu0 %v2021
        %2039 = vmatpush.msra.mxu0 %v2019
        %2040 = vmatpush.msra.mxu0 %v2017
        %2041 = vmatpush.msra.mxu0 %v2015
        %2042 = vmatpush.msra.mxu0 %v2013
        %2043 = vmatpush.msra.mxu0 %v2011
        %2044 = vmatpush.msra.mxu0 %v2009
        %2045 = vmatpush.msra.mxu0 %v2007
        %2046 = vmatpush.msra.mxu0 %v2005
        %2047 = vmatpush.msra.mxu0 %v2003
        %2048 = vmatpush.msra.mxu0 %v2001
        %2049 = vmatpush.msra.mxu0 %v1999
        %2050 = vmatpush.msra.mxu0 %v1997
        %2051 = vmatpush.msra.mxu0 %v1995
        %2052 = vmatpush.msra.mxu0 %v1993
        %2053 = vmatpush.msra.mxu0 %v1991
        %2054 = vmatmul.f32.gmra.mxu0 %v1748
        %v2055 = vpop.f32.mrf.mxu0
        %v2056 = vadd.f32 0.0, %v2055
        %2057 = vmatmul.f32.gmra.mxu0 %v1763
        %v2058 = vpop.f32.mrf.mxu0
        %v2059 = vadd.f32 0.0, %v2058
        %2060 = vmatmul.f32.gmra.mxu0 %v1778
        %v2061 = vpop.f32.mrf.mxu0
        %v2062 = vadd.f32 0.0, %v2061
        %2063 = vmatmul.f32.gmra.mxu0 %v1793
        %v2064 = vpop.f32.mrf.mxu0
        %v2065 = vadd.f32 0.0, %v2064
        %2066 = vmatmul.f32.gmra.mxu0 %v1808
        %v2067 = vpop.f32.mrf.mxu0
        %v2068 = vadd.f32 0.0, %v2067
        %2069 = vmatmul.f32.gmra.mxu0 %v1823
        %v2070 = vpop.f32.mrf.mxu0
        %v2071 = vadd.f32 0.0, %v2070
        %2072 = vmatmul.f32.gmra.mxu0 %v1838
        %v2073 = vpop.f32.mrf.mxu0
        %v2074 = vadd.f32 0.0, %v2073
        %2075 = vmatmul.f32.gmra.mxu0 %v1853
        %v2076 = vpop.f32.mrf.mxu0
        %v2077 = vadd.f32 0.0, %v2076
        %2078 = vmatmul.f32.gmra.mxu0 %v1868
        %v2079 = vpop.f32.mrf.mxu0
        %v2080 = vadd.f32 0.0, %v2079
        %2081 = vmatmul.f32.gmra.mxu0 %v1883
        %v2082 = vpop.f32.mrf.mxu0
        %v2083 = vadd.f32 0.0, %v2082
        %2084 = vmatmul.f32.gmra.mxu0 %v1898
        %v2085 = vpop.f32.mrf.mxu0
        %v2086 = vadd.f32 0.0, %v2085
        %2087 = vmatmul.f32.gmra.mxu0 %v1913
        %v2088 = vpop.f32.mrf.mxu0
        %v2089 = vadd.f32 0.0, %v2088
        %2090 = vmatmul.f32.gmra.mxu0 %v1928
        %v2091 = vpop.f32.mrf.mxu0
        %v2092 = vadd.f32 0.0, %v2091
        %2093 = vmatmul.f32.gmra.mxu0 %v1943
        %v2094 = vpop.f32.mrf.mxu0
        %v2095 = vadd.f32 0.0, %v2094
        %2096 = vmatmul.f32.gmra.mxu0 %v1958
        %v2097 = vpop.f32.mrf.mxu0
        %v2098 = vadd.f32 0.0, %v2097
        %2099 = vmatmul.f32.gmra.mxu0 %v1973
        %v2100 = vpop.f32.mrf.mxu0
        %v2101 = vadd.f32 0.0, %v2100
        %2102 = vdwg.mxu0
        %2103 = vrot.lane.b32.xlu0 %v609, 96
        %v2104 = vpop.permute.xlu0 %2103
        %2105 = vrot.lane.b32.xlu0 %v612, 96
        %v2106 = vpop.permute.xlu0 %2105
        %2107 = vrot.lane.b32.xlu0 %v615, 96
        %v2108 = vpop.permute.xlu0 %2107
        %2109 = vrot.lane.b32.xlu0 %v618, 96
        %v2110 = vpop.permute.xlu0 %2109
        %2111 = vrot.lane.b32.xlu0 %v621, 96
        %v2112 = vpop.permute.xlu0 %2111
        %2113 = vrot.lane.b32.xlu0 %v624, 96
        %v2114 = vpop.permute.xlu0 %2113
        %2115 = vrot.lane.b32.xlu0 %v627, 96
        %v2116 = vpop.permute.xlu0 %2115
        %2117 = vrot.lane.b32.xlu0 %v630, 96
        %v2118 = vpop.permute.xlu0 %2117
        %2119 = vrot.lane.b32.xlu0 %v633, 96
        %v2120 = vpop.permute.xlu0 %2119
        %2121 = vrot.lane.b32.xlu0 %v636, 96
        %v2122 = vpop.permute.xlu0 %2121
        %2123 = vrot.lane.b32.xlu0 %v639, 96
        %v2124 = vpop.permute.xlu0 %2123
        %2125 = vrot.lane.b32.xlu0 %v642, 96
        %v2126 = vpop.permute.xlu0 %2125
        %2127 = vrot.lane.b32.xlu0 %v645, 96
        %v2128 = vpop.permute.xlu0 %2127
        %2129 = vrot.lane.b32.xlu0 %v648, 96
        %v2130 = vpop.permute.xlu0 %2129
        %2131 = vrot.lane.b32.xlu0 %v651, 96
        %v2132 = vpop.permute.xlu0 %2131
        %2133 = vrot.lane.b32.xlu0 %v654, 96
        %v2134 = vpop.permute.xlu0 %2133
        %2135 = vrot.lane.b32.xlu0 %v690, 96
        %v2136 = vpop.permute.xlu0 %2135
        %2137 = vrot.lane.b32.xlu0 %v693, 96
        %v2138 = vpop.permute.xlu0 %2137
        %2139 = vrot.lane.b32.xlu0 %v696, 96
        %v2140 = vpop.permute.xlu0 %2139
        %2141 = vrot.lane.b32.xlu0 %v699, 96
        %v2142 = vpop.permute.xlu0 %2141
        %2143 = vrot.lane.b32.xlu0 %v702, 96
        %v2144 = vpop.permute.xlu0 %2143
        %2145 = vrot.lane.b32.xlu0 %v705, 96
        %v2146 = vpop.permute.xlu0 %2145
        %2147 = vrot.lane.b32.xlu0 %v708, 96
        %v2148 = vpop.permute.xlu0 %2147
        %2149 = vrot.lane.b32.xlu0 %v711, 96
        %v2150 = vpop.permute.xlu0 %2149
        %2151 = vrot.lane.b32.xlu0 %v714, 96
        %v2152 = vpop.permute.xlu0 %2151
        %2153 = vrot.lane.b32.xlu0 %v717, 96
        %v2154 = vpop.permute.xlu0 %2153
        %2155 = vrot.lane.b32.xlu0 %v720, 96
        %v2156 = vpop.permute.xlu0 %2155
        %2157 = vrot.lane.b32.xlu0 %v723, 96
        %v2158 = vpop.permute.xlu0 %2157
        %2159 = vrot.lane.b32.xlu0 %v726, 96
        %v2160 = vpop.permute.xlu0 %2159
        %2161 = vrot.lane.b32.xlu0 %v729, 96
        %v2162 = vpop.permute.xlu0 %2161
        %2163 = vrot.lane.b32.xlu0 %v732, 96
        %v2164 = vpop.permute.xlu0 %2163
        %2165 = vrot.lane.b32.xlu0 %v735, 96
        %v2166 = vpop.permute.xlu0 %2165
        %v2167 = vsel %vm818, %v2104, 0
        %v2169 = vsel %vm818, %v2106, 0
        %v2171 = vsel %vm818, %v2108, 0
        %v2173 = vsel %vm818, %v2110, 0
        %v2175 = vsel %vm818, %v2112, 0
        %v2177 = vsel %vm818, %v2114, 0
        %v2179 = vsel %vm818, %v2116, 0
        %v2181 = vsel %vm818, %v2118, 0
        %v2183 = vsel %vm818, %v2120, 0
        %v2185 = vsel %vm818, %v2122, 0
        %v2187 = vsel %vm818, %v2124, 0
        %v2189 = vsel %vm818, %v2126, 0
        %v2191 = vsel %vm818, %v2128, 0
        %v2193 = vsel %vm818, %v2130, 0
        %v2195 = vsel %vm818, %v2132, 0
        %v2197 = vsel %vm818, %v2134, 0
        %v2199 = vsel %vm818, %v2136, 0
        %v2201 = vsel %vm818, %v2138, 0
        %v2203 = vsel %vm818, %v2140, 0
        %v2205 = vsel %vm818, %v2142, 0
        %v2207 = vsel %vm818, %v2144, 0
        %v2209 = vsel %vm818, %v2146, 0
        %v2211 = vsel %vm818, %v2148, 0
        %v2213 = vsel %vm818, %v2150, 0
        %v2215 = vsel %vm818, %v2152, 0
        %v2217 = vsel %vm818, %v2154, 0
        %v2219 = vsel %vm818, %v2156, 0
        %v2221 = vsel %vm818, %v2158, 0
        %v2223 = vsel %vm818, %v2160, 0
        %v2225 = vsel %vm818, %v2162, 0
        %v2227 = vsel %vm818, %v2164, 0
        %v2229 = vsel %vm818, %v2166, 0
        %2231 = vmatpush.xpose.msra.mxu0 %v2229
        %2232 = vmatpush.xpose.msra.mxu0 %v2227
        %2233 = vmatpush.xpose.msra.mxu0 %v2225
        %2234 = vmatpush.xpose.msra.mxu0 %v2223
        %2235 = vmatpush.xpose.msra.mxu0 %v2221
        %2236 = vmatpush.xpose.msra.mxu0 %v2219
        %2237 = vmatpush.xpose.msra.mxu0 %v2217
        %2238 = vmatpush.xpose.msra.mxu0 %v2215
        %2239 = vmatpush.xpose.msra.mxu0 %v2213
        %2240 = vmatpush.xpose.msra.mxu0 %v2211
        %2241 = vmatpush.xpose.msra.mxu0 %v2209
        %2242 = vmatpush.xpose.msra.mxu0 %v2207
        %2243 = vmatpush.xpose.msra.mxu0 %v2205
        %2244 = vmatpush.xpose.msra.mxu0 %v2203
        %2245 = vmatpush.xpose.msra.mxu0 %v2201
        %2246 = vmatpush.xpose.msra.mxu0 %v2199
        %2247 = vmatmul.f32.gmra.mxu0 %v2167
        %v2248 = vpop.f32.mrf.mxu0
        %v2249 = vadd.f32 0.0, %v2248
        %2250 = vmatmul.f32.gmra.mxu0 %v2169
        %v2251 = vpop.f32.mrf.mxu0
        %v2252 = vadd.f32 0.0, %v2251
        %2253 = vmatmul.f32.gmra.mxu0 %v2171
        %v2254 = vpop.f32.mrf.mxu0
        %v2255 = vadd.f32 0.0, %v2254
        %2256 = vmatmul.f32.gmra.mxu0 %v2173
        %v2257 = vpop.f32.mrf.mxu0
        %v2258 = vadd.f32 0.0, %v2257
        %2259 = vmatmul.f32.gmra.mxu0 %v2175
        %v2260 = vpop.f32.mrf.mxu0
        %v2261 = vadd.f32 0.0, %v2260
        %2262 = vmatmul.f32.gmra.mxu0 %v2177
        %v2263 = vpop.f32.mrf.mxu0
        %v2264 = vadd.f32 0.0, %v2263
        %2265 = vmatmul.f32.gmra.mxu0 %v2179
        %v2266 = vpop.f32.mrf.mxu0
        %v2267 = vadd.f32 0.0, %v2266
        %2268 = vmatmul.f32.gmra.mxu0 %v2181
        %v2269 = vpop.f32.mrf.mxu0
        %v2270 = vadd.f32 0.0, %v2269
        %2271 = vmatmul.f32.gmra.mxu0 %v2183
        %v2272 = vpop.f32.mrf.mxu0
        %v2273 = vadd.f32 0.0, %v2272
        %2274 = vmatmul.f32.gmra.mxu0 %v2185
        %v2275 = vpop.f32.mrf.mxu0
        %v2276 = vadd.f32 0.0, %v2275
        %2277 = vmatmul.f32.gmra.mxu0 %v2187
        %v2278 = vpop.f32.mrf.mxu0
        %v2279 = vadd.f32 0.0, %v2278
        %2280 = vmatmul.f32.gmra.mxu0 %v2189
        %v2281 = vpop.f32.mrf.mxu0
        %v2282 = vadd.f32 0.0, %v2281
        %2283 = vmatmul.f32.gmra.mxu0 %v2191
        %v2284 = vpop.f32.mrf.mxu0
        %v2285 = vadd.f32 0.0, %v2284
        %2286 = vmatmul.f32.gmra.mxu0 %v2193
        %v2287 = vpop.f32.mrf.mxu0
        %v2288 = vadd.f32 0.0, %v2287
        %2289 = vmatmul.f32.gmra.mxu0 %v2195
        %v2290 = vpop.f32.mrf.mxu0
        %v2291 = vadd.f32 0.0, %v2290
        %2292 = vmatmul.f32.gmra.mxu0 %v2197
        %v2293 = vpop.f32.mrf.mxu0
        %v2294 = vadd.f32 0.0, %v2293
        %2295 = vdwg.mxu0
        %v2296 = vmul.f32 %v2249, 0.088388346
        %v2297 = vmul.f32 %v2252, 0.088388346
        %v2298 = vmul.f32 %v2255, 0.088388346
        %v2299 = vmul.f32 %v2258, 0.088388346
        %v2300 = vmul.f32 %v2261, 0.088388346
        %v2301 = vmul.f32 %v2264, 0.088388346
        %v2302 = vmul.f32 %v2267, 0.088388346
        %v2303 = vmul.f32 %v2270, 0.088388346
        %v2304 = vmul.f32 %v2273, 0.088388346
        %v2305 = vmul.f32 %v2276, 0.088388346
        %v2306 = vmul.f32 %v2279, 0.088388346
        %v2307 = vmul.f32 %v2282, 0.088388346
        %v2308 = vmul.f32 %v2285, 0.088388346
        %v2309 = vmul.f32 %v2288, 0.088388346
        %v2310 = vmul.f32 %v2291, 0.088388346
        %v2311 = vmul.f32 %v2294, 0.088388346
        %2312 = vmax.xlane.f32.xlu0 %v2296
        %v2313 = vpop.xlane.xlu0 %2312
        %2314 = vmax.xlane.f32.xlu0 %v2297
        %v2315 = vpop.xlane.xlu0 %2314
        %2316 = vmax.xlane.f32.xlu0 %v2298
        %v2317 = vpop.xlane.xlu0 %2316
        %2318 = vmax.xlane.f32.xlu0 %v2299
        %v2319 = vpop.xlane.xlu0 %2318
        %2320 = vmax.xlane.f32.xlu0 %v2300
        %v2321 = vpop.xlane.xlu0 %2320
        %2322 = vmax.xlane.f32.xlu0 %v2301
        %v2323 = vpop.xlane.xlu0 %2322
        %2324 = vmax.xlane.f32.xlu0 %v2302
        %v2325 = vpop.xlane.xlu0 %2324
        %2326 = vmax.xlane.f32.xlu0 %v2303
        %v2327 = vpop.xlane.xlu0 %2326
        %2328 = vmax.xlane.f32.xlu0 %v2304
        %v2329 = vpop.xlane.xlu0 %2328
        %2330 = vmax.xlane.f32.xlu0 %v2305
        %v2331 = vpop.xlane.xlu0 %2330
        %2332 = vmax.xlane.f32.xlu0 %v2306
        %v2333 = vpop.xlane.xlu0 %2332
        %2334 = vmax.xlane.f32.xlu0 %v2307
        %v2335 = vpop.xlane.xlu0 %2334
        %2336 = vmax.xlane.f32.xlu0 %v2308
        %v2337 = vpop.xlane.xlu0 %2336
        %2338 = vmax.xlane.f32.xlu0 %v2309
        %v2339 = vpop.xlane.xlu0 %2338
        %2340 = vmax.xlane.f32.xlu0 %v2310
        %v2341 = vpop.xlane.xlu0 %2340
        %2342 = vmax.xlane.f32.xlu0 %v2311
        %v2343 = vpop.xlane.xlu0 %2342
        %v2344 = vsub.f32 %v2296, %v2313
        %v2345 = vsub.f32 %v2297, %v2315
        %v2346 = vsub.f32 %v2298, %v2317
        %v2347 = vsub.f32 %v2299, %v2319
        %v2348 = vsub.f32 %v2300, %v2321
        %v2349 = vsub.f32 %v2301, %v2323
        %v2350 = vsub.f32 %v2302, %v2325
        %v2351 = vsub.f32 %v2303, %v2327
        %v2352 = vsub.f32 %v2304, %v2329
        %v2353 = vsub.f32 %v2305, %v2331
        %v2354 = vsub.f32 %v2306, %v2333
        %v2355 = vsub.f32 %v2307, %v2335
        %v2356 = vsub.f32 %v2308, %v2337
        %v2357 = vsub.f32 %v2309, %v2339
        %v2358 = vsub.f32 %v2310, %v2341
        %v2359 = vsub.f32 %v2311, %v2343
        %v2360 = vmul.f32 %v2344, 1.442695
        %v2361 = vpow.pop %v2360
        %v2362 = vmul.f32 %v2345, 1.442695
        %v2363 = vpow.pop %v2362
        %v2364 = vmul.f32 %v2346, 1.442695
        %v2365 = vpow.pop %v2364
        %v2366 = vmul.f32 %v2347, 1.442695
        %v2367 = vpow.pop %v2366
        %v2368 = vmul.f32 %v2348, 1.442695
        %v2369 = vpow.pop %v2368
        %v2370 = vmul.f32 %v2349, 1.442695
        %v2371 = vpow.pop %v2370
        %v2372 = vmul.f32 %v2350, 1.442695
        %v2373 = vpow.pop %v2372
        %v2374 = vmul.f32 %v2351, 1.442695
        %v2375 = vpow.pop %v2374
        %v2376 = vmul.f32 %v2352, 1.442695
        %v2377 = vpow.pop %v2376
        %v2378 = vmul.f32 %v2353, 1.442695
        %v2379 = vpow.pop %v2378
        %v2380 = vmul.f32 %v2354, 1.442695
        %v2381 = vpow.pop %v2380
        %v2382 = vmul.f32 %v2355, 1.442695
        %v2383 = vpow.pop %v2382
        %v2384 = vmul.f32 %v2356, 1.442695
        %v2385 = vpow.pop %v2384
        %v2386 = vmul.f32 %v2357, 1.442695
        %v2387 = vpow.pop %v2386
        %v2388 = vmul.f32 %v2358, 1.442695
        %v2389 = vpow.pop %v2388
        %v2390 = vmul.f32 %v2359, 1.442695
        %v2391 = vpow.pop %v2390
        %2392 = vadd.xlane.f32.xlu0 %v2361
        %v2393 = vpop.xlane.xlu0 %2392
        %2394 = vadd.xlane.f32.xlu0 %v2363
        %v2395 = vpop.xlane.xlu0 %2394
        %2396 = vadd.xlane.f32.xlu0 %v2365
        %v2397 = vpop.xlane.xlu0 %2396
        %2398 = vadd.xlane.f32.xlu0 %v2367
        %v2399 = vpop.xlane.xlu0 %2398
        %2400 = vadd.xlane.f32.xlu0 %v2369
        %v2401 = vpop.xlane.xlu0 %2400
        %2402 = vadd.xlane.f32.xlu0 %v2371
        %v2403 = vpop.xlane.xlu0 %2402
        %2404 = vadd.xlane.f32.xlu0 %v2373
        %v2405 = vpop.xlane.xlu0 %2404
        %2406 = vadd.xlane.f32.xlu0 %v2375
        %v2407 = vpop.xlane.xlu0 %2406
        %2408 = vadd.xlane.f32.xlu0 %v2377
        %v2409 = vpop.xlane.xlu0 %2408
        %2410 = vadd.xlane.f32.xlu0 %v2379
        %v2411 = vpop.xlane.xlu0 %2410
        %2412 = vadd.xlane.f32.xlu0 %v2381
        %v2413 = vpop.xlane.xlu0 %2412
        %2414 = vadd.xlane.f32.xlu0 %v2383
        %v2415 = vpop.xlane.xlu0 %2414
        %2416 = vadd.xlane.f32.xlu0 %v2385
        %v2417 = vpop.xlane.xlu0 %2416
        %2418 = vadd.xlane.f32.xlu0 %v2387
        %v2419 = vpop.xlane.xlu0 %2418
        %2420 = vadd.xlane.f32.xlu0 %v2389
        %v2421 = vpop.xlane.xlu0 %2420
        %2422 = vadd.xlane.f32.xlu0 %v2391
        %v2423 = vpop.xlane.xlu0 %2422
        %v2424 = vrcp.pop %v2393
        %v2425 = vmul.f32 %v2393, %v2424
        %v2426 = vsub.f32 1.0, %v2425
        %v2427 = vmul.f32 %v2424, %v2426
        %v2428 = vadd.f32 %v2424, %v2427
        %vm2429 = vweird.f32 %v2393
        %vm2430 = vweird.f32 %v2424
        %vm2431 = vmor %vm2429, %vm2430
        %v2432 = vsel %vm2431, %v2424, %v2428
        %v2433 = vand.u32 2147483647, %v2393
        %vm2434 = vcmp.eq.f32.partialorder %v2433, 8.507059e+37
        %v2435 = vand.u32 %v2393, 2147483648
        %v2436 = vor.u32 1.1754944e-38, %v2435
        %v2437 = vsel %vm2434, %v2436, %v2432
        %v2438 = vmul.f32 %v2361, %v2437
        %v2439 = vrcp.pop %v2395
        %v2440 = vmul.f32 %v2395, %v2439
        %v2441 = vsub.f32 1.0, %v2440
        %v2442 = vmul.f32 %v2439, %v2441
        %v2443 = vadd.f32 %v2439, %v2442
        %vm2444 = vweird.f32 %v2395
        %vm2445 = vweird.f32 %v2439
        %vm2446 = vmor %vm2444, %vm2445
        %v2447 = vsel %vm2446, %v2439, %v2443
        %v2448 = vand.u32 2147483647, %v2395
        %vm2449 = vcmp.eq.f32.partialorder %v2448, 8.507059e+37
        %v2450 = vand.u32 %v2395, 2147483648
        %v2451 = vor.u32 1.1754944e-38, %v2450
        %v2452 = vsel %vm2449, %v2451, %v2447
        %v2453 = vmul.f32 %v2363, %v2452
        %v2454 = vrcp.pop %v2397
        %v2455 = vmul.f32 %v2397, %v2454
        %v2456 = vsub.f32 1.0, %v2455
        %v2457 = vmul.f32 %v2454, %v2456
        %v2458 = vadd.f32 %v2454, %v2457
        %vm2459 = vweird.f32 %v2397
        %vm2460 = vweird.f32 %v2454
        %vm2461 = vmor %vm2459, %vm2460
        %v2462 = vsel %vm2461, %v2454, %v2458
        %v2463 = vand.u32 2147483647, %v2397
        %vm2464 = vcmp.eq.f32.partialorder %v2463, 8.507059e+37
        %v2465 = vand.u32 %v2397, 2147483648
        %v2466 = vor.u32 1.1754944e-38, %v2465
        %v2467 = vsel %vm2464, %v2466, %v2462
        %v2468 = vmul.f32 %v2365, %v2467
        %v2469 = vrcp.pop %v2399
        %v2470 = vmul.f32 %v2399, %v2469
        %v2471 = vsub.f32 1.0, %v2470
        %v2472 = vmul.f32 %v2469, %v2471
        %v2473 = vadd.f32 %v2469, %v2472
        %vm2474 = vweird.f32 %v2399
        %vm2475 = vweird.f32 %v2469
        %vm2476 = vmor %vm2474, %vm2475
        %v2477 = vsel %vm2476, %v2469, %v2473
        %v2478 = vand.u32 2147483647, %v2399
        %vm2479 = vcmp.eq.f32.partialorder %v2478, 8.507059e+37
        %v2480 = vand.u32 %v2399, 2147483648
        %v2481 = vor.u32 1.1754944e-38, %v2480
        %v2482 = vsel %vm2479, %v2481, %v2477
        %v2483 = vmul.f32 %v2367, %v2482
        %v2484 = vrcp.pop %v2401
        %v2485 = vmul.f32 %v2401, %v2484
        %v2486 = vsub.f32 1.0, %v2485
        %v2487 = vmul.f32 %v2484, %v2486
        %v2488 = vadd.f32 %v2484, %v2487
        %vm2489 = vweird.f32 %v2401
        %vm2490 = vweird.f32 %v2484
        %vm2491 = vmor %vm2489, %vm2490
        %v2492 = vsel %vm2491, %v2484, %v2488
        %v2493 = vand.u32 2147483647, %v2401
        %vm2494 = vcmp.eq.f32.partialorder %v2493, 8.507059e+37
        %v2495 = vand.u32 %v2401, 2147483648
        %v2496 = vor.u32 1.1754944e-38, %v2495
        %v2497 = vsel %vm2494, %v2496, %v2492
        %v2498 = vmul.f32 %v2369, %v2497
        %v2499 = vrcp.pop %v2403
        %v2500 = vmul.f32 %v2403, %v2499
        %v2501 = vsub.f32 1.0, %v2500
        %v2502 = vmul.f32 %v2499, %v2501
        %v2503 = vadd.f32 %v2499, %v2502
        %vm2504 = vweird.f32 %v2403
        %vm2505 = vweird.f32 %v2499
        %vm2506 = vmor %vm2504, %vm2505
        %v2507 = vsel %vm2506, %v2499, %v2503
        %v2508 = vand.u32 2147483647, %v2403
        %vm2509 = vcmp.eq.f32.partialorder %v2508, 8.507059e+37
        %v2510 = vand.u32 %v2403, 2147483648
        %v2511 = vor.u32 1.1754944e-38, %v2510
        %v2512 = vsel %vm2509, %v2511, %v2507
        %v2513 = vmul.f32 %v2371, %v2512
        %v2514 = vrcp.pop %v2405
        %v2515 = vmul.f32 %v2405, %v2514
        %v2516 = vsub.f32 1.0, %v2515
        %v2517 = vmul.f32 %v2514, %v2516
        %v2518 = vadd.f32 %v2514, %v2517
        %vm2519 = vweird.f32 %v2405
        %vm2520 = vweird.f32 %v2514
        %vm2521 = vmor %vm2519, %vm2520
        %v2522 = vsel %vm2521, %v2514, %v2518
        %v2523 = vand.u32 2147483647, %v2405
        %vm2524 = vcmp.eq.f32.partialorder %v2523, 8.507059e+37
        %v2525 = vand.u32 %v2405, 2147483648
        %v2526 = vor.u32 1.1754944e-38, %v2525
        %v2527 = vsel %vm2524, %v2526, %v2522
        %v2528 = vmul.f32 %v2373, %v2527
        %v2529 = vrcp.pop %v2407
        %v2530 = vmul.f32 %v2407, %v2529
        %v2531 = vsub.f32 1.0, %v2530
        %v2532 = vmul.f32 %v2529, %v2531
        %v2533 = vadd.f32 %v2529, %v2532
        %vm2534 = vweird.f32 %v2407
        %vm2535 = vweird.f32 %v2529
        %vm2536 = vmor %vm2534, %vm2535
        %v2537 = vsel %vm2536, %v2529, %v2533
        %v2538 = vand.u32 2147483647, %v2407
        %vm2539 = vcmp.eq.f32.partialorder %v2538, 8.507059e+37
        %v2540 = vand.u32 %v2407, 2147483648
        %v2541 = vor.u32 1.1754944e-38, %v2540
        %v2542 = vsel %vm2539, %v2541, %v2537
        %v2543 = vmul.f32 %v2375, %v2542
        %v2544 = vrcp.pop %v2409
        %v2545 = vmul.f32 %v2409, %v2544
        %v2546 = vsub.f32 1.0, %v2545
        %v2547 = vmul.f32 %v2544, %v2546
        %v2548 = vadd.f32 %v2544, %v2547
        %vm2549 = vweird.f32 %v2409
        %vm2550 = vweird.f32 %v2544
        %vm2551 = vmor %vm2549, %vm2550
        %v2552 = vsel %vm2551, %v2544, %v2548
        %v2553 = vand.u32 2147483647, %v2409
        %vm2554 = vcmp.eq.f32.partialorder %v2553, 8.507059e+37
        %v2555 = vand.u32 %v2409, 2147483648
        %v2556 = vor.u32 1.1754944e-38, %v2555
        %v2557 = vsel %vm2554, %v2556, %v2552
        %v2558 = vmul.f32 %v2377, %v2557
        %v2559 = vrcp.pop %v2411
        %v2560 = vmul.f32 %v2411, %v2559
        %v2561 = vsub.f32 1.0, %v2560
        %v2562 = vmul.f32 %v2559, %v2561
        %v2563 = vadd.f32 %v2559, %v2562
        %vm2564 = vweird.f32 %v2411
        %vm2565 = vweird.f32 %v2559
        %vm2566 = vmor %vm2564, %vm2565
        %v2567 = vsel %vm2566, %v2559, %v2563
        %v2568 = vand.u32 2147483647, %v2411
        %vm2569 = vcmp.eq.f32.partialorder %v2568, 8.507059e+37
        %v2570 = vand.u32 %v2411, 2147483648
        %v2571 = vor.u32 1.1754944e-38, %v2570
        %v2572 = vsel %vm2569, %v2571, %v2567
        %v2573 = vmul.f32 %v2379, %v2572
        %v2574 = vrcp.pop %v2413
        %v2575 = vmul.f32 %v2413, %v2574
        %v2576 = vsub.f32 1.0, %v2575
        %v2577 = vmul.f32 %v2574, %v2576
        %v2578 = vadd.f32 %v2574, %v2577
        %vm2579 = vweird.f32 %v2413
        %vm2580 = vweird.f32 %v2574
        %vm2581 = vmor %vm2579, %vm2580
        %v2582 = vsel %vm2581, %v2574, %v2578
        %v2583 = vand.u32 2147483647, %v2413
        %vm2584 = vcmp.eq.f32.partialorder %v2583, 8.507059e+37
        %v2585 = vand.u32 %v2413, 2147483648
        %v2586 = vor.u32 1.1754944e-38, %v2585
        %v2587 = vsel %vm2584, %v2586, %v2582
        %v2588 = vmul.f32 %v2381, %v2587
        %v2589 = vrcp.pop %v2415
        %v2590 = vmul.f32 %v2415, %v2589
        %v2591 = vsub.f32 1.0, %v2590
        %v2592 = vmul.f32 %v2589, %v2591
        %v2593 = vadd.f32 %v2589, %v2592
        %vm2594 = vweird.f32 %v2415
        %vm2595 = vweird.f32 %v2589
        %vm2596 = vmor %vm2594, %vm2595
        %v2597 = vsel %vm2596, %v2589, %v2593
        %v2598 = vand.u32 2147483647, %v2415
        %vm2599 = vcmp.eq.f32.partialorder %v2598, 8.507059e+37
        %v2600 = vand.u32 %v2415, 2147483648
        %v2601 = vor.u32 1.1754944e-38, %v2600
        %v2602 = vsel %vm2599, %v2601, %v2597
        %v2603 = vmul.f32 %v2383, %v2602
        %v2604 = vrcp.pop %v2417
        %v2605 = vmul.f32 %v2417, %v2604
        %v2606 = vsub.f32 1.0, %v2605
        %v2607 = vmul.f32 %v2604, %v2606
        %v2608 = vadd.f32 %v2604, %v2607
        %vm2609 = vweird.f32 %v2417
        %vm2610 = vweird.f32 %v2604
        %vm2611 = vmor %vm2609, %vm2610
        %v2612 = vsel %vm2611, %v2604, %v2608
        %v2613 = vand.u32 2147483647, %v2417
        %vm2614 = vcmp.eq.f32.partialorder %v2613, 8.507059e+37
        %v2615 = vand.u32 %v2417, 2147483648
        %v2616 = vor.u32 1.1754944e-38, %v2615
        %v2617 = vsel %vm2614, %v2616, %v2612
        %v2618 = vmul.f32 %v2385, %v2617
        %v2619 = vrcp.pop %v2419
        %v2620 = vmul.f32 %v2419, %v2619
        %v2621 = vsub.f32 1.0, %v2620
        %v2622 = vmul.f32 %v2619, %v2621
        %v2623 = vadd.f32 %v2619, %v2622
        %vm2624 = vweird.f32 %v2419
        %vm2625 = vweird.f32 %v2619
        %vm2626 = vmor %vm2624, %vm2625
        %v2627 = vsel %vm2626, %v2619, %v2623
        %v2628 = vand.u32 2147483647, %v2419
        %vm2629 = vcmp.eq.f32.partialorder %v2628, 8.507059e+37
        %v2630 = vand.u32 %v2419, 2147483648
        %v2631 = vor.u32 1.1754944e-38, %v2630
        %v2632 = vsel %vm2629, %v2631, %v2627
        %v2633 = vmul.f32 %v2387, %v2632
        %v2634 = vrcp.pop %v2421
        %v2635 = vmul.f32 %v2421, %v2634
        %v2636 = vsub.f32 1.0, %v2635
        %v2637 = vmul.f32 %v2634, %v2636
        %v2638 = vadd.f32 %v2634, %v2637
        %vm2639 = vweird.f32 %v2421
        %vm2640 = vweird.f32 %v2634
        %vm2641 = vmor %vm2639, %vm2640
        %v2642 = vsel %vm2641, %v2634, %v2638
        %v2643 = vand.u32 2147483647, %v2421
        %vm2644 = vcmp.eq.f32.partialorder %v2643, 8.507059e+37
        %v2645 = vand.u32 %v2421, 2147483648
        %v2646 = vor.u32 1.1754944e-38, %v2645
        %v2647 = vsel %vm2644, %v2646, %v2642
        %v2648 = vmul.f32 %v2389, %v2647
        %v2649 = vrcp.pop %v2423
        %v2650 = vmul.f32 %v2423, %v2649
        %v2651 = vsub.f32 1.0, %v2650
        %v2652 = vmul.f32 %v2649, %v2651
        %v2653 = vadd.f32 %v2649, %v2652
        %vm2654 = vweird.f32 %v2423
        %vm2655 = vweird.f32 %v2649
        %vm2656 = vmor %vm2654, %vm2655
        %v2657 = vsel %vm2656, %v2649, %v2653
        %v2658 = vand.u32 2147483647, %v2423
        %vm2659 = vcmp.eq.f32.partialorder %v2658, 8.507059e+37
        %v2660 = vand.u32 %v2423, 2147483648
        %v2661 = vor.u32 1.1754944e-38, %v2660
        %v2662 = vsel %vm2659, %v2661, %v2657
        %v2663 = vmul.f32 %v2391, %v2662
        %2664 = vrot.lane.b32.xlu0 %v771, 96
        %v2665 = vpop.permute.xlu0 %2664
        %2666 = vrot.lane.b32.xlu0 %v774, 96
        %v2667 = vpop.permute.xlu0 %2666
        %2668 = vrot.lane.b32.xlu0 %v777, 96
        %v2669 = vpop.permute.xlu0 %2668
        %2670 = vrot.lane.b32.xlu0 %v780, 96
        %v2671 = vpop.permute.xlu0 %2670
        %2672 = vrot.lane.b32.xlu0 %v783, 96
        %v2673 = vpop.permute.xlu0 %2672
        %2674 = vrot.lane.b32.xlu0 %v786, 96
        %v2675 = vpop.permute.xlu0 %2674
        %2676 = vrot.lane.b32.xlu0 %v789, 96
        %v2677 = vpop.permute.xlu0 %2676
        %2678 = vrot.lane.b32.xlu0 %v792, 96
        %v2679 = vpop.permute.xlu0 %2678
        %2680 = vrot.lane.b32.xlu0 %v795, 96
        %v2681 = vpop.permute.xlu0 %2680
        %2682 = vrot.lane.b32.xlu0 %v798, 96
        %v2683 = vpop.permute.xlu0 %2682
        %2684 = vrot.lane.b32.xlu0 %v801, 96
        %v2685 = vpop.permute.xlu0 %2684
        %2686 = vrot.lane.b32.xlu0 %v804, 96
        %v2687 = vpop.permute.xlu0 %2686
        %2688 = vrot.lane.b32.xlu0 %v807, 96
        %v2689 = vpop.permute.xlu0 %2688
        %2690 = vrot.lane.b32.xlu0 %v810, 96
        %v2691 = vpop.permute.xlu0 %2690
        %2692 = vrot.lane.b32.xlu0 %v813, 96
        %v2693 = vpop.permute.xlu0 %2692
        %2694 = vrot.lane.b32.xlu0 %v816, 96
        %v2695 = vpop.permute.xlu0 %2694
        %2712 = vmatpush.msra.mxu0 %v2695
        %2713 = vmatpush.msra.mxu0 %v2693
        %2714 = vmatpush.msra.mxu0 %v2691
        %2715 = vmatpush.msra.mxu0 %v2689
        %2716 = vmatpush.msra.mxu0 %v2687
        %2717 = vmatpush.msra.mxu0 %v2685
        %2718 = vmatpush.msra.mxu0 %v2683
        %2719 = vmatpush.msra.mxu0 %v2681
        %2720 = vmatpush.msra.mxu0 %v2679
        %2721 = vmatpush.msra.mxu0 %v2677
        %2722 = vmatpush.msra.mxu0 %v2675
        %2723 = vmatpush.msra.mxu0 %v2673
        %2724 = vmatpush.msra.mxu0 %v2671
        %2725 = vmatpush.msra.mxu0 %v2669
        %2726 = vmatpush.msra.mxu0 %v2667
        %2727 = vmatpush.msra.mxu0 %v2665
        %2728 = vmatmul.f32.gmra.mxu0 %v2438
        %v2729 = vpop.f32.mrf.mxu0
        %v2730 = vadd.f32 0.0, %v2729
        %2731 = vmatmul.f32.gmra.mxu0 %v2453
        %v2732 = vpop.f32.mrf.mxu0
        %v2733 = vadd.f32 0.0, %v2732
        %2734 = vmatmul.f32.gmra.mxu0 %v2468
        %v2735 = vpop.f32.mrf.mxu0
        %v2736 = vadd.f32 0.0, %v2735
        %2737 = vmatmul.f32.gmra.mxu0 %v2483
        %v2738 = vpop.f32.mrf.mxu0
        %v2739 = vadd.f32 0.0, %v2738
        %2740 = vmatmul.f32.gmra.mxu0 %v2498
        %v2741 = vpop.f32.mrf.mxu0
        %v2742 = vadd.f32 0.0, %v2741
        %2743 = vmatmul.f32.gmra.mxu0 %v2513
        %v2744 = vpop.f32.mrf.mxu0
        %v2745 = vadd.f32 0.0, %v2744
        %2746 = vmatmul.f32.gmra.mxu0 %v2528
        %v2747 = vpop.f32.mrf.mxu0
        %v2748 = vadd.f32 0.0, %v2747
        %2749 = vmatmul.f32.gmra.mxu0 %v2543
        %v2750 = vpop.f32.mrf.mxu0
        %v2751 = vadd.f32 0.0, %v2750
        %2752 = vmatmul.f32.gmra.mxu0 %v2558
        %v2753 = vpop.f32.mrf.mxu0
        %v2754 = vadd.f32 0.0, %v2753
        %2755 = vmatmul.f32.gmra.mxu0 %v2573
        %v2756 = vpop.f32.mrf.mxu0
        %v2757 = vadd.f32 0.0, %v2756
        %2758 = vmatmul.f32.gmra.mxu0 %v2588
        %v2759 = vpop.f32.mrf.mxu0
        %v2760 = vadd.f32 0.0, %v2759
        %2761 = vmatmul.f32.gmra.mxu0 %v2603
        %v2762 = vpop.f32.mrf.mxu0
        %v2763 = vadd.f32 0.0, %v2762
        %2764 = vmatmul.f32.gmra.mxu0 %v2618
        %v2765 = vpop.f32.mrf.mxu0
        %v2766 = vadd.f32 0.0, %v2765
        %2767 = vmatmul.f32.gmra.mxu0 %v2633
        %v2768 = vpop.f32.mrf.mxu0
        %v2769 = vadd.f32 0.0, %v2768
        %2770 = vmatmul.f32.gmra.mxu0 %v2648
        %v2771 = vpop.f32.mrf.mxu0
        %v2772 = vadd.f32 0.0, %v2771
        %2773 = vmatmul.f32.gmra.mxu0 %v2663
        %v2774 = vpop.f32.mrf.mxu0
        %v2775 = vadd.f32 0.0, %v2774
        %2776 = vdwg.mxu0
        %2777 = vrot.lane.b32.xlu0 %v609, 80
        %v2778 = vpop.permute.xlu0 %2777
        %2779 = vrot.lane.b32.xlu0 %v612, 80
        %v2780 = vpop.permute.xlu0 %2779
        %2781 = vrot.lane.b32.xlu0 %v615, 80
        %v2782 = vpop.permute.xlu0 %2781
        %2783 = vrot.lane.b32.xlu0 %v618, 80
        %v2784 = vpop.permute.xlu0 %2783
        %2785 = vrot.lane.b32.xlu0 %v621, 80
        %v2786 = vpop.permute.xlu0 %2785
        %2787 = vrot.lane.b32.xlu0 %v624, 80
        %v2788 = vpop.permute.xlu0 %2787
        %2789 = vrot.lane.b32.xlu0 %v627, 80
        %v2790 = vpop.permute.xlu0 %2789
        %2791 = vrot.lane.b32.xlu0 %v630, 80
        %v2792 = vpop.permute.xlu0 %2791
        %2793 = vrot.lane.b32.xlu0 %v633, 80
        %v2794 = vpop.permute.xlu0 %2793
        %2795 = vrot.lane.b32.xlu0 %v636, 80
        %v2796 = vpop.permute.xlu0 %2795
        %2797 = vrot.lane.b32.xlu0 %v639, 80
        %v2798 = vpop.permute.xlu0 %2797
        %2799 = vrot.lane.b32.xlu0 %v642, 80
        %v2800 = vpop.permute.xlu0 %2799
        %2801 = vrot.lane.b32.xlu0 %v645, 80
        %v2802 = vpop.permute.xlu0 %2801
        %2803 = vrot.lane.b32.xlu0 %v648, 80
        %v2804 = vpop.permute.xlu0 %2803
        %2805 = vrot.lane.b32.xlu0 %v651, 80
        %v2806 = vpop.permute.xlu0 %2805
        %2807 = vrot.lane.b32.xlu0 %v654, 80
        %v2808 = vpop.permute.xlu0 %2807
        %2809 = vrot.lane.b32.xlu0 %v690, 80
        %v2810 = vpop.permute.xlu0 %2809
        %2811 = vrot.lane.b32.xlu0 %v693, 80
        %v2812 = vpop.permute.xlu0 %2811
        %2813 = vrot.lane.b32.xlu0 %v696, 80
        %v2814 = vpop.permute.xlu0 %2813
        %2815 = vrot.lane.b32.xlu0 %v699, 80
        %v2816 = vpop.permute.xlu0 %2815
        %2817 = vrot.lane.b32.xlu0 %v702, 80
        %v2818 = vpop.permute.xlu0 %2817
        %2819 = vrot.lane.b32.xlu0 %v705, 80
        %v2820 = vpop.permute.xlu0 %2819
        %2821 = vrot.lane.b32.xlu0 %v708, 80
        %v2822 = vpop.permute.xlu0 %2821
        %2823 = vrot.lane.b32.xlu0 %v711, 80
        %v2824 = vpop.permute.xlu0 %2823
        %2825 = vrot.lane.b32.xlu0 %v714, 80
        %v2826 = vpop.permute.xlu0 %2825
        %2827 = vrot.lane.b32.xlu0 %v717, 80
        %v2828 = vpop.permute.xlu0 %2827
        %2829 = vrot.lane.b32.xlu0 %v720, 80
        %v2830 = vpop.permute.xlu0 %2829
        %2831 = vrot.lane.b32.xlu0 %v723, 80
        %v2832 = vpop.permute.xlu0 %2831
        %2833 = vrot.lane.b32.xlu0 %v726, 80
        %v2834 = vpop.permute.xlu0 %2833
        %2835 = vrot.lane.b32.xlu0 %v729, 80
        %v2836 = vpop.permute.xlu0 %2835
        %2837 = vrot.lane.b32.xlu0 %v732, 80
        %v2838 = vpop.permute.xlu0 %2837
        %2839 = vrot.lane.b32.xlu0 %v735, 80
        %v2840 = vpop.permute.xlu0 %2839
        %v2841 = vsel %vm818, %v2778, 0
        %v2843 = vsel %vm818, %v2780, 0
        %v2845 = vsel %vm818, %v2782, 0
        %v2847 = vsel %vm818, %v2784, 0
        %v2849 = vsel %vm818, %v2786, 0
        %v2851 = vsel %vm818, %v2788, 0
        %v2853 = vsel %vm818, %v2790, 0
        %v2855 = vsel %vm818, %v2792, 0
        %v2857 = vsel %vm818, %v2794, 0
        %v2859 = vsel %vm818, %v2796, 0
        %v2861 = vsel %vm818, %v2798, 0
        %v2863 = vsel %vm818, %v2800, 0
        %v2865 = vsel %vm818, %v2802, 0
        %v2867 = vsel %vm818, %v2804, 0
        %v2869 = vsel %vm818, %v2806, 0
        %v2871 = vsel %vm818, %v2808, 0
        %v2873 = vsel %vm818, %v2810, 0
        %v2875 = vsel %vm818, %v2812, 0
        %v2877 = vsel %vm818, %v2814, 0
        %v2879 = vsel %vm818, %v2816, 0
        %v2881 = vsel %vm818, %v2818, 0
        %v2883 = vsel %vm818, %v2820, 0
        %v2885 = vsel %vm818, %v2822, 0
        %v2887 = vsel %vm818, %v2824, 0
        %v2889 = vsel %vm818, %v2826, 0
        %v2891 = vsel %vm818, %v2828, 0
        %v2893 = vsel %vm818, %v2830, 0
        %v2895 = vsel %vm818, %v2832, 0
        %v2897 = vsel %vm818, %v2834, 0
        %v2899 = vsel %vm818, %v2836, 0
        %v2901 = vsel %vm818, %v2838, 0
        %v2903 = vsel %vm818, %v2840, 0
        %2905 = vmatpush.xpose.msra.mxu0 %v2903
        %2906 = vmatpush.xpose.msra.mxu0 %v2901
        %2907 = vmatpush.xpose.msra.mxu0 %v2899
        %2908 = vmatpush.xpose.msra.mxu0 %v2897
        %2909 = vmatpush.xpose.msra.mxu0 %v2895
        %2910 = vmatpush.xpose.msra.mxu0 %v2893
        %2911 = vmatpush.xpose.msra.mxu0 %v2891
        %2912 = vmatpush.xpose.msra.mxu0 %v2889
        %2913 = vmatpush.xpose.msra.mxu0 %v2887
        %2914 = vmatpush.xpose.msra.mxu0 %v2885
        %2915 = vmatpush.xpose.msra.mxu0 %v2883
        %2916 = vmatpush.xpose.msra.mxu0 %v2881
        %2917 = vmatpush.xpose.msra.mxu0 %v2879
        %2918 = vmatpush.xpose.msra.mxu0 %v2877
        %2919 = vmatpush.xpose.msra.mxu0 %v2875
        %2920 = vmatpush.xpose.msra.mxu0 %v2873
        %2921 = vmatmul.f32.gmra.mxu0 %v2841
        %v2922 = vpop.f32.mrf.mxu0
        %v2923 = vadd.f32 0.0, %v2922
        %2924 = vmatmul.f32.gmra.mxu0 %v2843
        %v2925 = vpop.f32.mrf.mxu0
        %v2926 = vadd.f32 0.0, %v2925
        %2927 = vmatmul.f32.gmra.mxu0 %v2845
        %v2928 = vpop.f32.mrf.mxu0
        %v2929 = vadd.f32 0.0, %v2928
        %2930 = vmatmul.f32.gmra.mxu0 %v2847
        %v2931 = vpop.f32.mrf.mxu0
        %v2932 = vadd.f32 0.0, %v2931
        %2933 = vmatmul.f32.gmra.mxu0 %v2849
        %v2934 = vpop.f32.mrf.mxu0
        %v2935 = vadd.f32 0.0, %v2934
        %2936 = vmatmul.f32.gmra.mxu0 %v2851
        %v2937 = vpop.f32.mrf.mxu0
        %v2938 = vadd.f32 0.0, %v2937
        %2939 = vmatmul.f32.gmra.mxu0 %v2853
        %v2940 = vpop.f32.mrf.mxu0
        %v2941 = vadd.f32 0.0, %v2940
        %2942 = vmatmul.f32.gmra.mxu0 %v2855
        %v2943 = vpop.f32.mrf.mxu0
        %v2944 = vadd.f32 0.0, %v2943
        %2945 = vmatmul.f32.gmra.mxu0 %v2857
        %v2946 = vpop.f32.mrf.mxu0
        %v2947 = vadd.f32 0.0, %v2946
        %2948 = vmatmul.f32.gmra.mxu0 %v2859
        %v2949 = vpop.f32.mrf.mxu0
        %v2950 = vadd.f32 0.0, %v2949
        %2951 = vmatmul.f32.gmra.mxu0 %v2861
        %v2952 = vpop.f32.mrf.mxu0
        %v2953 = vadd.f32 0.0, %v2952
        %2954 = vmatmul.f32.gmra.mxu0 %v2863
        %v2955 = vpop.f32.mrf.mxu0
        %v2956 = vadd.f32 0.0, %v2955
        %2957 = vmatmul.f32.gmra.mxu0 %v2865
        %v2958 = vpop.f32.mrf.mxu0
        %v2959 = vadd.f32 0.0, %v2958
        %2960 = vmatmul.f32.gmra.mxu0 %v2867
        %v2961 = vpop.f32.mrf.mxu0
        %v2962 = vadd.f32 0.0, %v2961
        %2963 = vmatmul.f32.gmra.mxu0 %v2869
        %v2964 = vpop.f32.mrf.mxu0
        %v2965 = vadd.f32 0.0, %v2964
        %2966 = vmatmul.f32.gmra.mxu0 %v2871
        %v2967 = vpop.f32.mrf.mxu0
        %v2968 = vadd.f32 0.0, %v2967
        %2969 = vdwg.mxu0
        %v2970 = vmul.f32 %v2923, 0.088388346
        %v2971 = vmul.f32 %v2926, 0.088388346
        %v2972 = vmul.f32 %v2929, 0.088388346
        %v2973 = vmul.f32 %v2932, 0.088388346
        %v2974 = vmul.f32 %v2935, 0.088388346
        %v2975 = vmul.f32 %v2938, 0.088388346
        %v2976 = vmul.f32 %v2941, 0.088388346
        %v2977 = vmul.f32 %v2944, 0.088388346
        %v2978 = vmul.f32 %v2947, 0.088388346
        %v2979 = vmul.f32 %v2950, 0.088388346
        %v2980 = vmul.f32 %v2953, 0.088388346
        %v2981 = vmul.f32 %v2956, 0.088388346
        %v2982 = vmul.f32 %v2959, 0.088388346
        %v2983 = vmul.f32 %v2962, 0.088388346
        %v2984 = vmul.f32 %v2965, 0.088388346
        %v2985 = vmul.f32 %v2968, 0.088388346
        %2986 = vmax.xlane.f32.xlu0 %v2970
        %v2987 = vpop.xlane.xlu0 %2986
        %2988 = vmax.xlane.f32.xlu0 %v2971
        %v2989 = vpop.xlane.xlu0 %2988
        %2990 = vmax.xlane.f32.xlu0 %v2972
        %v2991 = vpop.xlane.xlu0 %2990
        %2992 = vmax.xlane.f32.xlu0 %v2973
        %v2993 = vpop.xlane.xlu0 %2992
        %2994 = vmax.xlane.f32.xlu0 %v2974
        %v2995 = vpop.xlane.xlu0 %2994
        %2996 = vmax.xlane.f32.xlu0 %v2975
        %v2997 = vpop.xlane.xlu0 %2996
        %2998 = vmax.xlane.f32.xlu0 %v2976
        %v2999 = vpop.xlane.xlu0 %2998
        %3000 = vmax.xlane.f32.xlu0 %v2977
        %v3001 = vpop.xlane.xlu0 %3000
        %3002 = vmax.xlane.f32.xlu0 %v2978
        %v3003 = vpop.xlane.xlu0 %3002
        %3004 = vmax.xlane.f32.xlu0 %v2979
        %v3005 = vpop.xlane.xlu0 %3004
        %3006 = vmax.xlane.f32.xlu0 %v2980
        %v3007 = vpop.xlane.xlu0 %3006
        %3008 = vmax.xlane.f32.xlu0 %v2981
        %v3009 = vpop.xlane.xlu0 %3008
        %3010 = vmax.xlane.f32.xlu0 %v2982
        %v3011 = vpop.xlane.xlu0 %3010
        %3012 = vmax.xlane.f32.xlu0 %v2983
        %v3013 = vpop.xlane.xlu0 %3012
        %3014 = vmax.xlane.f32.xlu0 %v2984
        %v3015 = vpop.xlane.xlu0 %3014
        %3016 = vmax.xlane.f32.xlu0 %v2985
        %v3017 = vpop.xlane.xlu0 %3016
        %v3018 = vsub.f32 %v2970, %v2987
        %v3019 = vsub.f32 %v2971, %v2989
        %v3020 = vsub.f32 %v2972, %v2991
        %v3021 = vsub.f32 %v2973, %v2993
        %v3022 = vsub.f32 %v2974, %v2995
        %v3023 = vsub.f32 %v2975, %v2997
        %v3024 = vsub.f32 %v2976, %v2999
        %v3025 = vsub.f32 %v2977, %v3001
        %v3026 = vsub.f32 %v2978, %v3003
        %v3027 = vsub.f32 %v2979, %v3005
        %v3028 = vsub.f32 %v2980, %v3007
        %v3029 = vsub.f32 %v2981, %v3009
        %v3030 = vsub.f32 %v2982, %v3011
        %v3031 = vsub.f32 %v2983, %v3013
        %v3032 = vsub.f32 %v2984, %v3015
        %v3033 = vsub.f32 %v2985, %v3017
        %v3034 = vmul.f32 %v3018, 1.442695
        %v3035 = vpow.pop %v3034
        %v3036 = vmul.f32 %v3019, 1.442695
        %v3037 = vpow.pop %v3036
        %v3038 = vmul.f32 %v3020, 1.442695
        %v3039 = vpow.pop %v3038
        %v3040 = vmul.f32 %v3021, 1.442695
        %v3041 = vpow.pop %v3040
        %v3042 = vmul.f32 %v3022, 1.442695
        %v3043 = vpow.pop %v3042
        %v3044 = vmul.f32 %v3023, 1.442695
        %v3045 = vpow.pop %v3044
        %v3046 = vmul.f32 %v3024, 1.442695
        %v3047 = vpow.pop %v3046
        %v3048 = vmul.f32 %v3025, 1.442695
        %v3049 = vpow.pop %v3048
        %v3050 = vmul.f32 %v3026, 1.442695
        %v3051 = vpow.pop %v3050
        %v3052 = vmul.f32 %v3027, 1.442695
        %v3053 = vpow.pop %v3052
        %v3054 = vmul.f32 %v3028, 1.442695
        %v3055 = vpow.pop %v3054
        %v3056 = vmul.f32 %v3029, 1.442695
        %v3057 = vpow.pop %v3056
        %v3058 = vmul.f32 %v3030, 1.442695
        %v3059 = vpow.pop %v3058
        %v3060 = vmul.f32 %v3031, 1.442695
        %v3061 = vpow.pop %v3060
        %v3062 = vmul.f32 %v3032, 1.442695
        %v3063 = vpow.pop %v3062
        %v3064 = vmul.f32 %v3033, 1.442695
        %v3065 = vpow.pop %v3064
        %3066 = vadd.xlane.f32.xlu0 %v3035
        %v3067 = vpop.xlane.xlu0 %3066
        %3068 = vadd.xlane.f32.xlu0 %v3037
        %v3069 = vpop.xlane.xlu0 %3068
        %3070 = vadd.xlane.f32.xlu0 %v3039
        %v3071 = vpop.xlane.xlu0 %3070
        %3072 = vadd.xlane.f32.xlu0 %v3041
        %v3073 = vpop.xlane.xlu0 %3072
        %3074 = vadd.xlane.f32.xlu0 %v3043
        %v3075 = vpop.xlane.xlu0 %3074
        %3076 = vadd.xlane.f32.xlu0 %v3045
        %v3077 = vpop.xlane.xlu0 %3076
        %3078 = vadd.xlane.f32.xlu0 %v3047
        %v3079 = vpop.xlane.xlu0 %3078
        %3080 = vadd.xlane.f32.xlu0 %v3049
        %v3081 = vpop.xlane.xlu0 %3080
        %3082 = vadd.xlane.f32.xlu0 %v3051
        %v3083 = vpop.xlane.xlu0 %3082
        %3084 = vadd.xlane.f32.xlu0 %v3053
        %v3085 = vpop.xlane.xlu0 %3084
        %3086 = vadd.xlane.f32.xlu0 %v3055
        %v3087 = vpop.xlane.xlu0 %3086
        %3088 = vadd.xlane.f32.xlu0 %v3057
        %v3089 = vpop.xlane.xlu0 %3088
        %3090 = vadd.xlane.f32.xlu0 %v3059
        %v3091 = vpop.xlane.xlu0 %3090
        %3092 = vadd.xlane.f32.xlu0 %v3061
        %v3093 = vpop.xlane.xlu0 %3092
        %3094 = vadd.xlane.f32.xlu0 %v3063
        %v3095 = vpop.xlane.xlu0 %3094
        %3096 = vadd.xlane.f32.xlu0 %v3065
        %v3097 = vpop.xlane.xlu0 %3096
        %v3098 = vrcp.pop %v3067
        %v3099 = vmul.f32 %v3067, %v3098
        %v3100 = vsub.f32 1.0, %v3099
        %v3101 = vmul.f32 %v3098, %v3100
        %v3102 = vadd.f32 %v3098, %v3101
        %vm3103 = vweird.f32 %v3067
        %vm3104 = vweird.f32 %v3098
        %vm3105 = vmor %vm3103, %vm3104
        %v3106 = vsel %vm3105, %v3098, %v3102
        %v3107 = vand.u32 2147483647, %v3067
        %vm3108 = vcmp.eq.f32.partialorder %v3107, 8.507059e+37
        %v3109 = vand.u32 %v3067, 2147483648
        %v3110 = vor.u32 1.1754944e-38, %v3109
        %v3111 = vsel %vm3108, %v3110, %v3106
        %v3112 = vmul.f32 %v3035, %v3111
        %v3113 = vrcp.pop %v3069
        %v3114 = vmul.f32 %v3069, %v3113
        %v3115 = vsub.f32 1.0, %v3114
        %v3116 = vmul.f32 %v3113, %v3115
        %v3117 = vadd.f32 %v3113, %v3116
        %vm3118 = vweird.f32 %v3069
        %vm3119 = vweird.f32 %v3113
        %vm3120 = vmor %vm3118, %vm3119
        %v3121 = vsel %vm3120, %v3113, %v3117
        %v3122 = vand.u32 2147483647, %v3069
        %vm3123 = vcmp.eq.f32.partialorder %v3122, 8.507059e+37
        %v3124 = vand.u32 %v3069, 2147483648
        %v3125 = vor.u32 1.1754944e-38, %v3124
        %v3126 = vsel %vm3123, %v3125, %v3121
        %v3127 = vmul.f32 %v3037, %v3126
        %v3128 = vrcp.pop %v3071
        %v3129 = vmul.f32 %v3071, %v3128
        %v3130 = vsub.f32 1.0, %v3129
        %v3131 = vmul.f32 %v3128, %v3130
        %v3132 = vadd.f32 %v3128, %v3131
        %vm3133 = vweird.f32 %v3071
        %vm3134 = vweird.f32 %v3128
        %vm3135 = vmor %vm3133, %vm3134
        %v3136 = vsel %vm3135, %v3128, %v3132
        %v3137 = vand.u32 2147483647, %v3071
        %vm3138 = vcmp.eq.f32.partialorder %v3137, 8.507059e+37
        %v3139 = vand.u32 %v3071, 2147483648
        %v3140 = vor.u32 1.1754944e-38, %v3139
        %v3141 = vsel %vm3138, %v3140, %v3136
        %v3142 = vmul.f32 %v3039, %v3141
        %v3143 = vrcp.pop %v3073
        %v3144 = vmul.f32 %v3073, %v3143
        %v3145 = vsub.f32 1.0, %v3144
        %v3146 = vmul.f32 %v3143, %v3145
        %v3147 = vadd.f32 %v3143, %v3146
        %vm3148 = vweird.f32 %v3073
        %vm3149 = vweird.f32 %v3143
        %vm3150 = vmor %vm3148, %vm3149
        %v3151 = vsel %vm3150, %v3143, %v3147
        %v3152 = vand.u32 2147483647, %v3073
        %vm3153 = vcmp.eq.f32.partialorder %v3152, 8.507059e+37
        %v3154 = vand.u32 %v3073, 2147483648
        %v3155 = vor.u32 1.1754944e-38, %v3154
        %v3156 = vsel %vm3153, %v3155, %v3151
        %v3157 = vmul.f32 %v3041, %v3156
        %v3158 = vrcp.pop %v3075
        %v3159 = vmul.f32 %v3075, %v3158
        %v3160 = vsub.f32 1.0, %v3159
        %v3161 = vmul.f32 %v3158, %v3160
        %v3162 = vadd.f32 %v3158, %v3161
        %vm3163 = vweird.f32 %v3075
        %vm3164 = vweird.f32 %v3158
        %vm3165 = vmor %vm3163, %vm3164
        %v3166 = vsel %vm3165, %v3158, %v3162
        %v3167 = vand.u32 2147483647, %v3075
        %vm3168 = vcmp.eq.f32.partialorder %v3167, 8.507059e+37
        %v3169 = vand.u32 %v3075, 2147483648
        %v3170 = vor.u32 1.1754944e-38, %v3169
        %v3171 = vsel %vm3168, %v3170, %v3166
        %v3172 = vmul.f32 %v3043, %v3171
        %v3173 = vrcp.pop %v3077
        %v3174 = vmul.f32 %v3077, %v3173
        %v3175 = vsub.f32 1.0, %v3174
        %v3176 = vmul.f32 %v3173, %v3175
        %v3177 = vadd.f32 %v3173, %v3176
        %vm3178 = vweird.f32 %v3077
        %vm3179 = vweird.f32 %v3173
        %vm3180 = vmor %vm3178, %vm3179
        %v3181 = vsel %vm3180, %v3173, %v3177
        %v3182 = vand.u32 2147483647, %v3077
        %vm3183 = vcmp.eq.f32.partialorder %v3182, 8.507059e+37
        %v3184 = vand.u32 %v3077, 2147483648
        %v3185 = vor.u32 1.1754944e-38, %v3184
        %v3186 = vsel %vm3183, %v3185, %v3181
        %v3187 = vmul.f32 %v3045, %v3186
        %v3188 = vrcp.pop %v3079
        %v3189 = vmul.f32 %v3079, %v3188
        %v3190 = vsub.f32 1.0, %v3189
        %v3191 = vmul.f32 %v3188, %v3190
        %v3192 = vadd.f32 %v3188, %v3191
        %vm3193 = vweird.f32 %v3079
        %vm3194 = vweird.f32 %v3188
        %vm3195 = vmor %vm3193, %vm3194
        %v3196 = vsel %vm3195, %v3188, %v3192
        %v3197 = vand.u32 2147483647, %v3079
        %vm3198 = vcmp.eq.f32.partialorder %v3197, 8.507059e+37
        %v3199 = vand.u32 %v3079, 2147483648
        %v3200 = vor.u32 1.1754944e-38, %v3199
        %v3201 = vsel %vm3198, %v3200, %v3196
        %v3202 = vmul.f32 %v3047, %v3201
        %v3203 = vrcp.pop %v3081
        %v3204 = vmul.f32 %v3081, %v3203
        %v3205 = vsub.f32 1.0, %v3204
        %v3206 = vmul.f32 %v3203, %v3205
        %v3207 = vadd.f32 %v3203, %v3206
        %vm3208 = vweird.f32 %v3081
        %vm3209 = vweird.f32 %v3203
        %vm3210 = vmor %vm3208, %vm3209
        %v3211 = vsel %vm3210, %v3203, %v3207
        %v3212 = vand.u32 2147483647, %v3081
        %vm3213 = vcmp.eq.f32.partialorder %v3212, 8.507059e+37
        %v3214 = vand.u32 %v3081, 2147483648
        %v3215 = vor.u32 1.1754944e-38, %v3214
        %v3216 = vsel %vm3213, %v3215, %v3211
        %v3217 = vmul.f32 %v3049, %v3216
        %v3218 = vrcp.pop %v3083
        %v3219 = vmul.f32 %v3083, %v3218
        %v3220 = vsub.f32 1.0, %v3219
        %v3221 = vmul.f32 %v3218, %v3220
        %v3222 = vadd.f32 %v3218, %v3221
        %vm3223 = vweird.f32 %v3083
        %vm3224 = vweird.f32 %v3218
        %vm3225 = vmor %vm3223, %vm3224
        %v3226 = vsel %vm3225, %v3218, %v3222
        %v3227 = vand.u32 2147483647, %v3083
        %vm3228 = vcmp.eq.f32.partialorder %v3227, 8.507059e+37
        %v3229 = vand.u32 %v3083, 2147483648
        %v3230 = vor.u32 1.1754944e-38, %v3229
        %v3231 = vsel %vm3228, %v3230, %v3226
        %v3232 = vmul.f32 %v3051, %v3231
        %v3233 = vrcp.pop %v3085
        %v3234 = vmul.f32 %v3085, %v3233
        %v3235 = vsub.f32 1.0, %v3234
        %v3236 = vmul.f32 %v3233, %v3235
        %v3237 = vadd.f32 %v3233, %v3236
        %vm3238 = vweird.f32 %v3085
        %vm3239 = vweird.f32 %v3233
        %vm3240 = vmor %vm3238, %vm3239
        %v3241 = vsel %vm3240, %v3233, %v3237
        %v3242 = vand.u32 2147483647, %v3085
        %vm3243 = vcmp.eq.f32.partialorder %v3242, 8.507059e+37
        %v3244 = vand.u32 %v3085, 2147483648
        %v3245 = vor.u32 1.1754944e-38, %v3244
        %v3246 = vsel %vm3243, %v3245, %v3241
        %v3247 = vmul.f32 %v3053, %v3246
        %v3248 = vrcp.pop %v3087
        %v3249 = vmul.f32 %v3087, %v3248
        %v3250 = vsub.f32 1.0, %v3249
        %v3251 = vmul.f32 %v3248, %v3250
        %v3252 = vadd.f32 %v3248, %v3251
        %vm3253 = vweird.f32 %v3087
        %vm3254 = vweird.f32 %v3248
        %vm3255 = vmor %vm3253, %vm3254
        %v3256 = vsel %vm3255, %v3248, %v3252
        %v3257 = vand.u32 2147483647, %v3087
        %vm3258 = vcmp.eq.f32.partialorder %v3257, 8.507059e+37
        %v3259 = vand.u32 %v3087, 2147483648
        %v3260 = vor.u32 1.1754944e-38, %v3259
        %v3261 = vsel %vm3258, %v3260, %v3256
        %v3262 = vmul.f32 %v3055, %v3261
        %v3263 = vrcp.pop %v3089
        %v3264 = vmul.f32 %v3089, %v3263
        %v3265 = vsub.f32 1.0, %v3264
        %v3266 = vmul.f32 %v3263, %v3265
        %v3267 = vadd.f32 %v3263, %v3266
        %vm3268 = vweird.f32 %v3089
        %vm3269 = vweird.f32 %v3263
        %vm3270 = vmor %vm3268, %vm3269
        %v3271 = vsel %vm3270, %v3263, %v3267
        %v3272 = vand.u32 2147483647, %v3089
        %vm3273 = vcmp.eq.f32.partialorder %v3272, 8.507059e+37
        %v3274 = vand.u32 %v3089, 2147483648
        %v3275 = vor.u32 1.1754944e-38, %v3274
        %v3276 = vsel %vm3273, %v3275, %v3271
        %v3277 = vmul.f32 %v3057, %v3276
        %v3278 = vrcp.pop %v3091
        %v3279 = vmul.f32 %v3091, %v3278
        %v3280 = vsub.f32 1.0, %v3279
        %v3281 = vmul.f32 %v3278, %v3280
        %v3282 = vadd.f32 %v3278, %v3281
        %vm3283 = vweird.f32 %v3091
        %vm3284 = vweird.f32 %v3278
        %vm3285 = vmor %vm3283, %vm3284
        %v3286 = vsel %vm3285, %v3278, %v3282
        %v3287 = vand.u32 2147483647, %v3091
        %vm3288 = vcmp.eq.f32.partialorder %v3287, 8.507059e+37
        %v3289 = vand.u32 %v3091, 2147483648
        %v3290 = vor.u32 1.1754944e-38, %v3289
        %v3291 = vsel %vm3288, %v3290, %v3286
        %v3292 = vmul.f32 %v3059, %v3291
        %v3293 = vrcp.pop %v3093
        %v3294 = vmul.f32 %v3093, %v3293
        %v3295 = vsub.f32 1.0, %v3294
        %v3296 = vmul.f32 %v3293, %v3295
        %v3297 = vadd.f32 %v3293, %v3296
        %vm3298 = vweird.f32 %v3093
        %vm3299 = vweird.f32 %v3293
        %vm3300 = vmor %vm3298, %vm3299
        %v3301 = vsel %vm3300, %v3293, %v3297
        %v3302 = vand.u32 2147483647, %v3093
        %vm3303 = vcmp.eq.f32.partialorder %v3302, 8.507059e+37
        %v3304 = vand.u32 %v3093, 2147483648
        %v3305 = vor.u32 1.1754944e-38, %v3304
        %v3306 = vsel %vm3303, %v3305, %v3301
        %v3307 = vmul.f32 %v3061, %v3306
        %v3308 = vrcp.pop %v3095
        %v3309 = vmul.f32 %v3095, %v3308
        %v3310 = vsub.f32 1.0, %v3309
        %v3311 = vmul.f32 %v3308, %v3310
        %v3312 = vadd.f32 %v3308, %v3311
        %vm3313 = vweird.f32 %v3095
        %vm3314 = vweird.f32 %v3308
        %vm3315 = vmor %vm3313, %vm3314
        %v3316 = vsel %vm3315, %v3308, %v3312
        %v3317 = vand.u32 2147483647, %v3095
        %vm3318 = vcmp.eq.f32.partialorder %v3317, 8.507059e+37
        %v3319 = vand.u32 %v3095, 2147483648
        %v3320 = vor.u32 1.1754944e-38, %v3319
        %v3321 = vsel %vm3318, %v3320, %v3316
        %v3322 = vmul.f32 %v3063, %v3321
        %v3323 = vrcp.pop %v3097
        %v3324 = vmul.f32 %v3097, %v3323
        %v3325 = vsub.f32 1.0, %v3324
        %v3326 = vmul.f32 %v3323, %v3325
        %v3327 = vadd.f32 %v3323, %v3326
        %vm3328 = vweird.f32 %v3097
        %vm3329 = vweird.f32 %v3323
        %vm3330 = vmor %vm3328, %vm3329
        %v3331 = vsel %vm3330, %v3323, %v3327
        %v3332 = vand.u32 2147483647, %v3097
        %vm3333 = vcmp.eq.f32.partialorder %v3332, 8.507059e+37
        %v3334 = vand.u32 %v3097, 2147483648
        %v3335 = vor.u32 1.1754944e-38, %v3334
        %v3336 = vsel %vm3333, %v3335, %v3331
        %v3337 = vmul.f32 %v3065, %v3336
        %3338 = vrot.lane.b32.xlu0 %v771, 80
        %v3339 = vpop.permute.xlu0 %3338
        %3340 = vrot.lane.b32.xlu0 %v774, 80
        %v3341 = vpop.permute.xlu0 %3340
        %3342 = vrot.lane.b32.xlu0 %v777, 80
        %v3343 = vpop.permute.xlu0 %3342
        %3344 = vrot.lane.b32.xlu0 %v780, 80
        %v3345 = vpop.permute.xlu0 %3344
        %3346 = vrot.lane.b32.xlu0 %v783, 80
        %v3347 = vpop.permute.xlu0 %3346
        %3348 = vrot.lane.b32.xlu0 %v786, 80
        %v3349 = vpop.permute.xlu0 %3348
        %3350 = vrot.lane.b32.xlu0 %v789, 80
        %v3351 = vpop.permute.xlu0 %3350
        %3352 = vrot.lane.b32.xlu0 %v792, 80
        %v3353 = vpop.permute.xlu0 %3352
        %3354 = vrot.lane.b32.xlu0 %v795, 80
        %v3355 = vpop.permute.xlu0 %3354
        %3356 = vrot.lane.b32.xlu0 %v798, 80
        %v3357 = vpop.permute.xlu0 %3356
        %3358 = vrot.lane.b32.xlu0 %v801, 80
        %v3359 = vpop.permute.xlu0 %3358
        %3360 = vrot.lane.b32.xlu0 %v804, 80
        %v3361 = vpop.permute.xlu0 %3360
        %3362 = vrot.lane.b32.xlu0 %v807, 80
        %v3363 = vpop.permute.xlu0 %3362
        %3364 = vrot.lane.b32.xlu0 %v810, 80
        %v3365 = vpop.permute.xlu0 %3364
        %3366 = vrot.lane.b32.xlu0 %v813, 80
        %v3367 = vpop.permute.xlu0 %3366
        %3368 = vrot.lane.b32.xlu0 %v816, 80
        %v3369 = vpop.permute.xlu0 %3368
        %3386 = vmatpush.msra.mxu0 %v3369
        %3387 = vmatpush.msra.mxu0 %v3367
        %3388 = vmatpush.msra.mxu0 %v3365
        %3389 = vmatpush.msra.mxu0 %v3363
        %3390 = vmatpush.msra.mxu0 %v3361
        %3391 = vmatpush.msra.mxu0 %v3359
        %3392 = vmatpush.msra.mxu0 %v3357
        %3393 = vmatpush.msra.mxu0 %v3355
        %3394 = vmatpush.msra.mxu0 %v3353
        %3395 = vmatpush.msra.mxu0 %v3351
        %3396 = vmatpush.msra.mxu0 %v3349
        %3397 = vmatpush.msra.mxu0 %v3347
        %3398 = vmatpush.msra.mxu0 %v3345
        %3399 = vmatpush.msra.mxu0 %v3343
        %3400 = vmatpush.msra.mxu0 %v3341
        %3401 = vmatpush.msra.mxu0 %v3339
        %3402 = vmatmul.f32.gmra.mxu0 %v3112
        %v3403 = vpop.f32.mrf.mxu0
        %v3404 = vadd.f32 0.0, %v3403
        %3405 = vmatmul.f32.gmra.mxu0 %v3127
        %v3406 = vpop.f32.mrf.mxu0
        %v3407 = vadd.f32 0.0, %v3406
        %3408 = vmatmul.f32.gmra.mxu0 %v3142
        %v3409 = vpop.f32.mrf.mxu0
        %v3410 = vadd.f32 0.0, %v3409
        %3411 = vmatmul.f32.gmra.mxu0 %v3157
        %v3412 = vpop.f32.mrf.mxu0
        %v3413 = vadd.f32 0.0, %v3412
        %3414 = vmatmul.f32.gmra.mxu0 %v3172
        %v3415 = vpop.f32.mrf.mxu0
        %v3416 = vadd.f32 0.0, %v3415
        %3417 = vmatmul.f32.gmra.mxu0 %v3187
        %v3418 = vpop.f32.mrf.mxu0
        %v3419 = vadd.f32 0.0, %v3418
        %3420 = vmatmul.f32.gmra.mxu0 %v3202
        %v3421 = vpop.f32.mrf.mxu0
        %v3422 = vadd.f32 0.0, %v3421
        %3423 = vmatmul.f32.gmra.mxu0 %v3217
        %v3424 = vpop.f32.mrf.mxu0
        %v3425 = vadd.f32 0.0, %v3424
        %3426 = vmatmul.f32.gmra.mxu0 %v3232
        %v3427 = vpop.f32.mrf.mxu0
        %v3428 = vadd.f32 0.0, %v3427
        %3429 = vmatmul.f32.gmra.mxu0 %v3247
        %v3430 = vpop.f32.mrf.mxu0
        %v3431 = vadd.f32 0.0, %v3430
        %3432 = vmatmul.f32.gmra.mxu0 %v3262
        %v3433 = vpop.f32.mrf.mxu0
        %v3434 = vadd.f32 0.0, %v3433
        %3435 = vmatmul.f32.gmra.mxu0 %v3277
        %v3436 = vpop.f32.mrf.mxu0
        %v3437 = vadd.f32 0.0, %v3436
        %3438 = vmatmul.f32.gmra.mxu0 %v3292
        %v3439 = vpop.f32.mrf.mxu0
        %v3440 = vadd.f32 0.0, %v3439
        %3441 = vmatmul.f32.gmra.mxu0 %v3307
        %v3442 = vpop.f32.mrf.mxu0
        %v3443 = vadd.f32 0.0, %v3442
        %3444 = vmatmul.f32.gmra.mxu0 %v3322
        %v3445 = vpop.f32.mrf.mxu0
        %v3446 = vadd.f32 0.0, %v3445
        %3447 = vmatmul.f32.gmra.mxu0 %v3337
        %v3448 = vpop.f32.mrf.mxu0
        %v3449 = vadd.f32 0.0, %v3448
        %3450 = vdwg.mxu0
        %3451 = vrot.lane.b32.xlu0 %v609, 64
        %v3452 = vpop.permute.xlu0 %3451
        %3453 = vrot.lane.b32.xlu0 %v612, 64
        %v3454 = vpop.permute.xlu0 %3453
        %3455 = vrot.lane.b32.xlu0 %v615, 64
        %v3456 = vpop.permute.xlu0 %3455
        %3457 = vrot.lane.b32.xlu0 %v618, 64
        %v3458 = vpop.permute.xlu0 %3457
        %3459 = vrot.lane.b32.xlu0 %v621, 64
        %v3460 = vpop.permute.xlu0 %3459
        %3461 = vrot.lane.b32.xlu0 %v624, 64
        %v3462 = vpop.permute.xlu0 %3461
        %3463 = vrot.lane.b32.xlu0 %v627, 64
        %v3464 = vpop.permute.xlu0 %3463
        %3465 = vrot.lane.b32.xlu0 %v630, 64
        %v3466 = vpop.permute.xlu0 %3465
        %3467 = vrot.lane.b32.xlu0 %v633, 64
        %v3468 = vpop.permute.xlu0 %3467
        %3469 = vrot.lane.b32.xlu0 %v636, 64
        %v3470 = vpop.permute.xlu0 %3469
        %3471 = vrot.lane.b32.xlu0 %v639, 64
        %v3472 = vpop.permute.xlu0 %3471
        %3473 = vrot.lane.b32.xlu0 %v642, 64
        %v3474 = vpop.permute.xlu0 %3473
        %3475 = vrot.lane.b32.xlu0 %v645, 64
        %v3476 = vpop.permute.xlu0 %3475
        %3477 = vrot.lane.b32.xlu0 %v648, 64
        %v3478 = vpop.permute.xlu0 %3477
        %3479 = vrot.lane.b32.xlu0 %v651, 64
        %v3480 = vpop.permute.xlu0 %3479
        %3481 = vrot.lane.b32.xlu0 %v654, 64
        %v3482 = vpop.permute.xlu0 %3481
        %3483 = vrot.lane.b32.xlu0 %v690, 64
        %v3484 = vpop.permute.xlu0 %3483
        %3485 = vrot.lane.b32.xlu0 %v693, 64
        %v3486 = vpop.permute.xlu0 %3485
        %3487 = vrot.lane.b32.xlu0 %v696, 64
        %v3488 = vpop.permute.xlu0 %3487
        %3489 = vrot.lane.b32.xlu0 %v699, 64
        %v3490 = vpop.permute.xlu0 %3489
        %3491 = vrot.lane.b32.xlu0 %v702, 64
        %v3492 = vpop.permute.xlu0 %3491
        %3493 = vrot.lane.b32.xlu0 %v705, 64
        %v3494 = vpop.permute.xlu0 %3493
        %3495 = vrot.lane.b32.xlu0 %v708, 64
        %v3496 = vpop.permute.xlu0 %3495
        %3497 = vrot.lane.b32.xlu0 %v711, 64
        %v3498 = vpop.permute.xlu0 %3497
        %3499 = vrot.lane.b32.xlu0 %v714, 64
        %v3500 = vpop.permute.xlu0 %3499
        %3501 = vrot.lane.b32.xlu0 %v717, 64
        %v3502 = vpop.permute.xlu0 %3501
        %3503 = vrot.lane.b32.xlu0 %v720, 64
        %v3504 = vpop.permute.xlu0 %3503
        %3505 = vrot.lane.b32.xlu0 %v723, 64
        %v3506 = vpop.permute.xlu0 %3505
        %3507 = vrot.lane.b32.xlu0 %v726, 64
        %v3508 = vpop.permute.xlu0 %3507
        %3509 = vrot.lane.b32.xlu0 %v729, 64
        %v3510 = vpop.permute.xlu0 %3509
        %3511 = vrot.lane.b32.xlu0 %v732, 64
        %v3512 = vpop.permute.xlu0 %3511
        %3513 = vrot.lane.b32.xlu0 %v735, 64
        %v3514 = vpop.permute.xlu0 %3513
        %v3515 = vsel %vm818, %v3452, 0
        %v3517 = vsel %vm818, %v3454, 0
        %v3519 = vsel %vm818, %v3456, 0
        %v3521 = vsel %vm818, %v3458, 0
        %v3523 = vsel %vm818, %v3460, 0
        %v3525 = vsel %vm818, %v3462, 0
        %v3527 = vsel %vm818, %v3464, 0
        %v3529 = vsel %vm818, %v3466, 0
        %v3531 = vsel %vm818, %v3468, 0
        %v3533 = vsel %vm818, %v3470, 0
        %v3535 = vsel %vm818, %v3472, 0
        %v3537 = vsel %vm818, %v3474, 0
        %v3539 = vsel %vm818, %v3476, 0
        %v3541 = vsel %vm818, %v3478, 0
        %v3543 = vsel %vm818, %v3480, 0
        %v3545 = vsel %vm818, %v3482, 0
        %v3547 = vsel %vm818, %v3484, 0
        %v3549 = vsel %vm818, %v3486, 0
        %v3551 = vsel %vm818, %v3488, 0
        %v3553 = vsel %vm818, %v3490, 0
        %v3555 = vsel %vm818, %v3492, 0
        %v3557 = vsel %vm818, %v3494, 0
        %v3559 = vsel %vm818, %v3496, 0
        %v3561 = vsel %vm818, %v3498, 0
        %v3563 = vsel %vm818, %v3500, 0
        %v3565 = vsel %vm818, %v3502, 0
        %v3567 = vsel %vm818, %v3504, 0
        %v3569 = vsel %vm818, %v3506, 0
        %v3571 = vsel %vm818, %v3508, 0
        %v3573 = vsel %vm818, %v3510, 0
        %v3575 = vsel %vm818, %v3512, 0
        %v3577 = vsel %vm818, %v3514, 0
        %3579 = vmatpush.xpose.msra.mxu0 %v3577
        %3580 = vmatpush.xpose.msra.mxu0 %v3575
        %3581 = vmatpush.xpose.msra.mxu0 %v3573
        %3582 = vmatpush.xpose.msra.mxu0 %v3571
        %3583 = vmatpush.xpose.msra.mxu0 %v3569
        %3584 = vmatpush.xpose.msra.mxu0 %v3567
        %3585 = vmatpush.xpose.msra.mxu0 %v3565
        %3586 = vmatpush.xpose.msra.mxu0 %v3563
        %3587 = vmatpush.xpose.msra.mxu0 %v3561
        %3588 = vmatpush.xpose.msra.mxu0 %v3559
        %3589 = vmatpush.xpose.msra.mxu0 %v3557
        %3590 = vmatpush.xpose.msra.mxu0 %v3555
        %3591 = vmatpush.xpose.msra.mxu0 %v3553
        %3592 = vmatpush.xpose.msra.mxu0 %v3551
        %3593 = vmatpush.xpose.msra.mxu0 %v3549
        %3594 = vmatpush.xpose.msra.mxu0 %v3547
        %3595 = vmatmul.f32.gmra.mxu0 %v3515
        %v3596 = vpop.f32.mrf.mxu0
        %v3597 = vadd.f32 0.0, %v3596
        %3598 = vmatmul.f32.gmra.mxu0 %v3517
        %v3599 = vpop.f32.mrf.mxu0
        %v3600 = vadd.f32 0.0, %v3599
        %3601 = vmatmul.f32.gmra.mxu0 %v3519
        %v3602 = vpop.f32.mrf.mxu0
        %v3603 = vadd.f32 0.0, %v3602
        %3604 = vmatmul.f32.gmra.mxu0 %v3521
        %v3605 = vpop.f32.mrf.mxu0
        %v3606 = vadd.f32 0.0, %v3605
        %3607 = vmatmul.f32.gmra.mxu0 %v3523
        %v3608 = vpop.f32.mrf.mxu0
        %v3609 = vadd.f32 0.0, %v3608
        %3610 = vmatmul.f32.gmra.mxu0 %v3525
        %v3611 = vpop.f32.mrf.mxu0
        %v3612 = vadd.f32 0.0, %v3611
        %3613 = vmatmul.f32.gmra.mxu0 %v3527
        %v3614 = vpop.f32.mrf.mxu0
        %v3615 = vadd.f32 0.0, %v3614
        %3616 = vmatmul.f32.gmra.mxu0 %v3529
        %v3617 = vpop.f32.mrf.mxu0
        %v3618 = vadd.f32 0.0, %v3617
        %3619 = vmatmul.f32.gmra.mxu0 %v3531
        %v3620 = vpop.f32.mrf.mxu0
        %v3621 = vadd.f32 0.0, %v3620
        %3622 = vmatmul.f32.gmra.mxu0 %v3533
        %v3623 = vpop.f32.mrf.mxu0
        %v3624 = vadd.f32 0.0, %v3623
        %3625 = vmatmul.f32.gmra.mxu0 %v3535
        %v3626 = vpop.f32.mrf.mxu0
        %v3627 = vadd.f32 0.0, %v3626
        %3628 = vmatmul.f32.gmra.mxu0 %v3537
        %v3629 = vpop.f32.mrf.mxu0
        %v3630 = vadd.f32 0.0, %v3629
        %3631 = vmatmul.f32.gmra.mxu0 %v3539
        %v3632 = vpop.f32.mrf.mxu0
        %v3633 = vadd.f32 0.0, %v3632
        %3634 = vmatmul.f32.gmra.mxu0 %v3541
        %v3635 = vpop.f32.mrf.mxu0
        %v3636 = vadd.f32 0.0, %v3635
        %3637 = vmatmul.f32.gmra.mxu0 %v3543
        %v3638 = vpop.f32.mrf.mxu0
        %v3639 = vadd.f32 0.0, %v3638
        %3640 = vmatmul.f32.gmra.mxu0 %v3545
        %v3641 = vpop.f32.mrf.mxu0
        %v3642 = vadd.f32 0.0, %v3641
        %3643 = vdwg.mxu0
        %v3644 = vmul.f32 %v3597, 0.088388346
        %v3645 = vmul.f32 %v3600, 0.088388346
        %v3646 = vmul.f32 %v3603, 0.088388346
        %v3647 = vmul.f32 %v3606, 0.088388346
        %v3648 = vmul.f32 %v3609, 0.088388346
        %v3649 = vmul.f32 %v3612, 0.088388346
        %v3650 = vmul.f32 %v3615, 0.088388346
        %v3651 = vmul.f32 %v3618, 0.088388346
        %v3652 = vmul.f32 %v3621, 0.088388346
        %v3653 = vmul.f32 %v3624, 0.088388346
        %v3654 = vmul.f32 %v3627, 0.088388346
        %v3655 = vmul.f32 %v3630, 0.088388346
        %v3656 = vmul.f32 %v3633, 0.088388346
        %v3657 = vmul.f32 %v3636, 0.088388346
        %v3658 = vmul.f32 %v3639, 0.088388346
        %v3659 = vmul.f32 %v3642, 0.088388346
        %3660 = vmax.xlane.f32.xlu0 %v3644
        %v3661 = vpop.xlane.xlu0 %3660
        %3662 = vmax.xlane.f32.xlu0 %v3645
        %v3663 = vpop.xlane.xlu0 %3662
        %3664 = vmax.xlane.f32.xlu0 %v3646
        %v3665 = vpop.xlane.xlu0 %3664
        %3666 = vmax.xlane.f32.xlu0 %v3647
        %v3667 = vpop.xlane.xlu0 %3666
        %3668 = vmax.xlane.f32.xlu0 %v3648
        %v3669 = vpop.xlane.xlu0 %3668
        %3670 = vmax.xlane.f32.xlu0 %v3649
        %v3671 = vpop.xlane.xlu0 %3670
        %3672 = vmax.xlane.f32.xlu0 %v3650
        %v3673 = vpop.xlane.xlu0 %3672
        %3674 = vmax.xlane.f32.xlu0 %v3651
        %v3675 = vpop.xlane.xlu0 %3674
        %3676 = vmax.xlane.f32.xlu0 %v3652
        %v3677 = vpop.xlane.xlu0 %3676
        %3678 = vmax.xlane.f32.xlu0 %v3653
        %v3679 = vpop.xlane.xlu0 %3678
        %3680 = vmax.xlane.f32.xlu0 %v3654
        %v3681 = vpop.xlane.xlu0 %3680
        %3682 = vmax.xlane.f32.xlu0 %v3655
        %v3683 = vpop.xlane.xlu0 %3682
        %3684 = vmax.xlane.f32.xlu0 %v3656
        %v3685 = vpop.xlane.xlu0 %3684
        %3686 = vmax.xlane.f32.xlu0 %v3657
        %v3687 = vpop.xlane.xlu0 %3686
        %3688 = vmax.xlane.f32.xlu0 %v3658
        %v3689 = vpop.xlane.xlu0 %3688
        %3690 = vmax.xlane.f32.xlu0 %v3659
        %v3691 = vpop.xlane.xlu0 %3690
        %v3692 = vsub.f32 %v3644, %v3661
        %v3693 = vsub.f32 %v3645, %v3663
        %v3694 = vsub.f32 %v3646, %v3665
        %v3695 = vsub.f32 %v3647, %v3667
        %v3696 = vsub.f32 %v3648, %v3669
        %v3697 = vsub.f32 %v3649, %v3671
        %v3698 = vsub.f32 %v3650, %v3673
        %v3699 = vsub.f32 %v3651, %v3675
        %v3700 = vsub.f32 %v3652, %v3677
        %v3701 = vsub.f32 %v3653, %v3679
        %v3702 = vsub.f32 %v3654, %v3681
        %v3703 = vsub.f32 %v3655, %v3683
        %v3704 = vsub.f32 %v3656, %v3685
        %v3705 = vsub.f32 %v3657, %v3687
        %v3706 = vsub.f32 %v3658, %v3689
        %v3707 = vsub.f32 %v3659, %v3691
        %v3708 = vmul.f32 %v3692, 1.442695
        %v3709 = vpow.pop %v3708
        %v3710 = vmul.f32 %v3693, 1.442695
        %v3711 = vpow.pop %v3710
        %v3712 = vmul.f32 %v3694, 1.442695
        %v3713 = vpow.pop %v3712
        %v3714 = vmul.f32 %v3695, 1.442695
        %v3715 = vpow.pop %v3714
        %v3716 = vmul.f32 %v3696, 1.442695
        %v3717 = vpow.pop %v3716
        %v3718 = vmul.f32 %v3697, 1.442695
        %v3719 = vpow.pop %v3718
        %v3720 = vmul.f32 %v3698, 1.442695
        %v3721 = vpow.pop %v3720
        %v3722 = vmul.f32 %v3699, 1.442695
        %v3723 = vpow.pop %v3722
        %v3724 = vmul.f32 %v3700, 1.442695
        %v3725 = vpow.pop %v3724
        %v3726 = vmul.f32 %v3701, 1.442695
        %v3727 = vpow.pop %v3726
        %v3728 = vmul.f32 %v3702, 1.442695
        %v3729 = vpow.pop %v3728
        %v3730 = vmul.f32 %v3703, 1.442695
        %v3731 = vpow.pop %v3730
        %v3732 = vmul.f32 %v3704, 1.442695
        %v3733 = vpow.pop %v3732
        %v3734 = vmul.f32 %v3705, 1.442695
        %v3735 = vpow.pop %v3734
        %v3736 = vmul.f32 %v3706, 1.442695
        %v3737 = vpow.pop %v3736
        %v3738 = vmul.f32 %v3707, 1.442695
        %v3739 = vpow.pop %v3738
        %3740 = vadd.xlane.f32.xlu0 %v3709
        %v3741 = vpop.xlane.xlu0 %3740
        %3742 = vadd.xlane.f32.xlu0 %v3711
        %v3743 = vpop.xlane.xlu0 %3742
        %3744 = vadd.xlane.f32.xlu0 %v3713
        %v3745 = vpop.xlane.xlu0 %3744
        %3746 = vadd.xlane.f32.xlu0 %v3715
        %v3747 = vpop.xlane.xlu0 %3746
        %3748 = vadd.xlane.f32.xlu0 %v3717
        %v3749 = vpop.xlane.xlu0 %3748
        %3750 = vadd.xlane.f32.xlu0 %v3719
        %v3751 = vpop.xlane.xlu0 %3750
        %3752 = vadd.xlane.f32.xlu0 %v3721
        %v3753 = vpop.xlane.xlu0 %3752
        %3754 = vadd.xlane.f32.xlu0 %v3723
        %v3755 = vpop.xlane.xlu0 %3754
        %3756 = vadd.xlane.f32.xlu0 %v3725
        %v3757 = vpop.xlane.xlu0 %3756
        %3758 = vadd.xlane.f32.xlu0 %v3727
        %v3759 = vpop.xlane.xlu0 %3758
        %3760 = vadd.xlane.f32.xlu0 %v3729
        %v3761 = vpop.xlane.xlu0 %3760
        %3762 = vadd.xlane.f32.xlu0 %v3731
        %v3763 = vpop.xlane.xlu0 %3762
        %3764 = vadd.xlane.f32.xlu0 %v3733
        %v3765 = vpop.xlane.xlu0 %3764
        %3766 = vadd.xlane.f32.xlu0 %v3735
        %v3767 = vpop.xlane.xlu0 %3766
        %3768 = vadd.xlane.f32.xlu0 %v3737
        %v3769 = vpop.xlane.xlu0 %3768
        %3770 = vadd.xlane.f32.xlu0 %v3739
        %v3771 = vpop.xlane.xlu0 %3770
        %v3772 = vrcp.pop %v3741
        %v3773 = vmul.f32 %v3741, %v3772
        %v3774 = vsub.f32 1.0, %v3773
        %v3775 = vmul.f32 %v3772, %v3774
        %v3776 = vadd.f32 %v3772, %v3775
        %vm3777 = vweird.f32 %v3741
        %vm3778 = vweird.f32 %v3772
        %vm3779 = vmor %vm3777, %vm3778
        %v3780 = vsel %vm3779, %v3772, %v3776
        %v3781 = vand.u32 2147483647, %v3741
        %vm3782 = vcmp.eq.f32.partialorder %v3781, 8.507059e+37
        %v3783 = vand.u32 %v3741, 2147483648
        %v3784 = vor.u32 1.1754944e-38, %v3783
        %v3785 = vsel %vm3782, %v3784, %v3780
        %v3786 = vmul.f32 %v3709, %v3785
        %v3787 = vrcp.pop %v3743
        %v3788 = vmul.f32 %v3743, %v3787
        %v3789 = vsub.f32 1.0, %v3788
        %v3790 = vmul.f32 %v3787, %v3789
        %v3791 = vadd.f32 %v3787, %v3790
        %vm3792 = vweird.f32 %v3743
        %vm3793 = vweird.f32 %v3787
        %vm3794 = vmor %vm3792, %vm3793
        %v3795 = vsel %vm3794, %v3787, %v3791
        %v3796 = vand.u32 2147483647, %v3743
        %vm3797 = vcmp.eq.f32.partialorder %v3796, 8.507059e+37
        %v3798 = vand.u32 %v3743, 2147483648
        %v3799 = vor.u32 1.1754944e-38, %v3798
        %v3800 = vsel %vm3797, %v3799, %v3795
        %v3801 = vmul.f32 %v3711, %v3800
        %v3802 = vrcp.pop %v3745
        %v3803 = vmul.f32 %v3745, %v3802
        %v3804 = vsub.f32 1.0, %v3803
        %v3805 = vmul.f32 %v3802, %v3804
        %v3806 = vadd.f32 %v3802, %v3805
        %vm3807 = vweird.f32 %v3745
        %vm3808 = vweird.f32 %v3802
        %vm3809 = vmor %vm3807, %vm3808
        %v3810 = vsel %vm3809, %v3802, %v3806
        %v3811 = vand.u32 2147483647, %v3745
        %vm3812 = vcmp.eq.f32.partialorder %v3811, 8.507059e+37
        %v3813 = vand.u32 %v3745, 2147483648
        %v3814 = vor.u32 1.1754944e-38, %v3813
        %v3815 = vsel %vm3812, %v3814, %v3810
        %v3816 = vmul.f32 %v3713, %v3815
        %v3817 = vrcp.pop %v3747
        %v3818 = vmul.f32 %v3747, %v3817
        %v3819 = vsub.f32 1.0, %v3818
        %v3820 = vmul.f32 %v3817, %v3819
        %v3821 = vadd.f32 %v3817, %v3820
        %vm3822 = vweird.f32 %v3747
        %vm3823 = vweird.f32 %v3817
        %vm3824 = vmor %vm3822, %vm3823
        %v3825 = vsel %vm3824, %v3817, %v3821
        %v3826 = vand.u32 2147483647, %v3747
        %vm3827 = vcmp.eq.f32.partialorder %v3826, 8.507059e+37
        %v3828 = vand.u32 %v3747, 2147483648
        %v3829 = vor.u32 1.1754944e-38, %v3828
        %v3830 = vsel %vm3827, %v3829, %v3825
        %v3831 = vmul.f32 %v3715, %v3830
        %v3832 = vrcp.pop %v3749
        %v3833 = vmul.f32 %v3749, %v3832
        %v3834 = vsub.f32 1.0, %v3833
        %v3835 = vmul.f32 %v3832, %v3834
        %v3836 = vadd.f32 %v3832, %v3835
        %vm3837 = vweird.f32 %v3749
        %vm3838 = vweird.f32 %v3832
        %vm3839 = vmor %vm3837, %vm3838
        %v3840 = vsel %vm3839, %v3832, %v3836
        %v3841 = vand.u32 2147483647, %v3749
        %vm3842 = vcmp.eq.f32.partialorder %v3841, 8.507059e+37
        %v3843 = vand.u32 %v3749, 2147483648
        %v3844 = vor.u32 1.1754944e-38, %v3843
        %v3845 = vsel %vm3842, %v3844, %v3840
        %v3846 = vmul.f32 %v3717, %v3845
        %v3847 = vrcp.pop %v3751
        %v3848 = vmul.f32 %v3751, %v3847
        %v3849 = vsub.f32 1.0, %v3848
        %v3850 = vmul.f32 %v3847, %v3849
        %v3851 = vadd.f32 %v3847, %v3850
        %vm3852 = vweird.f32 %v3751
        %vm3853 = vweird.f32 %v3847
        %vm3854 = vmor %vm3852, %vm3853
        %v3855 = vsel %vm3854, %v3847, %v3851
        %v3856 = vand.u32 2147483647, %v3751
        %vm3857 = vcmp.eq.f32.partialorder %v3856, 8.507059e+37
        %v3858 = vand.u32 %v3751, 2147483648
        %v3859 = vor.u32 1.1754944e-38, %v3858
        %v3860 = vsel %vm3857, %v3859, %v3855
        %v3861 = vmul.f32 %v3719, %v3860
        %v3862 = vrcp.pop %v3753
        %v3863 = vmul.f32 %v3753, %v3862
        %v3864 = vsub.f32 1.0, %v3863
        %v3865 = vmul.f32 %v3862, %v3864
        %v3866 = vadd.f32 %v3862, %v3865
        %vm3867 = vweird.f32 %v3753
        %vm3868 = vweird.f32 %v3862
        %vm3869 = vmor %vm3867, %vm3868
        %v3870 = vsel %vm3869, %v3862, %v3866
        %v3871 = vand.u32 2147483647, %v3753
        %vm3872 = vcmp.eq.f32.partialorder %v3871, 8.507059e+37
        %v3873 = vand.u32 %v3753, 2147483648
        %v3874 = vor.u32 1.1754944e-38, %v3873
        %v3875 = vsel %vm3872, %v3874, %v3870
        %v3876 = vmul.f32 %v3721, %v3875
        %v3877 = vrcp.pop %v3755
        %v3878 = vmul.f32 %v3755, %v3877
        %v3879 = vsub.f32 1.0, %v3878
        %v3880 = vmul.f32 %v3877, %v3879
        %v3881 = vadd.f32 %v3877, %v3880
        %vm3882 = vweird.f32 %v3755
        %vm3883 = vweird.f32 %v3877
        %vm3884 = vmor %vm3882, %vm3883
        %v3885 = vsel %vm3884, %v3877, %v3881
        %v3886 = vand.u32 2147483647, %v3755
        %vm3887 = vcmp.eq.f32.partialorder %v3886, 8.507059e+37
        %v3888 = vand.u32 %v3755, 2147483648
        %v3889 = vor.u32 1.1754944e-38, %v3888
        %v3890 = vsel %vm3887, %v3889, %v3885
        %v3891 = vmul.f32 %v3723, %v3890
        %v3892 = vrcp.pop %v3757
        %v3893 = vmul.f32 %v3757, %v3892
        %v3894 = vsub.f32 1.0, %v3893
        %v3895 = vmul.f32 %v3892, %v3894
        %v3896 = vadd.f32 %v3892, %v3895
        %vm3897 = vweird.f32 %v3757
        %vm3898 = vweird.f32 %v3892
        %vm3899 = vmor %vm3897, %vm3898
        %v3900 = vsel %vm3899, %v3892, %v3896
        %v3901 = vand.u32 2147483647, %v3757
        %vm3902 = vcmp.eq.f32.partialorder %v3901, 8.507059e+37
        %v3903 = vand.u32 %v3757, 2147483648
        %v3904 = vor.u32 1.1754944e-38, %v3903
        %v3905 = vsel %vm3902, %v3904, %v3900
        %v3906 = vmul.f32 %v3725, %v3905
        %v3907 = vrcp.pop %v3759
        %v3908 = vmul.f32 %v3759, %v3907
        %v3909 = vsub.f32 1.0, %v3908
        %v3910 = vmul.f32 %v3907, %v3909
        %v3911 = vadd.f32 %v3907, %v3910
        %vm3912 = vweird.f32 %v3759
        %vm3913 = vweird.f32 %v3907
        %vm3914 = vmor %vm3912, %vm3913
        %v3915 = vsel %vm3914, %v3907, %v3911
        %v3916 = vand.u32 2147483647, %v3759
        %vm3917 = vcmp.eq.f32.partialorder %v3916, 8.507059e+37
        %v3918 = vand.u32 %v3759, 2147483648
        %v3919 = vor.u32 1.1754944e-38, %v3918
        %v3920 = vsel %vm3917, %v3919, %v3915
        %v3921 = vmul.f32 %v3727, %v3920
        %v3922 = vrcp.pop %v3761
        %v3923 = vmul.f32 %v3761, %v3922
        %v3924 = vsub.f32 1.0, %v3923
        %v3925 = vmul.f32 %v3922, %v3924
        %v3926 = vadd.f32 %v3922, %v3925
        %vm3927 = vweird.f32 %v3761
        %vm3928 = vweird.f32 %v3922
        %vm3929 = vmor %vm3927, %vm3928
        %v3930 = vsel %vm3929, %v3922, %v3926
        %v3931 = vand.u32 2147483647, %v3761
        %vm3932 = vcmp.eq.f32.partialorder %v3931, 8.507059e+37
        %v3933 = vand.u32 %v3761, 2147483648
        %v3934 = vor.u32 1.1754944e-38, %v3933
        %v3935 = vsel %vm3932, %v3934, %v3930
        %v3936 = vmul.f32 %v3729, %v3935
        %v3937 = vrcp.pop %v3763
        %v3938 = vmul.f32 %v3763, %v3937
        %v3939 = vsub.f32 1.0, %v3938
        %v3940 = vmul.f32 %v3937, %v3939
        %v3941 = vadd.f32 %v3937, %v3940
        %vm3942 = vweird.f32 %v3763
        %vm3943 = vweird.f32 %v3937
        %vm3944 = vmor %vm3942, %vm3943
        %v3945 = vsel %vm3944, %v3937, %v3941
        %v3946 = vand.u32 2147483647, %v3763
        %vm3947 = vcmp.eq.f32.partialorder %v3946, 8.507059e+37
        %v3948 = vand.u32 %v3763, 2147483648
        %v3949 = vor.u32 1.1754944e-38, %v3948
        %v3950 = vsel %vm3947, %v3949, %v3945
        %v3951 = vmul.f32 %v3731, %v3950
        %v3952 = vrcp.pop %v3765
        %v3953 = vmul.f32 %v3765, %v3952
        %v3954 = vsub.f32 1.0, %v3953
        %v3955 = vmul.f32 %v3952, %v3954
        %v3956 = vadd.f32 %v3952, %v3955
        %vm3957 = vweird.f32 %v3765
        %vm3958 = vweird.f32 %v3952
        %vm3959 = vmor %vm3957, %vm3958
        %v3960 = vsel %vm3959, %v3952, %v3956
        %v3961 = vand.u32 2147483647, %v3765
        %vm3962 = vcmp.eq.f32.partialorder %v3961, 8.507059e+37
        %v3963 = vand.u32 %v3765, 2147483648
        %v3964 = vor.u32 1.1754944e-38, %v3963
        %v3965 = vsel %vm3962, %v3964, %v3960
        %v3966 = vmul.f32 %v3733, %v3965
        %v3967 = vrcp.pop %v3767
        %v3968 = vmul.f32 %v3767, %v3967
        %v3969 = vsub.f32 1.0, %v3968
        %v3970 = vmul.f32 %v3967, %v3969
        %v3971 = vadd.f32 %v3967, %v3970
        %vm3972 = vweird.f32 %v3767
        %vm3973 = vweird.f32 %v3967
        %vm3974 = vmor %vm3972, %vm3973
        %v3975 = vsel %vm3974, %v3967, %v3971
        %v3976 = vand.u32 2147483647, %v3767
        %vm3977 = vcmp.eq.f32.partialorder %v3976, 8.507059e+37
        %v3978 = vand.u32 %v3767, 2147483648
        %v3979 = vor.u32 1.1754944e-38, %v3978
        %v3980 = vsel %vm3977, %v3979, %v3975
        %v3981 = vmul.f32 %v3735, %v3980
        %v3982 = vrcp.pop %v3769
        %v3983 = vmul.f32 %v3769, %v3982
        %v3984 = vsub.f32 1.0, %v3983
        %v3985 = vmul.f32 %v3982, %v3984
        %v3986 = vadd.f32 %v3982, %v3985
        %vm3987 = vweird.f32 %v3769
        %vm3988 = vweird.f32 %v3982
        %vm3989 = vmor %vm3987, %vm3988
        %v3990 = vsel %vm3989, %v3982, %v3986
        %v3991 = vand.u32 2147483647, %v3769
        %vm3992 = vcmp.eq.f32.partialorder %v3991, 8.507059e+37
        %v3993 = vand.u32 %v3769, 2147483648
        %v3994 = vor.u32 1.1754944e-38, %v3993
        %v3995 = vsel %vm3992, %v3994, %v3990
        %v3996 = vmul.f32 %v3737, %v3995
        %v3997 = vrcp.pop %v3771
        %v3998 = vmul.f32 %v3771, %v3997
        %v3999 = vsub.f32 1.0, %v3998
        %v4000 = vmul.f32 %v3997, %v3999
        %v4001 = vadd.f32 %v3997, %v4000
        %vm4002 = vweird.f32 %v3771
        %vm4003 = vweird.f32 %v3997
        %vm4004 = vmor %vm4002, %vm4003
        %v4005 = vsel %vm4004, %v3997, %v4001
        %v4006 = vand.u32 2147483647, %v3771
        %vm4007 = vcmp.eq.f32.partialorder %v4006, 8.507059e+37
        %v4008 = vand.u32 %v3771, 2147483648
        %v4009 = vor.u32 1.1754944e-38, %v4008
        %v4010 = vsel %vm4007, %v4009, %v4005
        %v4011 = vmul.f32 %v3739, %v4010
        %4012 = vrot.lane.b32.xlu0 %v771, 64
        %v4013 = vpop.permute.xlu0 %4012
        %4014 = vrot.lane.b32.xlu0 %v774, 64
        %v4015 = vpop.permute.xlu0 %4014
        %4016 = vrot.lane.b32.xlu0 %v777, 64
        %v4017 = vpop.permute.xlu0 %4016
        %4018 = vrot.lane.b32.xlu0 %v780, 64
        %v4019 = vpop.permute.xlu0 %4018
        %4020 = vrot.lane.b32.xlu0 %v783, 64
        %v4021 = vpop.permute.xlu0 %4020
        %4022 = vrot.lane.b32.xlu0 %v786, 64
        %v4023 = vpop.permute.xlu0 %4022
        %4024 = vrot.lane.b32.xlu0 %v789, 64
        %v4025 = vpop.permute.xlu0 %4024
        %4026 = vrot.lane.b32.xlu0 %v792, 64
        %v4027 = vpop.permute.xlu0 %4026
        %4028 = vrot.lane.b32.xlu0 %v795, 64
        %v4029 = vpop.permute.xlu0 %4028
        %4030 = vrot.lane.b32.xlu0 %v798, 64
        %v4031 = vpop.permute.xlu0 %4030
        %4032 = vrot.lane.b32.xlu0 %v801, 64
        %v4033 = vpop.permute.xlu0 %4032
        %4034 = vrot.lane.b32.xlu0 %v804, 64
        %v4035 = vpop.permute.xlu0 %4034
        %4036 = vrot.lane.b32.xlu0 %v807, 64
        %v4037 = vpop.permute.xlu0 %4036
        %4038 = vrot.lane.b32.xlu0 %v810, 64
        %v4039 = vpop.permute.xlu0 %4038
        %4040 = vrot.lane.b32.xlu0 %v813, 64
        %v4041 = vpop.permute.xlu0 %4040
        %4042 = vrot.lane.b32.xlu0 %v816, 64
        %v4043 = vpop.permute.xlu0 %4042
        %4060 = vmatpush.msra.mxu0 %v4043
        %4061 = vmatpush.msra.mxu0 %v4041
        %4062 = vmatpush.msra.mxu0 %v4039
        %4063 = vmatpush.msra.mxu0 %v4037
        %4064 = vmatpush.msra.mxu0 %v4035
        %4065 = vmatpush.msra.mxu0 %v4033
        %4066 = vmatpush.msra.mxu0 %v4031
        %4067 = vmatpush.msra.mxu0 %v4029
        %4068 = vmatpush.msra.mxu0 %v4027
        %4069 = vmatpush.msra.mxu0 %v4025
        %4070 = vmatpush.msra.mxu0 %v4023
        %4071 = vmatpush.msra.mxu0 %v4021
        %4072 = vmatpush.msra.mxu0 %v4019
        %4073 = vmatpush.msra.mxu0 %v4017
        %4074 = vmatpush.msra.mxu0 %v4015
        %4075 = vmatpush.msra.mxu0 %v4013
        %4076 = vmatmul.f32.gmra.mxu0 %v3786
        %v4077 = vpop.f32.mrf.mxu0
        %v4078 = vadd.f32 0.0, %v4077
        %4079 = vmatmul.f32.gmra.mxu0 %v3801
        %v4080 = vpop.f32.mrf.mxu0
        %v4081 = vadd.f32 0.0, %v4080
        %4082 = vmatmul.f32.gmra.mxu0 %v3816
        %v4083 = vpop.f32.mrf.mxu0
        %v4084 = vadd.f32 0.0, %v4083
        %4085 = vmatmul.f32.gmra.mxu0 %v3831
        %v4086 = vpop.f32.mrf.mxu0
        %v4087 = vadd.f32 0.0, %v4086
        %4088 = vmatmul.f32.gmra.mxu0 %v3846
        %v4089 = vpop.f32.mrf.mxu0
        %v4090 = vadd.f32 0.0, %v4089
        %4091 = vmatmul.f32.gmra.mxu0 %v3861
        %v4092 = vpop.f32.mrf.mxu0
        %v4093 = vadd.f32 0.0, %v4092
        %4094 = vmatmul.f32.gmra.mxu0 %v3876
        %v4095 = vpop.f32.mrf.mxu0
        %v4096 = vadd.f32 0.0, %v4095
        %4097 = vmatmul.f32.gmra.mxu0 %v3891
        %v4098 = vpop.f32.mrf.mxu0
        %v4099 = vadd.f32 0.0, %v4098
        %4100 = vmatmul.f32.gmra.mxu0 %v3906
        %v4101 = vpop.f32.mrf.mxu0
        %v4102 = vadd.f32 0.0, %v4101
        %4103 = vmatmul.f32.gmra.mxu0 %v3921
        %v4104 = vpop.f32.mrf.mxu0
        %v4105 = vadd.f32 0.0, %v4104
        %4106 = vmatmul.f32.gmra.mxu0 %v3936
        %v4107 = vpop.f32.mrf.mxu0
        %v4108 = vadd.f32 0.0, %v4107
        %4109 = vmatmul.f32.gmra.mxu0 %v3951
        %v4110 = vpop.f32.mrf.mxu0
        %v4111 = vadd.f32 0.0, %v4110
        %4112 = vmatmul.f32.gmra.mxu0 %v3966
        %v4113 = vpop.f32.mrf.mxu0
        %v4114 = vadd.f32 0.0, %v4113
        %4115 = vmatmul.f32.gmra.mxu0 %v3981
        %v4116 = vpop.f32.mrf.mxu0
        %v4117 = vadd.f32 0.0, %v4116
        %4118 = vmatmul.f32.gmra.mxu0 %v3996
        %v4119 = vpop.f32.mrf.mxu0
        %v4120 = vadd.f32 0.0, %v4119
        %4121 = vmatmul.f32.gmra.mxu0 %v4011
        %v4122 = vpop.f32.mrf.mxu0
        %v4123 = vadd.f32 0.0, %v4122
        %4124 = vdwg.mxu0
        %4125 = vrot.lane.b32.xlu0 %v609, 48
        %v4126 = vpop.permute.xlu0 %4125
        %4127 = vrot.lane.b32.xlu0 %v612, 48
        %v4128 = vpop.permute.xlu0 %4127
        %4129 = vrot.lane.b32.xlu0 %v615, 48
        %v4130 = vpop.permute.xlu0 %4129
        %4131 = vrot.lane.b32.xlu0 %v618, 48
        %v4132 = vpop.permute.xlu0 %4131
        %4133 = vrot.lane.b32.xlu0 %v621, 48
        %v4134 = vpop.permute.xlu0 %4133
        %4135 = vrot.lane.b32.xlu0 %v624, 48
        %v4136 = vpop.permute.xlu0 %4135
        %4137 = vrot.lane.b32.xlu0 %v627, 48
        %v4138 = vpop.permute.xlu0 %4137
        %4139 = vrot.lane.b32.xlu0 %v630, 48
        %v4140 = vpop.permute.xlu0 %4139
        %4141 = vrot.lane.b32.xlu0 %v633, 48
        %v4142 = vpop.permute.xlu0 %4141
        %4143 = vrot.lane.b32.xlu0 %v636, 48
        %v4144 = vpop.permute.xlu0 %4143
        %4145 = vrot.lane.b32.xlu0 %v639, 48
        %v4146 = vpop.permute.xlu0 %4145
        %4147 = vrot.lane.b32.xlu0 %v642, 48
        %v4148 = vpop.permute.xlu0 %4147
        %4149 = vrot.lane.b32.xlu0 %v645, 48
        %v4150 = vpop.permute.xlu0 %4149
        %4151 = vrot.lane.b32.xlu0 %v648, 48
        %v4152 = vpop.permute.xlu0 %4151
        %4153 = vrot.lane.b32.xlu0 %v651, 48
        %v4154 = vpop.permute.xlu0 %4153
        %4155 = vrot.lane.b32.xlu0 %v654, 48
        %v4156 = vpop.permute.xlu0 %4155
        %4157 = vrot.lane.b32.xlu0 %v690, 48
        %v4158 = vpop.permute.xlu0 %4157
        %4159 = vrot.lane.b32.xlu0 %v693, 48
        %v4160 = vpop.permute.xlu0 %4159
        %4161 = vrot.lane.b32.xlu0 %v696, 48
        %v4162 = vpop.permute.xlu0 %4161
        %4163 = vrot.lane.b32.xlu0 %v699, 48
        %v4164 = vpop.permute.xlu0 %4163
        %4165 = vrot.lane.b32.xlu0 %v702, 48
        %v4166 = vpop.permute.xlu0 %4165
        %4167 = vrot.lane.b32.xlu0 %v705, 48
        %v4168 = vpop.permute.xlu0 %4167
        %4169 = vrot.lane.b32.xlu0 %v708, 48
        %v4170 = vpop.permute.xlu0 %4169
        %4171 = vrot.lane.b32.xlu0 %v711, 48
        %v4172 = vpop.permute.xlu0 %4171
        %4173 = vrot.lane.b32.xlu0 %v714, 48
        %v4174 = vpop.permute.xlu0 %4173
        %4175 = vrot.lane.b32.xlu0 %v717, 48
        %v4176 = vpop.permute.xlu0 %4175
        %4177 = vrot.lane.b32.xlu0 %v720, 48
        %v4178 = vpop.permute.xlu0 %4177
        %4179 = vrot.lane.b32.xlu0 %v723, 48
        %v4180 = vpop.permute.xlu0 %4179
        %4181 = vrot.lane.b32.xlu0 %v726, 48
        %v4182 = vpop.permute.xlu0 %4181
        %4183 = vrot.lane.b32.xlu0 %v729, 48
        %v4184 = vpop.permute.xlu0 %4183
        %4185 = vrot.lane.b32.xlu0 %v732, 48
        %v4186 = vpop.permute.xlu0 %4185
        %4187 = vrot.lane.b32.xlu0 %v735, 48
        %v4188 = vpop.permute.xlu0 %4187
        %v4189 = vsel %vm818, %v4126, 0
        %v4191 = vsel %vm818, %v4128, 0
        %v4193 = vsel %vm818, %v4130, 0
        %v4195 = vsel %vm818, %v4132, 0
        %v4197 = vsel %vm818, %v4134, 0
        %v4199 = vsel %vm818, %v4136, 0
        %v4201 = vsel %vm818, %v4138, 0
        %v4203 = vsel %vm818, %v4140, 0
        %v4205 = vsel %vm818, %v4142, 0
        %v4207 = vsel %vm818, %v4144, 0
        %v4209 = vsel %vm818, %v4146, 0
        %v4211 = vsel %vm818, %v4148, 0
        %v4213 = vsel %vm818, %v4150, 0
        %v4215 = vsel %vm818, %v4152, 0
        %v4217 = vsel %vm818, %v4154, 0
        %v4219 = vsel %vm818, %v4156, 0
        %v4221 = vsel %vm818, %v4158, 0
        %v4223 = vsel %vm818, %v4160, 0
        %v4225 = vsel %vm818, %v4162, 0
        %v4227 = vsel %vm818, %v4164, 0
        %v4229 = vsel %vm818, %v4166, 0
        %v4231 = vsel %vm818, %v4168, 0
        %v4233 = vsel %vm818, %v4170, 0
        %v4235 = vsel %vm818, %v4172, 0
        %v4237 = vsel %vm818, %v4174, 0
        %v4239 = vsel %vm818, %v4176, 0
        %v4241 = vsel %vm818, %v4178, 0
        %v4243 = vsel %vm818, %v4180, 0
        %v4245 = vsel %vm818, %v4182, 0
        %v4247 = vsel %vm818, %v4184, 0
        %v4249 = vsel %vm818, %v4186, 0
        %v4251 = vsel %vm818, %v4188, 0
        %4253 = vmatpush.xpose.msra.mxu0 %v4251
        %4254 = vmatpush.xpose.msra.mxu0 %v4249
        %4255 = vmatpush.xpose.msra.mxu0 %v4247
        %4256 = vmatpush.xpose.msra.mxu0 %v4245
        %4257 = vmatpush.xpose.msra.mxu0 %v4243
        %4258 = vmatpush.xpose.msra.mxu0 %v4241
        %4259 = vmatpush.xpose.msra.mxu0 %v4239
        %4260 = vmatpush.xpose.msra.mxu0 %v4237
        %4261 = vmatpush.xpose.msra.mxu0 %v4235
        %4262 = vmatpush.xpose.msra.mxu0 %v4233
        %4263 = vmatpush.xpose.msra.mxu0 %v4231
        %4264 = vmatpush.xpose.msra.mxu0 %v4229
        %4265 = vmatpush.xpose.msra.mxu0 %v4227
        %4266 = vmatpush.xpose.msra.mxu0 %v4225
        %4267 = vmatpush.xpose.msra.mxu0 %v4223
        %4268 = vmatpush.xpose.msra.mxu0 %v4221
        %4269 = vmatmul.f32.gmra.mxu0 %v4189
        %v4270 = vpop.f32.mrf.mxu0
        %v4271 = vadd.f32 0.0, %v4270
        %4272 = vmatmul.f32.gmra.mxu0 %v4191
        %v4273 = vpop.f32.mrf.mxu0
        %v4274 = vadd.f32 0.0, %v4273
        %4275 = vmatmul.f32.gmra.mxu0 %v4193
        %v4276 = vpop.f32.mrf.mxu0
        %v4277 = vadd.f32 0.0, %v4276
        %4278 = vmatmul.f32.gmra.mxu0 %v4195
        %v4279 = vpop.f32.mrf.mxu0
        %v4280 = vadd.f32 0.0, %v4279
        %4281 = vmatmul.f32.gmra.mxu0 %v4197
        %v4282 = vpop.f32.mrf.mxu0
        %v4283 = vadd.f32 0.0, %v4282
        %4284 = vmatmul.f32.gmra.mxu0 %v4199
        %v4285 = vpop.f32.mrf.mxu0
        %v4286 = vadd.f32 0.0, %v4285
        %4287 = vmatmul.f32.gmra.mxu0 %v4201
        %v4288 = vpop.f32.mrf.mxu0
        %v4289 = vadd.f32 0.0, %v4288
        %4290 = vmatmul.f32.gmra.mxu0 %v4203
        %v4291 = vpop.f32.mrf.mxu0
        %v4292 = vadd.f32 0.0, %v4291
        %4293 = vmatmul.f32.gmra.mxu0 %v4205
        %v4294 = vpop.f32.mrf.mxu0
        %v4295 = vadd.f32 0.0, %v4294
        %4296 = vmatmul.f32.gmra.mxu0 %v4207
        %v4297 = vpop.f32.mrf.mxu0
        %v4298 = vadd.f32 0.0, %v4297
        %4299 = vmatmul.f32.gmra.mxu0 %v4209
        %v4300 = vpop.f32.mrf.mxu0
        %v4301 = vadd.f32 0.0, %v4300
        %4302 = vmatmul.f32.gmra.mxu0 %v4211
        %v4303 = vpop.f32.mrf.mxu0
        %v4304 = vadd.f32 0.0, %v4303
        %4305 = vmatmul.f32.gmra.mxu0 %v4213
        %v4306 = vpop.f32.mrf.mxu0
        %v4307 = vadd.f32 0.0, %v4306
        %4308 = vmatmul.f32.gmra.mxu0 %v4215
        %v4309 = vpop.f32.mrf.mxu0
        %v4310 = vadd.f32 0.0, %v4309
        %4311 = vmatmul.f32.gmra.mxu0 %v4217
        %v4312 = vpop.f32.mrf.mxu0
        %v4313 = vadd.f32 0.0, %v4312
        %4314 = vmatmul.f32.gmra.mxu0 %v4219
        %v4315 = vpop.f32.mrf.mxu0
        %v4316 = vadd.f32 0.0, %v4315
        %4317 = vdwg.mxu0
        %v4318 = vmul.f32 %v4271, 0.088388346
        %v4319 = vmul.f32 %v4274, 0.088388346
        %v4320 = vmul.f32 %v4277, 0.088388346
        %v4321 = vmul.f32 %v4280, 0.088388346
        %v4322 = vmul.f32 %v4283, 0.088388346
        %v4323 = vmul.f32 %v4286, 0.088388346
        %v4324 = vmul.f32 %v4289, 0.088388346
        %v4325 = vmul.f32 %v4292, 0.088388346
        %v4326 = vmul.f32 %v4295, 0.088388346
        %v4327 = vmul.f32 %v4298, 0.088388346
        %v4328 = vmul.f32 %v4301, 0.088388346
        %v4329 = vmul.f32 %v4304, 0.088388346
        %v4330 = vmul.f32 %v4307, 0.088388346
        %v4331 = vmul.f32 %v4310, 0.088388346
        %v4332 = vmul.f32 %v4313, 0.088388346
        %v4333 = vmul.f32 %v4316, 0.088388346
        %4334 = vmax.xlane.f32.xlu0 %v4318
        %v4335 = vpop.xlane.xlu0 %4334
        %4336 = vmax.xlane.f32.xlu0 %v4319
        %v4337 = vpop.xlane.xlu0 %4336
        %4338 = vmax.xlane.f32.xlu0 %v4320
        %v4339 = vpop.xlane.xlu0 %4338
        %4340 = vmax.xlane.f32.xlu0 %v4321
        %v4341 = vpop.xlane.xlu0 %4340
        %4342 = vmax.xlane.f32.xlu0 %v4322
        %v4343 = vpop.xlane.xlu0 %4342
        %4344 = vmax.xlane.f32.xlu0 %v4323
        %v4345 = vpop.xlane.xlu0 %4344
        %4346 = vmax.xlane.f32.xlu0 %v4324
        %v4347 = vpop.xlane.xlu0 %4346
        %4348 = vmax.xlane.f32.xlu0 %v4325
        %v4349 = vpop.xlane.xlu0 %4348
        %4350 = vmax.xlane.f32.xlu0 %v4326
        %v4351 = vpop.xlane.xlu0 %4350
        %4352 = vmax.xlane.f32.xlu0 %v4327
        %v4353 = vpop.xlane.xlu0 %4352
        %4354 = vmax.xlane.f32.xlu0 %v4328
        %v4355 = vpop.xlane.xlu0 %4354
        %4356 = vmax.xlane.f32.xlu0 %v4329
        %v4357 = vpop.xlane.xlu0 %4356
        %4358 = vmax.xlane.f32.xlu0 %v4330
        %v4359 = vpop.xlane.xlu0 %4358
        %4360 = vmax.xlane.f32.xlu0 %v4331
        %v4361 = vpop.xlane.xlu0 %4360
        %4362 = vmax.xlane.f32.xlu0 %v4332
        %v4363 = vpop.xlane.xlu0 %4362
        %4364 = vmax.xlane.f32.xlu0 %v4333
        %v4365 = vpop.xlane.xlu0 %4364
        %v4366 = vsub.f32 %v4318, %v4335
        %v4367 = vsub.f32 %v4319, %v4337
        %v4368 = vsub.f32 %v4320, %v4339
        %v4369 = vsub.f32 %v4321, %v4341
        %v4370 = vsub.f32 %v4322, %v4343
        %v4371 = vsub.f32 %v4323, %v4345
        %v4372 = vsub.f32 %v4324, %v4347
        %v4373 = vsub.f32 %v4325, %v4349
        %v4374 = vsub.f32 %v4326, %v4351
        %v4375 = vsub.f32 %v4327, %v4353
        %v4376 = vsub.f32 %v4328, %v4355
        %v4377 = vsub.f32 %v4329, %v4357
        %v4378 = vsub.f32 %v4330, %v4359
        %v4379 = vsub.f32 %v4331, %v4361
        %v4380 = vsub.f32 %v4332, %v4363
        %v4381 = vsub.f32 %v4333, %v4365
        %v4382 = vmul.f32 %v4366, 1.442695
        %v4383 = vpow.pop %v4382
        %v4384 = vmul.f32 %v4367, 1.442695
        %v4385 = vpow.pop %v4384
        %v4386 = vmul.f32 %v4368, 1.442695
        %v4387 = vpow.pop %v4386
        %v4388 = vmul.f32 %v4369, 1.442695
        %v4389 = vpow.pop %v4388
        %v4390 = vmul.f32 %v4370, 1.442695
        %v4391 = vpow.pop %v4390
        %v4392 = vmul.f32 %v4371, 1.442695
        %v4393 = vpow.pop %v4392
        %v4394 = vmul.f32 %v4372, 1.442695
        %v4395 = vpow.pop %v4394
        %v4396 = vmul.f32 %v4373, 1.442695
        %v4397 = vpow.pop %v4396
        %v4398 = vmul.f32 %v4374, 1.442695
        %v4399 = vpow.pop %v4398
        %v4400 = vmul.f32 %v4375, 1.442695
        %v4401 = vpow.pop %v4400
        %v4402 = vmul.f32 %v4376, 1.442695
        %v4403 = vpow.pop %v4402
        %v4404 = vmul.f32 %v4377, 1.442695
        %v4405 = vpow.pop %v4404
        %v4406 = vmul.f32 %v4378, 1.442695
        %v4407 = vpow.pop %v4406
        %v4408 = vmul.f32 %v4379, 1.442695
        %v4409 = vpow.pop %v4408
        %v4410 = vmul.f32 %v4380, 1.442695
        %v4411 = vpow.pop %v4410
        %v4412 = vmul.f32 %v4381, 1.442695
        %v4413 = vpow.pop %v4412
        %4414 = vadd.xlane.f32.xlu0 %v4383
        %v4415 = vpop.xlane.xlu0 %4414
        %4416 = vadd.xlane.f32.xlu0 %v4385
        %v4417 = vpop.xlane.xlu0 %4416
        %4418 = vadd.xlane.f32.xlu0 %v4387
        %v4419 = vpop.xlane.xlu0 %4418
        %4420 = vadd.xlane.f32.xlu0 %v4389
        %v4421 = vpop.xlane.xlu0 %4420
        %4422 = vadd.xlane.f32.xlu0 %v4391
        %v4423 = vpop.xlane.xlu0 %4422
        %4424 = vadd.xlane.f32.xlu0 %v4393
        %v4425 = vpop.xlane.xlu0 %4424
        %4426 = vadd.xlane.f32.xlu0 %v4395
        %v4427 = vpop.xlane.xlu0 %4426
        %4428 = vadd.xlane.f32.xlu0 %v4397
        %v4429 = vpop.xlane.xlu0 %4428
        %4430 = vadd.xlane.f32.xlu0 %v4399
        %v4431 = vpop.xlane.xlu0 %4430
        %4432 = vadd.xlane.f32.xlu0 %v4401
        %v4433 = vpop.xlane.xlu0 %4432
        %4434 = vadd.xlane.f32.xlu0 %v4403
        %v4435 = vpop.xlane.xlu0 %4434
        %4436 = vadd.xlane.f32.xlu0 %v4405
        %v4437 = vpop.xlane.xlu0 %4436
        %4438 = vadd.xlane.f32.xlu0 %v4407
        %v4439 = vpop.xlane.xlu0 %4438
        %4440 = vadd.xlane.f32.xlu0 %v4409
        %v4441 = vpop.xlane.xlu0 %4440
        %4442 = vadd.xlane.f32.xlu0 %v4411
        %v4443 = vpop.xlane.xlu0 %4442
        %4444 = vadd.xlane.f32.xlu0 %v4413
        %v4445 = vpop.xlane.xlu0 %4444
        %v4446 = vrcp.pop %v4415
        %v4447 = vmul.f32 %v4415, %v4446
        %v4448 = vsub.f32 1.0, %v4447
        %v4449 = vmul.f32 %v4446, %v4448
        %v4450 = vadd.f32 %v4446, %v4449
        %vm4451 = vweird.f32 %v4415
        %vm4452 = vweird.f32 %v4446
        %vm4453 = vmor %vm4451, %vm4452
        %v4454 = vsel %vm4453, %v4446, %v4450
        %v4455 = vand.u32 2147483647, %v4415
        %vm4456 = vcmp.eq.f32.partialorder %v4455, 8.507059e+37
        %v4457 = vand.u32 %v4415, 2147483648
        %v4458 = vor.u32 1.1754944e-38, %v4457
        %v4459 = vsel %vm4456, %v4458, %v4454
        %v4460 = vmul.f32 %v4383, %v4459
        %v4461 = vrcp.pop %v4417
        %v4462 = vmul.f32 %v4417, %v4461
        %v4463 = vsub.f32 1.0, %v4462
        %v4464 = vmul.f32 %v4461, %v4463
        %v4465 = vadd.f32 %v4461, %v4464
        %vm4466 = vweird.f32 %v4417
        %vm4467 = vweird.f32 %v4461
        %vm4468 = vmor %vm4466, %vm4467
        %v4469 = vsel %vm4468, %v4461, %v4465
        %v4470 = vand.u32 2147483647, %v4417
        %vm4471 = vcmp.eq.f32.partialorder %v4470, 8.507059e+37
        %v4472 = vand.u32 %v4417, 2147483648
        %v4473 = vor.u32 1.1754944e-38, %v4472
        %v4474 = vsel %vm4471, %v4473, %v4469
        %v4475 = vmul.f32 %v4385, %v4474
        %v4476 = vrcp.pop %v4419
        %v4477 = vmul.f32 %v4419, %v4476
        %v4478 = vsub.f32 1.0, %v4477
        %v4479 = vmul.f32 %v4476, %v4478
        %v4480 = vadd.f32 %v4476, %v4479
        %vm4481 = vweird.f32 %v4419
        %vm4482 = vweird.f32 %v4476
        %vm4483 = vmor %vm4481, %vm4482
        %v4484 = vsel %vm4483, %v4476, %v4480
        %v4485 = vand.u32 2147483647, %v4419
        %vm4486 = vcmp.eq.f32.partialorder %v4485, 8.507059e+37
        %v4487 = vand.u32 %v4419, 2147483648
        %v4488 = vor.u32 1.1754944e-38, %v4487
        %v4489 = vsel %vm4486, %v4488, %v4484
        %v4490 = vmul.f32 %v4387, %v4489
        %v4491 = vrcp.pop %v4421
        %v4492 = vmul.f32 %v4421, %v4491
        %v4493 = vsub.f32 1.0, %v4492
        %v4494 = vmul.f32 %v4491, %v4493
        %v4495 = vadd.f32 %v4491, %v4494
        %vm4496 = vweird.f32 %v4421
        %vm4497 = vweird.f32 %v4491
        %vm4498 = vmor %vm4496, %vm4497
        %v4499 = vsel %vm4498, %v4491, %v4495
        %v4500 = vand.u32 2147483647, %v4421
        %vm4501 = vcmp.eq.f32.partialorder %v4500, 8.507059e+37
        %v4502 = vand.u32 %v4421, 2147483648
        %v4503 = vor.u32 1.1754944e-38, %v4502
        %v4504 = vsel %vm4501, %v4503, %v4499
        %v4505 = vmul.f32 %v4389, %v4504
        %v4506 = vrcp.pop %v4423
        %v4507 = vmul.f32 %v4423, %v4506
        %v4508 = vsub.f32 1.0, %v4507
        %v4509 = vmul.f32 %v4506, %v4508
        %v4510 = vadd.f32 %v4506, %v4509
        %vm4511 = vweird.f32 %v4423
        %vm4512 = vweird.f32 %v4506
        %vm4513 = vmor %vm4511, %vm4512
        %v4514 = vsel %vm4513, %v4506, %v4510
        %v4515 = vand.u32 2147483647, %v4423
        %vm4516 = vcmp.eq.f32.partialorder %v4515, 8.507059e+37
        %v4517 = vand.u32 %v4423, 2147483648
        %v4518 = vor.u32 1.1754944e-38, %v4517
        %v4519 = vsel %vm4516, %v4518, %v4514
        %v4520 = vmul.f32 %v4391, %v4519
        %v4521 = vrcp.pop %v4425
        %v4522 = vmul.f32 %v4425, %v4521
        %v4523 = vsub.f32 1.0, %v4522
        %v4524 = vmul.f32 %v4521, %v4523
        %v4525 = vadd.f32 %v4521, %v4524
        %vm4526 = vweird.f32 %v4425
        %vm4527 = vweird.f32 %v4521
        %vm4528 = vmor %vm4526, %vm4527
        %v4529 = vsel %vm4528, %v4521, %v4525
        %v4530 = vand.u32 2147483647, %v4425
        %vm4531 = vcmp.eq.f32.partialorder %v4530, 8.507059e+37
        %v4532 = vand.u32 %v4425, 2147483648
        %v4533 = vor.u32 1.1754944e-38, %v4532
        %v4534 = vsel %vm4531, %v4533, %v4529
        %v4535 = vmul.f32 %v4393, %v4534
        %v4536 = vrcp.pop %v4427
        %v4537 = vmul.f32 %v4427, %v4536
        %v4538 = vsub.f32 1.0, %v4537
        %v4539 = vmul.f32 %v4536, %v4538
        %v4540 = vadd.f32 %v4536, %v4539
        %vm4541 = vweird.f32 %v4427
        %vm4542 = vweird.f32 %v4536
        %vm4543 = vmor %vm4541, %vm4542
        %v4544 = vsel %vm4543, %v4536, %v4540
        %v4545 = vand.u32 2147483647, %v4427
        %vm4546 = vcmp.eq.f32.partialorder %v4545, 8.507059e+37
        %v4547 = vand.u32 %v4427, 2147483648
        %v4548 = vor.u32 1.1754944e-38, %v4547
        %v4549 = vsel %vm4546, %v4548, %v4544
        %v4550 = vmul.f32 %v4395, %v4549
        %v4551 = vrcp.pop %v4429
        %v4552 = vmul.f32 %v4429, %v4551
        %v4553 = vsub.f32 1.0, %v4552
        %v4554 = vmul.f32 %v4551, %v4553
        %v4555 = vadd.f32 %v4551, %v4554
        %vm4556 = vweird.f32 %v4429
        %vm4557 = vweird.f32 %v4551
        %vm4558 = vmor %vm4556, %vm4557
        %v4559 = vsel %vm4558, %v4551, %v4555
        %v4560 = vand.u32 2147483647, %v4429
        %vm4561 = vcmp.eq.f32.partialorder %v4560, 8.507059e+37
        %v4562 = vand.u32 %v4429, 2147483648
        %v4563 = vor.u32 1.1754944e-38, %v4562
        %v4564 = vsel %vm4561, %v4563, %v4559
        %v4565 = vmul.f32 %v4397, %v4564
        %v4566 = vrcp.pop %v4431
        %v4567 = vmul.f32 %v4431, %v4566
        %v4568 = vsub.f32 1.0, %v4567
        %v4569 = vmul.f32 %v4566, %v4568
        %v4570 = vadd.f32 %v4566, %v4569
        %vm4571 = vweird.f32 %v4431
        %vm4572 = vweird.f32 %v4566
        %vm4573 = vmor %vm4571, %vm4572
        %v4574 = vsel %vm4573, %v4566, %v4570
        %v4575 = vand.u32 2147483647, %v4431
        %vm4576 = vcmp.eq.f32.partialorder %v4575, 8.507059e+37
        %v4577 = vand.u32 %v4431, 2147483648
        %v4578 = vor.u32 1.1754944e-38, %v4577
        %v4579 = vsel %vm4576, %v4578, %v4574
        %v4580 = vmul.f32 %v4399, %v4579
        %v4581 = vrcp.pop %v4433
        %v4582 = vmul.f32 %v4433, %v4581
        %v4583 = vsub.f32 1.0, %v4582
        %v4584 = vmul.f32 %v4581, %v4583
        %v4585 = vadd.f32 %v4581, %v4584
        %vm4586 = vweird.f32 %v4433
        %vm4587 = vweird.f32 %v4581
        %vm4588 = vmor %vm4586, %vm4587
        %v4589 = vsel %vm4588, %v4581, %v4585
        %v4590 = vand.u32 2147483647, %v4433
        %vm4591 = vcmp.eq.f32.partialorder %v4590, 8.507059e+37
        %v4592 = vand.u32 %v4433, 2147483648
        %v4593 = vor.u32 1.1754944e-38, %v4592
        %v4594 = vsel %vm4591, %v4593, %v4589
        %v4595 = vmul.f32 %v4401, %v4594
        %v4596 = vrcp.pop %v4435
        %v4597 = vmul.f32 %v4435, %v4596
        %v4598 = vsub.f32 1.0, %v4597
        %v4599 = vmul.f32 %v4596, %v4598
        %v4600 = vadd.f32 %v4596, %v4599
        %vm4601 = vweird.f32 %v4435
        %vm4602 = vweird.f32 %v4596
        %vm4603 = vmor %vm4601, %vm4602
        %v4604 = vsel %vm4603, %v4596, %v4600
        %v4605 = vand.u32 2147483647, %v4435
        %vm4606 = vcmp.eq.f32.partialorder %v4605, 8.507059e+37
        %v4607 = vand.u32 %v4435, 2147483648
        %v4608 = vor.u32 1.1754944e-38, %v4607
        %v4609 = vsel %vm4606, %v4608, %v4604
        %v4610 = vmul.f32 %v4403, %v4609
        %v4611 = vrcp.pop %v4437
        %v4612 = vmul.f32 %v4437, %v4611
        %v4613 = vsub.f32 1.0, %v4612
        %v4614 = vmul.f32 %v4611, %v4613
        %v4615 = vadd.f32 %v4611, %v4614
        %vm4616 = vweird.f32 %v4437
        %vm4617 = vweird.f32 %v4611
        %vm4618 = vmor %vm4616, %vm4617
        %v4619 = vsel %vm4618, %v4611, %v4615
        %v4620 = vand.u32 2147483647, %v4437
        %vm4621 = vcmp.eq.f32.partialorder %v4620, 8.507059e+37
        %v4622 = vand.u32 %v4437, 2147483648
        %v4623 = vor.u32 1.1754944e-38, %v4622
        %v4624 = vsel %vm4621, %v4623, %v4619
        %v4625 = vmul.f32 %v4405, %v4624
        %v4626 = vrcp.pop %v4439
        %v4627 = vmul.f32 %v4439, %v4626
        %v4628 = vsub.f32 1.0, %v4627
        %v4629 = vmul.f32 %v4626, %v4628
        %v4630 = vadd.f32 %v4626, %v4629
        %vm4631 = vweird.f32 %v4439
        %vm4632 = vweird.f32 %v4626
        %vm4633 = vmor %vm4631, %vm4632
        %v4634 = vsel %vm4633, %v4626, %v4630
        %v4635 = vand.u32 2147483647, %v4439
        %vm4636 = vcmp.eq.f32.partialorder %v4635, 8.507059e+37
        %v4637 = vand.u32 %v4439, 2147483648
        %v4638 = vor.u32 1.1754944e-38, %v4637
        %v4639 = vsel %vm4636, %v4638, %v4634
        %v4640 = vmul.f32 %v4407, %v4639
        %v4641 = vrcp.pop %v4441
        %v4642 = vmul.f32 %v4441, %v4641
        %v4643 = vsub.f32 1.0, %v4642
        %v4644 = vmul.f32 %v4641, %v4643
        %v4645 = vadd.f32 %v4641, %v4644
        %vm4646 = vweird.f32 %v4441
        %vm4647 = vweird.f32 %v4641
        %vm4648 = vmor %vm4646, %vm4647
        %v4649 = vsel %vm4648, %v4641, %v4645
        %v4650 = vand.u32 2147483647, %v4441
        %vm4651 = vcmp.eq.f32.partialorder %v4650, 8.507059e+37
        %v4652 = vand.u32 %v4441, 2147483648
        %v4653 = vor.u32 1.1754944e-38, %v4652
        %v4654 = vsel %vm4651, %v4653, %v4649
        %v4655 = vmul.f32 %v4409, %v4654
        %v4656 = vrcp.pop %v4443
        %v4657 = vmul.f32 %v4443, %v4656
        %v4658 = vsub.f32 1.0, %v4657
        %v4659 = vmul.f32 %v4656, %v4658
        %v4660 = vadd.f32 %v4656, %v4659
        %vm4661 = vweird.f32 %v4443
        %vm4662 = vweird.f32 %v4656
        %vm4663 = vmor %vm4661, %vm4662
        %v4664 = vsel %vm4663, %v4656, %v4660
        %v4665 = vand.u32 2147483647, %v4443
        %vm4666 = vcmp.eq.f32.partialorder %v4665, 8.507059e+37
        %v4667 = vand.u32 %v4443, 2147483648
        %v4668 = vor.u32 1.1754944e-38, %v4667
        %v4669 = vsel %vm4666, %v4668, %v4664
        %v4670 = vmul.f32 %v4411, %v4669
        %v4671 = vrcp.pop %v4445
        %v4672 = vmul.f32 %v4445, %v4671
        %v4673 = vsub.f32 1.0, %v4672
        %v4674 = vmul.f32 %v4671, %v4673
        %v4675 = vadd.f32 %v4671, %v4674
        %vm4676 = vweird.f32 %v4445
        %vm4677 = vweird.f32 %v4671
        %vm4678 = vmor %vm4676, %vm4677
        %v4679 = vsel %vm4678, %v4671, %v4675
        %v4680 = vand.u32 2147483647, %v4445
        %vm4681 = vcmp.eq.f32.partialorder %v4680, 8.507059e+37
        %v4682 = vand.u32 %v4445, 2147483648
        %v4683 = vor.u32 1.1754944e-38, %v4682
        %v4684 = vsel %vm4681, %v4683, %v4679
        %v4685 = vmul.f32 %v4413, %v4684
        %4686 = vrot.lane.b32.xlu0 %v771, 48
        %v4687 = vpop.permute.xlu0 %4686
        %4688 = vrot.lane.b32.xlu0 %v774, 48
        %v4689 = vpop.permute.xlu0 %4688
        %4690 = vrot.lane.b32.xlu0 %v777, 48
        %v4691 = vpop.permute.xlu0 %4690
        %4692 = vrot.lane.b32.xlu0 %v780, 48
        %v4693 = vpop.permute.xlu0 %4692
        %4694 = vrot.lane.b32.xlu0 %v783, 48
        %v4695 = vpop.permute.xlu0 %4694
        %4696 = vrot.lane.b32.xlu0 %v786, 48
        %v4697 = vpop.permute.xlu0 %4696
        %4698 = vrot.lane.b32.xlu0 %v789, 48
        %v4699 = vpop.permute.xlu0 %4698
        %4700 = vrot.lane.b32.xlu0 %v792, 48
        %v4701 = vpop.permute.xlu0 %4700
        %4702 = vrot.lane.b32.xlu0 %v795, 48
        %v4703 = vpop.permute.xlu0 %4702
        %4704 = vrot.lane.b32.xlu0 %v798, 48
        %v4705 = vpop.permute.xlu0 %4704
        %4706 = vrot.lane.b32.xlu0 %v801, 48
        %v4707 = vpop.permute.xlu0 %4706
        %4708 = vrot.lane.b32.xlu0 %v804, 48
        %v4709 = vpop.permute.xlu0 %4708
        %4710 = vrot.lane.b32.xlu0 %v807, 48
        %v4711 = vpop.permute.xlu0 %4710
        %4712 = vrot.lane.b32.xlu0 %v810, 48
        %v4713 = vpop.permute.xlu0 %4712
        %4714 = vrot.lane.b32.xlu0 %v813, 48
        %v4715 = vpop.permute.xlu0 %4714
        %4716 = vrot.lane.b32.xlu0 %v816, 48
        %v4717 = vpop.permute.xlu0 %4716
        %4734 = vmatpush.msra.mxu0 %v4717
        %4735 = vmatpush.msra.mxu0 %v4715
        %4736 = vmatpush.msra.mxu0 %v4713
        %4737 = vmatpush.msra.mxu0 %v4711
        %4738 = vmatpush.msra.mxu0 %v4709
        %4739 = vmatpush.msra.mxu0 %v4707
        %4740 = vmatpush.msra.mxu0 %v4705
        %4741 = vmatpush.msra.mxu0 %v4703
        %4742 = vmatpush.msra.mxu0 %v4701
        %4743 = vmatpush.msra.mxu0 %v4699
        %4744 = vmatpush.msra.mxu0 %v4697
        %4745 = vmatpush.msra.mxu0 %v4695
        %4746 = vmatpush.msra.mxu0 %v4693
        %4747 = vmatpush.msra.mxu0 %v4691
        %4748 = vmatpush.msra.mxu0 %v4689
        %4749 = vmatpush.msra.mxu0 %v4687
        %4750 = vmatmul.f32.gmra.mxu0 %v4460
        %v4751 = vpop.f32.mrf.mxu0
        %v4752 = vadd.f32 0.0, %v4751
        %4753 = vmatmul.f32.gmra.mxu0 %v4475
        %v4754 = vpop.f32.mrf.mxu0
        %v4755 = vadd.f32 0.0, %v4754
        %4756 = vmatmul.f32.gmra.mxu0 %v4490
        %v4757 = vpop.f32.mrf.mxu0
        %v4758 = vadd.f32 0.0, %v4757
        %4759 = vmatmul.f32.gmra.mxu0 %v4505
        %v4760 = vpop.f32.mrf.mxu0
        %v4761 = vadd.f32 0.0, %v4760
        %4762 = vmatmul.f32.gmra.mxu0 %v4520
        %v4763 = vpop.f32.mrf.mxu0
        %v4764 = vadd.f32 0.0, %v4763
        %4765 = vmatmul.f32.gmra.mxu0 %v4535
        %v4766 = vpop.f32.mrf.mxu0
        %v4767 = vadd.f32 0.0, %v4766
        %4768 = vmatmul.f32.gmra.mxu0 %v4550
        %v4769 = vpop.f32.mrf.mxu0
        %v4770 = vadd.f32 0.0, %v4769
        %4771 = vmatmul.f32.gmra.mxu0 %v4565
        %v4772 = vpop.f32.mrf.mxu0
        %v4773 = vadd.f32 0.0, %v4772
        %4774 = vmatmul.f32.gmra.mxu0 %v4580
        %v4775 = vpop.f32.mrf.mxu0
        %v4776 = vadd.f32 0.0, %v4775
        %4777 = vmatmul.f32.gmra.mxu0 %v4595
        %v4778 = vpop.f32.mrf.mxu0
        %v4779 = vadd.f32 0.0, %v4778
        %4780 = vmatmul.f32.gmra.mxu0 %v4610
        %v4781 = vpop.f32.mrf.mxu0
        %v4782 = vadd.f32 0.0, %v4781
        %4783 = vmatmul.f32.gmra.mxu0 %v4625
        %v4784 = vpop.f32.mrf.mxu0
        %v4785 = vadd.f32 0.0, %v4784
        %4786 = vmatmul.f32.gmra.mxu0 %v4640
        %v4787 = vpop.f32.mrf.mxu0
        %v4788 = vadd.f32 0.0, %v4787
        %4789 = vmatmul.f32.gmra.mxu0 %v4655
        %v4790 = vpop.f32.mrf.mxu0
        %v4791 = vadd.f32 0.0, %v4790
        %4792 = vmatmul.f32.gmra.mxu0 %v4670
        %v4793 = vpop.f32.mrf.mxu0
        %v4794 = vadd.f32 0.0, %v4793
        %4795 = vmatmul.f32.gmra.mxu0 %v4685
        %v4796 = vpop.f32.mrf.mxu0
        %v4797 = vadd.f32 0.0, %v4796
        %4798 = vdwg.mxu0
        %4799 = vrot.lane.b32.xlu0 %v609, 32
        %v4800 = vpop.permute.xlu0 %4799
        %4801 = vrot.lane.b32.xlu0 %v612, 32
        %v4802 = vpop.permute.xlu0 %4801
        %4803 = vrot.lane.b32.xlu0 %v615, 32
        %v4804 = vpop.permute.xlu0 %4803
        %4805 = vrot.lane.b32.xlu0 %v618, 32
        %v4806 = vpop.permute.xlu0 %4805
        %4807 = vrot.lane.b32.xlu0 %v621, 32
        %v4808 = vpop.permute.xlu0 %4807
        %4809 = vrot.lane.b32.xlu0 %v624, 32
        %v4810 = vpop.permute.xlu0 %4809
        %4811 = vrot.lane.b32.xlu0 %v627, 32
        %v4812 = vpop.permute.xlu0 %4811
        %4813 = vrot.lane.b32.xlu0 %v630, 32
        %v4814 = vpop.permute.xlu0 %4813
        %4815 = vrot.lane.b32.xlu0 %v633, 32
        %v4816 = vpop.permute.xlu0 %4815
        %4817 = vrot.lane.b32.xlu0 %v636, 32
        %v4818 = vpop.permute.xlu0 %4817
        %4819 = vrot.lane.b32.xlu0 %v639, 32
        %v4820 = vpop.permute.xlu0 %4819
        %4821 = vrot.lane.b32.xlu0 %v642, 32
        %v4822 = vpop.permute.xlu0 %4821
        %4823 = vrot.lane.b32.xlu0 %v645, 32
        %v4824 = vpop.permute.xlu0 %4823
        %4825 = vrot.lane.b32.xlu0 %v648, 32
        %v4826 = vpop.permute.xlu0 %4825
        %4827 = vrot.lane.b32.xlu0 %v651, 32
        %v4828 = vpop.permute.xlu0 %4827
        %4829 = vrot.lane.b32.xlu0 %v654, 32
        %v4830 = vpop.permute.xlu0 %4829
        %4831 = vrot.lane.b32.xlu0 %v690, 32
        %v4832 = vpop.permute.xlu0 %4831
        %4833 = vrot.lane.b32.xlu0 %v693, 32
        %v4834 = vpop.permute.xlu0 %4833
        %4835 = vrot.lane.b32.xlu0 %v696, 32
        %v4836 = vpop.permute.xlu0 %4835
        %4837 = vrot.lane.b32.xlu0 %v699, 32
        %v4838 = vpop.permute.xlu0 %4837
        %4839 = vrot.lane.b32.xlu0 %v702, 32
        %v4840 = vpop.permute.xlu0 %4839
        %4841 = vrot.lane.b32.xlu0 %v705, 32
        %v4842 = vpop.permute.xlu0 %4841
        %4843 = vrot.lane.b32.xlu0 %v708, 32
        %v4844 = vpop.permute.xlu0 %4843
        %4845 = vrot.lane.b32.xlu0 %v711, 32
        %v4846 = vpop.permute.xlu0 %4845
        %4847 = vrot.lane.b32.xlu0 %v714, 32
        %v4848 = vpop.permute.xlu0 %4847
        %4849 = vrot.lane.b32.xlu0 %v717, 32
        %v4850 = vpop.permute.xlu0 %4849
        %4851 = vrot.lane.b32.xlu0 %v720, 32
        %v4852 = vpop.permute.xlu0 %4851
        %4853 = vrot.lane.b32.xlu0 %v723, 32
        %v4854 = vpop.permute.xlu0 %4853
        %4855 = vrot.lane.b32.xlu0 %v726, 32
        %v4856 = vpop.permute.xlu0 %4855
        %4857 = vrot.lane.b32.xlu0 %v729, 32
        %v4858 = vpop.permute.xlu0 %4857
        %4859 = vrot.lane.b32.xlu0 %v732, 32
        %v4860 = vpop.permute.xlu0 %4859
        %4861 = vrot.lane.b32.xlu0 %v735, 32
        %v4862 = vpop.permute.xlu0 %4861
        %v4863 = vsel %vm818, %v4800, 0
        %v4865 = vsel %vm818, %v4802, 0
        %v4867 = vsel %vm818, %v4804, 0
        %v4869 = vsel %vm818, %v4806, 0
        %v4871 = vsel %vm818, %v4808, 0
        %v4873 = vsel %vm818, %v4810, 0
        %v4875 = vsel %vm818, %v4812, 0
        %v4877 = vsel %vm818, %v4814, 0
        %v4879 = vsel %vm818, %v4816, 0
        %v4881 = vsel %vm818, %v4818, 0
        %v4883 = vsel %vm818, %v4820, 0
        %v4885 = vsel %vm818, %v4822, 0
        %v4887 = vsel %vm818, %v4824, 0
        %v4889 = vsel %vm818, %v4826, 0
        %v4891 = vsel %vm818, %v4828, 0
        %v4893 = vsel %vm818, %v4830, 0
        %v4895 = vsel %vm818, %v4832, 0
        %v4897 = vsel %vm818, %v4834, 0
        %v4899 = vsel %vm818, %v4836, 0
        %v4901 = vsel %vm818, %v4838, 0
        %v4903 = vsel %vm818, %v4840, 0
        %v4905 = vsel %vm818, %v4842, 0
        %v4907 = vsel %vm818, %v4844, 0
        %v4909 = vsel %vm818, %v4846, 0
        %v4911 = vsel %vm818, %v4848, 0
        %v4913 = vsel %vm818, %v4850, 0
        %v4915 = vsel %vm818, %v4852, 0
        %v4917 = vsel %vm818, %v4854, 0
        %v4919 = vsel %vm818, %v4856, 0
        %v4921 = vsel %vm818, %v4858, 0
        %v4923 = vsel %vm818, %v4860, 0
        %v4925 = vsel %vm818, %v4862, 0
        %4927 = vmatpush.xpose.msra.mxu0 %v4925
        %4928 = vmatpush.xpose.msra.mxu0 %v4923
        %4929 = vmatpush.xpose.msra.mxu0 %v4921
        %4930 = vmatpush.xpose.msra.mxu0 %v4919
        %4931 = vmatpush.xpose.msra.mxu0 %v4917
        %4932 = vmatpush.xpose.msra.mxu0 %v4915
        %4933 = vmatpush.xpose.msra.mxu0 %v4913
        %4934 = vmatpush.xpose.msra.mxu0 %v4911
        %4935 = vmatpush.xpose.msra.mxu0 %v4909
        %4936 = vmatpush.xpose.msra.mxu0 %v4907
        %4937 = vmatpush.xpose.msra.mxu0 %v4905
        %4938 = vmatpush.xpose.msra.mxu0 %v4903
        %4939 = vmatpush.xpose.msra.mxu0 %v4901
        %4940 = vmatpush.xpose.msra.mxu0 %v4899
        %4941 = vmatpush.xpose.msra.mxu0 %v4897
        %4942 = vmatpush.xpose.msra.mxu0 %v4895
        %4943 = vmatmul.f32.gmra.mxu0 %v4863
        %v4944 = vpop.f32.mrf.mxu0
        %v4945 = vadd.f32 0.0, %v4944
        %4946 = vmatmul.f32.gmra.mxu0 %v4865
        %v4947 = vpop.f32.mrf.mxu0
        %v4948 = vadd.f32 0.0, %v4947
        %4949 = vmatmul.f32.gmra.mxu0 %v4867
        %v4950 = vpop.f32.mrf.mxu0
        %v4951 = vadd.f32 0.0, %v4950
        %4952 = vmatmul.f32.gmra.mxu0 %v4869
        %v4953 = vpop.f32.mrf.mxu0
        %v4954 = vadd.f32 0.0, %v4953
        %4955 = vmatmul.f32.gmra.mxu0 %v4871
        %v4956 = vpop.f32.mrf.mxu0
        %v4957 = vadd.f32 0.0, %v4956
        %4958 = vmatmul.f32.gmra.mxu0 %v4873
        %v4959 = vpop.f32.mrf.mxu0
        %v4960 = vadd.f32 0.0, %v4959
        %4961 = vmatmul.f32.gmra.mxu0 %v4875
        %v4962 = vpop.f32.mrf.mxu0
        %v4963 = vadd.f32 0.0, %v4962
        %4964 = vmatmul.f32.gmra.mxu0 %v4877
        %v4965 = vpop.f32.mrf.mxu0
        %v4966 = vadd.f32 0.0, %v4965
        %4967 = vmatmul.f32.gmra.mxu0 %v4879
        %v4968 = vpop.f32.mrf.mxu0
        %v4969 = vadd.f32 0.0, %v4968
        %4970 = vmatmul.f32.gmra.mxu0 %v4881
        %v4971 = vpop.f32.mrf.mxu0
        %v4972 = vadd.f32 0.0, %v4971
        %4973 = vmatmul.f32.gmra.mxu0 %v4883
        %v4974 = vpop.f32.mrf.mxu0
        %v4975 = vadd.f32 0.0, %v4974
        %4976 = vmatmul.f32.gmra.mxu0 %v4885
        %v4977 = vpop.f32.mrf.mxu0
        %v4978 = vadd.f32 0.0, %v4977
        %4979 = vmatmul.f32.gmra.mxu0 %v4887
        %v4980 = vpop.f32.mrf.mxu0
        %v4981 = vadd.f32 0.0, %v4980
        %4982 = vmatmul.f32.gmra.mxu0 %v4889
        %v4983 = vpop.f32.mrf.mxu0
        %v4984 = vadd.f32 0.0, %v4983
        %4985 = vmatmul.f32.gmra.mxu0 %v4891
        %v4986 = vpop.f32.mrf.mxu0
        %v4987 = vadd.f32 0.0, %v4986
        %4988 = vmatmul.f32.gmra.mxu0 %v4893
        %v4989 = vpop.f32.mrf.mxu0
        %v4990 = vadd.f32 0.0, %v4989
        %4991 = vdwg.mxu0
        %v4992 = vmul.f32 %v4945, 0.088388346
        %v4993 = vmul.f32 %v4948, 0.088388346
        %v4994 = vmul.f32 %v4951, 0.088388346
        %v4995 = vmul.f32 %v4954, 0.088388346
        %v4996 = vmul.f32 %v4957, 0.088388346
        %v4997 = vmul.f32 %v4960, 0.088388346
        %v4998 = vmul.f32 %v4963, 0.088388346
        %v4999 = vmul.f32 %v4966, 0.088388346
        %v5000 = vmul.f32 %v4969, 0.088388346
        %v5001 = vmul.f32 %v4972, 0.088388346
        %v5002 = vmul.f32 %v4975, 0.088388346
        %v5003 = vmul.f32 %v4978, 0.088388346
        %v5004 = vmul.f32 %v4981, 0.088388346
        %v5005 = vmul.f32 %v4984, 0.088388346
        %v5006 = vmul.f32 %v4987, 0.088388346
        %v5007 = vmul.f32 %v4990, 0.088388346
        %5008 = vmax.xlane.f32.xlu0 %v4992
        %v5009 = vpop.xlane.xlu0 %5008
        %5010 = vmax.xlane.f32.xlu0 %v4993
        %v5011 = vpop.xlane.xlu0 %5010
        %5012 = vmax.xlane.f32.xlu0 %v4994
        %v5013 = vpop.xlane.xlu0 %5012
        %5014 = vmax.xlane.f32.xlu0 %v4995
        %v5015 = vpop.xlane.xlu0 %5014
        %5016 = vmax.xlane.f32.xlu0 %v4996
        %v5017 = vpop.xlane.xlu0 %5016
        %5018 = vmax.xlane.f32.xlu0 %v4997
        %v5019 = vpop.xlane.xlu0 %5018
        %5020 = vmax.xlane.f32.xlu0 %v4998
        %v5021 = vpop.xlane.xlu0 %5020
        %5022 = vmax.xlane.f32.xlu0 %v4999
        %v5023 = vpop.xlane.xlu0 %5022
        %5024 = vmax.xlane.f32.xlu0 %v5000
        %v5025 = vpop.xlane.xlu0 %5024
        %5026 = vmax.xlane.f32.xlu0 %v5001
        %v5027 = vpop.xlane.xlu0 %5026
        %5028 = vmax.xlane.f32.xlu0 %v5002
        %v5029 = vpop.xlane.xlu0 %5028
        %5030 = vmax.xlane.f32.xlu0 %v5003
        %v5031 = vpop.xlane.xlu0 %5030
        %5032 = vmax.xlane.f32.xlu0 %v5004
        %v5033 = vpop.xlane.xlu0 %5032
        %5034 = vmax.xlane.f32.xlu0 %v5005
        %v5035 = vpop.xlane.xlu0 %5034
        %5036 = vmax.xlane.f32.xlu0 %v5006
        %v5037 = vpop.xlane.xlu0 %5036
        %5038 = vmax.xlane.f32.xlu0 %v5007
        %v5039 = vpop.xlane.xlu0 %5038
        %v5040 = vsub.f32 %v4992, %v5009
        %v5041 = vsub.f32 %v4993, %v5011
        %v5042 = vsub.f32 %v4994, %v5013
        %v5043 = vsub.f32 %v4995, %v5015
        %v5044 = vsub.f32 %v4996, %v5017
        %v5045 = vsub.f32 %v4997, %v5019
        %v5046 = vsub.f32 %v4998, %v5021
        %v5047 = vsub.f32 %v4999, %v5023
        %v5048 = vsub.f32 %v5000, %v5025
        %v5049 = vsub.f32 %v5001, %v5027
        %v5050 = vsub.f32 %v5002, %v5029
        %v5051 = vsub.f32 %v5003, %v5031
        %v5052 = vsub.f32 %v5004, %v5033
        %v5053 = vsub.f32 %v5005, %v5035
        %v5054 = vsub.f32 %v5006, %v5037
        %v5055 = vsub.f32 %v5007, %v5039
        %v5056 = vmul.f32 %v5040, 1.442695
        %v5057 = vpow.pop %v5056
        %v5058 = vmul.f32 %v5041, 1.442695
        %v5059 = vpow.pop %v5058
        %v5060 = vmul.f32 %v5042, 1.442695
        %v5061 = vpow.pop %v5060
        %v5062 = vmul.f32 %v5043, 1.442695
        %v5063 = vpow.pop %v5062
        %v5064 = vmul.f32 %v5044, 1.442695
        %v5065 = vpow.pop %v5064
        %v5066 = vmul.f32 %v5045, 1.442695
        %v5067 = vpow.pop %v5066
        %v5068 = vmul.f32 %v5046, 1.442695
        %v5069 = vpow.pop %v5068
        %v5070 = vmul.f32 %v5047, 1.442695
        %v5071 = vpow.pop %v5070
        %v5072 = vmul.f32 %v5048, 1.442695
        %v5073 = vpow.pop %v5072
        %v5074 = vmul.f32 %v5049, 1.442695
        %v5075 = vpow.pop %v5074
        %v5076 = vmul.f32 %v5050, 1.442695
        %v5077 = vpow.pop %v5076
        %v5078 = vmul.f32 %v5051, 1.442695
        %v5079 = vpow.pop %v5078
        %v5080 = vmul.f32 %v5052, 1.442695
        %v5081 = vpow.pop %v5080
        %v5082 = vmul.f32 %v5053, 1.442695
        %v5083 = vpow.pop %v5082
        %v5084 = vmul.f32 %v5054, 1.442695
        %v5085 = vpow.pop %v5084
        %v5086 = vmul.f32 %v5055, 1.442695
        %v5087 = vpow.pop %v5086
        %5088 = vadd.xlane.f32.xlu0 %v5057
        %v5089 = vpop.xlane.xlu0 %5088
        %5090 = vadd.xlane.f32.xlu0 %v5059
        %v5091 = vpop.xlane.xlu0 %5090
        %5092 = vadd.xlane.f32.xlu0 %v5061
        %v5093 = vpop.xlane.xlu0 %5092
        %5094 = vadd.xlane.f32.xlu0 %v5063
        %v5095 = vpop.xlane.xlu0 %5094
        %5096 = vadd.xlane.f32.xlu0 %v5065
        %v5097 = vpop.xlane.xlu0 %5096
        %5098 = vadd.xlane.f32.xlu0 %v5067
        %v5099 = vpop.xlane.xlu0 %5098
        %5100 = vadd.xlane.f32.xlu0 %v5069
        %v5101 = vpop.xlane.xlu0 %5100
        %5102 = vadd.xlane.f32.xlu0 %v5071
        %v5103 = vpop.xlane.xlu0 %5102
        %5104 = vadd.xlane.f32.xlu0 %v5073
        %v5105 = vpop.xlane.xlu0 %5104
        %5106 = vadd.xlane.f32.xlu0 %v5075
        %v5107 = vpop.xlane.xlu0 %5106
        %5108 = vadd.xlane.f32.xlu0 %v5077
        %v5109 = vpop.xlane.xlu0 %5108
        %5110 = vadd.xlane.f32.xlu0 %v5079
        %v5111 = vpop.xlane.xlu0 %5110
        %5112 = vadd.xlane.f32.xlu0 %v5081
        %v5113 = vpop.xlane.xlu0 %5112
        %5114 = vadd.xlane.f32.xlu0 %v5083
        %v5115 = vpop.xlane.xlu0 %5114
        %5116 = vadd.xlane.f32.xlu0 %v5085
        %v5117 = vpop.xlane.xlu0 %5116
        %5118 = vadd.xlane.f32.xlu0 %v5087
        %v5119 = vpop.xlane.xlu0 %5118
        %v5120 = vrcp.pop %v5089
        %v5121 = vmul.f32 %v5089, %v5120
        %v5122 = vsub.f32 1.0, %v5121
        %v5123 = vmul.f32 %v5120, %v5122
        %v5124 = vadd.f32 %v5120, %v5123
        %vm5125 = vweird.f32 %v5089
        %vm5126 = vweird.f32 %v5120
        %vm5127 = vmor %vm5125, %vm5126
        %v5128 = vsel %vm5127, %v5120, %v5124
        %v5129 = vand.u32 2147483647, %v5089
        %vm5130 = vcmp.eq.f32.partialorder %v5129, 8.507059e+37
        %v5131 = vand.u32 %v5089, 2147483648
        %v5132 = vor.u32 1.1754944e-38, %v5131
        %v5133 = vsel %vm5130, %v5132, %v5128
        %v5134 = vmul.f32 %v5057, %v5133
        %v5135 = vrcp.pop %v5091
        %v5136 = vmul.f32 %v5091, %v5135
        %v5137 = vsub.f32 1.0, %v5136
        %v5138 = vmul.f32 %v5135, %v5137
        %v5139 = vadd.f32 %v5135, %v5138
        %vm5140 = vweird.f32 %v5091
        %vm5141 = vweird.f32 %v5135
        %vm5142 = vmor %vm5140, %vm5141
        %v5143 = vsel %vm5142, %v5135, %v5139
        %v5144 = vand.u32 2147483647, %v5091
        %vm5145 = vcmp.eq.f32.partialorder %v5144, 8.507059e+37
        %v5146 = vand.u32 %v5091, 2147483648
        %v5147 = vor.u32 1.1754944e-38, %v5146
        %v5148 = vsel %vm5145, %v5147, %v5143
        %v5149 = vmul.f32 %v5059, %v5148
        %v5150 = vrcp.pop %v5093
        %v5151 = vmul.f32 %v5093, %v5150
        %v5152 = vsub.f32 1.0, %v5151
        %v5153 = vmul.f32 %v5150, %v5152
        %v5154 = vadd.f32 %v5150, %v5153
        %vm5155 = vweird.f32 %v5093
        %vm5156 = vweird.f32 %v5150
        %vm5157 = vmor %vm5155, %vm5156
        %v5158 = vsel %vm5157, %v5150, %v5154
        %v5159 = vand.u32 2147483647, %v5093
        %vm5160 = vcmp.eq.f32.partialorder %v5159, 8.507059e+37
        %v5161 = vand.u32 %v5093, 2147483648
        %v5162 = vor.u32 1.1754944e-38, %v5161
        %v5163 = vsel %vm5160, %v5162, %v5158
        %v5164 = vmul.f32 %v5061, %v5163
        %v5165 = vrcp.pop %v5095
        %v5166 = vmul.f32 %v5095, %v5165
        %v5167 = vsub.f32 1.0, %v5166
        %v5168 = vmul.f32 %v5165, %v5167
        %v5169 = vadd.f32 %v5165, %v5168
        %vm5170 = vweird.f32 %v5095
        %vm5171 = vweird.f32 %v5165
        %vm5172 = vmor %vm5170, %vm5171
        %v5173 = vsel %vm5172, %v5165, %v5169
        %v5174 = vand.u32 2147483647, %v5095
        %vm5175 = vcmp.eq.f32.partialorder %v5174, 8.507059e+37
        %v5176 = vand.u32 %v5095, 2147483648
        %v5177 = vor.u32 1.1754944e-38, %v5176
        %v5178 = vsel %vm5175, %v5177, %v5173
        %v5179 = vmul.f32 %v5063, %v5178
        %v5180 = vrcp.pop %v5097
        %v5181 = vmul.f32 %v5097, %v5180
        %v5182 = vsub.f32 1.0, %v5181
        %v5183 = vmul.f32 %v5180, %v5182
        %v5184 = vadd.f32 %v5180, %v5183
        %vm5185 = vweird.f32 %v5097
        %vm5186 = vweird.f32 %v5180
        %vm5187 = vmor %vm5185, %vm5186
        %v5188 = vsel %vm5187, %v5180, %v5184
        %v5189 = vand.u32 2147483647, %v5097
        %vm5190 = vcmp.eq.f32.partialorder %v5189, 8.507059e+37
        %v5191 = vand.u32 %v5097, 2147483648
        %v5192 = vor.u32 1.1754944e-38, %v5191
        %v5193 = vsel %vm5190, %v5192, %v5188
        %v5194 = vmul.f32 %v5065, %v5193
        %v5195 = vrcp.pop %v5099
        %v5196 = vmul.f32 %v5099, %v5195
        %v5197 = vsub.f32 1.0, %v5196
        %v5198 = vmul.f32 %v5195, %v5197
        %v5199 = vadd.f32 %v5195, %v5198
        %vm5200 = vweird.f32 %v5099
        %vm5201 = vweird.f32 %v5195
        %vm5202 = vmor %vm5200, %vm5201
        %v5203 = vsel %vm5202, %v5195, %v5199
        %v5204 = vand.u32 2147483647, %v5099
        %vm5205 = vcmp.eq.f32.partialorder %v5204, 8.507059e+37
        %v5206 = vand.u32 %v5099, 2147483648
        %v5207 = vor.u32 1.1754944e-38, %v5206
        %v5208 = vsel %vm5205, %v5207, %v5203
        %v5209 = vmul.f32 %v5067, %v5208
        %v5210 = vrcp.pop %v5101
        %v5211 = vmul.f32 %v5101, %v5210
        %v5212 = vsub.f32 1.0, %v5211
        %v5213 = vmul.f32 %v5210, %v5212
        %v5214 = vadd.f32 %v5210, %v5213
        %vm5215 = vweird.f32 %v5101
        %vm5216 = vweird.f32 %v5210
        %vm5217 = vmor %vm5215, %vm5216
        %v5218 = vsel %vm5217, %v5210, %v5214
        %v5219 = vand.u32 2147483647, %v5101
        %vm5220 = vcmp.eq.f32.partialorder %v5219, 8.507059e+37
        %v5221 = vand.u32 %v5101, 2147483648
        %v5222 = vor.u32 1.1754944e-38, %v5221
        %v5223 = vsel %vm5220, %v5222, %v5218
        %v5224 = vmul.f32 %v5069, %v5223
        %v5225 = vrcp.pop %v5103
        %v5226 = vmul.f32 %v5103, %v5225
        %v5227 = vsub.f32 1.0, %v5226
        %v5228 = vmul.f32 %v5225, %v5227
        %v5229 = vadd.f32 %v5225, %v5228
        %vm5230 = vweird.f32 %v5103
        %vm5231 = vweird.f32 %v5225
        %vm5232 = vmor %vm5230, %vm5231
        %v5233 = vsel %vm5232, %v5225, %v5229
        %v5234 = vand.u32 2147483647, %v5103
        %vm5235 = vcmp.eq.f32.partialorder %v5234, 8.507059e+37
        %v5236 = vand.u32 %v5103, 2147483648
        %v5237 = vor.u32 1.1754944e-38, %v5236
        %v5238 = vsel %vm5235, %v5237, %v5233
        %v5239 = vmul.f32 %v5071, %v5238
        %v5240 = vrcp.pop %v5105
        %v5241 = vmul.f32 %v5105, %v5240
        %v5242 = vsub.f32 1.0, %v5241
        %v5243 = vmul.f32 %v5240, %v5242
        %v5244 = vadd.f32 %v5240, %v5243
        %vm5245 = vweird.f32 %v5105
        %vm5246 = vweird.f32 %v5240
        %vm5247 = vmor %vm5245, %vm5246
        %v5248 = vsel %vm5247, %v5240, %v5244
        %v5249 = vand.u32 2147483647, %v5105
        %vm5250 = vcmp.eq.f32.partialorder %v5249, 8.507059e+37
        %v5251 = vand.u32 %v5105, 2147483648
        %v5252 = vor.u32 1.1754944e-38, %v5251
        %v5253 = vsel %vm5250, %v5252, %v5248
        %v5254 = vmul.f32 %v5073, %v5253
        %v5255 = vrcp.pop %v5107
        %v5256 = vmul.f32 %v5107, %v5255
        %v5257 = vsub.f32 1.0, %v5256
        %v5258 = vmul.f32 %v5255, %v5257
        %v5259 = vadd.f32 %v5255, %v5258
        %vm5260 = vweird.f32 %v5107
        %vm5261 = vweird.f32 %v5255
        %vm5262 = vmor %vm5260, %vm5261
        %v5263 = vsel %vm5262, %v5255, %v5259
        %v5264 = vand.u32 2147483647, %v5107
        %vm5265 = vcmp.eq.f32.partialorder %v5264, 8.507059e+37
        %v5266 = vand.u32 %v5107, 2147483648
        %v5267 = vor.u32 1.1754944e-38, %v5266
        %v5268 = vsel %vm5265, %v5267, %v5263
        %v5269 = vmul.f32 %v5075, %v5268
        %v5270 = vrcp.pop %v5109
        %v5271 = vmul.f32 %v5109, %v5270
        %v5272 = vsub.f32 1.0, %v5271
        %v5273 = vmul.f32 %v5270, %v5272
        %v5274 = vadd.f32 %v5270, %v5273
        %vm5275 = vweird.f32 %v5109
        %vm5276 = vweird.f32 %v5270
        %vm5277 = vmor %vm5275, %vm5276
        %v5278 = vsel %vm5277, %v5270, %v5274
        %v5279 = vand.u32 2147483647, %v5109
        %vm5280 = vcmp.eq.f32.partialorder %v5279, 8.507059e+37
        %v5281 = vand.u32 %v5109, 2147483648
        %v5282 = vor.u32 1.1754944e-38, %v5281
        %v5283 = vsel %vm5280, %v5282, %v5278
        %v5284 = vmul.f32 %v5077, %v5283
        %v5285 = vrcp.pop %v5111
        %v5286 = vmul.f32 %v5111, %v5285
        %v5287 = vsub.f32 1.0, %v5286
        %v5288 = vmul.f32 %v5285, %v5287
        %v5289 = vadd.f32 %v5285, %v5288
        %vm5290 = vweird.f32 %v5111
        %vm5291 = vweird.f32 %v5285
        %vm5292 = vmor %vm5290, %vm5291
        %v5293 = vsel %vm5292, %v5285, %v5289
        %v5294 = vand.u32 2147483647, %v5111
        %vm5295 = vcmp.eq.f32.partialorder %v5294, 8.507059e+37
        %v5296 = vand.u32 %v5111, 2147483648
        %v5297 = vor.u32 1.1754944e-38, %v5296
        %v5298 = vsel %vm5295, %v5297, %v5293
        %v5299 = vmul.f32 %v5079, %v5298
        %v5300 = vrcp.pop %v5113
        %v5301 = vmul.f32 %v5113, %v5300
        %v5302 = vsub.f32 1.0, %v5301
        %v5303 = vmul.f32 %v5300, %v5302
        %v5304 = vadd.f32 %v5300, %v5303
        %vm5305 = vweird.f32 %v5113
        %vm5306 = vweird.f32 %v5300
        %vm5307 = vmor %vm5305, %vm5306
        %v5308 = vsel %vm5307, %v5300, %v5304
        %v5309 = vand.u32 2147483647, %v5113
        %vm5310 = vcmp.eq.f32.partialorder %v5309, 8.507059e+37
        %v5311 = vand.u32 %v5113, 2147483648
        %v5312 = vor.u32 1.1754944e-38, %v5311
        %v5313 = vsel %vm5310, %v5312, %v5308
        %v5314 = vmul.f32 %v5081, %v5313
        %v5315 = vrcp.pop %v5115
        %v5316 = vmul.f32 %v5115, %v5315
        %v5317 = vsub.f32 1.0, %v5316
        %v5318 = vmul.f32 %v5315, %v5317
        %v5319 = vadd.f32 %v5315, %v5318
        %vm5320 = vweird.f32 %v5115
        %vm5321 = vweird.f32 %v5315
        %vm5322 = vmor %vm5320, %vm5321
        %v5323 = vsel %vm5322, %v5315, %v5319
        %v5324 = vand.u32 2147483647, %v5115
        %vm5325 = vcmp.eq.f32.partialorder %v5324, 8.507059e+37
        %v5326 = vand.u32 %v5115, 2147483648
        %v5327 = vor.u32 1.1754944e-38, %v5326
        %v5328 = vsel %vm5325, %v5327, %v5323
        %v5329 = vmul.f32 %v5083, %v5328
        %v5330 = vrcp.pop %v5117
        %v5331 = vmul.f32 %v5117, %v5330
        %v5332 = vsub.f32 1.0, %v5331
        %v5333 = vmul.f32 %v5330, %v5332
        %v5334 = vadd.f32 %v5330, %v5333
        %vm5335 = vweird.f32 %v5117
        %vm5336 = vweird.f32 %v5330
        %vm5337 = vmor %vm5335, %vm5336
        %v5338 = vsel %vm5337, %v5330, %v5334
        %v5339 = vand.u32 2147483647, %v5117
        %vm5340 = vcmp.eq.f32.partialorder %v5339, 8.507059e+37
        %v5341 = vand.u32 %v5117, 2147483648
        %v5342 = vor.u32 1.1754944e-38, %v5341
        %v5343 = vsel %vm5340, %v5342, %v5338
        %v5344 = vmul.f32 %v5085, %v5343
        %v5345 = vrcp.pop %v5119
        %v5346 = vmul.f32 %v5119, %v5345
        %v5347 = vsub.f32 1.0, %v5346
        %v5348 = vmul.f32 %v5345, %v5347
        %v5349 = vadd.f32 %v5345, %v5348
        %vm5350 = vweird.f32 %v5119
        %vm5351 = vweird.f32 %v5345
        %vm5352 = vmor %vm5350, %vm5351
        %v5353 = vsel %vm5352, %v5345, %v5349
        %v5354 = vand.u32 2147483647, %v5119
        %vm5355 = vcmp.eq.f32.partialorder %v5354, 8.507059e+37
        %v5356 = vand.u32 %v5119, 2147483648
        %v5357 = vor.u32 1.1754944e-38, %v5356
        %v5358 = vsel %vm5355, %v5357, %v5353
        %v5359 = vmul.f32 %v5087, %v5358
        %5360 = vrot.lane.b32.xlu0 %v771, 32
        %v5361 = vpop.permute.xlu0 %5360
        %5362 = vrot.lane.b32.xlu0 %v774, 32
        %v5363 = vpop.permute.xlu0 %5362
        %5364 = vrot.lane.b32.xlu0 %v777, 32
        %v5365 = vpop.permute.xlu0 %5364
        %5366 = vrot.lane.b32.xlu0 %v780, 32
        %v5367 = vpop.permute.xlu0 %5366
        %5368 = vrot.lane.b32.xlu0 %v783, 32
        %v5369 = vpop.permute.xlu0 %5368
        %5370 = vrot.lane.b32.xlu0 %v786, 32
        %v5371 = vpop.permute.xlu0 %5370
        %5372 = vrot.lane.b32.xlu0 %v789, 32
        %v5373 = vpop.permute.xlu0 %5372
        %5374 = vrot.lane.b32.xlu0 %v792, 32
        %v5375 = vpop.permute.xlu0 %5374
        %5376 = vrot.lane.b32.xlu0 %v795, 32
        %v5377 = vpop.permute.xlu0 %5376
        %5378 = vrot.lane.b32.xlu0 %v798, 32
        %v5379 = vpop.permute.xlu0 %5378
        %5380 = vrot.lane.b32.xlu0 %v801, 32
        %v5381 = vpop.permute.xlu0 %5380
        %5382 = vrot.lane.b32.xlu0 %v804, 32
        %v5383 = vpop.permute.xlu0 %5382
        %5384 = vrot.lane.b32.xlu0 %v807, 32
        %v5385 = vpop.permute.xlu0 %5384
        %5386 = vrot.lane.b32.xlu0 %v810, 32
        %v5387 = vpop.permute.xlu0 %5386
        %5388 = vrot.lane.b32.xlu0 %v813, 32
        %v5389 = vpop.permute.xlu0 %5388
        %5390 = vrot.lane.b32.xlu0 %v816, 32
        %v5391 = vpop.permute.xlu0 %5390
        %5408 = vmatpush.msra.mxu0 %v5391
        %5409 = vmatpush.msra.mxu0 %v5389
        %5410 = vmatpush.msra.mxu0 %v5387
        %5411 = vmatpush.msra.mxu0 %v5385
        %5412 = vmatpush.msra.mxu0 %v5383
        %5413 = vmatpush.msra.mxu0 %v5381
        %5414 = vmatpush.msra.mxu0 %v5379
        %5415 = vmatpush.msra.mxu0 %v5377
        %5416 = vmatpush.msra.mxu0 %v5375
        %5417 = vmatpush.msra.mxu0 %v5373
        %5418 = vmatpush.msra.mxu0 %v5371
        %5419 = vmatpush.msra.mxu0 %v5369
        %5420 = vmatpush.msra.mxu0 %v5367
        %5421 = vmatpush.msra.mxu0 %v5365
        %5422 = vmatpush.msra.mxu0 %v5363
        %5423 = vmatpush.msra.mxu0 %v5361
        %5424 = vmatmul.f32.gmra.mxu0 %v5134
        %v5425 = vpop.f32.mrf.mxu0
        %v5426 = vadd.f32 0.0, %v5425
        %5427 = vmatmul.f32.gmra.mxu0 %v5149
        %v5428 = vpop.f32.mrf.mxu0
        %v5429 = vadd.f32 0.0, %v5428
        %5430 = vmatmul.f32.gmra.mxu0 %v5164
        %v5431 = vpop.f32.mrf.mxu0
        %v5432 = vadd.f32 0.0, %v5431
        %5433 = vmatmul.f32.gmra.mxu0 %v5179
        %v5434 = vpop.f32.mrf.mxu0
        %v5435 = vadd.f32 0.0, %v5434
        %5436 = vmatmul.f32.gmra.mxu0 %v5194
        %v5437 = vpop.f32.mrf.mxu0
        %v5438 = vadd.f32 0.0, %v5437
        %5439 = vmatmul.f32.gmra.mxu0 %v5209
        %v5440 = vpop.f32.mrf.mxu0
        %v5441 = vadd.f32 0.0, %v5440
        %5442 = vmatmul.f32.gmra.mxu0 %v5224
        %v5443 = vpop.f32.mrf.mxu0
        %v5444 = vadd.f32 0.0, %v5443
        %5445 = vmatmul.f32.gmra.mxu0 %v5239
        %v5446 = vpop.f32.mrf.mxu0
        %v5447 = vadd.f32 0.0, %v5446
        %5448 = vmatmul.f32.gmra.mxu0 %v5254
        %v5449 = vpop.f32.mrf.mxu0
        %v5450 = vadd.f32 0.0, %v5449
        %5451 = vmatmul.f32.gmra.mxu0 %v5269
        %v5452 = vpop.f32.mrf.mxu0
        %v5453 = vadd.f32 0.0, %v5452
        %5454 = vmatmul.f32.gmra.mxu0 %v5284
        %v5455 = vpop.f32.mrf.mxu0
        %v5456 = vadd.f32 0.0, %v5455
        %5457 = vmatmul.f32.gmra.mxu0 %v5299
        %v5458 = vpop.f32.mrf.mxu0
        %v5459 = vadd.f32 0.0, %v5458
        %5460 = vmatmul.f32.gmra.mxu0 %v5314
        %v5461 = vpop.f32.mrf.mxu0
        %v5462 = vadd.f32 0.0, %v5461
        %5463 = vmatmul.f32.gmra.mxu0 %v5329
        %v5464 = vpop.f32.mrf.mxu0
        %v5465 = vadd.f32 0.0, %v5464
        %5466 = vmatmul.f32.gmra.mxu0 %v5344
        %v5467 = vpop.f32.mrf.mxu0
        %v5468 = vadd.f32 0.0, %v5467
        %5469 = vmatmul.f32.gmra.mxu0 %v5359
        %v5470 = vpop.f32.mrf.mxu0
        %v5471 = vadd.f32 0.0, %v5470
        %5472 = vdwg.mxu0
        %5473 = vrot.lane.b32.xlu0 %v609, 16
        %v5474 = vpop.permute.xlu0 %5473
        %5475 = vrot.lane.b32.xlu0 %v612, 16
        %v5476 = vpop.permute.xlu0 %5475
        %5477 = vrot.lane.b32.xlu0 %v615, 16
        %v5478 = vpop.permute.xlu0 %5477
        %5479 = vrot.lane.b32.xlu0 %v618, 16
        %v5480 = vpop.permute.xlu0 %5479
        %5481 = vrot.lane.b32.xlu0 %v621, 16
        %v5482 = vpop.permute.xlu0 %5481
        %5483 = vrot.lane.b32.xlu0 %v624, 16
        %v5484 = vpop.permute.xlu0 %5483
        %5485 = vrot.lane.b32.xlu0 %v627, 16
        %v5486 = vpop.permute.xlu0 %5485
        %5487 = vrot.lane.b32.xlu0 %v630, 16
        %v5488 = vpop.permute.xlu0 %5487
        %5489 = vrot.lane.b32.xlu0 %v633, 16
        %v5490 = vpop.permute.xlu0 %5489
        %5491 = vrot.lane.b32.xlu0 %v636, 16
        %v5492 = vpop.permute.xlu0 %5491
        %5493 = vrot.lane.b32.xlu0 %v639, 16
        %v5494 = vpop.permute.xlu0 %5493
        %5495 = vrot.lane.b32.xlu0 %v642, 16
        %v5496 = vpop.permute.xlu0 %5495
        %5497 = vrot.lane.b32.xlu0 %v645, 16
        %v5498 = vpop.permute.xlu0 %5497
        %5499 = vrot.lane.b32.xlu0 %v648, 16
        %v5500 = vpop.permute.xlu0 %5499
        %5501 = vrot.lane.b32.xlu0 %v651, 16
        %v5502 = vpop.permute.xlu0 %5501
        %5503 = vrot.lane.b32.xlu0 %v654, 16
        %v5504 = vpop.permute.xlu0 %5503
        %5505 = vrot.lane.b32.xlu0 %v690, 16
        %v5506 = vpop.permute.xlu0 %5505
        %5507 = vrot.lane.b32.xlu0 %v693, 16
        %v5508 = vpop.permute.xlu0 %5507
        %5509 = vrot.lane.b32.xlu0 %v696, 16
        %v5510 = vpop.permute.xlu0 %5509
        %5511 = vrot.lane.b32.xlu0 %v699, 16
        %v5512 = vpop.permute.xlu0 %5511
        %5513 = vrot.lane.b32.xlu0 %v702, 16
        %v5514 = vpop.permute.xlu0 %5513
        %5515 = vrot.lane.b32.xlu0 %v705, 16
        %v5516 = vpop.permute.xlu0 %5515
        %5517 = vrot.lane.b32.xlu0 %v708, 16
        %v5518 = vpop.permute.xlu0 %5517
        %5519 = vrot.lane.b32.xlu0 %v711, 16
        %v5520 = vpop.permute.xlu0 %5519
        %5521 = vrot.lane.b32.xlu0 %v714, 16
        %v5522 = vpop.permute.xlu0 %5521
        %5523 = vrot.lane.b32.xlu0 %v717, 16
        %v5524 = vpop.permute.xlu0 %5523
        %5525 = vrot.lane.b32.xlu0 %v720, 16
        %v5526 = vpop.permute.xlu0 %5525
        %5527 = vrot.lane.b32.xlu0 %v723, 16
        %v5528 = vpop.permute.xlu0 %5527
        %5529 = vrot.lane.b32.xlu0 %v726, 16
        %v5530 = vpop.permute.xlu0 %5529
        %5531 = vrot.lane.b32.xlu0 %v729, 16
        %v5532 = vpop.permute.xlu0 %5531
        %5533 = vrot.lane.b32.xlu0 %v732, 16
        %v5534 = vpop.permute.xlu0 %5533
        %5535 = vrot.lane.b32.xlu0 %v735, 16
        %v5536 = vpop.permute.xlu0 %5535
        %v5537 = vsel %vm818, %v5474, 0
        %v5539 = vsel %vm818, %v5476, 0
        %v5541 = vsel %vm818, %v5478, 0
        %v5543 = vsel %vm818, %v5480, 0
        %v5545 = vsel %vm818, %v5482, 0
        %v5547 = vsel %vm818, %v5484, 0
        %v5549 = vsel %vm818, %v5486, 0
        %v5551 = vsel %vm818, %v5488, 0
        %v5553 = vsel %vm818, %v5490, 0
        %v5555 = vsel %vm818, %v5492, 0
        %v5557 = vsel %vm818, %v5494, 0
        %v5559 = vsel %vm818, %v5496, 0
        %v5561 = vsel %vm818, %v5498, 0
        %v5563 = vsel %vm818, %v5500, 0
        %v5565 = vsel %vm818, %v5502, 0
        %v5567 = vsel %vm818, %v5504, 0
        %v5569 = vsel %vm818, %v5506, 0
        %v5571 = vsel %vm818, %v5508, 0
        %v5573 = vsel %vm818, %v5510, 0
        %v5575 = vsel %vm818, %v5512, 0
        %v5577 = vsel %vm818, %v5514, 0
        %v5579 = vsel %vm818, %v5516, 0
        %v5581 = vsel %vm818, %v5518, 0
        %v5583 = vsel %vm818, %v5520, 0
        %v5585 = vsel %vm818, %v5522, 0
        %v5587 = vsel %vm818, %v5524, 0
        %v5589 = vsel %vm818, %v5526, 0
        %v5591 = vsel %vm818, %v5528, 0
        %v5593 = vsel %vm818, %v5530, 0
        %v5595 = vsel %vm818, %v5532, 0
        %v5597 = vsel %vm818, %v5534, 0
        %v5599 = vsel %vm818, %v5536, 0
        %5601 = vmatpush.xpose.msra.mxu0 %v5599
        %5602 = vmatpush.xpose.msra.mxu0 %v5597
        %5603 = vmatpush.xpose.msra.mxu0 %v5595
        %5604 = vmatpush.xpose.msra.mxu0 %v5593
        %5605 = vmatpush.xpose.msra.mxu0 %v5591
        %5606 = vmatpush.xpose.msra.mxu0 %v5589
        %5607 = vmatpush.xpose.msra.mxu0 %v5587
        %5608 = vmatpush.xpose.msra.mxu0 %v5585
        %5609 = vmatpush.xpose.msra.mxu0 %v5583
        %5610 = vmatpush.xpose.msra.mxu0 %v5581
        %5611 = vmatpush.xpose.msra.mxu0 %v5579
        %5612 = vmatpush.xpose.msra.mxu0 %v5577
        %5613 = vmatpush.xpose.msra.mxu0 %v5575
        %5614 = vmatpush.xpose.msra.mxu0 %v5573
        %5615 = vmatpush.xpose.msra.mxu0 %v5571
        %5616 = vmatpush.xpose.msra.mxu0 %v5569
        %5617 = vmatmul.f32.gmra.mxu0 %v5537
        %v5618 = vpop.f32.mrf.mxu0
        %v5619 = vadd.f32 0.0, %v5618
        %5620 = vmatmul.f32.gmra.mxu0 %v5539
        %v5621 = vpop.f32.mrf.mxu0
        %v5622 = vadd.f32 0.0, %v5621
        %5623 = vmatmul.f32.gmra.mxu0 %v5541
        %v5624 = vpop.f32.mrf.mxu0
        %v5625 = vadd.f32 0.0, %v5624
        %5626 = vmatmul.f32.gmra.mxu0 %v5543
        %v5627 = vpop.f32.mrf.mxu0
        %v5628 = vadd.f32 0.0, %v5627
        %5629 = vmatmul.f32.gmra.mxu0 %v5545
        %v5630 = vpop.f32.mrf.mxu0
        %v5631 = vadd.f32 0.0, %v5630
        %5632 = vmatmul.f32.gmra.mxu0 %v5547
        %v5633 = vpop.f32.mrf.mxu0
        %v5634 = vadd.f32 0.0, %v5633
        %5635 = vmatmul.f32.gmra.mxu0 %v5549
        %v5636 = vpop.f32.mrf.mxu0
        %v5637 = vadd.f32 0.0, %v5636
        %5638 = vmatmul.f32.gmra.mxu0 %v5551
        %v5639 = vpop.f32.mrf.mxu0
        %v5640 = vadd.f32 0.0, %v5639
        %5641 = vmatmul.f32.gmra.mxu0 %v5553
        %v5642 = vpop.f32.mrf.mxu0
        %v5643 = vadd.f32 0.0, %v5642
        %5644 = vmatmul.f32.gmra.mxu0 %v5555
        %v5645 = vpop.f32.mrf.mxu0
        %v5646 = vadd.f32 0.0, %v5645
        %5647 = vmatmul.f32.gmra.mxu0 %v5557
        %v5648 = vpop.f32.mrf.mxu0
        %v5649 = vadd.f32 0.0, %v5648
        %5650 = vmatmul.f32.gmra.mxu0 %v5559
        %v5651 = vpop.f32.mrf.mxu0
        %v5652 = vadd.f32 0.0, %v5651
        %5653 = vmatmul.f32.gmra.mxu0 %v5561
        %v5654 = vpop.f32.mrf.mxu0
        %v5655 = vadd.f32 0.0, %v5654
        %5656 = vmatmul.f32.gmra.mxu0 %v5563
        %v5657 = vpop.f32.mrf.mxu0
        %v5658 = vadd.f32 0.0, %v5657
        %5659 = vmatmul.f32.gmra.mxu0 %v5565
        %v5660 = vpop.f32.mrf.mxu0
        %v5661 = vadd.f32 0.0, %v5660
        %5662 = vmatmul.f32.gmra.mxu0 %v5567
        %v5663 = vpop.f32.mrf.mxu0
        %v5664 = vadd.f32 0.0, %v5663
        %5665 = vdwg.mxu0
        %v5666 = vmul.f32 %v5619, 0.088388346
        %v5667 = vmul.f32 %v5622, 0.088388346
        %v5668 = vmul.f32 %v5625, 0.088388346
        %v5669 = vmul.f32 %v5628, 0.088388346
        %v5670 = vmul.f32 %v5631, 0.088388346
        %v5671 = vmul.f32 %v5634, 0.088388346
        %v5672 = vmul.f32 %v5637, 0.088388346
        %v5673 = vmul.f32 %v5640, 0.088388346
        %v5674 = vmul.f32 %v5643, 0.088388346
        %v5675 = vmul.f32 %v5646, 0.088388346
        %v5676 = vmul.f32 %v5649, 0.088388346
        %v5677 = vmul.f32 %v5652, 0.088388346
        %v5678 = vmul.f32 %v5655, 0.088388346
        %v5679 = vmul.f32 %v5658, 0.088388346
        %v5680 = vmul.f32 %v5661, 0.088388346
        %v5681 = vmul.f32 %v5664, 0.088388346
        %5682 = vmax.xlane.f32.xlu0 %v5666
        %v5683 = vpop.xlane.xlu0 %5682
        %5684 = vmax.xlane.f32.xlu0 %v5667
        %v5685 = vpop.xlane.xlu0 %5684
        %5686 = vmax.xlane.f32.xlu0 %v5668
        %v5687 = vpop.xlane.xlu0 %5686
        %5688 = vmax.xlane.f32.xlu0 %v5669
        %v5689 = vpop.xlane.xlu0 %5688
        %5690 = vmax.xlane.f32.xlu0 %v5670
        %v5691 = vpop.xlane.xlu0 %5690
        %5692 = vmax.xlane.f32.xlu0 %v5671
        %v5693 = vpop.xlane.xlu0 %5692
        %5694 = vmax.xlane.f32.xlu0 %v5672
        %v5695 = vpop.xlane.xlu0 %5694
        %5696 = vmax.xlane.f32.xlu0 %v5673
        %v5697 = vpop.xlane.xlu0 %5696
        %5698 = vmax.xlane.f32.xlu0 %v5674
        %v5699 = vpop.xlane.xlu0 %5698
        %5700 = vmax.xlane.f32.xlu0 %v5675
        %v5701 = vpop.xlane.xlu0 %5700
        %5702 = vmax.xlane.f32.xlu0 %v5676
        %v5703 = vpop.xlane.xlu0 %5702
        %5704 = vmax.xlane.f32.xlu0 %v5677
        %v5705 = vpop.xlane.xlu0 %5704
        %5706 = vmax.xlane.f32.xlu0 %v5678
        %v5707 = vpop.xlane.xlu0 %5706
        %5708 = vmax.xlane.f32.xlu0 %v5679
        %v5709 = vpop.xlane.xlu0 %5708
        %5710 = vmax.xlane.f32.xlu0 %v5680
        %v5711 = vpop.xlane.xlu0 %5710
        %5712 = vmax.xlane.f32.xlu0 %v5681
        %v5713 = vpop.xlane.xlu0 %5712
        %v5714 = vsub.f32 %v5666, %v5683
        %v5715 = vsub.f32 %v5667, %v5685
        %v5716 = vsub.f32 %v5668, %v5687
        %v5717 = vsub.f32 %v5669, %v5689
        %v5718 = vsub.f32 %v5670, %v5691
        %v5719 = vsub.f32 %v5671, %v5693
        %v5720 = vsub.f32 %v5672, %v5695
        %v5721 = vsub.f32 %v5673, %v5697
        %v5722 = vsub.f32 %v5674, %v5699
        %v5723 = vsub.f32 %v5675, %v5701
        %v5724 = vsub.f32 %v5676, %v5703
        %v5725 = vsub.f32 %v5677, %v5705
        %v5726 = vsub.f32 %v5678, %v5707
        %v5727 = vsub.f32 %v5679, %v5709
        %v5728 = vsub.f32 %v5680, %v5711
        %v5729 = vsub.f32 %v5681, %v5713
        %v5730 = vmul.f32 %v5714, 1.442695
        %v5731 = vpow.pop %v5730
        %v5732 = vmul.f32 %v5715, 1.442695
        %v5733 = vpow.pop %v5732
        %v5734 = vmul.f32 %v5716, 1.442695
        %v5735 = vpow.pop %v5734
        %v5736 = vmul.f32 %v5717, 1.442695
        %v5737 = vpow.pop %v5736
        %v5738 = vmul.f32 %v5718, 1.442695
        %v5739 = vpow.pop %v5738
        %v5740 = vmul.f32 %v5719, 1.442695
        %v5741 = vpow.pop %v5740
        %v5742 = vmul.f32 %v5720, 1.442695
        %v5743 = vpow.pop %v5742
        %v5744 = vmul.f32 %v5721, 1.442695
        %v5745 = vpow.pop %v5744
        %v5746 = vmul.f32 %v5722, 1.442695
        %v5747 = vpow.pop %v5746
        %v5748 = vmul.f32 %v5723, 1.442695
        %v5749 = vpow.pop %v5748
        %v5750 = vmul.f32 %v5724, 1.442695
        %v5751 = vpow.pop %v5750
        %v5752 = vmul.f32 %v5725, 1.442695
        %v5753 = vpow.pop %v5752
        %v5754 = vmul.f32 %v5726, 1.442695
        %v5755 = vpow.pop %v5754
        %v5756 = vmul.f32 %v5727, 1.442695
        %v5757 = vpow.pop %v5756
        %v5758 = vmul.f32 %v5728, 1.442695
        %v5759 = vpow.pop %v5758
        %v5760 = vmul.f32 %v5729, 1.442695
        %v5761 = vpow.pop %v5760
        %5762 = vadd.xlane.f32.xlu0 %v5731
        %v5763 = vpop.xlane.xlu0 %5762
        %5764 = vadd.xlane.f32.xlu0 %v5733
        %v5765 = vpop.xlane.xlu0 %5764
        %5766 = vadd.xlane.f32.xlu0 %v5735
        %v5767 = vpop.xlane.xlu0 %5766
        %5768 = vadd.xlane.f32.xlu0 %v5737
        %v5769 = vpop.xlane.xlu0 %5768
        %5770 = vadd.xlane.f32.xlu0 %v5739
        %v5771 = vpop.xlane.xlu0 %5770
        %5772 = vadd.xlane.f32.xlu0 %v5741
        %v5773 = vpop.xlane.xlu0 %5772
        %5774 = vadd.xlane.f32.xlu0 %v5743
        %v5775 = vpop.xlane.xlu0 %5774
        %5776 = vadd.xlane.f32.xlu0 %v5745
        %v5777 = vpop.xlane.xlu0 %5776
        %5778 = vadd.xlane.f32.xlu0 %v5747
        %v5779 = vpop.xlane.xlu0 %5778
        %5780 = vadd.xlane.f32.xlu0 %v5749
        %v5781 = vpop.xlane.xlu0 %5780
        %5782 = vadd.xlane.f32.xlu0 %v5751
        %v5783 = vpop.xlane.xlu0 %5782
        %5784 = vadd.xlane.f32.xlu0 %v5753
        %v5785 = vpop.xlane.xlu0 %5784
        %5786 = vadd.xlane.f32.xlu0 %v5755
        %v5787 = vpop.xlane.xlu0 %5786
        %5788 = vadd.xlane.f32.xlu0 %v5757
        %v5789 = vpop.xlane.xlu0 %5788
        %5790 = vadd.xlane.f32.xlu0 %v5759
        %v5791 = vpop.xlane.xlu0 %5790
        %5792 = vadd.xlane.f32.xlu0 %v5761
        %v5793 = vpop.xlane.xlu0 %5792
        %v5794 = vrcp.pop %v5763
        %v5795 = vmul.f32 %v5763, %v5794
        %v5796 = vsub.f32 1.0, %v5795
        %v5797 = vmul.f32 %v5794, %v5796
        %v5798 = vadd.f32 %v5794, %v5797
        %vm5799 = vweird.f32 %v5763
        %vm5800 = vweird.f32 %v5794
        %vm5801 = vmor %vm5799, %vm5800
        %v5802 = vsel %vm5801, %v5794, %v5798
        %v5803 = vand.u32 2147483647, %v5763
        %vm5804 = vcmp.eq.f32.partialorder %v5803, 8.507059e+37
        %v5805 = vand.u32 %v5763, 2147483648
        %v5806 = vor.u32 1.1754944e-38, %v5805
        %v5807 = vsel %vm5804, %v5806, %v5802
        %v5808 = vmul.f32 %v5731, %v5807
        %v5809 = vrcp.pop %v5765
        %v5810 = vmul.f32 %v5765, %v5809
        %v5811 = vsub.f32 1.0, %v5810
        %v5812 = vmul.f32 %v5809, %v5811
        %v5813 = vadd.f32 %v5809, %v5812
        %vm5814 = vweird.f32 %v5765
        %vm5815 = vweird.f32 %v5809
        %vm5816 = vmor %vm5814, %vm5815
        %v5817 = vsel %vm5816, %v5809, %v5813
        %v5818 = vand.u32 2147483647, %v5765
        %vm5819 = vcmp.eq.f32.partialorder %v5818, 8.507059e+37
        %v5820 = vand.u32 %v5765, 2147483648
        %v5821 = vor.u32 1.1754944e-38, %v5820
        %v5822 = vsel %vm5819, %v5821, %v5817
        %v5823 = vmul.f32 %v5733, %v5822
        %v5824 = vrcp.pop %v5767
        %v5825 = vmul.f32 %v5767, %v5824
        %v5826 = vsub.f32 1.0, %v5825
        %v5827 = vmul.f32 %v5824, %v5826
        %v5828 = vadd.f32 %v5824, %v5827
        %vm5829 = vweird.f32 %v5767
        %vm5830 = vweird.f32 %v5824
        %vm5831 = vmor %vm5829, %vm5830
        %v5832 = vsel %vm5831, %v5824, %v5828
        %v5833 = vand.u32 2147483647, %v5767
        %vm5834 = vcmp.eq.f32.partialorder %v5833, 8.507059e+37
        %v5835 = vand.u32 %v5767, 2147483648
        %v5836 = vor.u32 1.1754944e-38, %v5835
        %v5837 = vsel %vm5834, %v5836, %v5832
        %v5838 = vmul.f32 %v5735, %v5837
        %v5839 = vrcp.pop %v5769
        %v5840 = vmul.f32 %v5769, %v5839
        %v5841 = vsub.f32 1.0, %v5840
        %v5842 = vmul.f32 %v5839, %v5841
        %v5843 = vadd.f32 %v5839, %v5842
        %vm5844 = vweird.f32 %v5769
        %vm5845 = vweird.f32 %v5839
        %vm5846 = vmor %vm5844, %vm5845
        %v5847 = vsel %vm5846, %v5839, %v5843
        %v5848 = vand.u32 2147483647, %v5769
        %vm5849 = vcmp.eq.f32.partialorder %v5848, 8.507059e+37
        %v5850 = vand.u32 %v5769, 2147483648
        %v5851 = vor.u32 1.1754944e-38, %v5850
        %v5852 = vsel %vm5849, %v5851, %v5847
        %v5853 = vmul.f32 %v5737, %v5852
        %v5854 = vrcp.pop %v5771
        %v5855 = vmul.f32 %v5771, %v5854
        %v5856 = vsub.f32 1.0, %v5855
        %v5857 = vmul.f32 %v5854, %v5856
        %v5858 = vadd.f32 %v5854, %v5857
        %vm5859 = vweird.f32 %v5771
        %vm5860 = vweird.f32 %v5854
        %vm5861 = vmor %vm5859, %vm5860
        %v5862 = vsel %vm5861, %v5854, %v5858
        %v5863 = vand.u32 2147483647, %v5771
        %vm5864 = vcmp.eq.f32.partialorder %v5863, 8.507059e+37
        %v5865 = vand.u32 %v5771, 2147483648
        %v5866 = vor.u32 1.1754944e-38, %v5865
        %v5867 = vsel %vm5864, %v5866, %v5862
        %v5868 = vmul.f32 %v5739, %v5867
        %v5869 = vrcp.pop %v5773
        %v5870 = vmul.f32 %v5773, %v5869
        %v5871 = vsub.f32 1.0, %v5870
        %v5872 = vmul.f32 %v5869, %v5871
        %v5873 = vadd.f32 %v5869, %v5872
        %vm5874 = vweird.f32 %v5773
        %vm5875 = vweird.f32 %v5869
        %vm5876 = vmor %vm5874, %vm5875
        %v5877 = vsel %vm5876, %v5869, %v5873
        %v5878 = vand.u32 2147483647, %v5773
        %vm5879 = vcmp.eq.f32.partialorder %v5878, 8.507059e+37
        %v5880 = vand.u32 %v5773, 2147483648
        %v5881 = vor.u32 1.1754944e-38, %v5880
        %v5882 = vsel %vm5879, %v5881, %v5877
        %v5883 = vmul.f32 %v5741, %v5882
        %v5884 = vrcp.pop %v5775
        %v5885 = vmul.f32 %v5775, %v5884
        %v5886 = vsub.f32 1.0, %v5885
        %v5887 = vmul.f32 %v5884, %v5886
        %v5888 = vadd.f32 %v5884, %v5887
        %vm5889 = vweird.f32 %v5775
        %vm5890 = vweird.f32 %v5884
        %vm5891 = vmor %vm5889, %vm5890
        %v5892 = vsel %vm5891, %v5884, %v5888
        %v5893 = vand.u32 2147483647, %v5775
        %vm5894 = vcmp.eq.f32.partialorder %v5893, 8.507059e+37
        %v5895 = vand.u32 %v5775, 2147483648
        %v5896 = vor.u32 1.1754944e-38, %v5895
        %v5897 = vsel %vm5894, %v5896, %v5892
        %v5898 = vmul.f32 %v5743, %v5897
        %v5899 = vrcp.pop %v5777
        %v5900 = vmul.f32 %v5777, %v5899
        %v5901 = vsub.f32 1.0, %v5900
        %v5902 = vmul.f32 %v5899, %v5901
        %v5903 = vadd.f32 %v5899, %v5902
        %vm5904 = vweird.f32 %v5777
        %vm5905 = vweird.f32 %v5899
        %vm5906 = vmor %vm5904, %vm5905
        %v5907 = vsel %vm5906, %v5899, %v5903
        %v5908 = vand.u32 2147483647, %v5777
        %vm5909 = vcmp.eq.f32.partialorder %v5908, 8.507059e+37
        %v5910 = vand.u32 %v5777, 2147483648
        %v5911 = vor.u32 1.1754944e-38, %v5910
        %v5912 = vsel %vm5909, %v5911, %v5907
        %v5913 = vmul.f32 %v5745, %v5912
        %v5914 = vrcp.pop %v5779
        %v5915 = vmul.f32 %v5779, %v5914
        %v5916 = vsub.f32 1.0, %v5915
        %v5917 = vmul.f32 %v5914, %v5916
        %v5918 = vadd.f32 %v5914, %v5917
        %vm5919 = vweird.f32 %v5779
        %vm5920 = vweird.f32 %v5914
        %vm5921 = vmor %vm5919, %vm5920
        %v5922 = vsel %vm5921, %v5914, %v5918
        %v5923 = vand.u32 2147483647, %v5779
        %vm5924 = vcmp.eq.f32.partialorder %v5923, 8.507059e+37
        %v5925 = vand.u32 %v5779, 2147483648
        %v5926 = vor.u32 1.1754944e-38, %v5925
        %v5927 = vsel %vm5924, %v5926, %v5922
        %v5928 = vmul.f32 %v5747, %v5927
        %v5929 = vrcp.pop %v5781
        %v5930 = vmul.f32 %v5781, %v5929
        %v5931 = vsub.f32 1.0, %v5930
        %v5932 = vmul.f32 %v5929, %v5931
        %v5933 = vadd.f32 %v5929, %v5932
        %vm5934 = vweird.f32 %v5781
        %vm5935 = vweird.f32 %v5929
        %vm5936 = vmor %vm5934, %vm5935
        %v5937 = vsel %vm5936, %v5929, %v5933
        %v5938 = vand.u32 2147483647, %v5781
        %vm5939 = vcmp.eq.f32.partialorder %v5938, 8.507059e+37
        %v5940 = vand.u32 %v5781, 2147483648
        %v5941 = vor.u32 1.1754944e-38, %v5940
        %v5942 = vsel %vm5939, %v5941, %v5937
        %v5943 = vmul.f32 %v5749, %v5942
        %v5944 = vrcp.pop %v5783
        %v5945 = vmul.f32 %v5783, %v5944
        %v5946 = vsub.f32 1.0, %v5945
        %v5947 = vmul.f32 %v5944, %v5946
        %v5948 = vadd.f32 %v5944, %v5947
        %vm5949 = vweird.f32 %v5783
        %vm5950 = vweird.f32 %v5944
        %vm5951 = vmor %vm5949, %vm5950
        %v5952 = vsel %vm5951, %v5944, %v5948
        %v5953 = vand.u32 2147483647, %v5783
        %vm5954 = vcmp.eq.f32.partialorder %v5953, 8.507059e+37
        %v5955 = vand.u32 %v5783, 2147483648
        %v5956 = vor.u32 1.1754944e-38, %v5955
        %v5957 = vsel %vm5954, %v5956, %v5952
        %v5958 = vmul.f32 %v5751, %v5957
        %v5959 = vrcp.pop %v5785
        %v5960 = vmul.f32 %v5785, %v5959
        %v5961 = vsub.f32 1.0, %v5960
        %v5962 = vmul.f32 %v5959, %v5961
        %v5963 = vadd.f32 %v5959, %v5962
        %vm5964 = vweird.f32 %v5785
        %vm5965 = vweird.f32 %v5959
        %vm5966 = vmor %vm5964, %vm5965
        %v5967 = vsel %vm5966, %v5959, %v5963
        %v5968 = vand.u32 2147483647, %v5785
        %vm5969 = vcmp.eq.f32.partialorder %v5968, 8.507059e+37
        %v5970 = vand.u32 %v5785, 2147483648
        %v5971 = vor.u32 1.1754944e-38, %v5970
        %v5972 = vsel %vm5969, %v5971, %v5967
        %v5973 = vmul.f32 %v5753, %v5972
        %v5974 = vrcp.pop %v5787
        %v5975 = vmul.f32 %v5787, %v5974
        %v5976 = vsub.f32 1.0, %v5975
        %v5977 = vmul.f32 %v5974, %v5976
        %v5978 = vadd.f32 %v5974, %v5977
        %vm5979 = vweird.f32 %v5787
        %vm5980 = vweird.f32 %v5974
        %vm5981 = vmor %vm5979, %vm5980
        %v5982 = vsel %vm5981, %v5974, %v5978
        %v5983 = vand.u32 2147483647, %v5787
        %vm5984 = vcmp.eq.f32.partialorder %v5983, 8.507059e+37
        %v5985 = vand.u32 %v5787, 2147483648
        %v5986 = vor.u32 1.1754944e-38, %v5985
        %v5987 = vsel %vm5984, %v5986, %v5982
        %v5988 = vmul.f32 %v5755, %v5987
        %v5989 = vrcp.pop %v5789
        %v5990 = vmul.f32 %v5789, %v5989
        %v5991 = vsub.f32 1.0, %v5990
        %v5992 = vmul.f32 %v5989, %v5991
        %v5993 = vadd.f32 %v5989, %v5992
        %vm5994 = vweird.f32 %v5789
        %vm5995 = vweird.f32 %v5989
        %vm5996 = vmor %vm5994, %vm5995
        %v5997 = vsel %vm5996, %v5989, %v5993
        %v5998 = vand.u32 2147483647, %v5789
        %vm5999 = vcmp.eq.f32.partialorder %v5998, 8.507059e+37
        %v6000 = vand.u32 %v5789, 2147483648
        %v6001 = vor.u32 1.1754944e-38, %v6000
        %v6002 = vsel %vm5999, %v6001, %v5997
        %v6003 = vmul.f32 %v5757, %v6002
        %v6004 = vrcp.pop %v5791
        %v6005 = vmul.f32 %v5791, %v6004
        %v6006 = vsub.f32 1.0, %v6005
        %v6007 = vmul.f32 %v6004, %v6006
        %v6008 = vadd.f32 %v6004, %v6007
        %vm6009 = vweird.f32 %v5791
        %vm6010 = vweird.f32 %v6004
        %vm6011 = vmor %vm6009, %vm6010
        %v6012 = vsel %vm6011, %v6004, %v6008
        %v6013 = vand.u32 2147483647, %v5791
        %vm6014 = vcmp.eq.f32.partialorder %v6013, 8.507059e+37
        %v6015 = vand.u32 %v5791, 2147483648
        %v6016 = vor.u32 1.1754944e-38, %v6015
        %v6017 = vsel %vm6014, %v6016, %v6012
        %v6018 = vmul.f32 %v5759, %v6017
        %v6019 = vrcp.pop %v5793
        %v6020 = vmul.f32 %v5793, %v6019
        %v6021 = vsub.f32 1.0, %v6020
        %v6022 = vmul.f32 %v6019, %v6021
        %v6023 = vadd.f32 %v6019, %v6022
        %vm6024 = vweird.f32 %v5793
        %vm6025 = vweird.f32 %v6019
        %vm6026 = vmor %vm6024, %vm6025
        %v6027 = vsel %vm6026, %v6019, %v6023
        %v6028 = vand.u32 2147483647, %v5793
        %vm6029 = vcmp.eq.f32.partialorder %v6028, 8.507059e+37
        %v6030 = vand.u32 %v5793, 2147483648
        %v6031 = vor.u32 1.1754944e-38, %v6030
        %v6032 = vsel %vm6029, %v6031, %v6027
        %v6033 = vmul.f32 %v5761, %v6032
        %6034 = vrot.lane.b32.xlu0 %v771, 16
        %v6035 = vpop.permute.xlu0 %6034
        %6036 = vrot.lane.b32.xlu0 %v774, 16
        %v6037 = vpop.permute.xlu0 %6036
        %6038 = vrot.lane.b32.xlu0 %v777, 16
        %v6039 = vpop.permute.xlu0 %6038
        %6040 = vrot.lane.b32.xlu0 %v780, 16
        %v6041 = vpop.permute.xlu0 %6040
        %6042 = vrot.lane.b32.xlu0 %v783, 16
        %v6043 = vpop.permute.xlu0 %6042
        %6044 = vrot.lane.b32.xlu0 %v786, 16
        %v6045 = vpop.permute.xlu0 %6044
        %6046 = vrot.lane.b32.xlu0 %v789, 16
        %v6047 = vpop.permute.xlu0 %6046
        %6048 = vrot.lane.b32.xlu0 %v792, 16
        %v6049 = vpop.permute.xlu0 %6048
        %6050 = vrot.lane.b32.xlu0 %v795, 16
        %v6051 = vpop.permute.xlu0 %6050
        %6052 = vrot.lane.b32.xlu0 %v798, 16
        %v6053 = vpop.permute.xlu0 %6052
        %6054 = vrot.lane.b32.xlu0 %v801, 16
        %v6055 = vpop.permute.xlu0 %6054
        %6056 = vrot.lane.b32.xlu0 %v804, 16
        %v6057 = vpop.permute.xlu0 %6056
        %6058 = vrot.lane.b32.xlu0 %v807, 16
        %v6059 = vpop.permute.xlu0 %6058
        %6060 = vrot.lane.b32.xlu0 %v810, 16
        %v6061 = vpop.permute.xlu0 %6060
        %6062 = vrot.lane.b32.xlu0 %v813, 16
        %v6063 = vpop.permute.xlu0 %6062
        %6064 = vrot.lane.b32.xlu0 %v816, 16
        %v6065 = vpop.permute.xlu0 %6064
        %6082 = vmatpush.msra.mxu0 %v6065
        %6083 = vmatpush.msra.mxu0 %v6063
        %6084 = vmatpush.msra.mxu0 %v6061
        %6085 = vmatpush.msra.mxu0 %v6059
        %6086 = vmatpush.msra.mxu0 %v6057
        %6087 = vmatpush.msra.mxu0 %v6055
        %6088 = vmatpush.msra.mxu0 %v6053
        %6089 = vmatpush.msra.mxu0 %v6051
        %6090 = vmatpush.msra.mxu0 %v6049
        %6091 = vmatpush.msra.mxu0 %v6047
        %6092 = vmatpush.msra.mxu0 %v6045
        %6093 = vmatpush.msra.mxu0 %v6043
        %6094 = vmatpush.msra.mxu0 %v6041
        %6095 = vmatpush.msra.mxu0 %v6039
        %6096 = vmatpush.msra.mxu0 %v6037
        %6097 = vmatpush.msra.mxu0 %v6035
        %6098 = vmatmul.f32.gmra.mxu0 %v5808
        %v6099 = vpop.f32.mrf.mxu0
        %v6100 = vadd.f32 0.0, %v6099
        %6101 = vmatmul.f32.gmra.mxu0 %v5823
        %v6102 = vpop.f32.mrf.mxu0
        %v6103 = vadd.f32 0.0, %v6102
        %6104 = vmatmul.f32.gmra.mxu0 %v5838
        %v6105 = vpop.f32.mrf.mxu0
        %v6106 = vadd.f32 0.0, %v6105
        %6107 = vmatmul.f32.gmra.mxu0 %v5853
        %v6108 = vpop.f32.mrf.mxu0
        %v6109 = vadd.f32 0.0, %v6108
        %6110 = vmatmul.f32.gmra.mxu0 %v5868
        %v6111 = vpop.f32.mrf.mxu0
        %v6112 = vadd.f32 0.0, %v6111
        %6113 = vmatmul.f32.gmra.mxu0 %v5883
        %v6114 = vpop.f32.mrf.mxu0
        %v6115 = vadd.f32 0.0, %v6114
        %6116 = vmatmul.f32.gmra.mxu0 %v5898
        %v6117 = vpop.f32.mrf.mxu0
        %v6118 = vadd.f32 0.0, %v6117
        %6119 = vmatmul.f32.gmra.mxu0 %v5913
        %v6120 = vpop.f32.mrf.mxu0
        %v6121 = vadd.f32 0.0, %v6120
        %6122 = vmatmul.f32.gmra.mxu0 %v5928
        %v6123 = vpop.f32.mrf.mxu0
        %v6124 = vadd.f32 0.0, %v6123
        %6125 = vmatmul.f32.gmra.mxu0 %v5943
        %v6126 = vpop.f32.mrf.mxu0
        %v6127 = vadd.f32 0.0, %v6126
        %6128 = vmatmul.f32.gmra.mxu0 %v5958
        %v6129 = vpop.f32.mrf.mxu0
        %v6130 = vadd.f32 0.0, %v6129
        %6131 = vmatmul.f32.gmra.mxu0 %v5973
        %v6132 = vpop.f32.mrf.mxu0
        %v6133 = vadd.f32 0.0, %v6132
        %6134 = vmatmul.f32.gmra.mxu0 %v5988
        %v6135 = vpop.f32.mrf.mxu0
        %v6136 = vadd.f32 0.0, %v6135
        %6137 = vmatmul.f32.gmra.mxu0 %v6003
        %v6138 = vpop.f32.mrf.mxu0
        %v6139 = vadd.f32 0.0, %v6138
        %6140 = vmatmul.f32.gmra.mxu0 %v6018
        %v6141 = vpop.f32.mrf.mxu0
        %v6142 = vadd.f32 0.0, %v6141
        %6143 = vmatmul.f32.gmra.mxu0 %v6033
        %v6144 = vpop.f32.mrf.mxu0
        %v6145 = vadd.f32 0.0, %v6144
        %6146 = vdwg.mxu0
        %6163 = vrot.lane.b32.xlu0 %v2056, 16
        %v6164 = vpop.permute.xlu0 %6163
        %6165 = vrot.lane.b32.xlu0 %v2059, 16
        %v6166 = vpop.permute.xlu0 %6165
        %6167 = vrot.lane.b32.xlu0 %v2062, 16
        %v6168 = vpop.permute.xlu0 %6167
        %6169 = vrot.lane.b32.xlu0 %v2065, 16
        %v6170 = vpop.permute.xlu0 %6169
        %6171 = vrot.lane.b32.xlu0 %v2068, 16
        %v6172 = vpop.permute.xlu0 %6171
        %6173 = vrot.lane.b32.xlu0 %v2071, 16
        %v6174 = vpop.permute.xlu0 %6173
        %6175 = vrot.lane.b32.xlu0 %v2074, 16
        %v6176 = vpop.permute.xlu0 %6175
        %6177 = vrot.lane.b32.xlu0 %v2077, 16
        %v6178 = vpop.permute.xlu0 %6177
        %6179 = vrot.lane.b32.xlu0 %v2080, 16
        %v6180 = vpop.permute.xlu0 %6179
        %6181 = vrot.lane.b32.xlu0 %v2083, 16
        %v6182 = vpop.permute.xlu0 %6181
        %6183 = vrot.lane.b32.xlu0 %v2086, 16
        %v6184 = vpop.permute.xlu0 %6183
        %6185 = vrot.lane.b32.xlu0 %v2089, 16
        %v6186 = vpop.permute.xlu0 %6185
        %6187 = vrot.lane.b32.xlu0 %v2092, 16
        %v6188 = vpop.permute.xlu0 %6187
        %6189 = vrot.lane.b32.xlu0 %v2095, 16
        %v6190 = vpop.permute.xlu0 %6189
        %6191 = vrot.lane.b32.xlu0 %v2098, 16
        %v6192 = vpop.permute.xlu0 %6191
        %6193 = vrot.lane.b32.xlu0 %v2101, 16
        %v6194 = vpop.permute.xlu0 %6193
        %6227 = vrot.lane.b32.xlu0 %v2730, 32
        %v6228 = vpop.permute.xlu0 %6227
        %6229 = vrot.lane.b32.xlu0 %v2733, 32
        %v6230 = vpop.permute.xlu0 %6229
        %6231 = vrot.lane.b32.xlu0 %v2736, 32
        %v6232 = vpop.permute.xlu0 %6231
        %6233 = vrot.lane.b32.xlu0 %v2739, 32
        %v6234 = vpop.permute.xlu0 %6233
        %6235 = vrot.lane.b32.xlu0 %v2742, 32
        %v6236 = vpop.permute.xlu0 %6235
        %6237 = vrot.lane.b32.xlu0 %v2745, 32
        %v6238 = vpop.permute.xlu0 %6237
        %6239 = vrot.lane.b32.xlu0 %v2748, 32
        %v6240 = vpop.permute.xlu0 %6239
        %6241 = vrot.lane.b32.xlu0 %v2751, 32
        %v6242 = vpop.permute.xlu0 %6241
        %6243 = vrot.lane.b32.xlu0 %v2754, 32
        %v6244 = vpop.permute.xlu0 %6243
        %6245 = vrot.lane.b32.xlu0 %v2757, 32
        %v6246 = vpop.permute.xlu0 %6245
        %6247 = vrot.lane.b32.xlu0 %v2760, 32
        %v6248 = vpop.permute.xlu0 %6247
        %6249 = vrot.lane.b32.xlu0 %v2763, 32
        %v6250 = vpop.permute.xlu0 %6249
        %6251 = vrot.lane.b32.xlu0 %v2766, 32
        %v6252 = vpop.permute.xlu0 %6251
        %6253 = vrot.lane.b32.xlu0 %v2769, 32
        %v6254 = vpop.permute.xlu0 %6253
        %6255 = vrot.lane.b32.xlu0 %v2772, 32
        %v6256 = vpop.permute.xlu0 %6255
        %6257 = vrot.lane.b32.xlu0 %v2775, 32
        %v6258 = vpop.permute.xlu0 %6257
        %6291 = vrot.lane.b32.xlu0 %v3404, 48
        %v6292 = vpop.permute.xlu0 %6291
        %6293 = vrot.lane.b32.xlu0 %v3407, 48
        %v6294 = vpop.permute.xlu0 %6293
        %6295 = vrot.lane.b32.xlu0 %v3410, 48
        %v6296 = vpop.permute.xlu0 %6295
        %6297 = vrot.lane.b32.xlu0 %v3413, 48
        %v6298 = vpop.permute.xlu0 %6297
        %6299 = vrot.lane.b32.xlu0 %v3416, 48
        %v6300 = vpop.permute.xlu0 %6299
        %6301 = vrot.lane.b32.xlu0 %v3419, 48
        %v6302 = vpop.permute.xlu0 %6301
        %6303 = vrot.lane.b32.xlu0 %v3422, 48
        %v6304 = vpop.permute.xlu0 %6303
        %6305 = vrot.lane.b32.xlu0 %v3425, 48
        %v6306 = vpop.permute.xlu0 %6305
        %6307 = vrot.lane.b32.xlu0 %v3428, 48
        %v6308 = vpop.permute.xlu0 %6307
        %6309 = vrot.lane.b32.xlu0 %v3431, 48
        %v6310 = vpop.permute.xlu0 %6309
        %6311 = vrot.lane.b32.xlu0 %v3434, 48
        %v6312 = vpop.permute.xlu0 %6311
        %6313 = vrot.lane.b32.xlu0 %v3437, 48
        %v6314 = vpop.permute.xlu0 %6313
        %6315 = vrot.lane.b32.xlu0 %v3440, 48
        %v6316 = vpop.permute.xlu0 %6315
        %6317 = vrot.lane.b32.xlu0 %v3443, 48
        %v6318 = vpop.permute.xlu0 %6317
        %6319 = vrot.lane.b32.xlu0 %v3446, 48
        %v6320 = vpop.permute.xlu0 %6319
        %6321 = vrot.lane.b32.xlu0 %v3449, 48
        %v6322 = vpop.permute.xlu0 %6321
        %6355 = vrot.lane.b32.xlu0 %v4078, 64
        %v6356 = vpop.permute.xlu0 %6355
        %6357 = vrot.lane.b32.xlu0 %v4081, 64
        %v6358 = vpop.permute.xlu0 %6357
        %6359 = vrot.lane.b32.xlu0 %v4084, 64
        %v6360 = vpop.permute.xlu0 %6359
        %6361 = vrot.lane.b32.xlu0 %v4087, 64
        %v6362 = vpop.permute.xlu0 %6361
        %6363 = vrot.lane.b32.xlu0 %v4090, 64
        %v6364 = vpop.permute.xlu0 %6363
        %6365 = vrot.lane.b32.xlu0 %v4093, 64
        %v6366 = vpop.permute.xlu0 %6365
        %6367 = vrot.lane.b32.xlu0 %v4096, 64
        %v6368 = vpop.permute.xlu0 %6367
        %6369 = vrot.lane.b32.xlu0 %v4099, 64
        %v6370 = vpop.permute.xlu0 %6369
        %6371 = vrot.lane.b32.xlu0 %v4102, 64
        %v6372 = vpop.permute.xlu0 %6371
        %6373 = vrot.lane.b32.xlu0 %v4105, 64
        %v6374 = vpop.permute.xlu0 %6373
        %6375 = vrot.lane.b32.xlu0 %v4108, 64
        %v6376 = vpop.permute.xlu0 %6375
        %6377 = vrot.lane.b32.xlu0 %v4111, 64
        %v6378 = vpop.permute.xlu0 %6377
        %6379 = vrot.lane.b32.xlu0 %v4114, 64
        %v6380 = vpop.permute.xlu0 %6379
        %6381 = vrot.lane.b32.xlu0 %v4117, 64
        %v6382 = vpop.permute.xlu0 %6381
        %6383 = vrot.lane.b32.xlu0 %v4120, 64
        %v6384 = vpop.permute.xlu0 %6383
        %6385 = vrot.lane.b32.xlu0 %v4123, 64
        %v6386 = vpop.permute.xlu0 %6385
        %6419 = vrot.lane.b32.xlu0 %v4752, 80
        %v6420 = vpop.permute.xlu0 %6419
        %6421 = vrot.lane.b32.xlu0 %v4755, 80
        %v6422 = vpop.permute.xlu0 %6421
        %6423 = vrot.lane.b32.xlu0 %v4758, 80
        %v6424 = vpop.permute.xlu0 %6423
        %6425 = vrot.lane.b32.xlu0 %v4761, 80
        %v6426 = vpop.permute.xlu0 %6425
        %6427 = vrot.lane.b32.xlu0 %v4764, 80
        %v6428 = vpop.permute.xlu0 %6427
        %6429 = vrot.lane.b32.xlu0 %v4767, 80
        %v6430 = vpop.permute.xlu0 %6429
        %6431 = vrot.lane.b32.xlu0 %v4770, 80
        %v6432 = vpop.permute.xlu0 %6431
        %6433 = vrot.lane.b32.xlu0 %v4773, 80
        %v6434 = vpop.permute.xlu0 %6433
        %6435 = vrot.lane.b32.xlu0 %v4776, 80
        %v6436 = vpop.permute.xlu0 %6435
        %6437 = vrot.lane.b32.xlu0 %v4779, 80
        %v6438 = vpop.permute.xlu0 %6437
        %6439 = vrot.lane.b32.xlu0 %v4782, 80
        %v6440 = vpop.permute.xlu0 %6439
        %6441 = vrot.lane.b32.xlu0 %v4785, 80
        %v6442 = vpop.permute.xlu0 %6441
        %6443 = vrot.lane.b32.xlu0 %v4788, 80
        %v6444 = vpop.permute.xlu0 %6443
        %6445 = vrot.lane.b32.xlu0 %v4791, 80
        %v6446 = vpop.permute.xlu0 %6445
        %6447 = vrot.lane.b32.xlu0 %v4794, 80
        %v6448 = vpop.permute.xlu0 %6447
        %6449 = vrot.lane.b32.xlu0 %v4797, 80
        %v6450 = vpop.permute.xlu0 %6449
        %6483 = vrot.lane.b32.xlu0 %v5426, 96
        %v6484 = vpop.permute.xlu0 %6483
        %6485 = vrot.lane.b32.xlu0 %v5429, 96
        %v6486 = vpop.permute.xlu0 %6485
        %6487 = vrot.lane.b32.xlu0 %v5432, 96
        %v6488 = vpop.permute.xlu0 %6487
        %6489 = vrot.lane.b32.xlu0 %v5435, 96
        %v6490 = vpop.permute.xlu0 %6489
        %6491 = vrot.lane.b32.xlu0 %v5438, 96
        %v6492 = vpop.permute.xlu0 %6491
        %6493 = vrot.lane.b32.xlu0 %v5441, 96
        %v6494 = vpop.permute.xlu0 %6493
        %6495 = vrot.lane.b32.xlu0 %v5444, 96
        %v6496 = vpop.permute.xlu0 %6495
        %6497 = vrot.lane.b32.xlu0 %v5447, 96
        %v6498 = vpop.permute.xlu0 %6497
        %6499 = vrot.lane.b32.xlu0 %v5450, 96
        %v6500 = vpop.permute.xlu0 %6499
        %6501 = vrot.lane.b32.xlu0 %v5453, 96
        %v6502 = vpop.permute.xlu0 %6501
        %6503 = vrot.lane.b32.xlu0 %v5456, 96
        %v6504 = vpop.permute.xlu0 %6503
        %6505 = vrot.lane.b32.xlu0 %v5459, 96
        %v6506 = vpop.permute.xlu0 %6505
        %6507 = vrot.lane.b32.xlu0 %v5462, 96
        %v6508 = vpop.permute.xlu0 %6507
        %6509 = vrot.lane.b32.xlu0 %v5465, 96
        %v6510 = vpop.permute.xlu0 %6509
        %6511 = vrot.lane.b32.xlu0 %v5468, 96
        %v6512 = vpop.permute.xlu0 %6511
        %6513 = vrot.lane.b32.xlu0 %v5471, 96
        %v6514 = vpop.permute.xlu0 %6513
        %6547 = vrot.lane.b32.xlu0 %v6100, 112
        %v6548 = vpop.permute.xlu0 %6547
        %6549 = vrot.lane.b32.xlu0 %v6103, 112
        %v6550 = vpop.permute.xlu0 %6549
        %6551 = vrot.lane.b32.xlu0 %v6106, 112
        %v6552 = vpop.permute.xlu0 %6551
        %6553 = vrot.lane.b32.xlu0 %v6109, 112
        %v6554 = vpop.permute.xlu0 %6553
        %6555 = vrot.lane.b32.xlu0 %v6112, 112
        %v6556 = vpop.permute.xlu0 %6555
        %6557 = vrot.lane.b32.xlu0 %v6115, 112
        %v6558 = vpop.permute.xlu0 %6557
        %6559 = vrot.lane.b32.xlu0 %v6118, 112
        %v6560 = vpop.permute.xlu0 %6559
        %6561 = vrot.lane.b32.xlu0 %v6121, 112
        %v6562 = vpop.permute.xlu0 %6561
        %6563 = vrot.lane.b32.xlu0 %v6124, 112
        %v6564 = vpop.permute.xlu0 %6563
        %6565 = vrot.lane.b32.xlu0 %v6127, 112
        %v6566 = vpop.permute.xlu0 %6565
        %6567 = vrot.lane.b32.xlu0 %v6130, 112
        %v6568 = vpop.permute.xlu0 %6567
        %6569 = vrot.lane.b32.xlu0 %v6133, 112
        %v6570 = vpop.permute.xlu0 %6569
        %6571 = vrot.lane.b32.xlu0 %v6136, 112
        %v6572 = vpop.permute.xlu0 %6571
        %6573 = vrot.lane.b32.xlu0 %v6139, 112
        %v6574 = vpop.permute.xlu0 %6573
        %6575 = vrot.lane.b32.xlu0 %v6142, 112
        %v6576 = vpop.permute.xlu0 %6575
        %6577 = vrot.lane.b32.xlu0 %v6145, 112
        %v6578 = vpop.permute.xlu0 %6577
        %v6595 = vsel %vm818, %v1366, %v6164
        %v6596 = vsel %vm818, %v1369, %v6166
        %v6597 = vsel %vm818, %v1372, %v6168
        %v6598 = vsel %vm818, %v1375, %v6170
        %v6599 = vsel %vm818, %v1378, %v6172
        %v6600 = vsel %vm818, %v1381, %v6174
        %v6601 = vsel %vm818, %v1384, %v6176
        %v6602 = vsel %vm818, %v1387, %v6178
        %v6603 = vsel %vm818, %v1390, %v6180
        %v6604 = vsel %vm818, %v1393, %v6182
        %v6605 = vsel %vm818, %v1396, %v6184
        %v6606 = vsel %vm818, %v1399, %v6186
        %v6607 = vsel %vm818, %v1402, %v6188
        %v6608 = vsel %vm818, %v1405, %v6190
        %v6609 = vsel %vm818, %v1408, %v6192
        %v6610 = vsel %vm818, %v1411, %v6194
        %vm6611 = vcmask 261120
        %v6612 = vsel %vm6611, %v6595, %v6228
        %v6613 = vsel %vm6611, %v6596, %v6230
        %v6614 = vsel %vm6611, %v6597, %v6232
        %v6615 = vsel %vm6611, %v6598, %v6234
        %v6616 = vsel %vm6611, %v6599, %v6236
        %v6617 = vsel %vm6611, %v6600, %v6238
        %v6618 = vsel %vm6611, %v6601, %v6240
        %v6619 = vsel %vm6611, %v6602, %v6242
        %v6620 = vsel %vm6611, %v6603, %v6244
        %v6621 = vsel %vm6611, %v6604, %v6246
        %v6622 = vsel %vm6611, %v6605, %v6248
        %v6623 = vsel %vm6611, %v6606, %v6250
        %v6624 = vsel %vm6611, %v6607, %v6252
        %v6625 = vsel %vm6611, %v6608, %v6254
        %v6626 = vsel %vm6611, %v6609, %v6256
        %v6627 = vsel %vm6611, %v6610, %v6258
        %vm6628 = vcmask 392192
        %v6629 = vsel %vm6628, %v6612, %v6292
        %v6630 = vsel %vm6628, %v6613, %v6294
        %v6631 = vsel %vm6628, %v6614, %v6296
        %v6632 = vsel %vm6628, %v6615, %v6298
        %v6633 = vsel %vm6628, %v6616, %v6300
        %v6634 = vsel %vm6628, %v6617, %v6302
        %v6635 = vsel %vm6628, %v6618, %v6304
        %v6636 = vsel %vm6628, %v6619, %v6306
        %v6637 = vsel %vm6628, %v6620, %v6308
        %v6638 = vsel %vm6628, %v6621, %v6310
        %v6639 = vsel %vm6628, %v6622, %v6312
        %v6640 = vsel %vm6628, %v6623, %v6314
        %v6641 = vsel %vm6628, %v6624, %v6316
        %v6642 = vsel %vm6628, %v6625, %v6318
        %v6643 = vsel %vm6628, %v6626, %v6320
        %v6644 = vsel %vm6628, %v6627, %v6322
        %vm6645 = vcmask 523264
        %v6646 = vsel %vm6645, %v6629, %v6356
        %v6647 = vsel %vm6645, %v6630, %v6358
        %v6648 = vsel %vm6645, %v6631, %v6360
        %v6649 = vsel %vm6645, %v6632, %v6362
        %v6650 = vsel %vm6645, %v6633, %v6364
        %v6651 = vsel %vm6645, %v6634, %v6366
        %v6652 = vsel %vm6645, %v6635, %v6368
        %v6653 = vsel %vm6645, %v6636, %v6370
        %v6654 = vsel %vm6645, %v6637, %v6372
        %v6655 = vsel %vm6645, %v6638, %v6374
        %v6656 = vsel %vm6645, %v6639, %v6376
        %v6657 = vsel %vm6645, %v6640, %v6378
        %v6658 = vsel %vm6645, %v6641, %v6380
        %v6659 = vsel %vm6645, %v6642, %v6382
        %v6660 = vsel %vm6645, %v6643, %v6384
        %v6661 = vsel %vm6645, %v6644, %v6386
        %vm6662 = vcmask 654336
        %v6663 = vsel %vm6662, %v6646, %v6420
        %v6664 = vsel %vm6662, %v6647, %v6422
        %v6665 = vsel %vm6662, %v6648, %v6424
        %v6666 = vsel %vm6662, %v6649, %v6426
        %v6667 = vsel %vm6662, %v6650, %v6428
        %v6668 = vsel %vm6662, %v6651, %v6430
        %v6669 = vsel %vm6662, %v6652, %v6432
        %v6670 = vsel %vm6662, %v6653, %v6434
        %v6671 = vsel %vm6662, %v6654, %v6436
        %v6672 = vsel %vm6662, %v6655, %v6438
        %v6673 = vsel %vm6662, %v6656, %v6440
        %v6674 = vsel %vm6662, %v6657, %v6442
        %v6675 = vsel %vm6662, %v6658, %v6444
        %v6676 = vsel %vm6662, %v6659, %v6446
        %v6677 = vsel %vm6662, %v6660, %v6448
        %v6678 = vsel %vm6662, %v6661, %v6450
        %vm6679 = vcmask 785408
        %v6680 = vsel %vm6679, %v6663, %v6484
        %v6681 = vsel %vm6679, %v6664, %v6486
        %v6682 = vsel %vm6679, %v6665, %v6488
        %v6683 = vsel %vm6679, %v6666, %v6490
        %v6684 = vsel %vm6679, %v6667, %v6492
        %v6685 = vsel %vm6679, %v6668, %v6494
        %v6686 = vsel %vm6679, %v6669, %v6496
        %v6687 = vsel %vm6679, %v6670, %v6498
        %v6688 = vsel %vm6679, %v6671, %v6500
        %v6689 = vsel %vm6679, %v6672, %v6502
        %v6690 = vsel %vm6679, %v6673, %v6504
        %v6691 = vsel %vm6679, %v6674, %v6506
        %v6692 = vsel %vm6679, %v6675, %v6508
        %v6693 = vsel %vm6679, %v6676, %v6510
        %v6694 = vsel %vm6679, %v6677, %v6512
        %v6695 = vsel %vm6679, %v6678, %v6514
        %vm6696 = vcmask 916480
        %v6697 = vsel %vm6696, %v6680, %v6548
        %v6698 = vsel %vm6696, %v6681, %v6550
        %v6699 = vsel %vm6696, %v6682, %v6552
        %v6700 = vsel %vm6696, %v6683, %v6554
        %v6701 = vsel %vm6696, %v6684, %v6556
        %v6702 = vsel %vm6696, %v6685, %v6558
        %v6703 = vsel %vm6696, %v6686, %v6560
        %v6704 = vsel %vm6696, %v6687, %v6562
        %v6705 = vsel %vm6696, %v6688, %v6564
        %v6706 = vsel %vm6696, %v6689, %v6566
        %v6707 = vsel %vm6696, %v6690, %v6568
        %v6708 = vsel %vm6696, %v6691, %v6570
        %v6709 = vsel %vm6696, %v6692, %v6572
        %v6710 = vsel %vm6696, %v6693, %v6574
        %v6711 = vsel %vm6696, %v6694, %v6576
        %v6712 = vsel %vm6696, %v6695, %v6578
        %v6713 = vld [vmem:[#allocation13] sm:$0xff]
        %v6714 = vld [vmem:[#allocation13 + $0x8] sm:$0xff]
        %v6715 = vld [vmem:[#allocation13 + $0x10] sm:$0xff]
        %v6716 = vld [vmem:[#allocation13 + $0x18] sm:$0xff]
        %v6717 = vld [vmem:[#allocation13 + $0x20] sm:$0xff]
        %v6718 = vld [vmem:[#allocation13 + $0x28] sm:$0xff]
        %v6719 = vld [vmem:[#allocation13 + $0x30] sm:$0xff]
        %v6720 = vld [vmem:[#allocation13 + $0x38] sm:$0xff]
        %v6721 = vld [vmem:[#allocation13 + $0x40] sm:$0xff]
        %v6722 = vld [vmem:[#allocation13 + $0x48] sm:$0xff]
        %v6723 = vld [vmem:[#allocation13 + $0x50] sm:$0xff]
        %v6724 = vld [vmem:[#allocation13 + $0x58] sm:$0xff]
        %v6725 = vld [vmem:[#allocation13 + $0x60] sm:$0xff]
        %v6726 = vld [vmem:[#allocation13 + $0x68] sm:$0xff]
        %v6727 = vld [vmem:[#allocation13 + $0x70] sm:$0xff]
        %v6728 = vld [vmem:[#allocation13 + $0x78] sm:$0xff]
        %v6729 = vld [vmem:[%s7] sm:$0x1]
        %v6731 = vperm.slane %v6729, 0
        %6733 = vmatpush.msra.mxu0 %v6728
        %6734 = vmatpush.msra.mxu0 %v6727
        %6735 = vmatpush.msra.mxu0 %v6726
        %6736 = vmatpush.msra.mxu0 %v6725
        %6737 = vmatpush.msra.mxu0 %v6724
        %6738 = vmatpush.msra.mxu0 %v6723
        %6739 = vmatpush.msra.mxu0 %v6722
        %6740 = vmatpush.msra.mxu0 %v6721
        %6741 = vmatpush.msra.mxu0 %v6720
        %6742 = vmatpush.msra.mxu0 %v6719
        %6743 = vmatpush.msra.mxu0 %v6718
        %6744 = vmatpush.msra.mxu0 %v6717
        %6745 = vmatpush.msra.mxu0 %v6716
        %6746 = vmatpush.msra.mxu0 %v6715
        %6747 = vmatpush.msra.mxu0 %v6714
        %6748 = vmatpush.msra.mxu0 %v6713
        %6749 = vmatmul.f32.gmra.mxu0 %v6697
        %v6750 = vpop.f32.mrf.mxu0
        %v6751 = vadd.f32 %v6731, %v6750
        %6752 = vmatmul.f32.gmra.mxu0 %v6698
        %v6753 = vpop.f32.mrf.mxu0
        %v6754 = vadd.f32 %v6731, %v6753
        %6755 = vmatmul.f32.gmra.mxu0 %v6699
        %v6756 = vpop.f32.mrf.mxu0
        %v6757 = vadd.f32 %v6731, %v6756
        %6758 = vmatmul.f32.gmra.mxu0 %v6700
        %v6759 = vpop.f32.mrf.mxu0
        %v6760 = vadd.f32 %v6731, %v6759
        %6761 = vmatmul.f32.gmra.mxu0 %v6701
        %v6762 = vpop.f32.mrf.mxu0
        %v6763 = vadd.f32 %v6731, %v6762
        %6764 = vmatmul.f32.gmra.mxu0 %v6702
        %v6765 = vpop.f32.mrf.mxu0
        %v6766 = vadd.f32 %v6731, %v6765
        %6767 = vmatmul.f32.gmra.mxu0 %v6703
        %v6768 = vpop.f32.mrf.mxu0
        %v6769 = vadd.f32 %v6731, %v6768
        %6770 = vmatmul.f32.gmra.mxu0 %v6704
        %v6771 = vpop.f32.mrf.mxu0
        %v6772 = vadd.f32 %v6731, %v6771
        %6773 = vmatmul.f32.gmra.mxu0 %v6705
        %v6774 = vpop.f32.mrf.mxu0
        %v6775 = vadd.f32 %v6731, %v6774
        %6776 = vmatmul.f32.gmra.mxu0 %v6706
        %v6777 = vpop.f32.mrf.mxu0
        %v6778 = vadd.f32 %v6731, %v6777
        %6779 = vmatmul.f32.gmra.mxu0 %v6707
        %v6780 = vpop.f32.mrf.mxu0
        %v6781 = vadd.f32 %v6731, %v6780
        %6782 = vmatmul.f32.gmra.mxu0 %v6708
        %v6783 = vpop.f32.mrf.mxu0
        %v6784 = vadd.f32 %v6731, %v6783
        %6785 = vmatmul.f32.gmra.mxu0 %v6709
        %v6786 = vpop.f32.mrf.mxu0
        %v6787 = vadd.f32 %v6731, %v6786
        %6788 = vmatmul.f32.gmra.mxu0 %v6710
        %v6789 = vpop.f32.mrf.mxu0
        %v6790 = vadd.f32 %v6731, %v6789
        %6791 = vmatmul.f32.gmra.mxu0 %v6711
        %v6792 = vpop.f32.mrf.mxu0
        %v6793 = vadd.f32 %v6731, %v6792
        %6794 = vmatmul.f32.gmra.mxu0 %v6712
        %v6795 = vpop.f32.mrf.mxu0
        %v6796 = vadd.f32 %v6731, %v6795
        %6797 = vdwg.mxu0
        %v6798 = vadd.f32 %v6751, %v527
        %v6799 = vadd.f32 %v6754, %v528
        %v6800 = vadd.f32 %v6757, %v529
        %v6801 = vadd.f32 %v6760, %v530
        %v6802 = vadd.f32 %v6763, %v531
        %v6803 = vadd.f32 %v6766, %v532
        %v6804 = vadd.f32 %v6769, %v533
        %v6805 = vadd.f32 %v6772, %v534
        %v6806 = vadd.f32 %v6775, %v535
        %v6807 = vadd.f32 %v6778, %v536
        %v6808 = vadd.f32 %v6781, %v537
        %v6809 = vadd.f32 %v6784, %v538
        %v6810 = vadd.f32 %v6787, %v539
        %v6811 = vadd.f32 %v6790, %v540
        %v6812 = vadd.f32 %v6793, %v541
        %v6813 = vadd.f32 %v6796, %v542
        %6814 = vadd.xlane.f32.xlu0 %v6798
        %v6815 = vpop.xlane.xlu0 %6814
        %6816 = vadd.xlane.f32.xlu0 %v6799
        %v6817 = vpop.xlane.xlu0 %6816
        %6818 = vadd.xlane.f32.xlu0 %v6800
        %v6819 = vpop.xlane.xlu0 %6818
        %6820 = vadd.xlane.f32.xlu0 %v6801
        %v6821 = vpop.xlane.xlu0 %6820
        %6822 = vadd.xlane.f32.xlu0 %v6802
        %v6823 = vpop.xlane.xlu0 %6822
        %6824 = vadd.xlane.f32.xlu0 %v6803
        %v6825 = vpop.xlane.xlu0 %6824
        %6826 = vadd.xlane.f32.xlu0 %v6804
        %v6827 = vpop.xlane.xlu0 %6826
        %6828 = vadd.xlane.f32.xlu0 %v6805
        %v6829 = vpop.xlane.xlu0 %6828
        %6830 = vadd.xlane.f32.xlu0 %v6806
        %v6831 = vpop.xlane.xlu0 %6830
        %6832 = vadd.xlane.f32.xlu0 %v6807
        %v6833 = vpop.xlane.xlu0 %6832
        %6834 = vadd.xlane.f32.xlu0 %v6808
        %v6835 = vpop.xlane.xlu0 %6834
        %6836 = vadd.xlane.f32.xlu0 %v6809
        %v6837 = vpop.xlane.xlu0 %6836
        %6838 = vadd.xlane.f32.xlu0 %v6810
        %v6839 = vpop.xlane.xlu0 %6838
        %6840 = vadd.xlane.f32.xlu0 %v6811
        %v6841 = vpop.xlane.xlu0 %6840
        %6842 = vadd.xlane.f32.xlu0 %v6812
        %v6843 = vpop.xlane.xlu0 %6842
        %6844 = vadd.xlane.f32.xlu0 %v6813
        %v6845 = vpop.xlane.xlu0 %6844
        %v6846 = vrcp.pop 128.0
        %v6847 = vmul.f32 128.0, %v6846
        %v6848 = vsub.f32 1.0, %v6847
        %v6849 = vmul.f32 %v6846, %v6848
        %v6850 = vadd.f32 %v6846, %v6849
        %vm6851 = vweird.f32 %v6846
        %v6852 = vsel %vm6851, %v6846, %v6850
        %v6853 = vmul.f32 %v6815, %v6852
        %v6854 = vmul.f32 %v6817, %v6852
        %v6855 = vmul.f32 %v6819, %v6852
        %v6856 = vmul.f32 %v6821, %v6852
        %v6857 = vmul.f32 %v6823, %v6852
        %v6858 = vmul.f32 %v6825, %v6852
        %v6859 = vmul.f32 %v6827, %v6852
        %v6860 = vmul.f32 %v6829, %v6852
        %v6861 = vmul.f32 %v6831, %v6852
        %v6862 = vmul.f32 %v6833, %v6852
        %v6863 = vmul.f32 %v6835, %v6852
        %v6864 = vmul.f32 %v6837, %v6852
        %v6865 = vmul.f32 %v6839, %v6852
        %v6866 = vmul.f32 %v6841, %v6852
        %v6867 = vmul.f32 %v6843, %v6852
        %v6868 = vmul.f32 %v6845, %v6852
        %v6869 = vsub.f32 %v6798, %v6853
        %v6870 = vsub.f32 %v6799, %v6854
        %v6871 = vsub.f32 %v6800, %v6855
        %v6872 = vsub.f32 %v6801, %v6856
        %v6873 = vsub.f32 %v6802, %v6857
        %v6874 = vsub.f32 %v6803, %v6858
        %v6875 = vsub.f32 %v6804, %v6859
        %v6876 = vsub.f32 %v6805, %v6860
        %v6877 = vsub.f32 %v6806, %v6861
        %v6878 = vsub.f32 %v6807, %v6862
        %v6879 = vsub.f32 %v6808, %v6863
        %v6880 = vsub.f32 %v6809, %v6864
        %v6881 = vsub.f32 %v6810, %v6865
        %v6882 = vsub.f32 %v6811, %v6866
        %v6883 = vsub.f32 %v6812, %v6867
        %v6884 = vsub.f32 %v6813, %v6868
        %v6885 = vmul.f32 %v6869, %v6869
        %v6886 = vmul.f32 %v6870, %v6870
        %v6887 = vmul.f32 %v6871, %v6871
        %v6888 = vmul.f32 %v6872, %v6872
        %v6889 = vmul.f32 %v6873, %v6873
        %v6890 = vmul.f32 %v6874, %v6874
        %v6891 = vmul.f32 %v6875, %v6875
        %v6892 = vmul.f32 %v6876, %v6876
        %v6893 = vmul.f32 %v6877, %v6877
        %v6894 = vmul.f32 %v6878, %v6878
        %v6895 = vmul.f32 %v6879, %v6879
        %v6896 = vmul.f32 %v6880, %v6880
        %v6897 = vmul.f32 %v6881, %v6881
        %v6898 = vmul.f32 %v6882, %v6882
        %v6899 = vmul.f32 %v6883, %v6883
        %v6900 = vmul.f32 %v6884, %v6884
        %6901 = vadd.xlane.f32.xlu0 %v6885
        %v6902 = vpop.xlane.xlu0 %6901
        %6903 = vadd.xlane.f32.xlu0 %v6886
        %v6904 = vpop.xlane.xlu0 %6903
        %6905 = vadd.xlane.f32.xlu0 %v6887
        %v6906 = vpop.xlane.xlu0 %6905
        %6907 = vadd.xlane.f32.xlu0 %v6888
        %v6908 = vpop.xlane.xlu0 %6907
        %6909 = vadd.xlane.f32.xlu0 %v6889
        %v6910 = vpop.xlane.xlu0 %6909
        %6911 = vadd.xlane.f32.xlu0 %v6890
        %v6912 = vpop.xlane.xlu0 %6911
        %6913 = vadd.xlane.f32.xlu0 %v6891
        %v6914 = vpop.xlane.xlu0 %6913
        %6915 = vadd.xlane.f32.xlu0 %v6892
        %v6916 = vpop.xlane.xlu0 %6915
        %6917 = vadd.xlane.f32.xlu0 %v6893
        %v6918 = vpop.xlane.xlu0 %6917
        %6919 = vadd.xlane.f32.xlu0 %v6894
        %v6920 = vpop.xlane.xlu0 %6919
        %6921 = vadd.xlane.f32.xlu0 %v6895
        %v6922 = vpop.xlane.xlu0 %6921
        %6923 = vadd.xlane.f32.xlu0 %v6896
        %v6924 = vpop.xlane.xlu0 %6923
        %6925 = vadd.xlane.f32.xlu0 %v6897
        %v6926 = vpop.xlane.xlu0 %6925
        %6927 = vadd.xlane.f32.xlu0 %v6898
        %v6928 = vpop.xlane.xlu0 %6927
        %6929 = vadd.xlane.f32.xlu0 %v6899
        %v6930 = vpop.xlane.xlu0 %6929
        %6931 = vadd.xlane.f32.xlu0 %v6900
        %v6932 = vpop.xlane.xlu0 %6931
        %v6933 = vmul.f32 %v6902, %v6852
        %v6934 = vmul.f32 %v6904, %v6852
        %v6935 = vmul.f32 %v6906, %v6852
        %v6936 = vmul.f32 %v6908, %v6852
        %v6937 = vmul.f32 %v6910, %v6852
        %v6938 = vmul.f32 %v6912, %v6852
        %v6939 = vmul.f32 %v6914, %v6852
        %v6940 = vmul.f32 %v6916, %v6852
        %v6941 = vmul.f32 %v6918, %v6852
        %v6942 = vmul.f32 %v6920, %v6852
        %v6943 = vmul.f32 %v6922, %v6852
        %v6944 = vmul.f32 %v6924, %v6852
        %v6945 = vmul.f32 %v6926, %v6852
        %v6946 = vmul.f32 %v6928, %v6852
        %v6947 = vmul.f32 %v6930, %v6852
        %v6948 = vmul.f32 %v6932, %v6852
        %v6949 = vadd.f32 %v6933, 1e-05
        %v6950 = vadd.f32 %v6934, 1e-05
        %v6951 = vadd.f32 %v6935, 1e-05
        %v6952 = vadd.f32 %v6936, 1e-05
        %v6953 = vadd.f32 %v6937, 1e-05
        %v6954 = vadd.f32 %v6938, 1e-05
        %v6955 = vadd.f32 %v6939, 1e-05
        %v6956 = vadd.f32 %v6940, 1e-05
        %v6957 = vadd.f32 %v6941, 1e-05
        %v6958 = vadd.f32 %v6942, 1e-05
        %v6959 = vadd.f32 %v6943, 1e-05
        %v6960 = vadd.f32 %v6944, 1e-05
        %v6961 = vadd.f32 %v6945, 1e-05
        %v6962 = vadd.f32 %v6946, 1e-05
        %v6963 = vadd.f32 %v6947, 1e-05
        %v6964 = vadd.f32 %v6948, 1e-05
        %v6965 = vrsqrt.pop %v6949
        %v6966 = vmul.f32 %v6965, %v6949
        %v6967 = vmul.f32 %v6966, %v6965
        %v6968 = vmul.f32 0.5, %v6967
        %v6969 = vsub.f32 1.5, %v6968
        %v6970 = vmul.f32 %v6965, %v6969
        %vm6971 = vweird.f32 %v6949
        %vm6972 = vweird.f32 %v6965
        %vm6973 = vmor %vm6971, %vm6972
        %v6974 = vsel %vm6973, %v6965, %v6970
        %v6975 = vrsqrt.pop %v6950
        %v6976 = vmul.f32 %v6975, %v6950
        %v6977 = vmul.f32 %v6976, %v6975
        %v6978 = vmul.f32 0.5, %v6977
        %v6979 = vsub.f32 1.5, %v6978
        %v6980 = vmul.f32 %v6975, %v6979
        %vm6981 = vweird.f32 %v6950
        %vm6982 = vweird.f32 %v6975
        %vm6983 = vmor %vm6981, %vm6982
        %v6984 = vsel %vm6983, %v6975, %v6980
        %v6985 = vrsqrt.pop %v6951
        %v6986 = vmul.f32 %v6985, %v6951
        %v6987 = vmul.f32 %v6986, %v6985
        %v6988 = vmul.f32 0.5, %v6987
        %v6989 = vsub.f32 1.5, %v6988
        %v6990 = vmul.f32 %v6985, %v6989
        %vm6991 = vweird.f32 %v6951
        %vm6992 = vweird.f32 %v6985
        %vm6993 = vmor %vm6991, %vm6992
        %v6994 = vsel %vm6993, %v6985, %v6990
        %v6995 = vrsqrt.pop %v6952
        %v6996 = vmul.f32 %v6995, %v6952
        %v6997 = vmul.f32 %v6996, %v6995
        %v6998 = vmul.f32 0.5, %v6997
        %v6999 = vsub.f32 1.5, %v6998
        %v7000 = vmul.f32 %v6995, %v6999
        %vm7001 = vweird.f32 %v6952
        %vm7002 = vweird.f32 %v6995
        %vm7003 = vmor %vm7001, %vm7002
        %v7004 = vsel %vm7003, %v6995, %v7000
        %v7005 = vrsqrt.pop %v6953
        %v7006 = vmul.f32 %v7005, %v6953
        %v7007 = vmul.f32 %v7006, %v7005
        %v7008 = vmul.f32 0.5, %v7007
        %v7009 = vsub.f32 1.5, %v7008
        %v7010 = vmul.f32 %v7005, %v7009
        %vm7011 = vweird.f32 %v6953
        %vm7012 = vweird.f32 %v7005
        %vm7013 = vmor %vm7011, %vm7012
        %v7014 = vsel %vm7013, %v7005, %v7010
        %v7015 = vrsqrt.pop %v6954
        %v7016 = vmul.f32 %v7015, %v6954
        %v7017 = vmul.f32 %v7016, %v7015
        %v7018 = vmul.f32 0.5, %v7017
        %v7019 = vsub.f32 1.5, %v7018
        %v7020 = vmul.f32 %v7015, %v7019
        %vm7021 = vweird.f32 %v6954
        %vm7022 = vweird.f32 %v7015
        %vm7023 = vmor %vm7021, %vm7022
        %v7024 = vsel %vm7023, %v7015, %v7020
        %v7025 = vrsqrt.pop %v6955
        %v7026 = vmul.f32 %v7025, %v6955
        %v7027 = vmul.f32 %v7026, %v7025
        %v7028 = vmul.f32 0.5, %v7027
        %v7029 = vsub.f32 1.5, %v7028
        %v7030 = vmul.f32 %v7025, %v7029
        %vm7031 = vweird.f32 %v6955
        %vm7032 = vweird.f32 %v7025
        %vm7033 = vmor %vm7031, %vm7032
        %v7034 = vsel %vm7033, %v7025, %v7030
        %v7035 = vrsqrt.pop %v6956
        %v7036 = vmul.f32 %v7035, %v6956
        %v7037 = vmul.f32 %v7036, %v7035
        %v7038 = vmul.f32 0.5, %v7037
        %v7039 = vsub.f32 1.5, %v7038
        %v7040 = vmul.f32 %v7035, %v7039
        %vm7041 = vweird.f32 %v6956
        %vm7042 = vweird.f32 %v7035
        %vm7043 = vmor %vm7041, %vm7042
        %v7044 = vsel %vm7043, %v7035, %v7040
        %v7045 = vrsqrt.pop %v6957
        %v7046 = vmul.f32 %v7045, %v6957
        %v7047 = vmul.f32 %v7046, %v7045
        %v7048 = vmul.f32 0.5, %v7047
        %v7049 = vsub.f32 1.5, %v7048
        %v7050 = vmul.f32 %v7045, %v7049
        %vm7051 = vweird.f32 %v6957
        %vm7052 = vweird.f32 %v7045
        %vm7053 = vmor %vm7051, %vm7052
        %v7054 = vsel %vm7053, %v7045, %v7050
        %v7055 = vrsqrt.pop %v6958
        %v7056 = vmul.f32 %v7055, %v6958
        %v7057 = vmul.f32 %v7056, %v7055
        %v7058 = vmul.f32 0.5, %v7057
        %v7059 = vsub.f32 1.5, %v7058
        %v7060 = vmul.f32 %v7055, %v7059
        %vm7061 = vweird.f32 %v6958
        %vm7062 = vweird.f32 %v7055
        %vm7063 = vmor %vm7061, %vm7062
        %v7064 = vsel %vm7063, %v7055, %v7060
        %v7065 = vrsqrt.pop %v6959
        %v7066 = vmul.f32 %v7065, %v6959
        %v7067 = vmul.f32 %v7066, %v7065
        %v7068 = vmul.f32 0.5, %v7067
        %v7069 = vsub.f32 1.5, %v7068
        %v7070 = vmul.f32 %v7065, %v7069
        %vm7071 = vweird.f32 %v6959
        %vm7072 = vweird.f32 %v7065
        %vm7073 = vmor %vm7071, %vm7072
        %v7074 = vsel %vm7073, %v7065, %v7070
        %v7075 = vrsqrt.pop %v6960
        %v7076 = vmul.f32 %v7075, %v6960
        %v7077 = vmul.f32 %v7076, %v7075
        %v7078 = vmul.f32 0.5, %v7077
        %v7079 = vsub.f32 1.5, %v7078
        %v7080 = vmul.f32 %v7075, %v7079
        %vm7081 = vweird.f32 %v6960
        %vm7082 = vweird.f32 %v7075
        %vm7083 = vmor %vm7081, %vm7082
        %v7084 = vsel %vm7083, %v7075, %v7080
        %v7085 = vrsqrt.pop %v6961
        %v7086 = vmul.f32 %v7085, %v6961
        %v7087 = vmul.f32 %v7086, %v7085
        %v7088 = vmul.f32 0.5, %v7087
        %v7089 = vsub.f32 1.5, %v7088
        %v7090 = vmul.f32 %v7085, %v7089
        %vm7091 = vweird.f32 %v6961
        %vm7092 = vweird.f32 %v7085
        %vm7093 = vmor %vm7091, %vm7092
        %v7094 = vsel %vm7093, %v7085, %v7090
        %v7095 = vrsqrt.pop %v6962
        %v7096 = vmul.f32 %v7095, %v6962
        %v7097 = vmul.f32 %v7096, %v7095
        %v7098 = vmul.f32 0.5, %v7097
        %v7099 = vsub.f32 1.5, %v7098
        %v7100 = vmul.f32 %v7095, %v7099
        %vm7101 = vweird.f32 %v6962
        %vm7102 = vweird.f32 %v7095
        %vm7103 = vmor %vm7101, %vm7102
        %v7104 = vsel %vm7103, %v7095, %v7100
        %v7105 = vrsqrt.pop %v6963
        %v7106 = vmul.f32 %v7105, %v6963
        %v7107 = vmul.f32 %v7106, %v7105
        %v7108 = vmul.f32 0.5, %v7107
        %v7109 = vsub.f32 1.5, %v7108
        %v7110 = vmul.f32 %v7105, %v7109
        %vm7111 = vweird.f32 %v6963
        %vm7112 = vweird.f32 %v7105
        %vm7113 = vmor %vm7111, %vm7112
        %v7114 = vsel %vm7113, %v7105, %v7110
        %v7115 = vrsqrt.pop %v6964
        %v7116 = vmul.f32 %v7115, %v6964
        %v7117 = vmul.f32 %v7116, %v7115
        %v7118 = vmul.f32 0.5, %v7117
        %v7119 = vsub.f32 1.5, %v7118
        %v7120 = vmul.f32 %v7115, %v7119
        %vm7121 = vweird.f32 %v6964
        %vm7122 = vweird.f32 %v7115
        %vm7123 = vmor %vm7121, %vm7122
        %v7124 = vsel %vm7123, %v7115, %v7120
        %v7125 = vmul.f32 %v6869, %v6974
        %v7126 = vmul.f32 %v6870, %v6984
        %v7127 = vmul.f32 %v6871, %v6994
        %v7128 = vmul.f32 %v6872, %v7004
        %v7129 = vmul.f32 %v6873, %v7014
        %v7130 = vmul.f32 %v6874, %v7024
        %v7131 = vmul.f32 %v6875, %v7034
        %v7132 = vmul.f32 %v6876, %v7044
        %v7133 = vmul.f32 %v6877, %v7054
        %v7134 = vmul.f32 %v6878, %v7064
        %v7135 = vmul.f32 %v6879, %v7074
        %v7136 = vmul.f32 %v6880, %v7084
        %v7137 = vmul.f32 %v6881, %v7094
        %v7138 = vmul.f32 %v6882, %v7104
        %v7139 = vmul.f32 %v6883, %v7114
        %v7140 = vmul.f32 %v6884, %v7124
        %v7141 = vld [vmem:[%s8] sm:$0x1]
        %v7143 = vperm.slane %v7141, 0
        %v7145 = vmul.f32 %v7125, %v7143
        %v7146 = vmul.f32 %v7126, %v7143
        %v7147 = vmul.f32 %v7127, %v7143
        %v7148 = vmul.f32 %v7128, %v7143
        %v7149 = vmul.f32 %v7129, %v7143
        %v7150 = vmul.f32 %v7130, %v7143
        %v7151 = vmul.f32 %v7131, %v7143
        %v7152 = vmul.f32 %v7132, %v7143
        %v7153 = vmul.f32 %v7133, %v7143
        %v7154 = vmul.f32 %v7134, %v7143
        %v7155 = vmul.f32 %v7135, %v7143
        %v7156 = vmul.f32 %v7136, %v7143
        %v7157 = vmul.f32 %v7137, %v7143
        %v7158 = vmul.f32 %v7138, %v7143
        %v7159 = vmul.f32 %v7139, %v7143
        %v7160 = vmul.f32 %v7140, %v7143
        %v7161 = vld [vmem:[%s9] sm:$0x1]
        %v7163 = vperm.slane %v7161, 0
        %v7165 = vadd.f32 %v7145, %v7163
        %v7166 = vadd.f32 %v7146, %v7163
        %v7167 = vadd.f32 %v7147, %v7163
        %v7168 = vadd.f32 %v7148, %v7163
        %v7169 = vadd.f32 %v7149, %v7163
        %v7170 = vadd.f32 %v7150, %v7163
        %v7171 = vadd.f32 %v7151, %v7163
        %v7172 = vadd.f32 %v7152, %v7163
        %v7173 = vadd.f32 %v7153, %v7163
        %v7174 = vadd.f32 %v7154, %v7163
        %v7175 = vadd.f32 %v7155, %v7163
        %v7176 = vadd.f32 %v7156, %v7163
        %v7177 = vadd.f32 %v7157, %v7163
        %v7178 = vadd.f32 %v7158, %v7163
        %v7179 = vadd.f32 %v7159, %v7163
        %v7180 = vadd.f32 %v7160, %v7163
        %7181 = vst [vmem:[%s526] sm:$0xff] %v7165
        %7182 = vst [vmem:[%s526 + $0x8] sm:$0xff] %v7166
        %7183 = vst [vmem:[%s526 + $0x10] sm:$0xff] %v7167
        %7184 = vst [vmem:[%s526 + $0x18] sm:$0xff] %v7168
        %7185 = vst [vmem:[%s526 + $0x20] sm:$0xff] %v7169
        %7186 = vst [vmem:[%s526 + $0x28] sm:$0xff] %v7170
        %7187 = vst [vmem:[%s526 + $0x30] sm:$0xff] %v7171
        %7188 = vst [vmem:[%s526 + $0x38] sm:$0xff] %v7172
        %7189 = vst [vmem:[%s526 + $0x40] sm:$0xff] %v7173
        %7190 = vst [vmem:[%s526 + $0x48] sm:$0xff] %v7174
        %7191 = vst [vmem:[%s526 + $0x50] sm:$0xff] %v7175
        %7192 = vst [vmem:[%s526 + $0x58] sm:$0xff] %v7176
        %7193 = vst [vmem:[%s526 + $0x60] sm:$0xff] %v7177
        %7194 = vst [vmem:[%s526 + $0x68] sm:$0xff] %v7178
        %7195 = vst [vmem:[%s526 + $0x70] sm:$0xff] %v7179
        %7196 = vst [vmem:[%s526 + $0x78] sm:$0xff] %v7180
        %s7197 = sand.u32 %s265, 1
        %s7198 = scalar_lea.sflag [#allocation4], %s7197
        %s7199 = sand.u32 %s265, 1
        %s7200 = smul.addr %s7199, 128
        %s7201 = scalar_lea.vmem [#allocation14], %s7200
        // Predicated region
        $region89: #{tpu_custom_call.1} parent=59 // pred_check
          %p7202 = pneg %p275
        $region90: #{tpu_custom_call.1} parent=59 // pred_check_branch
          %7204 = sbr.rel (%p7202) target = $region92
        $region91: #{tpu_custom_call.1} parent=59 // pred_region
          %7206 = vsyncadd %s7198, 0
          %s7207 = smul.addr %s32, 16
          %s7208 = smul.addr %s7207, 8
          %s7209 = scalar_lea.hbm %s10, %s7208
          %s7210 = sshll.u32 %s7201, 4
          %s7211 = int_to_ptr.vmem [resolvable:$true] %s7210
          %s7212 = sshll.u32 %s7209, 4
          %s7213 = int_to_ptr.hbm [resolvable:$true] %s7212
          %7218 = dma.vmem_to_hbm [thread:$0]  %s7211, 2048, %s7213, %s7198, 128, 128, 8
        $region92: #{tpu_custom_call.1} parent=59 // pred_fallthru
          _
      $region60: #{tpu_custom_call.1} parent=5 // pred_fallthru
        _
      %p7219 = scmp.le.s32.totalorder 2, %s27
      // Predicated region
      $region93: #{tpu_custom_call.1} parent=5 // pred_check
        %p7220 = pneg %p7219
      $region94: #{tpu_custom_call.1} parent=5 // pred_check_branch
        %7222 = sbr.rel (%p7220) target = $region96
      $region95: #{tpu_custom_call.1} parent=5 // pred_region
        %s7223 = ssub.s32 %s27, 2
        // Predicated region
        $region97: #{tpu_custom_call.1} parent=95 // pred_check
          %p7224 = pneg %p281
        $region98: #{tpu_custom_call.1} parent=95 // pred_check_branch
          %7226 = sbr.rel (%p7224) target = $region100
        $region99: #{tpu_custom_call.1} parent=95 // pred_region
          %s7227 = sand.u32 %s266, 1
          %s7228 = scalar_lea.sflag [#allocation4], %s7227
          %s7229 = sand.u32 %s266, 1
          %s7230 = smul.addr %s7229, 128
          %s7231 = scalar_lea.vmem [#allocation14], %s7230
          %7233 = dma.done %s7228, 2048
        $region100: #{tpu_custom_call.1} parent=95 // pred_fallthru
          _
      $region96: #{tpu_custom_call.1} parent=5 // pred_fallthru
        _
    $region6: #{tpu_custom_call.1} parent=1 // loop_footer
      %s31 = sadd.s32 1, %s27
    $region7: #{tpu_custom_call.1} parent=1 // loop_footer_branch
      %26 = sbr.rel target = $region3
    $region8: #{tpu_custom_call.1} parent=1 // loop_exit
      _
    %7234 = vsyncpa [#allocation3], 1
    %s7235 = scalar_lea.sflag [#allocation3], 1
    %7236 = vsyncpa %s7235, 1
    %7237 = vsyncpa [#allocation6], 1
    %s7238 = scalar_lea.sflag [#allocation6], 1
    %7239 = vsyncpa %s7238, 1
    %7240 = vsyncpa [#allocation9], 1
    %7241 = vsyncpa [#allocation12], 1
    %7242 = vsyncpa [#allocation4], 1
    %s7243 = scalar_lea.sflag [#allocation4], 1
    %7244 = vsyncpa %s7243, 1

</llo_original>
